<compile_context>
chip_gen: v6e
topology: v6e:2x2x1
jax: 0.10.0
libtpu: 0.0.40
codegen_flags: <defaults>
</compile_context>

<pallas_src>
import functools
import math

import jax
import jax.numpy as jnp
import numpy as np
from jax.experimental import pallas as pl
from jax.experimental.pallas import tpu as pltpu


# ------------------------- fused encoder-stack kernel ------------------------


def encoder_stack_kernel(
    x_ref,      # (1, S, E)  f32   embeddings + positional enc, batch element b
    wqkv_ref,   # (E, 3E)    bf16  fused Wq|Wk|Wv of layer l (L axis squeezed)
    wo_ref,     # (E, E)     bf16  fc_out weight (already transposed to (in,out))
    w1_ref,     # (E, H)     bf16  FFN fc1
    w2_ref,     # (H, E)     bf16  FFN fc2
    vec_ref,    # (1, 9E+H)  f32   packed biases + LayerNorm params of layer l
    o_ref,      # (1, S, E)  f32   final output (written only at l == L-1)
    resid_ref,  # (S, E)     f32   VMEM scratch: residual carried across layers
    *,
    heads,
    scale,
):
    l = pl.program_id(1)

    # Load the residual stream from HBM only once per batch element.
    @pl.when(l == 0)
    def _init_residual():
        resid_ref[...] = x_ref[0]

    x = resid_ref[...]                      # (S, E) f32
    S, E = x.shape
    H = w1_ref.shape[-1]
    Dh = E // heads
    Sh = S // heads

    # ---- packed per-layer 1-D params (single slab, static lane slices) ----
    bqkv = vec_ref[:, 0:3 * E]              # (1, 3E)
    bo   = vec_ref[:, 3 * E:4 * E]
    ln1g = vec_ref[:, 4 * E:5 * E]
    ln1b = vec_ref[:, 5 * E:6 * E]
    b1   = vec_ref[:, 6 * E:6 * E + H]
    b2   = vec_ref[:, 6 * E + H:7 * E + H]
    ln2g = vec_ref[:, 7 * E + H:8 * E + H]
    ln2b = vec_ref[:, 8 * E + H:9 * E + H]

    # ---- fused Q/K/V projection: one wide MXU matmul (lane width 3E) ----
    x_bf = x.astype(jnp.bfloat16)
    qkv = jnp.dot(x_bf, wqkv_ref[...], preferred_element_type=jnp.float32) + bqkv
    q = qkv[:, :E]
    k = qkv[:, E:2 * E]
    v = qkv[:, 2 * E:]

    # ---- selection matrices reproducing torch's no-permute head merge ----
    # Reference: out = einsum('bhqk,bhkd->bhqd',...).reshape(b, S, h*Dh), i.e.
    # Y[hh*Sh + t, :] = sum_j o_hh[heads*t + j, :] @ Wo[j*Dh:(j+1)*Dh, :].
    # sel[j] @ o_hh picks rows j::heads of o_hh entirely on the MXU (no
    # lane-crossing concat, no strided relayout).
    t_idx = jax.lax.broadcasted_iota(jnp.int32, (Sh, S), 0)
    q_idx = jax.lax.broadcasted_iota(jnp.int32, (Sh, S), 1)
    sel = [(q_idx == heads * t_idx + j).astype(jnp.bfloat16) for j in range(heads)]
    wo_slices = [wo_ref[j * Dh:(j + 1) * Dh, :] for j in range(heads)]  # hoisted

    # ---- multi-head self-attention, merge folded into the Wo projection ----
    attn_blocks = []
    for hh in range(heads):
        lo = hh * Dh
        qh = (q[:, lo:lo + Dh] * scale).astype(jnp.bfloat16)   # pre-scaled Q
        kh = k[:, lo:lo + Dh].astype(jnp.bfloat16)
        vh = v[:, lo:lo + Dh].astype(jnp.bfloat16)

        # scores via dot_general on the shared last axis (no kh.T transpose)
        scores = jax.lax.dot_general(
            qh, kh, (((1,), (1,)), ((), ())),
            preferred_element_type=jnp.float32)                # (S, S) f32

        s_max = jnp.max(scores, axis=-1, keepdims=True)
        p_un = jnp.exp(scores - s_max)
        denom = jnp.sum(p_un, axis=-1, keepdims=True)
        p = p_un * pl.reciprocal(denom, approx=True)           # EUP reciprocal

        oh = jnp.dot(p.astype(jnp.bfloat16), vh,
                     preferred_element_type=jnp.float32)       # (S, Dh) f32
        oh_bf = oh.astype(jnp.bfloat16)

        acc = jnp.zeros((Sh, E), jnp.float32)
        for j in range(heads):
            rows = jnp.dot(sel[j], oh_bf,
                           preferred_element_type=jnp.float32)  # rows j::heads
            acc = acc + jnp.dot(rows.astype(jnp.bfloat16), wo_slices[j],
                                preferred_element_type=jnp.float32)
        attn_blocks.append(acc)

    # sublane-axis concat of disjoint row blocks (cheap), then fc_out bias
    attn = jnp.concatenate(attn_blocks, axis=0) + bo            # (S, E) f32

    # ---- add_norm1: x + LayerNorm(attn)   (dropout == identity) ----
    mean1 = jnp.mean(attn, axis=-1, keepdims=True)
    c1 = attn - mean1
    var1 = jnp.mean(c1 * c1, axis=-1, keepdims=True)
    x1 = x + c1 * jax.lax.rsqrt(var1 + 1e-5) * ln1g + ln1b

    # ---- feed-forward: relu(x1 @ w1 + b1) @ w2 + b2 ----
    h1 = jnp.dot(x1.astype(jnp.bfloat16), w1_ref[...],
                 preferred_element_type=jnp.float32) + b1
    h1 = jnp.maximum(h1, 0.0)
    y = jnp.dot(h1.astype(jnp.bfloat16), w2_ref[...],
                preferred_element_type=jnp.float32) + b2

    # ---- add_norm2: x1 + LayerNorm(y) ----
    mean2 = jnp.mean(y, axis=-1, keepdims=True)
    c2 = y - mean2
    var2 = jnp.mean(c2 * c2, axis=-1, keepdims=True)
    out = x1 + c2 * jax.lax.rsqrt(var2 + 1e-5) * ln2g + ln2b

    resid_ref[...] = out

    @pl.when(l == pl.num_programs(1) - 1)
    def _store_output():
        o_ref[0] = out


# --------------------------------- wrapper ------------------------------------


def _vmem_limit_bytes(S, E, H, V):
    """Explicit scoped-VMEM budget (review item): 2-deep pipeline buffers +
    residual scratch + an in-kernel working-set allowance."""
    bf16, f32 = 2, 4
    weight_block = (E * 3 * E + E * E + E * H + H * E) * bf16 + V * f32
    act_block = S * E * f32                           # input block == output block
    pipelined = 2 * (weight_block + 2 * act_block)    # default double buffering
    scratch = S * E * f32
    working = 16 * S * E * f32 + 4 * S * S * f32      # qkv/ffn temporaries, scores
    est = pipelined + scratch + working
    # TODO(synk): at spec scale (E=1024, long S) on v7x (64 MiB VMEM) re-derive
    # this and tile the KV axis flash-style instead of full (S,S) scores.
    return int(min(max(est, 32 * 1024 * 1024), 64 * 1024 * 1024))


def pallas_encoder_stack(x, params, heads):
    B, S, E = x.shape
    L = params["wqkv"].shape[0]
    H = params["w1"].shape[-1]
    V = params["vec"].shape[-1]
    assert E % heads == 0, "embed_size must be divisible by heads"
    assert S % heads == 0, "seq_len must be divisible by heads (torch reshape path)"
    assert S % 8 == 0 and E % 128 == 0 and H % 128 == 0, "need (8,128)-aligned tiles"
    scale = 1.0 / math.sqrt(E // heads)

    kern = functools.partial(encoder_stack_kernel, heads=heads, scale=scale)

    act_spec = pl.BlockSpec((1, S, E), lambda b, l: (b, 0, 0))

    def layer_spec(a):
        # leading L axis squeezed; block follows the inner (layer) grid axis so
        # layer l+1's weights are prefetched while layer l computes.
        return pl.BlockSpec((None,) + a.shape[1:], lambda b, l: (l, 0, 0))

    return pl.pallas_call(
        kern,
        out_shape=jax.ShapeDtypeStruct((B, S, E), jnp.float32),
        grid=(B, L),                                 # layer axis innermost
        in_specs=[
            act_spec,
            layer_spec(params["wqkv"]),
            layer_spec(params["wo"]),
            layer_spec(params["w1"]),
            layer_spec(params["w2"]),
            layer_spec(params["vec"]),
        ],
        out_specs=act_spec,
        scratch_shapes=[pltpu.VMEM((S, E), jnp.float32)],   # residual stream
        compiler_params=pltpu.CompilerParams(
            dimension_semantics=("parallel", "arbitrary"),  # batch across TCs (v7x)
            vmem_limit_bytes=_vmem_limit_bytes(S, E, H, V),
        ),
    )(x, params["wqkv"], params["wo"], params["w1"], params["w2"], params["vec"])


# ------------------------------ model pieces ----------------------------------


def make_pos_table(max_len, d_model):
    # identical construction to the PyTorch PositionalEncoding
    pos_table = np.array(
        [
            [pos / np.power(10000, 2 * i / d_model) for i in range(d_model)]
            if pos != 0
            else np.zeros(d_model)
            for pos in range(max_len)
        ]
    )
    pos_table[1:, 0::2] = np.sin(pos_table[1:, 0::2])
    pos_table[1:, 1::2] = np.cos(pos_table[1:, 1::2])
    return jnp.asarray(pos_table, dtype=jnp.float32)


def init_encoder_params(key, vocab_size, num_layers, embed_size, heads, ffn_hidden):
    E, H, L = embed_size, ffn_hidden, num_layers
    keys = jax.random.split(key, 1 + L)
    emb = 0.02 * jax.random.normal(keys[0], (vocab_size, E), jnp.float32)
    s_attn = 1.0 / math.sqrt(E)
    s_f1 = 1.0 / math.sqrt(E)
    s_f2 = 1.0 / math.sqrt(H)

    wqkv_l, wo_l, w1_l, w2_l, vec_l = [], [], [], [], []
    for layer in range(L):
        ks = jax.random.split(keys[1 + layer], 8)
        wq = s_attn * jax.random.normal(ks[0], (E, E), jnp.float32)
        wk = s_attn * jax.random.normal(ks[1], (E, E), jnp.float32)
        wv = s_attn * jax.random.normal(ks[2], (E, E), jnp.float32)
        wqkv_l.append(jnp.concatenate([wq, wk, wv], axis=1).astype(jnp.bfloat16))
        wo_l.append((s_attn * jax.random.normal(ks[3], (E, E), jnp.float32))
                    .astype(jnp.bfloat16))
        w1_l.append((s_f1 * jax.random.normal(ks[4], (E, H), jnp.float32))
                    .astype(jnp.bfloat16))
        w2_l.append((s_f2 * jax.random.normal(ks[6], (H, E), jnp.float32))
                    .astype(jnp.bfloat16))
        # packed slab: [bqkv | bo | ln1_g | ln1_b | b1 | b2 | ln2_g | ln2_b]
        vec_l.append(jnp.concatenate([
            jnp.zeros((3 * E,), jnp.float32),                       # bqkv
            jnp.zeros((E,), jnp.float32),                           # bo
            jnp.ones((E,), jnp.float32),                            # ln1 gamma
            jnp.zeros((E,), jnp.float32),                           # ln1 beta
            0.01 * jax.random.normal(ks[5], (H,), jnp.float32),     # b1
            0.01 * jax.random.normal(ks[7], (E,), jnp.float32),     # b2
            jnp.ones((E,), jnp.float32),                            # ln2 gamma
            jnp.zeros((E,), jnp.float32),                           # ln2 beta
        ])[None, :])

    return {
        "emb": emb,
        "wqkv": jnp.stack(wqkv_l),          # (L, E, 3E) bf16
        "wo": jnp.stack(wo_l),              # (L, E, E)  bf16
        "w1": jnp.stack(w1_l),              # (L, E, H)  bf16
        "w2": jnp.stack(w2_l),              # (L, H, E)  bf16
        "vec": jnp.stack(vec_l),            # (L, 1, 9E+H) f32
    }


def encoder_forward(params, token_ids, heads, pos_table):
    # glue: embedding gather + positional encoding add (dropout == identity)
    x = jnp.take(params["emb"], token_ids, axis=0)           # (B, S, E)
    S = token_ids.shape[1]
    x = x + pos_table[:S, :][None, :, :]
    # Reference Encoder.forward returns None; we return the final activations.
    return pallas_encoder_stack(x, params, heads)


# ---------------------------------- main ---------------------------------------

if __name__ == "__main__":
    # small shapes consistent with the module (scaled-down, lane-aligned)
    vocab_size = 50
    num_layers = 2
    embed_size = 256      # multiple of 128 -> dense lanes (spec: 1024)
    heads = 4             # head_dim = 64 (spec: 256)
    ffn_hidden = 512      # keeps the 2x ratio of the spec's 2048 @ 1024
    batch = 2             # even -> both v7x TensorCores get balanced work
    seq = 128             # multiple of 8 and of heads (spec: 192)

    key = jax.random.PRNGKey(0)
    pkey, ikey = jax.random.split(key)
    params = init_encoder_params(
        pkey, vocab_size, num_layers, embed_size, heads, ffn_hidden
    )
    pos_table = make_pos_table(max_len=256, d_model=embed_size)

    token_ids = jax.random.randint(ikey, (batch, seq), 0, vocab_size, dtype=jnp.int32)

    fwd = jax.jit(functools.partial(encoder_forward, heads=heads, pos_table=pos_table))
    out = fwd(params, token_ids)
    jax.block_until_ready(out)

    assert out.shape == (batch, seq, embed_size)
    assert bool(jnp.all(jnp.isfinite(out)))
    print("KERNEL_OK")
</pallas_src>

<mosaic_0001>
module attributes {stable_mosaic.version = 11 : i64} {
  func.func @encoder_stack_kernel(%arg0: i32, %arg1: i32, %arg2: memref<1x128x256xf32, #tpu.memory_space<vmem>>, %arg3: memref<1x256x768xbf16, #tpu.memory_space<vmem>>, %arg4: memref<1x256x256xbf16, #tpu.memory_space<vmem>>, %arg5: memref<1x256x512xbf16, #tpu.memory_space<vmem>>, %arg6: memref<1x512x256xbf16, #tpu.memory_space<vmem>>, %arg7: memref<1x1x2816xf32, #tpu.memory_space<vmem>>, %arg8: memref<1x128x256xf32, #tpu.memory_space<vmem>>, %arg9: memref<128x256xf32, #tpu.memory_space<vmem>>) attributes {dimension_semantics = [#tpu.dimension_semantics<parallel>, #tpu.dimension_semantics<arbitrary>], iteration_bounds = array<i64: 2, 2>, scalar_prefetch = 0 : i64, scratch_operands = 1 : i64, tpu.core_type = #tpu.core_type<tc>, window_params = [{transform_indices = @transform_0, window_bounds = array<i64: 1, 128, 256>}, {transform_indices = @transform_1, window_bounds = array<i64: 1, 256, 768>}, {transform_indices = @transform_2, window_bounds = array<i64: 1, 256, 256>}, {transform_indices = @transform_3, window_bounds = array<i64: 1, 256, 512>}, {transform_indices = @transform_4, window_bounds = array<i64: 1, 512, 256>}, {transform_indices = @transform_5, window_bounds = array<i64: 1, 1, 2816>}, {transform_indices = @transform_6, window_bounds = array<i64: 1, 128, 256>}]} {
    %c0_i32 = arith.constant 0 : i32
    %0 = arith.cmpi eq, %arg1, %c0_i32 : i32
    %1 = arith.extui %0 : i1 to i32
    %c0_i32_0 = arith.constant 0 : i32
    %2 = arith.cmpi ne, %1, %c0_i32_0 : i32
    scf.if %2 {
      %c0_114 = arith.constant 0 : index
      %c0_115 = arith.constant 0 : index
      %c0_116 = arith.constant 0 : index
      %290 = vector.load %arg2[%c0_114, %c0_115, %c0_116] : memref<1x128x256xf32, #tpu.memory_space<vmem>>, vector<1x128x256xf32>
      %291 = vector.shape_cast %290 : vector<1x128x256xf32> to vector<128x256xf32>
      %c0_117 = arith.constant 0 : index
      %c0_118 = arith.constant 0 : index
      %292 = vector.load %arg9[%c0_117, %c0_118] : memref<128x256xf32, #tpu.memory_space<vmem>>, vector<128x256xf32>
      tpu.vector_store %arg9[%c0_117, %c0_118], %291 {strides = array<i32>} : memref<128x256xf32, #tpu.memory_space<vmem>>, vector<128x256xf32>,
    } else {
    }
    %c0 = arith.constant 0 : index
    %c0_1 = arith.constant 0 : index
    %3 = vector.load %arg9[%c0, %c0_1] : memref<128x256xf32, #tpu.memory_space<vmem>>, vector<128x256xf32>
    %c0_2 = arith.constant 0 : index
    %c0_3 = arith.constant 0 : index
    %c0_4 = arith.constant 0 : index
    %4 = vector.load %arg7[%c0_2, %c0_3, %c0_4] : memref<1x1x2816xf32, #tpu.memory_space<vmem>>, vector<1x1x768xf32>
    %5 = vector.shape_cast %4 : vector<1x1x768xf32> to vector<1x768xf32>
    %c0_5 = arith.constant 0 : index
    %c0_6 = arith.constant 0 : index
    %c768 = arith.constant 768 : index
    %6 = vector.load %arg7[%c0_5, %c0_6, %c768] : memref<1x1x2816xf32, #tpu.memory_space<vmem>>, vector<1x1x256xf32>
    %7 = vector.shape_cast %6 : vector<1x1x256xf32> to vector<1x256xf32>
    %c0_7 = arith.constant 0 : index
    %c0_8 = arith.constant 0 : index
    %c1024 = arith.constant 1024 : index
    %8 = vector.load %arg7[%c0_7, %c0_8, %c1024] : memref<1x1x2816xf32, #tpu.memory_space<vmem>>, vector<1x1x256xf32>
    %9 = vector.shape_cast %8 : vector<1x1x256xf32> to vector<1x256xf32>
    %c0_9 = arith.constant 0 : index
    %c0_10 = arith.constant 0 : index
    %c1280 = arith.constant 1280 : index
    %10 = vector.load %arg7[%c0_9, %c0_10, %c1280] : memref<1x1x2816xf32, #tpu.memory_space<vmem>>, vector<1x1x256xf32>
    %11 = vector.shape_cast %10 : vector<1x1x256xf32> to vector<1x256xf32>
    %c0_11 = arith.constant 0 : index
    %c0_12 = arith.constant 0 : index
    %c1536 = arith.constant 1536 : index
    %12 = vector.load %arg7[%c0_11, %c0_12, %c1536] : memref<1x1x2816xf32, #tpu.memory_space<vmem>>, vector<1x1x512xf32>
    %13 = vector.shape_cast %12 : vector<1x1x512xf32> to vector<1x512xf32>
    %c0_13 = arith.constant 0 : index
    %c0_14 = arith.constant 0 : index
    %c2048 = arith.constant 2048 : index
    %14 = vector.load %arg7[%c0_13, %c0_14, %c2048] : memref<1x1x2816xf32, #tpu.memory_space<vmem>>, vector<1x1x256xf32>
    %15 = vector.shape_cast %14 : vector<1x1x256xf32> to vector<1x256xf32>
    %c0_15 = arith.constant 0 : index
    %c0_16 = arith.constant 0 : index
    %c2304 = arith.constant 2304 : index
    %16 = vector.load %arg7[%c0_15, %c0_16, %c2304] : memref<1x1x2816xf32, #tpu.memory_space<vmem>>, vector<1x1x256xf32>
    %17 = vector.shape_cast %16 : vector<1x1x256xf32> to vector<1x256xf32>
    %c0_17 = arith.constant 0 : index
    %c0_18 = arith.constant 0 : index
    %c2560 = arith.constant 2560 : index
    %18 = vector.load %arg7[%c0_17, %c0_18, %c2560] : memref<1x1x2816xf32, #tpu.memory_space<vmem>>, vector<1x1x256xf32>
    %19 = vector.shape_cast %18 : vector<1x1x256xf32> to vector<1x256xf32>
    %20 = arith.truncf %3 : vector<128x256xf32> to vector<128x256xbf16>
    %c0_19 = arith.constant 0 : index
    %c0_20 = arith.constant 0 : index
    %c0_21 = arith.constant 0 : index
    %21 = vector.load %arg3[%c0_19, %c0_20, %c0_21] : memref<1x256x768xbf16, #tpu.memory_space<vmem>>, vector<1x256x768xbf16>
    %22 = vector.shape_cast %21 : vector<1x256x768xbf16> to vector<256x768xbf16>
    %cst = arith.constant dense<0.000000e+00> : vector<128x768xf32>
    %23 = tpu.matmul %20, %22, %cst {dimension_numbers = #tpu.dot_dimension_numbers<[1], [0], [0], [1], [0, 0, 1, 1], [], []>} : vector<128x256xbf16>, vector<256x768xbf16>, vector<128x768xf32> -> vector<128x768xf32>
    %24 = vector.broadcast %5 : vector<1x768xf32> to vector<128x768xf32>
    %25 = arith.addf %23, %24 : vector<128x768xf32>
    %26 = vector.extract_strided_slice %25 {offsets = [0, 0], sizes = [128, 256], strides = [1, 1]} : vector<128x768xf32> to vector<128x256xf32>
    %27 = vector.extract_strided_slice %25 {offsets = [0, 256], sizes = [128, 256], strides = [1, 1]} : vector<128x768xf32> to vector<128x256xf32>
    %28 = vector.extract_strided_slice %25 {offsets = [0, 512], sizes = [128, 256], strides = [1, 1]} : vector<128x768xf32> to vector<128x256xf32>
    %29 = tpu.iota {dimensions = array<i32: 0>} : vector<32x128xi32>
    %30 = tpu.iota {dimensions = array<i32: 1>} : vector<32x128xi32>
    %c4_i32 = arith.constant 4 : i32
    %31 = vector.broadcast %c4_i32 : i32 to vector<32x128xi32>
    %32 = arith.muli %31, %29 : vector<32x128xi32>
    %c0_i32_22 = arith.constant 0 : i32
    %33 = vector.broadcast %c0_i32_22 : i32 to vector<32x128xi32>
    %34 = arith.addi %32, %33 : vector<32x128xi32>
    %35 = arith.cmpi eq, %30, %34 : vector<32x128xi32>
    %36 = arith.extui %35 : vector<32x128xi1> to vector<32x128xi32>
    %37 = arith.sitofp %36 : vector<32x128xi32> to vector<32x128xf32>
    %38 = arith.truncf %37 : vector<32x128xf32> to vector<32x128xbf16>
    %c4_i32_23 = arith.constant 4 : i32
    %39 = vector.broadcast %c4_i32_23 : i32 to vector<32x128xi32>
    %40 = arith.muli %39, %29 : vector<32x128xi32>
    %c1_i32 = arith.constant 1 : i32
    %41 = vector.broadcast %c1_i32 : i32 to vector<32x128xi32>
    %42 = arith.addi %40, %41 : vector<32x128xi32>
    %43 = arith.cmpi eq, %30, %42 : vector<32x128xi32>
    %44 = arith.extui %43 : vector<32x128xi1> to vector<32x128xi32>
    %45 = arith.sitofp %44 : vector<32x128xi32> to vector<32x128xf32>
    %46 = arith.truncf %45 : vector<32x128xf32> to vector<32x128xbf16>
    %c4_i32_24 = arith.constant 4 : i32
    %47 = vector.broadcast %c4_i32_24 : i32 to vector<32x128xi32>
    %48 = arith.muli %47, %29 : vector<32x128xi32>
    %c2_i32 = arith.constant 2 : i32
    %49 = vector.broadcast %c2_i32 : i32 to vector<32x128xi32>
    %50 = arith.addi %48, %49 : vector<32x128xi32>
    %51 = arith.cmpi eq, %30, %50 : vector<32x128xi32>
    %52 = arith.extui %51 : vector<32x128xi1> to vector<32x128xi32>
    %53 = arith.sitofp %52 : vector<32x128xi32> to vector<32x128xf32>
    %54 = arith.truncf %53 : vector<32x128xf32> to vector<32x128xbf16>
    %c4_i32_25 = arith.constant 4 : i32
    %55 = vector.broadcast %c4_i32_25 : i32 to vector<32x128xi32>
    %56 = arith.muli %55, %29 : vector<32x128xi32>
    %c3_i32 = arith.constant 3 : i32
    %57 = vector.broadcast %c3_i32 : i32 to vector<32x128xi32>
    %58 = arith.addi %56, %57 : vector<32x128xi32>
    %59 = arith.cmpi eq, %30, %58 : vector<32x128xi32>
    %60 = arith.extui %59 : vector<32x128xi1> to vector<32x128xi32>
    %61 = arith.sitofp %60 : vector<32x128xi32> to vector<32x128xf32>
    %62 = arith.truncf %61 : vector<32x128xf32> to vector<32x128xbf16>
    %c0_26 = arith.constant 0 : index
    %c0_27 = arith.constant 0 : index
    %c0_28 = arith.constant 0 : index
    %63 = vector.load %arg4[%c0_26, %c0_27, %c0_28] : memref<1x256x256xbf16, #tpu.memory_space<vmem>>, vector<1x64x256xbf16>
    %64 = vector.shape_cast %63 : vector<1x64x256xbf16> to vector<64x256xbf16>
    %c0_29 = arith.constant 0 : index
    %c64 = arith.constant 64 : index
    %c0_30 = arith.constant 0 : index
    %65 = vector.load %arg4[%c0_29, %c64, %c0_30] : memref<1x256x256xbf16, #tpu.memory_space<vmem>>, vector<1x64x256xbf16>
    %66 = vector.shape_cast %65 : vector<1x64x256xbf16> to vector<64x256xbf16>
    %c0_31 = arith.constant 0 : index
    %c128 = arith.constant 128 : index
    %c0_32 = arith.constant 0 : index
    %67 = vector.load %arg4[%c0_31, %c128, %c0_32] : memref<1x256x256xbf16, #tpu.memory_space<vmem>>, vector<1x64x256xbf16>
    %68 = vector.shape_cast %67 : vector<1x64x256xbf16> to vector<64x256xbf16>
    %c0_33 = arith.constant 0 : index
    %c192 = arith.constant 192 : index
    %c0_34 = arith.constant 0 : index
    %69 = vector.load %arg4[%c0_33, %c192, %c0_34] : memref<1x256x256xbf16, #tpu.memory_space<vmem>>, vector<1x64x256xbf16>
    %70 = vector.shape_cast %69 : vector<1x64x256xbf16> to vector<64x256xbf16>
    %71 = vector.extract_strided_slice %26 {offsets = [0, 0], sizes = [128, 64], strides = [1, 1]} : vector<128x256xf32> to vector<128x64xf32>
    %cst_35 = arith.constant 1.250000e-01 : f32
    %72 = vector.broadcast %cst_35 : f32 to vector<128x64xf32>
    %73 = arith.mulf %71, %72 : vector<128x64xf32>
    %74 = arith.truncf %73 : vector<128x64xf32> to vector<128x64xbf16>
    %75 = vector.extract_strided_slice %27 {offsets = [0, 0], sizes = [128, 64], strides = [1, 1]} : vector<128x256xf32> to vector<128x64xf32>
    %76 = arith.truncf %75 : vector<128x64xf32> to vector<128x64xbf16>
    %77 = vector.extract_strided_slice %28 {offsets = [0, 0], sizes = [128, 64], strides = [1, 1]} : vector<128x256xf32> to vector<128x64xf32>
    %78 = arith.truncf %77 : vector<128x64xf32> to vector<128x64xbf16>
    %cst_36 = arith.constant dense<0.000000e+00> : vector<128x128xf32>
    %79 = tpu.matmul %74, %76, %cst_36 {dimension_numbers = #tpu.dot_dimension_numbers<[1], [1], [0], [0], [0, 0, 1, 0], [], []>} : vector<128x64xbf16>, vector<128x64xbf16>, vector<128x128xf32> -> vector<128x128xf32>
    %cst_37 = arith.constant dense<0xFF800000> : vector<128xf32>
    %80 = vector.multi_reduction <maximumf>, %79, %cst_37 [1] : vector<128x128xf32> to vector<128xf32>
    %81 = vector.shape_cast %80 : vector<128xf32> to vector<128x1xf32>
    %82 = vector.broadcast %81 : vector<128x1xf32> to vector<128x128xf32>
    %83 = arith.subf %79, %82 : vector<128x128xf32>
    %84 = math.exp %83 : vector<128x128xf32>
    %cst_38 = arith.constant dense<0.000000e+00> : vector<128xf32>
    %85 = vector.multi_reduction <add>, %84, %cst_38 [1] : vector<128x128xf32> to vector<128xf32>
    %86 = vector.shape_cast %85 : vector<128xf32> to vector<128x1xf32>
    %87 = tpu.reciprocal %86 {approx = true} : vector<128x1xf32> -> vector<128x1xf32>
    %88 = vector.broadcast %87 : vector<128x1xf32> to vector<128x128xf32>
    %89 = arith.mulf %84, %88 : vector<128x128xf32>
    %90 = arith.truncf %89 : vector<128x128xf32> to vector<128x128xbf16>
    %cst_39 = arith.constant dense<0.000000e+00> : vector<128x64xf32>
    %91 = tpu.matmul %90, %78, %cst_39 {dimension_numbers = #tpu.dot_dimension_numbers<[1], [0], [0], [1], [0, 0, 1, 1], [], []>} : vector<128x128xbf16>, vector<128x64xbf16>, vector<128x64xf32> -> vector<128x64xf32>
    %92 = arith.truncf %91 : vector<128x64xf32> to vector<128x64xbf16>
    %cst_40 = arith.constant 0.000000e+00 : f32
    %93 = vector.broadcast %cst_40 : f32 to vector<32x256xf32>
    %cst_41 = arith.constant dense<0.000000e+00> : vector<32x64xf32>
    %94 = tpu.matmul %38, %92, %cst_41 {dimension_numbers = #tpu.dot_dimension_numbers<[1], [0], [0], [1], [0, 0, 1, 1], [], []>} : vector<32x128xbf16>, vector<128x64xbf16>, vector<32x64xf32> -> vector<32x64xf32>
    %95 = arith.truncf %94 : vector<32x64xf32> to vector<32x64xbf16>
    %cst_42 = arith.constant dense<0.000000e+00> : vector<32x256xf32>
    %96 = tpu.matmul %95, %64, %cst_42 {dimension_numbers = #tpu.dot_dimension_numbers<[1], [0], [0], [1], [0, 0, 1, 1], [], []>} : vector<32x64xbf16>, vector<64x256xbf16>, vector<32x256xf32> -> vector<32x256xf32>
    %97 = arith.addf %93, %96 : vector<32x256xf32>
    %cst_43 = arith.constant dense<0.000000e+00> : vector<32x64xf32>
    %98 = tpu.matmul %46, %92, %cst_43 {dimension_numbers = #tpu.dot_dimension_numbers<[1], [0], [0], [1], [0, 0, 1, 1], [], []>} : vector<32x128xbf16>, vector<128x64xbf16>, vector<32x64xf32> -> vector<32x64xf32>
    %99 = arith.truncf %98 : vector<32x64xf32> to vector<32x64xbf16>
    %cst_44 = arith.constant dense<0.000000e+00> : vector<32x256xf32>
    %100 = tpu.matmul %99, %66, %cst_44 {dimension_numbers = #tpu.dot_dimension_numbers<[1], [0], [0], [1], [0, 0, 1, 1], [], []>} : vector<32x64xbf16>, vector<64x256xbf16>, vector<32x256xf32> -> vector<32x256xf32>
    %101 = arith.addf %97, %100 : vector<32x256xf32>
    %cst_45 = arith.constant dense<0.000000e+00> : vector<32x64xf32>
    %102 = tpu.matmul %54, %92, %cst_45 {dimension_numbers = #tpu.dot_dimension_numbers<[1], [0], [0], [1], [0, 0, 1, 1], [], []>} : vector<32x128xbf16>, vector<128x64xbf16>, vector<32x64xf32> -> vector<32x64xf32>
    %103 = arith.truncf %102 : vector<32x64xf32> to vector<32x64xbf16>
    %cst_46 = arith.constant dense<0.000000e+00> : vector<32x256xf32>
    %104 = tpu.matmul %103, %68, %cst_46 {dimension_numbers = #tpu.dot_dimension_numbers<[1], [0], [0], [1], [0, 0, 1, 1], [], []>} : vector<32x64xbf16>, vector<64x256xbf16>, vector<32x256xf32> -> vector<32x256xf32>
    %105 = arith.addf %101, %104 : vector<32x256xf32>
    %cst_47 = arith.constant dense<0.000000e+00> : vector<32x64xf32>
    %106 = tpu.matmul %62, %92, %cst_47 {dimension_numbers = #tpu.dot_dimension_numbers<[1], [0], [0], [1], [0, 0, 1, 1], [], []>} : vector<32x128xbf16>, vector<128x64xbf16>, vector<32x64xf32> -> vector<32x64xf32>
    %107 = arith.truncf %106 : vector<32x64xf32> to vector<32x64xbf16>
    %cst_48 = arith.constant dense<0.000000e+00> : vector<32x256xf32>
    %108 = tpu.matmul %107, %70, %cst_48 {dimension_numbers = #tpu.dot_dimension_numbers<[1], [0], [0], [1], [0, 0, 1, 1], [], []>} : vector<32x64xbf16>, vector<64x256xbf16>, vector<32x256xf32> -> vector<32x256xf32>
    %109 = arith.addf %105, %108 : vector<32x256xf32>
    %110 = vector.extract_strided_slice %26 {offsets = [0, 64], sizes = [128, 64], strides = [1, 1]} : vector<128x256xf32> to vector<128x64xf32>
    %cst_49 = arith.constant 1.250000e-01 : f32
    %111 = vector.broadcast %cst_49 : f32 to vector<128x64xf32>
    %112 = arith.mulf %110, %111 : vector<128x64xf32>
    %113 = arith.truncf %112 : vector<128x64xf32> to vector<128x64xbf16>
    %114 = vector.extract_strided_slice %27 {offsets = [0, 64], sizes = [128, 64], strides = [1, 1]} : vector<128x256xf32> to vector<128x64xf32>
    %115 = arith.truncf %114 : vector<128x64xf32> to vector<128x64xbf16>
    %116 = vector.extract_strided_slice %28 {offsets = [0, 64], sizes = [128, 64], strides = [1, 1]} : vector<128x256xf32> to vector<128x64xf32>
    %117 = arith.truncf %116 : vector<128x64xf32> to vector<128x64xbf16>
    %cst_50 = arith.constant dense<0.000000e+00> : vector<128x128xf32>
    %118 = tpu.matmul %113, %115, %cst_50 {dimension_numbers = #tpu.dot_dimension_numbers<[1], [1], [0], [0], [0, 0, 1, 0], [], []>} : vector<128x64xbf16>, vector<128x64xbf16>, vector<128x128xf32> -> vector<128x128xf32>
    %cst_51 = arith.constant dense<0xFF800000> : vector<128xf32>
    %119 = vector.multi_reduction <maximumf>, %118, %cst_51 [1] : vector<128x128xf32> to vector<128xf32>
    %120 = vector.shape_cast %119 : vector<128xf32> to vector<128x1xf32>
    %121 = vector.broadcast %120 : vector<128x1xf32> to vector<128x128xf32>
    %122 = arith.subf %118, %121 : vector<128x128xf32>
    %123 = math.exp %122 : vector<128x128xf32>
    %cst_52 = arith.constant dense<0.000000e+00> : vector<128xf32>
    %124 = vector.multi_reduction <add>, %123, %cst_52 [1] : vector<128x128xf32> to vector<128xf32>
    %125 = vector.shape_cast %124 : vector<128xf32> to vector<128x1xf32>
    %126 = tpu.reciprocal %125 {approx = true} : vector<128x1xf32> -> vector<128x1xf32>
    %127 = vector.broadcast %126 : vector<128x1xf32> to vector<128x128xf32>
    %128 = arith.mulf %123, %127 : vector<128x128xf32>
    %129 = arith.truncf %128 : vector<128x128xf32> to vector<128x128xbf16>
    %cst_53 = arith.constant dense<0.000000e+00> : vector<128x64xf32>
    %130 = tpu.matmul %129, %117, %cst_53 {dimension_numbers = #tpu.dot_dimension_numbers<[1], [0], [0], [1], [0, 0, 1, 1], [], []>} : vector<128x128xbf16>, vector<128x64xbf16>, vector<128x64xf32> -> vector<128x64xf32>
    %131 = arith.truncf %130 : vector<128x64xf32> to vector<128x64xbf16>
    %cst_54 = arith.constant 0.000000e+00 : f32
    %132 = vector.broadcast %cst_54 : f32 to vector<32x256xf32>
    %cst_55 = arith.constant dense<0.000000e+00> : vector<32x64xf32>
    %133 = tpu.matmul %38, %131, %cst_55 {dimension_numbers = #tpu.dot_dimension_numbers<[1], [0], [0], [1], [0, 0, 1, 1], [], []>} : vector<32x128xbf16>, vector<128x64xbf16>, vector<32x64xf32> -> vector<32x64xf32>
    %134 = arith.truncf %133 : vector<32x64xf32> to vector<32x64xbf16>
    %cst_56 = arith.constant dense<0.000000e+00> : vector<32x256xf32>
    %135 = tpu.matmul %134, %64, %cst_56 {dimension_numbers = #tpu.dot_dimension_numbers<[1], [0], [0], [1], [0, 0, 1, 1], [], []>} : vector<32x64xbf16>, vector<64x256xbf16>, vector<32x256xf32> -> vector<32x256xf32>
    %136 = arith.addf %132, %135 : vector<32x256xf32>
    %cst_57 = arith.constant dense<0.000000e+00> : vector<32x64xf32>
    %137 = tpu.matmul %46, %131, %cst_57 {dimension_numbers = #tpu.dot_dimension_numbers<[1], [0], [0], [1], [0, 0, 1, 1], [], []>} : vector<32x128xbf16>, vector<128x64xbf16>, vector<32x64xf32> -> vector<32x64xf32>
    %138 = arith.truncf %137 : vector<32x64xf32> to vector<32x64xbf16>
    %cst_58 = arith.constant dense<0.000000e+00> : vector<32x256xf32>
    %139 = tpu.matmul %138, %66, %cst_58 {dimension_numbers = #tpu.dot_dimension_numbers<[1], [0], [0], [1], [0, 0, 1, 1], [], []>} : vector<32x64xbf16>, vector<64x256xbf16>, vector<32x256xf32> -> vector<32x256xf32>
    %140 = arith.addf %136, %139 : vector<32x256xf32>
    %cst_59 = arith.constant dense<0.000000e+00> : vector<32x64xf32>
    %141 = tpu.matmul %54, %131, %cst_59 {dimension_numbers = #tpu.dot_dimension_numbers<[1], [0], [0], [1], [0, 0, 1, 1], [], []>} : vector<32x128xbf16>, vector<128x64xbf16>, vector<32x64xf32> -> vector<32x64xf32>
    %142 = arith.truncf %141 : vector<32x64xf32> to vector<32x64xbf16>
    %cst_60 = arith.constant dense<0.000000e+00> : vector<32x256xf32>
    %143 = tpu.matmul %142, %68, %cst_60 {dimension_numbers = #tpu.dot_dimension_numbers<[1], [0], [0], [1], [0, 0, 1, 1], [], []>} : vector<32x64xbf16>, vector<64x256xbf16>, vector<32x256xf32> -> vector<32x256xf32>
    %144 = arith.addf %140, %143 : vector<32x256xf32>
    %cst_61 = arith.constant dense<0.000000e+00> : vector<32x64xf32>
    %145 = tpu.matmul %62, %131, %cst_61 {dimension_numbers = #tpu.dot_dimension_numbers<[1], [0], [0], [1], [0, 0, 1, 1], [], []>} : vector<32x128xbf16>, vector<128x64xbf16>, vector<32x64xf32> -> vector<32x64xf32>
    %146 = arith.truncf %145 : vector<32x64xf32> to vector<32x64xbf16>
    %cst_62 = arith.constant dense<0.000000e+00> : vector<32x256xf32>
    %147 = tpu.matmul %146, %70, %cst_62 {dimension_numbers = #tpu.dot_dimension_numbers<[1], [0], [0], [1], [0, 0, 1, 1], [], []>} : vector<32x64xbf16>, vector<64x256xbf16>, vector<32x256xf32> -> vector<32x256xf32>
    %148 = arith.addf %144, %147 : vector<32x256xf32>
    %149 = vector.extract_strided_slice %26 {offsets = [0, 128], sizes = [128, 64], strides = [1, 1]} : vector<128x256xf32> to vector<128x64xf32>
    %cst_63 = arith.constant 1.250000e-01 : f32
    %150 = vector.broadcast %cst_63 : f32 to vector<128x64xf32>
    %151 = arith.mulf %149, %150 : vector<128x64xf32>
    %152 = arith.truncf %151 : vector<128x64xf32> to vector<128x64xbf16>
    %153 = vector.extract_strided_slice %27 {offsets = [0, 128], sizes = [128, 64], strides = [1, 1]} : vector<128x256xf32> to vector<128x64xf32>
    %154 = arith.truncf %153 : vector<128x64xf32> to vector<128x64xbf16>
    %155 = vector.extract_strided_slice %28 {offsets = [0, 128], sizes = [128, 64], strides = [1, 1]} : vector<128x256xf32> to vector<128x64xf32>
    %156 = arith.truncf %155 : vector<128x64xf32> to vector<128x64xbf16>
    %cst_64 = arith.constant dense<0.000000e+00> : vector<128x128xf32>
    %157 = tpu.matmul %152, %154, %cst_64 {dimension_numbers = #tpu.dot_dimension_numbers<[1], [1], [0], [0], [0, 0, 1, 0], [], []>} : vector<128x64xbf16>, vector<128x64xbf16>, vector<128x128xf32> -> vector<128x128xf32>
    %cst_65 = arith.constant dense<0xFF800000> : vector<128xf32>
    %158 = vector.multi_reduction <maximumf>, %157, %cst_65 [1] : vector<128x128xf32> to vector<128xf32>
    %159 = vector.shape_cast %158 : vector<128xf32> to vector<128x1xf32>
    %160 = vector.broadcast %159 : vector<128x1xf32> to vector<128x128xf32>
    %161 = arith.subf %157, %160 : vector<128x128xf32>
    %162 = math.exp %161 : vector<128x128xf32>
    %cst_66 = arith.constant dense<0.000000e+00> : vector<128xf32>
    %163 = vector.multi_reduction <add>, %162, %cst_66 [1] : vector<128x128xf32> to vector<128xf32>
    %164 = vector.shape_cast %163 : vector<128xf32> to vector<128x1xf32>
    %165 = tpu.reciprocal %164 {approx = true} : vector<128x1xf32> -> vector<128x1xf32>
    %166 = vector.broadcast %165 : vector<128x1xf32> to vector<128x128xf32>
    %167 = arith.mulf %162, %166 : vector<128x128xf32>
    %168 = arith.truncf %167 : vector<128x128xf32> to vector<128x128xbf16>
    %cst_67 = arith.constant dense<0.000000e+00> : vector<128x64xf32>
    %169 = tpu.matmul %168, %156, %cst_67 {dimension_numbers = #tpu.dot_dimension_numbers<[1], [0], [0], [1], [0, 0, 1, 1], [], []>} : vector<128x128xbf16>, vector<128x64xbf16>, vector<128x64xf32> -> vector<128x64xf32>
    %170 = arith.truncf %169 : vector<128x64xf32> to vector<128x64xbf16>
    %cst_68 = arith.constant 0.000000e+00 : f32
    %171 = vector.broadcast %cst_68 : f32 to vector<32x256xf32>
    %cst_69 = arith.constant dense<0.000000e+00> : vector<32x64xf32>
    %172 = tpu.matmul %38, %170, %cst_69 {dimension_numbers = #tpu.dot_dimension_numbers<[1], [0], [0], [1], [0, 0, 1, 1], [], []>} : vector<32x128xbf16>, vector<128x64xbf16>, vector<32x64xf32> -> vector<32x64xf32>
    %173 = arith.truncf %172 : vector<32x64xf32> to vector<32x64xbf16>
    %cst_70 = arith.constant dense<0.000000e+00> : vector<32x256xf32>
    %174 = tpu.matmul %173, %64, %cst_70 {dimension_numbers = #tpu.dot_dimension_numbers<[1], [0], [0], [1], [0, 0, 1, 1], [], []>} : vector<32x64xbf16>, vector<64x256xbf16>, vector<32x256xf32> -> vector<32x256xf32>
    %175 = arith.addf %171, %174 : vector<32x256xf32>
    %cst_71 = arith.constant dense<0.000000e+00> : vector<32x64xf32>
    %176 = tpu.matmul %46, %170, %cst_71 {dimension_numbers = #tpu.dot_dimension_numbers<[1], [0], [0], [1], [0, 0, 1, 1], [], []>} : vector<32x128xbf16>, vector<128x64xbf16>, vector<32x64xf32> -> vector<32x64xf32>
    %177 = arith.truncf %176 : vector<32x64xf32> to vector<32x64xbf16>
    %cst_72 = arith.constant dense<0.000000e+00> : vector<32x256xf32>
    %178 = tpu.matmul %177, %66, %cst_72 {dimension_numbers = #tpu.dot_dimension_numbers<[1], [0], [0], [1], [0, 0, 1, 1], [], []>} : vector<32x64xbf16>, vector<64x256xbf16>, vector<32x256xf32> -> vector<32x256xf32>
    %179 = arith.addf %175, %178 : vector<32x256xf32>
    %cst_73 = arith.constant dense<0.000000e+00> : vector<32x64xf32>
    %180 = tpu.matmul %54, %170, %cst_73 {dimension_numbers = #tpu.dot_dimension_numbers<[1], [0], [0], [1], [0, 0, 1, 1], [], []>} : vector<32x128xbf16>, vector<128x64xbf16>, vector<32x64xf32> -> vector<32x64xf32>
    %181 = arith.truncf %180 : vector<32x64xf32> to vector<32x64xbf16>
    %cst_74 = arith.constant dense<0.000000e+00> : vector<32x256xf32>
    %182 = tpu.matmul %181, %68, %cst_74 {dimension_numbers = #tpu.dot_dimension_numbers<[1], [0], [0], [1], [0, 0, 1, 1], [], []>} : vector<32x64xbf16>, vector<64x256xbf16>, vector<32x256xf32> -> vector<32x256xf32>
    %183 = arith.addf %179, %182 : vector<32x256xf32>
    %cst_75 = arith.constant dense<0.000000e+00> : vector<32x64xf32>
    %184 = tpu.matmul %62, %170, %cst_75 {dimension_numbers = #tpu.dot_dimension_numbers<[1], [0], [0], [1], [0, 0, 1, 1], [], []>} : vector<32x128xbf16>, vector<128x64xbf16>, vector<32x64xf32> -> vector<32x64xf32>
    %185 = arith.truncf %184 : vector<32x64xf32> to vector<32x64xbf16>
    %cst_76 = arith.constant dense<0.000000e+00> : vector<32x256xf32>
    %186 = tpu.matmul %185, %70, %cst_76 {dimension_numbers = #tpu.dot_dimension_numbers<[1], [0], [0], [1], [0, 0, 1, 1], [], []>} : vector<32x64xbf16>, vector<64x256xbf16>, vector<32x256xf32> -> vector<32x256xf32>
    %187 = arith.addf %183, %186 : vector<32x256xf32>
    %188 = vector.extract_strided_slice %26 {offsets = [0, 192], sizes = [128, 64], strides = [1, 1]} : vector<128x256xf32> to vector<128x64xf32>
    %cst_77 = arith.constant 1.250000e-01 : f32
    %189 = vector.broadcast %cst_77 : f32 to vector<128x64xf32>
    %190 = arith.mulf %188, %189 : vector<128x64xf32>
    %191 = arith.truncf %190 : vector<128x64xf32> to vector<128x64xbf16>
    %192 = vector.extract_strided_slice %27 {offsets = [0, 192], sizes = [128, 64], strides = [1, 1]} : vector<128x256xf32> to vector<128x64xf32>
    %193 = arith.truncf %192 : vector<128x64xf32> to vector<128x64xbf16>
    %194 = vector.extract_strided_slice %28 {offsets = [0, 192], sizes = [128, 64], strides = [1, 1]} : vector<128x256xf32> to vector<128x64xf32>
    %195 = arith.truncf %194 : vector<128x64xf32> to vector<128x64xbf16>
    %cst_78 = arith.constant dense<0.000000e+00> : vector<128x128xf32>
    %196 = tpu.matmul %191, %193, %cst_78 {dimension_numbers = #tpu.dot_dimension_numbers<[1], [1], [0], [0], [0, 0, 1, 0], [], []>} : vector<128x64xbf16>, vector<128x64xbf16>, vector<128x128xf32> -> vector<128x128xf32>
    %cst_79 = arith.constant dense<0xFF800000> : vector<128xf32>
    %197 = vector.multi_reduction <maximumf>, %196, %cst_79 [1] : vector<128x128xf32> to vector<128xf32>
    %198 = vector.shape_cast %197 : vector<128xf32> to vector<128x1xf32>
    %199 = vector.broadcast %198 : vector<128x1xf32> to vector<128x128xf32>
    %200 = arith.subf %196, %199 : vector<128x128xf32>
    %201 = math.exp %200 : vector<128x128xf32>
    %cst_80 = arith.constant dense<0.000000e+00> : vector<128xf32>
    %202 = vector.multi_reduction <add>, %201, %cst_80 [1] : vector<128x128xf32> to vector<128xf32>
    %203 = vector.shape_cast %202 : vector<128xf32> to vector<128x1xf32>
    %204 = tpu.reciprocal %203 {approx = true} : vector<128x1xf32> -> vector<128x1xf32>
    %205 = vector.broadcast %204 : vector<128x1xf32> to vector<128x128xf32>
    %206 = arith.mulf %201, %205 : vector<128x128xf32>
    %207 = arith.truncf %206 : vector<128x128xf32> to vector<128x128xbf16>
    %cst_81 = arith.constant dense<0.000000e+00> : vector<128x64xf32>
    %208 = tpu.matmul %207, %195, %cst_81 {dimension_numbers = #tpu.dot_dimension_numbers<[1], [0], [0], [1], [0, 0, 1, 1], [], []>} : vector<128x128xbf16>, vector<128x64xbf16>, vector<128x64xf32> -> vector<128x64xf32>
    %209 = arith.truncf %208 : vector<128x64xf32> to vector<128x64xbf16>
    %cst_82 = arith.constant 0.000000e+00 : f32
    %210 = vector.broadcast %cst_82 : f32 to vector<32x256xf32>
    %cst_83 = arith.constant dense<0.000000e+00> : vector<32x64xf32>
    %211 = tpu.matmul %38, %209, %cst_83 {dimension_numbers = #tpu.dot_dimension_numbers<[1], [0], [0], [1], [0, 0, 1, 1], [], []>} : vector<32x128xbf16>, vector<128x64xbf16>, vector<32x64xf32> -> vector<32x64xf32>
    %212 = arith.truncf %211 : vector<32x64xf32> to vector<32x64xbf16>
    %cst_84 = arith.constant dense<0.000000e+00> : vector<32x256xf32>
    %213 = tpu.matmul %212, %64, %cst_84 {dimension_numbers = #tpu.dot_dimension_numbers<[1], [0], [0], [1], [0, 0, 1, 1], [], []>} : vector<32x64xbf16>, vector<64x256xbf16>, vector<32x256xf32> -> vector<32x256xf32>
    %214 = arith.addf %210, %213 : vector<32x256xf32>
    %cst_85 = arith.constant dense<0.000000e+00> : vector<32x64xf32>
    %215 = tpu.matmul %46, %209, %cst_85 {dimension_numbers = #tpu.dot_dimension_numbers<[1], [0], [0], [1], [0, 0, 1, 1], [], []>} : vector<32x128xbf16>, vector<128x64xbf16>, vector<32x64xf32> -> vector<32x64xf32>
    %216 = arith.truncf %215 : vector<32x64xf32> to vector<32x64xbf16>
    %cst_86 = arith.constant dense<0.000000e+00> : vector<32x256xf32>
    %217 = tpu.matmul %216, %66, %cst_86 {dimension_numbers = #tpu.dot_dimension_numbers<[1], [0], [0], [1], [0, 0, 1, 1], [], []>} : vector<32x64xbf16>, vector<64x256xbf16>, vector<32x256xf32> -> vector<32x256xf32>
    %218 = arith.addf %214, %217 : vector<32x256xf32>
    %cst_87 = arith.constant dense<0.000000e+00> : vector<32x64xf32>
    %219 = tpu.matmul %54, %209, %cst_87 {dimension_numbers = #tpu.dot_dimension_numbers<[1], [0], [0], [1], [0, 0, 1, 1], [], []>} : vector<32x128xbf16>, vector<128x64xbf16>, vector<32x64xf32> -> vector<32x64xf32>
    %220 = arith.truncf %219 : vector<32x64xf32> to vector<32x64xbf16>
    %cst_88 = arith.constant dense<0.000000e+00> : vector<32x256xf32>
    %221 = tpu.matmul %220, %68, %cst_88 {dimension_numbers = #tpu.dot_dimension_numbers<[1], [0], [0], [1], [0, 0, 1, 1], [], []>} : vector<32x64xbf16>, vector<64x256xbf16>, vector<32x256xf32> -> vector<32x256xf32>
    %222 = arith.addf %218, %221 : vector<32x256xf32>
    %cst_89 = arith.constant dense<0.000000e+00> : vector<32x64xf32>
    %223 = tpu.matmul %62, %209, %cst_89 {dimension_numbers = #tpu.dot_dimension_numbers<[1], [0], [0], [1], [0, 0, 1, 1], [], []>} : vector<32x128xbf16>, vector<128x64xbf16>, vector<32x64xf32> -> vector<32x64xf32>
    %224 = arith.truncf %223 : vector<32x64xf32> to vector<32x64xbf16>
    %cst_90 = arith.constant dense<0.000000e+00> : vector<32x256xf32>
    %225 = tpu.matmul %224, %70, %cst_90 {dimension_numbers = #tpu.dot_dimension_numbers<[1], [0], [0], [1], [0, 0, 1, 1], [], []>} : vector<32x64xbf16>, vector<64x256xbf16>, vector<32x256xf32> -> vector<32x256xf32>
    %226 = arith.addf %222, %225 : vector<32x256xf32>
    %227 = tpu.concatenate %109, %148, %187, %226 in 0 : vector<32x256xf32>, vector<32x256xf32>, vector<32x256xf32>, vector<32x256xf32> -> vector<128x256xf32>
    %228 = vector.broadcast %7 : vector<1x256xf32> to vector<128x256xf32>
    %229 = arith.addf %227, %228 : vector<128x256xf32>
    %cst_91 = arith.constant dense<0.000000e+00> : vector<128xf32>
    %230 = vector.multi_reduction <add>, %229, %cst_91 [1] : vector<128x256xf32> to vector<128xf32>
    %231 = vector.shape_cast %230 : vector<128xf32> to vector<128x1xf32>
    %cst_92 = arith.constant 2.560000e+02 : f32
    %232 = vector.broadcast %cst_92 : f32 to vector<128x1xf32>
    %233 = arith.divf %231, %232 : vector<128x1xf32>
    %234 = vector.broadcast %233 : vector<128x1xf32> to vector<128x256xf32>
    %235 = arith.subf %229, %234 : vector<128x256xf32>
    %236 = arith.mulf %235, %235 : vector<128x256xf32>
    %cst_93 = arith.constant dense<0.000000e+00> : vector<128xf32>
    %237 = vector.multi_reduction <add>, %236, %cst_93 [1] : vector<128x256xf32> to vector<128xf32>
    %238 = vector.shape_cast %237 : vector<128xf32> to vector<128x1xf32>
    %cst_94 = arith.constant 2.560000e+02 : f32
    %239 = vector.broadcast %cst_94 : f32 to vector<128x1xf32>
    %240 = arith.divf %238, %239 : vector<128x1xf32>
    %cst_95 = arith.constant 9.99999974E-6 : f32
    %241 = vector.broadcast %cst_95 : f32 to vector<128x1xf32>
    %242 = arith.addf %240, %241 : vector<128x1xf32>
    %243 = math.rsqrt %242 : vector<128x1xf32>
    %244 = vector.broadcast %243 : vector<128x1xf32> to vector<128x256xf32>
    %245 = arith.mulf %235, %244 : vector<128x256xf32>
    %246 = vector.broadcast %9 : vector<1x256xf32> to vector<128x256xf32>
    %247 = arith.mulf %245, %246 : vector<128x256xf32>
    %248 = arith.addf %3, %247 : vector<128x256xf32>
    %249 = vector.broadcast %11 : vector<1x256xf32> to vector<128x256xf32>
    %250 = arith.addf %248, %249 : vector<128x256xf32>
    %251 = arith.truncf %250 : vector<128x256xf32> to vector<128x256xbf16>
    %c0_96 = arith.constant 0 : index
    %c0_97 = arith.constant 0 : index
    %c0_98 = arith.constant 0 : index
    %252 = vector.load %arg5[%c0_96, %c0_97, %c0_98] : memref<1x256x512xbf16, #tpu.memory_space<vmem>>, vector<1x256x512xbf16>
    %253 = vector.shape_cast %252 : vector<1x256x512xbf16> to vector<256x512xbf16>
    %cst_99 = arith.constant dense<0.000000e+00> : vector<128x512xf32>
    %254 = tpu.matmul %251, %253, %cst_99 {dimension_numbers = #tpu.dot_dimension_numbers<[1], [0], [0], [1], [0, 0, 1, 1], [], []>} : vector<128x256xbf16>, vector<256x512xbf16>, vector<128x512xf32> -> vector<128x512xf32>
    %255 = vector.broadcast %13 : vector<1x512xf32> to vector<128x512xf32>
    %256 = arith.addf %254, %255 : vector<128x512xf32>
    %cst_100 = arith.constant 0.000000e+00 : f32
    %257 = vector.broadcast %cst_100 : f32 to vector<128x512xf32>
    %258 = arith.maximumf %256, %257 : vector<128x512xf32>
    %259 = arith.truncf %258 : vector<128x512xf32> to vector<128x512xbf16>
    %c0_101 = arith.constant 0 : index
    %c0_102 = arith.constant 0 : index
    %c0_103 = arith.constant 0 : index
    %260 = vector.load %arg6[%c0_101, %c0_102, %c0_103] : memref<1x512x256xbf16, #tpu.memory_space<vmem>>, vector<1x512x256xbf16>
    %261 = vector.shape_cast %260 : vector<1x512x256xbf16> to vector<512x256xbf16>
    %cst_104 = arith.constant dense<0.000000e+00> : vector<128x256xf32>
    %262 = tpu.matmul %259, %261, %cst_104 {dimension_numbers = #tpu.dot_dimension_numbers<[1], [0], [0], [1], [0, 0, 1, 1], [], []>} : vector<128x512xbf16>, vector<512x256xbf16>, vector<128x256xf32> -> vector<128x256xf32>
    %263 = vector.broadcast %15 : vector<1x256xf32> to vector<128x256xf32>
    %264 = arith.addf %262, %263 : vector<128x256xf32>
    %cst_105 = arith.constant dense<0.000000e+00> : vector<128xf32>
    %265 = vector.multi_reduction <add>, %264, %cst_105 [1] : vector<128x256xf32> to vector<128xf32>
    %266 = vector.shape_cast %265 : vector<128xf32> to vector<128x1xf32>
    %cst_106 = arith.constant 2.560000e+02 : f32
    %267 = vector.broadcast %cst_106 : f32 to vector<128x1xf32>
    %268 = arith.divf %266, %267 : vector<128x1xf32>
    %269 = vector.broadcast %268 : vector<128x1xf32> to vector<128x256xf32>
    %270 = arith.subf %264, %269 : vector<128x256xf32>
    %271 = arith.mulf %270, %270 : vector<128x256xf32>
    %cst_107 = arith.constant dense<0.000000e+00> : vector<128xf32>
    %272 = vector.multi_reduction <add>, %271, %cst_107 [1] : vector<128x256xf32> to vector<128xf32>
    %273 = vector.shape_cast %272 : vector<128xf32> to vector<128x1xf32>
    %cst_108 = arith.constant 2.560000e+02 : f32
    %274 = vector.broadcast %cst_108 : f32 to vector<128x1xf32>
    %275 = arith.divf %273, %274 : vector<128x1xf32>
    %cst_109 = arith.constant 9.99999974E-6 : f32
    %276 = vector.broadcast %cst_109 : f32 to vector<128x1xf32>
    %277 = arith.addf %275, %276 : vector<128x1xf32>
    %278 = math.rsqrt %277 : vector<128x1xf32>
    %279 = vector.broadcast %278 : vector<128x1xf32> to vector<128x256xf32>
    %280 = arith.mulf %270, %279 : vector<128x256xf32>
    %281 = vector.broadcast %17 : vector<1x256xf32> to vector<128x256xf32>
    %282 = arith.mulf %280, %281 : vector<128x256xf32>
    %283 = arith.addf %250, %282 : vector<128x256xf32>
    %284 = vector.broadcast %19 : vector<1x256xf32> to vector<128x256xf32>
    %285 = arith.addf %283, %284 : vector<128x256xf32>
    %c0_110 = arith.constant 0 : index
    %c0_111 = arith.constant 0 : index
    %286 = vector.load %arg9[%c0_110, %c0_111] : memref<128x256xf32, #tpu.memory_space<vmem>>, vector<128x256xf32>
    tpu.vector_store %arg9[%c0_110, %c0_111], %285 {strides = array<i32>} : memref<128x256xf32, #tpu.memory_space<vmem>>, vector<128x256xf32>,
    %c1_i32_112 = arith.constant 1 : i32
    %287 = arith.cmpi eq, %arg1, %c1_i32_112 : i32
    %288 = arith.extui %287 : i1 to i32
    %c0_i32_113 = arith.constant 0 : i32
    %289 = arith.cmpi ne, %288, %c0_i32_113 : i32
    scf.if %289 {
      %c0_114 = arith.constant 0 : index
      %c0_115 = arith.constant 0 : index
      %c0_116 = arith.constant 0 : index
      %290 = vector.load %arg8[%c0_114, %c0_115, %c0_116] : memref<1x128x256xf32, #tpu.memory_space<vmem>>, vector<1x128x256xf32>
      %291 = vector.shape_cast %290 : vector<1x128x256xf32> to vector<128x256xf32>
      %292 = vector.shape_cast %285 : vector<128x256xf32> to vector<1x128x256xf32>
      tpu.vector_store %arg8[%c0_114, %c0_115, %c0_116], %292 {strides = array<i32>} : memref<1x128x256xf32, #tpu.memory_space<vmem>>, vector<1x128x256xf32>,
    } else {
    }
    return
  }
  func.func @transform_0(%arg0: i32, %arg1: i32) -> (i32, i32, i32) {
    %c0_i32 = arith.constant 0 : i32
    %c0_i32_0 = arith.constant 0 : i32
    %c0_i32_1 = arith.constant 0 : i32
    return %arg0, %c0_i32, %c0_i32_0 : i32, i32, i32
  }
  func.func @transform_1(%arg0: i32, %arg1: i32) -> (i32, i32, i32) {
    %c0_i32 = arith.constant 0 : i32
    %c0_i32_0 = arith.constant 0 : i32
    %c0_i32_1 = arith.constant 0 : i32
    return %arg1, %c0_i32, %c0_i32_0 : i32, i32, i32
  }
  func.func @transform_2(%arg0: i32, %arg1: i32) -> (i32, i32, i32) {
    %c0_i32 = arith.constant 0 : i32
    %c0_i32_0 = arith.constant 0 : i32
    %c0_i32_1 = arith.constant 0 : i32
    return %arg1, %c0_i32, %c0_i32_0 : i32, i32, i32
  }
  func.func @transform_3(%arg0: i32, %arg1: i32) -> (i32, i32, i32) {
    %c0_i32 = arith.constant 0 : i32
    %c0_i32_0 = arith.constant 0 : i32
    %c0_i32_1 = arith.constant 0 : i32
    return %arg1, %c0_i32, %c0_i32_0 : i32, i32, i32
  }
  func.func @transform_4(%arg0: i32, %arg1: i32) -> (i32, i32, i32) {
    %c0_i32 = arith.constant 0 : i32
    %c0_i32_0 = arith.constant 0 : i32
    %c0_i32_1 = arith.constant 0 : i32
    return %arg1, %c0_i32, %c0_i32_0 : i32, i32, i32
  }
  func.func @transform_5(%arg0: i32, %arg1: i32) -> (i32, i32, i32) {
    %c0_i32 = arith.constant 0 : i32
    %c0_i32_0 = arith.constant 0 : i32
    %c0_i32_1 = arith.constant 0 : i32
    return %arg1, %c0_i32, %c0_i32_0 : i32, i32, i32
  }
  func.func @transform_6(%arg0: i32, %arg1: i32) -> (i32, i32, i32) {
    %c0_i32 = arith.constant 0 : i32
    %c0_i32_0 = arith.constant 0 : i32
    %c0_i32_1 = arith.constant 0 : i32
    return %arg0, %c0_i32, %c0_i32_0 : i32, i32, i32
  }
}

</mosaic_0001>

<llo_original>
// kernel: encoder_forward.1
$region0: #{encoder_forward.1}
  #allocation0 [shape = 'u32[]', space=smem, size = 0x4, offset = 0x4, fixed_abs, tag = 'smem constant byte address 0x4 - core index']
  #allocation1 [shape = 'u32[144,128]{1,0:T(1,128)}', space=vmem, size = 0x12000, scoped, tag = 'internal scratch']
  #allocation2 [shape = 'f32[128,256]{1,0:T(8,128)}', space=vmem, size = 0x20000, scoped, tag = 'scratch operand']
  %s0 = inlined_call_operand.vmem [shape: f32[2,128,256], index: 0, kind: input, shape index: {}]
  %s1 = inlined_call_operand.vmem [shape: bf16[2,256,768], index: 1, kind: input, shape index: {}]
  %s2 = inlined_call_operand.vmem [shape: bf16[2,256,256], index: 2, kind: input, shape index: {}]
  %s3 = inlined_call_operand.vmem [shape: bf16[2,256,512], index: 3, kind: input, shape index: {}]
  %s4 = inlined_call_operand.vmem [shape: bf16[2,512,256], index: 4, kind: input, shape index: {}]
  %s5 = inlined_call_operand.vmem [shape: f32[2,1,2816], index: 5, kind: input, shape index: {}]
  %s6 = inlined_call_operand.hbm [shape: f32[2,128,256], index: 6, kind: output, shape index: {}]
  %s7 = sld [smem:[#allocation0]]
  $region65: #{encoder_forward.1} parent=0
    _
  %s9 = ssub.s32 1, %s7
  %s10 = scalar_select 0, %s9, %s7
  $region1: #{encoder_forward.1} parent=0
    #allocation3 [shape = 'u8[262144]{0}', space=vmem, size = 0x40000, scoped, tag = 'output window, operand 0']
    #allocation4 [shape = 's32[2]{0}', space=sflag, size = 0x8, scoped, tag = 'scoped memory for encoder_forward.1']
    %11 = vsyncpa [#allocation4], 0
    %s12 = scalar_lea.sflag [#allocation4], 1
    %13 = vsyncpa %s12, 0
    loop: start=0, step=1, limit=6
    $region2: #{encoder_forward.1} parent=1 // loop_pre_header
      _
    $region3: #{encoder_forward.1} parent=1 // loop_header
      %s15 = sphi 0, %s19
      %p16 = scmp.ge.s32.totalorder %s15, 6
      %s22 = sphi 0, %s34
      %s23 = sphi 0, %s30
      %s24 = sphi 0, %s22
      %s25 = sphi 0, %s23
      %s26 = sphi 0, %s24
      %s27 = sphi 0, %s25
      %s37 = sphi 0, %s39
      %s40 = sphi 0, %s37
      %s41 = sphi 0, %s40
      %s57 = sphi 0, %s41
      %s63 = sphi 0, %s65
      %s66 = sphi 0, %s63
      %s67 = sphi 0, %s66
      %s83 = sphi 0, %s67
      %s89 = sphi 0, %s91
      %s92 = sphi 0, %s89
      %s93 = sphi 0, %s92
      %s109 = sphi 0, %s93
      %s115 = sphi 0, %s117
      %s118 = sphi 0, %s115
      %s119 = sphi 0, %s118
      %s135 = sphi 0, %s119
      %s141 = sphi 0, %s143
      %s144 = sphi 0, %s141
      %s145 = sphi 0, %s144
      %s161 = sphi 0, %s145
      %s167 = sphi 0, %s169
      %s170 = sphi 0, %s167
      %s171 = sphi 0, %s170
      %s187 = sphi 0, %s171
      %s193 = sphi 0, %s195
      %s196 = sphi 0, %s193
      %s197 = sphi 0, %s196
      %s213 = sphi 0, %s197
    $region4: #{encoder_forward.1} parent=1 // loop_header_branch
      %18 = sbr.rel (%p16) target = $region8
    $region5: #{encoder_forward.1} parent=1 // loop_body
      %s20 = ssub.s32 %s15, 1
      %s21 = ssub.s32 %s15, 2
      %s28 = sadd.s32 1, %s23
      %p29 = scmp.ge.s32.totalorder %s28, 2
      %s30 = scalar_select %p29, 0, %s28
      %s31 = sadd.s32 1, %s22
      %s32 = scalar_select %p29, %s31, %s22
      %p33 = scmp.ge.s32.totalorder %s32, 2
      %s34 = scalar_select %p33, 0, %s32
      %s35 = ssub.s32 %s22, %s34
      %p36 = scmp.eq.s32.totalorder %s35, 0
      %s38 = sadd.s32 %s37, 1
      %s39 = scalar_select %p36, %s37, %s38
      %p42 = pneg %p36
      %p43 = scmp.eq.s32.totalorder %s15, 3
      %p44 = por %p42, %p43
      %p45 = scmp.ne.s32.totalorder %s37, %s40
      %p46 = scmp.eq.s32.totalorder %s15, 0
      %p47 = por %p45, %p46
      %p48 = scmp.ne.s32.totalorder %s37, %s40
      %p49 = scmp.eq.s32.totalorder %s20, 3
      %p50 = por %p48, %p49
      %p51 = scmp.ne.s32.totalorder %s40, %s41
      %p52 = scmp.eq.s32.totalorder %s20, 0
      %p53 = por %p51, %p52
      %p54 = scmp.ne.s32.totalorder %s40, %s41
      %p55 = scmp.eq.s32.totalorder %s21, 3
      %p56 = por %p54, %p55
      %p58 = scmp.ne.s32.totalorder %s41, %s57
      %p59 = scmp.eq.s32.totalorder %s21, 0
      %p60 = por %p58, %p59
      %s61 = ssub.s32 %s23, %s30
      %p62 = scmp.eq.s32.totalorder %s61, 0
      %s64 = sadd.s32 %s63, 1
      %s65 = scalar_select %p62, %s63, %s64
      %p68 = pneg %p62
      %p69 = scmp.eq.s32.totalorder %s15, 3
      %p70 = por %p68, %p69
      %p71 = scmp.ne.s32.totalorder %s63, %s66
      %p72 = scmp.eq.s32.totalorder %s15, 0
      %p73 = por %p71, %p72
      %p74 = scmp.ne.s32.totalorder %s63, %s66
      %p75 = scmp.eq.s32.totalorder %s20, 3
      %p76 = por %p74, %p75
      %p77 = scmp.ne.s32.totalorder %s66, %s67
      %p78 = scmp.eq.s32.totalorder %s20, 0
      %p79 = por %p77, %p78
      %p80 = scmp.ne.s32.totalorder %s66, %s67
      %p81 = scmp.eq.s32.totalorder %s21, 3
      %p82 = por %p80, %p81
      %p84 = scmp.ne.s32.totalorder %s67, %s83
      %p85 = scmp.eq.s32.totalorder %s21, 0
      %p86 = por %p84, %p85
      %s87 = ssub.s32 %s23, %s30
      %p88 = scmp.eq.s32.totalorder %s87, 0
      %s90 = sadd.s32 %s89, 1
      %s91 = scalar_select %p88, %s89, %s90
      %p94 = pneg %p88
      %p95 = scmp.eq.s32.totalorder %s15, 3
      %p96 = por %p94, %p95
      %p97 = scmp.ne.s32.totalorder %s89, %s92
      %p98 = scmp.eq.s32.totalorder %s15, 0
      %p99 = por %p97, %p98
      %p100 = scmp.ne.s32.totalorder %s89, %s92
      %p101 = scmp.eq.s32.totalorder %s20, 3
      %p102 = por %p100, %p101
      %p103 = scmp.ne.s32.totalorder %s92, %s93
      %p104 = scmp.eq.s32.totalorder %s20, 0
      %p105 = por %p103, %p104
      %p106 = scmp.ne.s32.totalorder %s92, %s93
      %p107 = scmp.eq.s32.totalorder %s21, 3
      %p108 = por %p106, %p107
      %p110 = scmp.ne.s32.totalorder %s93, %s109
      %p111 = scmp.eq.s32.totalorder %s21, 0
      %p112 = por %p110, %p111
      %s113 = ssub.s32 %s23, %s30
      %p114 = scmp.eq.s32.totalorder %s113, 0
      %s116 = sadd.s32 %s115, 1
      %s117 = scalar_select %p114, %s115, %s116
      %p120 = pneg %p114
      %p121 = scmp.eq.s32.totalorder %s15, 3
      %p122 = por %p120, %p121
      %p123 = scmp.ne.s32.totalorder %s115, %s118
      %p124 = scmp.eq.s32.totalorder %s15, 0
      %p125 = por %p123, %p124
      %p126 = scmp.ne.s32.totalorder %s115, %s118
      %p127 = scmp.eq.s32.totalorder %s20, 3
      %p128 = por %p126, %p127
      %p129 = scmp.ne.s32.totalorder %s118, %s119
      %p130 = scmp.eq.s32.totalorder %s20, 0
      %p131 = por %p129, %p130
      %p132 = scmp.ne.s32.totalorder %s118, %s119
      %p133 = scmp.eq.s32.totalorder %s21, 3
      %p134 = por %p132, %p133
      %p136 = scmp.ne.s32.totalorder %s119, %s135
      %p137 = scmp.eq.s32.totalorder %s21, 0
      %p138 = por %p136, %p137
      %s139 = ssub.s32 %s23, %s30
      %p140 = scmp.eq.s32.totalorder %s139, 0
      %s142 = sadd.s32 %s141, 1
      %s143 = scalar_select %p140, %s141, %s142
      %p146 = pneg %p140
      %p147 = scmp.eq.s32.totalorder %s15, 3
      %p148 = por %p146, %p147
      %p149 = scmp.ne.s32.totalorder %s141, %s144
      %p150 = scmp.eq.s32.totalorder %s15, 0
      %p151 = por %p149, %p150
      %p152 = scmp.ne.s32.totalorder %s141, %s144
      %p153 = scmp.eq.s32.totalorder %s20, 3
      %p154 = por %p152, %p153
      %p155 = scmp.ne.s32.totalorder %s144, %s145
      %p156 = scmp.eq.s32.totalorder %s20, 0
      %p157 = por %p155, %p156
      %p158 = scmp.ne.s32.totalorder %s144, %s145
      %p159 = scmp.eq.s32.totalorder %s21, 3
      %p160 = por %p158, %p159
      %p162 = scmp.ne.s32.totalorder %s145, %s161
      %p163 = scmp.eq.s32.totalorder %s21, 0
      %p164 = por %p162, %p163
      %s165 = ssub.s32 %s23, %s30
      %p166 = scmp.eq.s32.totalorder %s165, 0
      %s168 = sadd.s32 %s167, 1
      %s169 = scalar_select %p166, %s167, %s168
      %p172 = pneg %p166
      %p173 = scmp.eq.s32.totalorder %s15, 3
      %p174 = por %p172, %p173
      %p175 = scmp.ne.s32.totalorder %s167, %s170
      %p176 = scmp.eq.s32.totalorder %s15, 0
      %p177 = por %p175, %p176
      %p178 = scmp.ne.s32.totalorder %s167, %s170
      %p179 = scmp.eq.s32.totalorder %s20, 3
      %p180 = por %p178, %p179
      %p181 = scmp.ne.s32.totalorder %s170, %s171
      %p182 = scmp.eq.s32.totalorder %s20, 0
      %p183 = por %p181, %p182
      %p184 = scmp.ne.s32.totalorder %s170, %s171
      %p185 = scmp.eq.s32.totalorder %s21, 3
      %p186 = por %p184, %p185
      %p188 = scmp.ne.s32.totalorder %s171, %s187
      %p189 = scmp.eq.s32.totalorder %s21, 0
      %p190 = por %p188, %p189
      %s191 = ssub.s32 %s22, %s34
      %p192 = scmp.eq.s32.totalorder %s191, 0
      %s194 = sadd.s32 %s193, 1
      %s195 = scalar_select %p192, %s193, %s194
      %p198 = pneg %p192
      %p199 = scmp.eq.s32.totalorder %s15, 3
      %p200 = por %p198, %p199
      %p201 = scmp.ne.s32.totalorder %s193, %s196
      %p202 = scmp.eq.s32.totalorder %s15, 0
      %p203 = por %p201, %p202
      %p204 = scmp.ne.s32.totalorder %s193, %s196
      %p205 = scmp.eq.s32.totalorder %s20, 3
      %p206 = por %p204, %p205
      %p207 = scmp.ne.s32.totalorder %s196, %s197
      %p208 = scmp.eq.s32.totalorder %s20, 0
      %p209 = por %p207, %p208
      %p210 = scmp.ne.s32.totalorder %s196, %s197
      %p211 = scmp.eq.s32.totalorder %s21, 3
      %p212 = por %p210, %p211
      %p214 = scmp.ne.s32.totalorder %s197, %s213
      %p215 = scmp.eq.s32.totalorder %s21, 0
      %p216 = por %p214, %p215
      %p217 = scmp.le.s32.totalorder 1, %s15
      %p218 = scmp.lt.s32.totalorder %s15, 5
      %p219 = pnand %p217, %p218
      %p220 = pneg %p219
      // Predicated region
      $region9: #{encoder_forward.1} parent=5 // pred_check
        _
      $region10: #{encoder_forward.1} parent=5 // pred_check_branch
        %222 = sbr.rel (%p219) target = $region12
      $region11: #{encoder_forward.1} parent=5 // pred_region
        %s223 = ssub.s32 %s15, 1
      $region12: #{encoder_forward.1} parent=5 // pred_fallthru
        _
      %p224 = scmp.lt.s32.totalorder %s15, 4
      // Predicated region
      $region13: #{encoder_forward.1} parent=5 // pred_check
        %p225 = pneg %p224
      $region14: #{encoder_forward.1} parent=5 // pred_check_branch
        %227 = sbr.rel (%p225) target = $region16
      $region15: #{encoder_forward.1} parent=5 // pred_region
        // Predicated region
        $region17: #{encoder_forward.1} parent=15 // pred_check
          %p228 = pneg %p47
        $region18: #{encoder_forward.1} parent=15 // pred_check_branch
          %230 = sbr.rel (%p228) target = $region20
        $region19: #{encoder_forward.1} parent=15 // pred_region
          %p231 = scmp.lt.s32.totalorder %s22, 1
          %s232 = scalar_select %p231, %s22, 1
          %s233 = smul.addr %s232, 32
          %s234 = smul.addr %s233, 8
          %s235 = scalar_lea.vmem %s0, %s234
        $region20: #{encoder_forward.1} parent=15 // pred_fallthru
          _
        // Predicated region
        $region21: #{encoder_forward.1} parent=15 // pred_check
          %p236 = pneg %p73
        $region22: #{encoder_forward.1} parent=15 // pred_check_branch
          %238 = sbr.rel (%p236) target = $region24
        $region23: #{encoder_forward.1} parent=15 // pred_region
          %p239 = scmp.lt.s32.totalorder %s23, 1
          %s240 = scalar_select %p239, %s23, 1
          %s241 = smul.addr %s240, 192
          %s242 = smul.addr %s241, 4
          %s243 = scalar_lea.vmem %s1, %s242
        $region24: #{encoder_forward.1} parent=15 // pred_fallthru
          _
        // Predicated region
        $region25: #{encoder_forward.1} parent=15 // pred_check
          %p244 = pneg %p99
        $region26: #{encoder_forward.1} parent=15 // pred_check_branch
          %246 = sbr.rel (%p244) target = $region28
        $region27: #{encoder_forward.1} parent=15 // pred_region
          %p247 = scmp.lt.s32.totalorder %s23, 1
          %s248 = scalar_select %p247, %s23, 1
          %s249 = smul.addr %s248, 64
          %s250 = smul.addr %s249, 4
          %s251 = scalar_lea.vmem %s2, %s250
        $region28: #{encoder_forward.1} parent=15 // pred_fallthru
          _
        // Predicated region
        $region29: #{encoder_forward.1} parent=15 // pred_check
          %p252 = pneg %p125
        $region30: #{encoder_forward.1} parent=15 // pred_check_branch
          %254 = sbr.rel (%p252) target = $region32
        $region31: #{encoder_forward.1} parent=15 // pred_region
          %p255 = scmp.lt.s32.totalorder %s23, 1
          %s256 = scalar_select %p255, %s23, 1
          %s257 = smul.addr %s256, 128
          %s258 = smul.addr %s257, 4
          %s259 = scalar_lea.vmem %s3, %s258
        $region32: #{encoder_forward.1} parent=15 // pred_fallthru
          _
        // Predicated region
        $region33: #{encoder_forward.1} parent=15 // pred_check
          %p260 = pneg %p151
        $region34: #{encoder_forward.1} parent=15 // pred_check_branch
          %262 = sbr.rel (%p260) target = $region36
        $region35: #{encoder_forward.1} parent=15 // pred_region
          %p263 = scmp.lt.s32.totalorder %s23, 1
          %s264 = scalar_select %p263, %s23, 1
          %s265 = smul.addr %s264, 128
          %s266 = smul.addr %s265, 4
          %s267 = scalar_lea.vmem %s4, %s266
        $region36: #{encoder_forward.1} parent=15 // pred_fallthru
          _
        // Predicated region
        $region37: #{encoder_forward.1} parent=15 // pred_check
          %p268 = pneg %p177
        $region38: #{encoder_forward.1} parent=15 // pred_check_branch
          %270 = sbr.rel (%p268) target = $region40
        $region39: #{encoder_forward.1} parent=15 // pred_region
          %p271 = scmp.lt.s32.totalorder %s23, 1
          %s272 = scalar_select %p271, %s23, 1
          %s273 = smul.addr %s272, 22
          %s274 = scalar_lea.vmem %s5, %s273
        $region40: #{encoder_forward.1} parent=15 // pred_fallthru
          _
      $region16: #{encoder_forward.1} parent=5 // pred_fallthru
        _
      %p275 = scmp.le.s32.totalorder 1, %s15
      %p276 = scmp.lt.s32.totalorder %s15, 5
      %p277 = pnand %p275, %p276
      %p278 = pneg %p277
      // Predicated region
      $region41: #{encoder_forward.1} parent=5 // pred_check
        _
      $region42: #{encoder_forward.1} parent=5 // pred_check_branch
        %280 = sbr.rel (%p277) target = $region44
      $region43: #{encoder_forward.1} parent=5 // pred_region
        %s281 = ssub.s32 %s15, 1
        %p282 = scmp.lt.s32.totalorder %s24, 1
        %s283 = scalar_select %p282, %s24, 1
        %s284 = smul.addr %s283, 32
        %s285 = smul.addr %s284, 8
        %s286 = scalar_lea.vmem %s0, %s285
        %p287 = pneg %p53
        %p288 = pneg %p50
        %p289 = scmp.lt.s32.totalorder %s25, 1
        %s290 = scalar_select %p289, %s25, 1
        %s291 = smul.addr %s290, 192
        %s292 = smul.addr %s291, 4
        %s293 = scalar_lea.vmem %s1, %s292
        %p294 = pneg %p79
        %p295 = pneg %p76
        %p296 = scmp.lt.s32.totalorder %s25, 1
        %s297 = scalar_select %p296, %s25, 1
        %s298 = smul.addr %s297, 64
        %s299 = smul.addr %s298, 4
        %s300 = scalar_lea.vmem %s2, %s299
        %p301 = pneg %p105
        %p302 = pneg %p102
        %p303 = scmp.lt.s32.totalorder %s25, 1
        %s304 = scalar_select %p303, %s25, 1
        %s305 = smul.addr %s304, 128
        %s306 = smul.addr %s305, 4
        %s307 = scalar_lea.vmem %s3, %s306
        %p308 = pneg %p131
        %p309 = pneg %p128
        %p310 = scmp.lt.s32.totalorder %s25, 1
        %s311 = scalar_select %p310, %s25, 1
        %s312 = smul.addr %s311, 128
        %s313 = smul.addr %s312, 4
        %s314 = scalar_lea.vmem %s4, %s313
        %p315 = pneg %p157
        %p316 = pneg %p154
        %p317 = scmp.lt.s32.totalorder %s25, 1
        %s318 = scalar_select %p317, %s25, 1
        %s319 = smul.addr %s318, 22
        %s320 = scalar_lea.vmem %s5, %s319
        %p321 = pneg %p183
        %p322 = pneg %p180
        %p323 = pneg %p209
        %p324 = pneg %p206
        %s325 = sand.u32 %s196, 1
        %s326 = scalar_lea.sflag [#allocation4], %s325
        %s327 = sand.u32 %s196, 1
        %s328 = smul.addr %s327, 256
        %s329 = scalar_lea.vmem [#allocation3], %s328
        %p330 = scmp.lt.s32.totalorder %s24, 1
        %s331 = scalar_select %p330, %s24, 1
        %s332 = smul.addr %s331, 32
        %s333 = smul.addr %s332, 8
        %s334 = scalar_lea.vmem %s0, %s333
        %p335 = scmp.lt.s32.totalorder %s25, 1
        %s336 = scalar_select %p335, %s25, 1
        %s337 = smul.addr %s336, 192
        %s338 = smul.addr %s337, 4
        %s339 = scalar_lea.vmem %s1, %s338
        %p340 = scmp.lt.s32.totalorder %s25, 1
        %s341 = scalar_select %p340, %s25, 1
        %s342 = smul.addr %s341, 64
        %s343 = smul.addr %s342, 4
        %s344 = scalar_lea.vmem %s2, %s343
        %p345 = scmp.lt.s32.totalorder %s25, 1
        %s346 = scalar_select %p345, %s25, 1
        %s347 = smul.addr %s346, 128
        %s348 = smul.addr %s347, 4
        %s349 = scalar_lea.vmem %s3, %s348
        %p350 = scmp.lt.s32.totalorder %s25, 1
        %s351 = scalar_select %p350, %s25, 1
        %s352 = smul.addr %s351, 128
        %s353 = smul.addr %s352, 4
        %s354 = scalar_lea.vmem %s4, %s353
        %p355 = scmp.lt.s32.totalorder %s25, 1
        %s356 = scalar_select %p355, %s25, 1
        %s357 = smul.addr %s356, 22
        %s358 = scalar_lea.vmem %s5, %s357
        %p360 = scmp.eq.s32.totalorder %s25, 0
        // Predicated region
        $region45: #{encoder_forward.1} parent=43 // pred_check
          %p361 = pneg %p360
        $region46: #{encoder_forward.1} parent=43 // pred_check_branch
          %363 = sbr.rel (%p361) target = $region48
        $region47: #{encoder_forward.1} parent=43 // pred_region
          %v364 = vld [vmem:[%s334] sm:$0xff]
          %v365 = vld [vmem:[%s334 + $0x8] sm:$0xff]
          %v366 = vld [vmem:[%s334 + $0x10] sm:$0xff]
          %v367 = vld [vmem:[%s334 + $0x18] sm:$0xff]
          %v368 = vld [vmem:[%s334 + $0x20] sm:$0xff]
          %v369 = vld [vmem:[%s334 + $0x28] sm:$0xff]
          %v370 = vld [vmem:[%s334 + $0x30] sm:$0xff]
          %v371 = vld [vmem:[%s334 + $0x38] sm:$0xff]
          %v372 = vld [vmem:[%s334 + $0x40] sm:$0xff]
          %v373 = vld [vmem:[%s334 + $0x48] sm:$0xff]
          %v374 = vld [vmem:[%s334 + $0x50] sm:$0xff]
          %v375 = vld [vmem:[%s334 + $0x58] sm:$0xff]
          %v376 = vld [vmem:[%s334 + $0x60] sm:$0xff]
          %v377 = vld [vmem:[%s334 + $0x68] sm:$0xff]
          %v378 = vld [vmem:[%s334 + $0x70] sm:$0xff]
          %v379 = vld [vmem:[%s334 + $0x78] sm:$0xff]
          %v380 = vld [vmem:[%s334 + $0x80] sm:$0xff]
          %v381 = vld [vmem:[%s334 + $0x88] sm:$0xff]
          %v382 = vld [vmem:[%s334 + $0x90] sm:$0xff]
          %v383 = vld [vmem:[%s334 + $0x98] sm:$0xff]
          %v384 = vld [vmem:[%s334 + $0xa0] sm:$0xff]
          %v385 = vld [vmem:[%s334 + $0xa8] sm:$0xff]
          %v386 = vld [vmem:[%s334 + $0xb0] sm:$0xff]
          %v387 = vld [vmem:[%s334 + $0xb8] sm:$0xff]
          %v388 = vld [vmem:[%s334 + $0xc0] sm:$0xff]
          %v389 = vld [vmem:[%s334 + $0xc8] sm:$0xff]
          %v390 = vld [vmem:[%s334 + $0xd0] sm:$0xff]
          %v391 = vld [vmem:[%s334 + $0xd8] sm:$0xff]
          %v392 = vld [vmem:[%s334 + $0xe0] sm:$0xff]
          %v393 = vld [vmem:[%s334 + $0xe8] sm:$0xff]
          %v394 = vld [vmem:[%s334 + $0xf0] sm:$0xff]
          %v395 = vld [vmem:[%s334 + $0xf8] sm:$0xff]
          %396 = vst [vmem:[#allocation2] sm:$0xff] %v364
          %397 = vst [vmem:[#allocation2 + $0x8] sm:$0xff] %v365
          %398 = vst [vmem:[#allocation2 + $0x10] sm:$0xff] %v366
          %399 = vst [vmem:[#allocation2 + $0x18] sm:$0xff] %v367
          %400 = vst [vmem:[#allocation2 + $0x20] sm:$0xff] %v368
          %401 = vst [vmem:[#allocation2 + $0x28] sm:$0xff] %v369
          %402 = vst [vmem:[#allocation2 + $0x30] sm:$0xff] %v370
          %403 = vst [vmem:[#allocation2 + $0x38] sm:$0xff] %v371
          %404 = vst [vmem:[#allocation2 + $0x40] sm:$0xff] %v372
          %405 = vst [vmem:[#allocation2 + $0x48] sm:$0xff] %v373
          %406 = vst [vmem:[#allocation2 + $0x50] sm:$0xff] %v374
          %407 = vst [vmem:[#allocation2 + $0x58] sm:$0xff] %v375
          %408 = vst [vmem:[#allocation2 + $0x60] sm:$0xff] %v376
          %409 = vst [vmem:[#allocation2 + $0x68] sm:$0xff] %v377
          %410 = vst [vmem:[#allocation2 + $0x70] sm:$0xff] %v378
          %411 = vst [vmem:[#allocation2 + $0x78] sm:$0xff] %v379
          %412 = vst [vmem:[#allocation2 + $0x80] sm:$0xff] %v380
          %413 = vst [vmem:[#allocation2 + $0x88] sm:$0xff] %v381
          %414 = vst [vmem:[#allocation2 + $0x90] sm:$0xff] %v382
          %415 = vst [vmem:[#allocation2 + $0x98] sm:$0xff] %v383
          %416 = vst [vmem:[#allocation2 + $0xa0] sm:$0xff] %v384
          %417 = vst [vmem:[#allocation2 + $0xa8] sm:$0xff] %v385
          %418 = vst [vmem:[#allocation2 + $0xb0] sm:$0xff] %v386
          %419 = vst [vmem:[#allocation2 + $0xb8] sm:$0xff] %v387
          %420 = vst [vmem:[#allocation2 + $0xc0] sm:$0xff] %v388
          %421 = vst [vmem:[#allocation2 + $0xc8] sm:$0xff] %v389
          %422 = vst [vmem:[#allocation2 + $0xd0] sm:$0xff] %v390
          %423 = vst [vmem:[#allocation2 + $0xd8] sm:$0xff] %v391
          %424 = vst [vmem:[#allocation2 + $0xe0] sm:$0xff] %v392
          %425 = vst [vmem:[#allocation2 + $0xe8] sm:$0xff] %v393
          %426 = vst [vmem:[#allocation2 + $0xf0] sm:$0xff] %v394
          %427 = vst [vmem:[#allocation2 + $0xf8] sm:$0xff] %v395
        $region48: #{encoder_forward.1} parent=43 // pred_fallthru
          _
        %v428 = vld [vmem:[#allocation2] sm:$0xff]
        %v429 = vld [vmem:[#allocation2 + $0x8] sm:$0xff]
        %v430 = vld [vmem:[#allocation2 + $0x10] sm:$0xff]
        %v431 = vld [vmem:[#allocation2 + $0x18] sm:$0xff]
        %v432 = vld [vmem:[#allocation2 + $0x20] sm:$0xff]
        %v433 = vld [vmem:[#allocation2 + $0x28] sm:$0xff]
        %v434 = vld [vmem:[#allocation2 + $0x30] sm:$0xff]
        %v435 = vld [vmem:[#allocation2 + $0x38] sm:$0xff]
        %v436 = vld [vmem:[#allocation2 + $0x40] sm:$0xff]
        %v437 = vld [vmem:[#allocation2 + $0x48] sm:$0xff]
        %v438 = vld [vmem:[#allocation2 + $0x50] sm:$0xff]
        %v439 = vld [vmem:[#allocation2 + $0x58] sm:$0xff]
        %v440 = vld [vmem:[#allocation2 + $0x60] sm:$0xff]
        %v441 = vld [vmem:[#allocation2 + $0x68] sm:$0xff]
        %v442 = vld [vmem:[#allocation2 + $0x70] sm:$0xff]
        %v443 = vld [vmem:[#allocation2 + $0x78] sm:$0xff]
        %v444 = vld [vmem:[#allocation2 + $0x80] sm:$0xff]
        %v445 = vld [vmem:[#allocation2 + $0x88] sm:$0xff]
        %v446 = vld [vmem:[#allocation2 + $0x90] sm:$0xff]
        %v447 = vld [vmem:[#allocation2 + $0x98] sm:$0xff]
        %v448 = vld [vmem:[#allocation2 + $0xa0] sm:$0xff]
        %v449 = vld [vmem:[#allocation2 + $0xa8] sm:$0xff]
        %v450 = vld [vmem:[#allocation2 + $0xb0] sm:$0xff]
        %v451 = vld [vmem:[#allocation2 + $0xb8] sm:$0xff]
        %v452 = vld [vmem:[#allocation2 + $0xc0] sm:$0xff]
        %v453 = vld [vmem:[#allocation2 + $0xc8] sm:$0xff]
        %v454 = vld [vmem:[#allocation2 + $0xd0] sm:$0xff]
        %v455 = vld [vmem:[#allocation2 + $0xd8] sm:$0xff]
        %v456 = vld [vmem:[#allocation2 + $0xe0] sm:$0xff]
        %v457 = vld [vmem:[#allocation2 + $0xe8] sm:$0xff]
        %v458 = vld [vmem:[#allocation2 + $0xf0] sm:$0xff]
        %v459 = vld [vmem:[#allocation2 + $0xf8] sm:$0xff]
        %v460 = vld [vmem:[%s358] sm:$0x3f]
        %v461 = vld [vmem:[%s358 + $0x6] sm:$0x3]
        %v462 = vld [vmem:[%s358 + $0x8] sm:$0x3]
        %v463 = vld [vmem:[%s358 + $0xa] sm:$0x3]
        %v464 = vld [vmem:[%s358 + $0xc] sm:$0xf]
        %v465 = vld [vmem:[%s358 + $0x10] sm:$0x3]
        %v466 = vld [vmem:[%s358 + $0x12] sm:$0x3]
        %v467 = vld [vmem:[%s358 + $0x14] sm:$0x3]
        %v468 = vpack.c.bf16 %v430, %v428
        %v469 = vpack.c.bf16 %v431, %v429
        %v470 = vpack.c.bf16 %v434, %v432
        %v471 = vpack.c.bf16 %v435, %v433
        %v472 = vpack.c.bf16 %v438, %v436
        %v473 = vpack.c.bf16 %v439, %v437
        %v474 = vpack.c.bf16 %v442, %v440
        %v475 = vpack.c.bf16 %v443, %v441
        %v476 = vpack.c.bf16 %v446, %v444
        %v477 = vpack.c.bf16 %v447, %v445
        %v478 = vpack.c.bf16 %v450, %v448
        %v479 = vpack.c.bf16 %v451, %v449
        %v480 = vpack.c.bf16 %v454, %v452
        %v481 = vpack.c.bf16 %v455, %v453
        %v482 = vpack.c.bf16 %v458, %v456
        %v483 = vpack.c.bf16 %v459, %v457
        %v484 = vld [vmem:[%s339] sm:$0xff]
        %v485 = vld [vmem:[%s339 + $0x8] sm:$0xff]
        %v486 = vld [vmem:[%s339 + $0x10] sm:$0xff]
        %v487 = vld [vmem:[%s339 + $0x18] sm:$0xff]
        %v488 = vld [vmem:[%s339 + $0x20] sm:$0xff]
        %v489 = vld [vmem:[%s339 + $0x28] sm:$0xff]
        %v490 = vld [vmem:[%s339 + $0x30] sm:$0xff]
        %v491 = vld [vmem:[%s339 + $0x38] sm:$0xff]
        %v492 = vld [vmem:[%s339 + $0x40] sm:$0xff]
        %v493 = vld [vmem:[%s339 + $0x48] sm:$0xff]
        %v494 = vld [vmem:[%s339 + $0x50] sm:$0xff]
        %v495 = vld [vmem:[%s339 + $0x58] sm:$0xff]
        %v496 = vld [vmem:[%s339 + $0x60] sm:$0xff]
        %v497 = vld [vmem:[%s339 + $0x68] sm:$0xff]
        %v498 = vld [vmem:[%s339 + $0x70] sm:$0xff]
        %v499 = vld [vmem:[%s339 + $0x78] sm:$0xff]
        %v500 = vld [vmem:[%s339 + $0x80] sm:$0xff]
        %v501 = vld [vmem:[%s339 + $0x88] sm:$0xff]
        %v502 = vld [vmem:[%s339 + $0x90] sm:$0xff]
        %v503 = vld [vmem:[%s339 + $0x98] sm:$0xff]
        %v504 = vld [vmem:[%s339 + $0xa0] sm:$0xff]
        %v505 = vld [vmem:[%s339 + $0xa8] sm:$0xff]
        %v506 = vld [vmem:[%s339 + $0xb0] sm:$0xff]
        %v507 = vld [vmem:[%s339 + $0xb8] sm:$0xff]
        %v508 = vld [vmem:[%s339 + $0xc0] sm:$0xff]
        %v509 = vld [vmem:[%s339 + $0xc8] sm:$0xff]
        %v510 = vld [vmem:[%s339 + $0xd0] sm:$0xff]
        %v511 = vld [vmem:[%s339 + $0xd8] sm:$0xff]
        %v512 = vld [vmem:[%s339 + $0xe0] sm:$0xff]
        %v513 = vld [vmem:[%s339 + $0xe8] sm:$0xff]
        %v514 = vld [vmem:[%s339 + $0xf0] sm:$0xff]
        %v515 = vld [vmem:[%s339 + $0xf8] sm:$0xff]
        %v516 = vld [vmem:[%s339 + $0x100] sm:$0xff]
        %v517 = vld [vmem:[%s339 + $0x108] sm:$0xff]
        %v518 = vld [vmem:[%s339 + $0x110] sm:$0xff]
        %v519 = vld [vmem:[%s339 + $0x118] sm:$0xff]
        %v520 = vld [vmem:[%s339 + $0x120] sm:$0xff]
        %v521 = vld [vmem:[%s339 + $0x128] sm:$0xff]
        %v522 = vld [vmem:[%s339 + $0x130] sm:$0xff]
        %v523 = vld [vmem:[%s339 + $0x138] sm:$0xff]
        %v524 = vld [vmem:[%s339 + $0x140] sm:$0xff]
        %v525 = vld [vmem:[%s339 + $0x148] sm:$0xff]
        %v526 = vld [vmem:[%s339 + $0x150] sm:$0xff]
        %v527 = vld [vmem:[%s339 + $0x158] sm:$0xff]
        %v528 = vld [vmem:[%s339 + $0x160] sm:$0xff]
        %v529 = vld [vmem:[%s339 + $0x168] sm:$0xff]
        %v530 = vld [vmem:[%s339 + $0x170] sm:$0xff]
        %v531 = vld [vmem:[%s339 + $0x178] sm:$0xff]
        %v532 = vld [vmem:[%s339 + $0x180] sm:$0xff]
        %v533 = vld [vmem:[%s339 + $0x188] sm:$0xff]
        %v534 = vld [vmem:[%s339 + $0x190] sm:$0xff]
        %v535 = vld [vmem:[%s339 + $0x198] sm:$0xff]
        %v536 = vld [vmem:[%s339 + $0x1a0] sm:$0xff]
        %v537 = vld [vmem:[%s339 + $0x1a8] sm:$0xff]
        %v538 = vld [vmem:[%s339 + $0x1b0] sm:$0xff]
        %v539 = vld [vmem:[%s339 + $0x1b8] sm:$0xff]
        %v540 = vld [vmem:[%s339 + $0x1c0] sm:$0xff]
        %v541 = vld [vmem:[%s339 + $0x1c8] sm:$0xff]
        %v542 = vld [vmem:[%s339 + $0x1d0] sm:$0xff]
        %v543 = vld [vmem:[%s339 + $0x1d8] sm:$0xff]
        %v544 = vld [vmem:[%s339 + $0x1e0] sm:$0xff]
        %v545 = vld [vmem:[%s339 + $0x1e8] sm:$0xff]
        %v546 = vld [vmem:[%s339 + $0x1f0] sm:$0xff]
        %v547 = vld [vmem:[%s339 + $0x1f8] sm:$0xff]
        %v548 = vld [vmem:[%s339 + $0x200] sm:$0xff]
        %v549 = vld [vmem:[%s339 + $0x208] sm:$0xff]
        %v550 = vld [vmem:[%s339 + $0x210] sm:$0xff]
        %v551 = vld [vmem:[%s339 + $0x218] sm:$0xff]
        %v552 = vld [vmem:[%s339 + $0x220] sm:$0xff]
        %v553 = vld [vmem:[%s339 + $0x228] sm:$0xff]
        %v554 = vld [vmem:[%s339 + $0x230] sm:$0xff]
        %v555 = vld [vmem:[%s339 + $0x238] sm:$0xff]
        %v556 = vld [vmem:[%s339 + $0x240] sm:$0xff]
        %v557 = vld [vmem:[%s339 + $0x248] sm:$0xff]
        %v558 = vld [vmem:[%s339 + $0x250] sm:$0xff]
        %v559 = vld [vmem:[%s339 + $0x258] sm:$0xff]
        %v560 = vld [vmem:[%s339 + $0x260] sm:$0xff]
        %v561 = vld [vmem:[%s339 + $0x268] sm:$0xff]
        %v562 = vld [vmem:[%s339 + $0x270] sm:$0xff]
        %v563 = vld [vmem:[%s339 + $0x278] sm:$0xff]
        %v564 = vld [vmem:[%s339 + $0x280] sm:$0xff]
        %v565 = vld [vmem:[%s339 + $0x288] sm:$0xff]
        %v566 = vld [vmem:[%s339 + $0x290] sm:$0xff]
        %v567 = vld [vmem:[%s339 + $0x298] sm:$0xff]
        %v568 = vld [vmem:[%s339 + $0x2a0] sm:$0xff]
        %v569 = vld [vmem:[%s339 + $0x2a8] sm:$0xff]
        %v570 = vld [vmem:[%s339 + $0x2b0] sm:$0xff]
        %v571 = vld [vmem:[%s339 + $0x2b8] sm:$0xff]
        %v572 = vld [vmem:[%s339 + $0x2c0] sm:$0xff]
        %v573 = vld [vmem:[%s339 + $0x2c8] sm:$0xff]
        %v574 = vld [vmem:[%s339 + $0x2d0] sm:$0xff]
        %v575 = vld [vmem:[%s339 + $0x2d8] sm:$0xff]
        %v576 = vld [vmem:[%s339 + $0x2e0] sm:$0xff]
        %v577 = vld [vmem:[%s339 + $0x2e8] sm:$0xff]
        %v578 = vld [vmem:[%s339 + $0x2f0] sm:$0xff]
        %v579 = vld [vmem:[%s339 + $0x2f8] sm:$0xff]
        %v581 = vlaneseq
        %v582 = vshrl.u32 %v581, 7
        %v583 = vsub.s32 0, %v582
        %v584 = vrot.slane %v460, %v583
        %v585 = vlaneseq
        %v586 = vshrl.u32 %v585, 7
        %v587 = vsub.s32 1, %v586
        %v588 = vrot.slane %v460, %v587
        %v589 = vlaneseq
        %v590 = vshrl.u32 %v589, 7
        %v591 = vsub.s32 2, %v590
        %v592 = vrot.slane %v460, %v591
        %v593 = vlaneseq
        %v594 = vshrl.u32 %v593, 7
        %v595 = vsub.s32 3, %v594
        %v596 = vrot.slane %v460, %v595
        %v597 = vlaneseq
        %v598 = vshrl.u32 %v597, 7
        %v599 = vsub.s32 4, %v598
        %v600 = vrot.slane %v460, %v599
        %v601 = vlaneseq
        %v602 = vshrl.u32 %v601, 7
        %v603 = vsub.s32 5, %v602
        %v604 = vrot.slane %v460, %v603
        %v707 = vunpack.c.l.b16 %v484
        %v708 = vunpack.c.h.b16 %v484
        %v709 = vunpack.c.l.b16 %v485
        %v710 = vunpack.c.h.b16 %v485
        %v711 = vunpack.c.l.b16 %v486
        %v712 = vunpack.c.h.b16 %v486
        %v713 = vunpack.c.l.b16 %v487
        %v714 = vunpack.c.h.b16 %v487
        %v715 = vunpack.c.l.b16 %v488
        %v716 = vunpack.c.h.b16 %v488
        %v717 = vunpack.c.l.b16 %v489
        %v718 = vunpack.c.h.b16 %v489
        %v719 = vunpack.c.l.b16 %v490
        %v720 = vunpack.c.h.b16 %v490
        %v721 = vunpack.c.l.b16 %v491
        %v722 = vunpack.c.h.b16 %v491
        %v723 = vunpack.c.l.b16 %v492
        %v724 = vunpack.c.h.b16 %v492
        %v725 = vunpack.c.l.b16 %v493
        %v726 = vunpack.c.h.b16 %v493
        %v727 = vunpack.c.l.b16 %v494
        %v728 = vunpack.c.h.b16 %v494
        %v729 = vunpack.c.l.b16 %v495
        %v730 = vunpack.c.h.b16 %v495
        %v731 = vunpack.c.l.b16 %v496
        %v732 = vunpack.c.h.b16 %v496
        %v733 = vunpack.c.l.b16 %v497
        %v734 = vunpack.c.h.b16 %v497
        %v735 = vunpack.c.l.b16 %v498
        %v736 = vunpack.c.h.b16 %v498
        %v737 = vunpack.c.l.b16 %v499
        %v738 = vunpack.c.h.b16 %v499
        %v739 = vunpack.c.l.b16 %v500
        %v740 = vunpack.c.h.b16 %v500
        %v741 = vunpack.c.l.b16 %v501
        %v742 = vunpack.c.h.b16 %v501
        %v743 = vunpack.c.l.b16 %v502
        %v744 = vunpack.c.h.b16 %v502
        %v745 = vunpack.c.l.b16 %v503
        %v746 = vunpack.c.h.b16 %v503
        %v747 = vunpack.c.l.b16 %v504
        %v748 = vunpack.c.h.b16 %v504
        %v749 = vunpack.c.l.b16 %v505
        %v750 = vunpack.c.h.b16 %v505
        %v751 = vunpack.c.l.b16 %v506
        %v752 = vunpack.c.h.b16 %v506
        %v753 = vunpack.c.l.b16 %v507
        %v754 = vunpack.c.h.b16 %v507
        %v755 = vunpack.c.l.b16 %v508
        %v756 = vunpack.c.h.b16 %v508
        %v757 = vunpack.c.l.b16 %v509
        %v758 = vunpack.c.h.b16 %v509
        %v759 = vunpack.c.l.b16 %v510
        %v760 = vunpack.c.h.b16 %v510
        %v761 = vunpack.c.l.b16 %v511
        %v762 = vunpack.c.h.b16 %v511
        %v763 = vunpack.c.l.b16 %v512
        %v764 = vunpack.c.h.b16 %v512
        %v765 = vunpack.c.l.b16 %v513
        %v766 = vunpack.c.h.b16 %v513
        %v767 = vunpack.c.l.b16 %v514
        %v768 = vunpack.c.h.b16 %v514
        %v769 = vunpack.c.l.b16 %v515
        %v770 = vunpack.c.h.b16 %v515
        %v771 = vunpack.c.l.b16 %v516
        %v772 = vunpack.c.h.b16 %v516
        %v773 = vunpack.c.l.b16 %v517
        %v774 = vunpack.c.h.b16 %v517
        %v775 = vunpack.c.l.b16 %v518
        %v776 = vunpack.c.h.b16 %v518
        %v777 = vunpack.c.l.b16 %v519
        %v778 = vunpack.c.h.b16 %v519
        %v779 = vunpack.c.l.b16 %v520
        %v780 = vunpack.c.h.b16 %v520
        %v781 = vunpack.c.l.b16 %v521
        %v782 = vunpack.c.h.b16 %v521
        %v783 = vunpack.c.l.b16 %v522
        %v784 = vunpack.c.h.b16 %v522
        %v785 = vunpack.c.l.b16 %v523
        %v786 = vunpack.c.h.b16 %v523
        %v787 = vunpack.c.l.b16 %v524
        %v788 = vunpack.c.h.b16 %v524
        %v789 = vunpack.c.l.b16 %v525
        %v790 = vunpack.c.h.b16 %v525
        %v791 = vunpack.c.l.b16 %v526
        %v792 = vunpack.c.h.b16 %v526
        %v793 = vunpack.c.l.b16 %v527
        %v794 = vunpack.c.h.b16 %v527
        %v795 = vunpack.c.l.b16 %v528
        %v796 = vunpack.c.h.b16 %v528
        %v797 = vunpack.c.l.b16 %v529
        %v798 = vunpack.c.h.b16 %v529
        %v799 = vunpack.c.l.b16 %v530
        %v800 = vunpack.c.h.b16 %v530
        %v801 = vunpack.c.l.b16 %v531
        %v802 = vunpack.c.h.b16 %v531
        %v803 = vunpack.c.l.b16 %v532
        %v804 = vunpack.c.h.b16 %v532
        %v805 = vunpack.c.l.b16 %v533
        %v806 = vunpack.c.h.b16 %v533
        %v807 = vunpack.c.l.b16 %v534
        %v808 = vunpack.c.h.b16 %v534
        %v809 = vunpack.c.l.b16 %v535
        %v810 = vunpack.c.h.b16 %v535
        %v811 = vunpack.c.l.b16 %v536
        %v812 = vunpack.c.h.b16 %v536
        %v813 = vunpack.c.l.b16 %v537
        %v814 = vunpack.c.h.b16 %v537
        %v815 = vunpack.c.l.b16 %v538
        %v816 = vunpack.c.h.b16 %v538
        %v817 = vunpack.c.l.b16 %v539
        %v818 = vunpack.c.h.b16 %v539
        %v819 = vunpack.c.l.b16 %v540
        %v820 = vunpack.c.h.b16 %v540
        %v821 = vunpack.c.l.b16 %v541
        %v822 = vunpack.c.h.b16 %v541
        %v823 = vunpack.c.l.b16 %v542
        %v824 = vunpack.c.h.b16 %v542
        %v825 = vunpack.c.l.b16 %v543
        %v826 = vunpack.c.h.b16 %v543
        %v827 = vunpack.c.l.b16 %v544
        %v828 = vunpack.c.h.b16 %v544
        %v829 = vunpack.c.l.b16 %v545
        %v830 = vunpack.c.h.b16 %v545
        %v831 = vunpack.c.l.b16 %v546
        %v832 = vunpack.c.h.b16 %v546
        %v833 = vunpack.c.l.b16 %v547
        %v834 = vunpack.c.h.b16 %v547
        %v835 = vunpack.c.l.b16 %v548
        %v836 = vunpack.c.h.b16 %v548
        %v837 = vunpack.c.l.b16 %v549
        %v838 = vunpack.c.h.b16 %v549
        %v839 = vunpack.c.l.b16 %v550
        %v840 = vunpack.c.h.b16 %v550
        %v841 = vunpack.c.l.b16 %v551
        %v842 = vunpack.c.h.b16 %v551
        %v843 = vunpack.c.l.b16 %v552
        %v844 = vunpack.c.h.b16 %v552
        %v845 = vunpack.c.l.b16 %v553
        %v846 = vunpack.c.h.b16 %v553
        %v847 = vunpack.c.l.b16 %v554
        %v848 = vunpack.c.h.b16 %v554
        %v849 = vunpack.c.l.b16 %v555
        %v850 = vunpack.c.h.b16 %v555
        %v851 = vunpack.c.l.b16 %v556
        %v852 = vunpack.c.h.b16 %v556
        %v853 = vunpack.c.l.b16 %v557
        %v854 = vunpack.c.h.b16 %v557
        %v855 = vunpack.c.l.b16 %v558
        %v856 = vunpack.c.h.b16 %v558
        %v857 = vunpack.c.l.b16 %v559
        %v858 = vunpack.c.h.b16 %v559
        %v859 = vunpack.c.l.b16 %v560
        %v860 = vunpack.c.h.b16 %v560
        %v861 = vunpack.c.l.b16 %v561
        %v862 = vunpack.c.h.b16 %v561
        %v863 = vunpack.c.l.b16 %v562
        %v864 = vunpack.c.h.b16 %v562
        %v865 = vunpack.c.l.b16 %v563
        %v866 = vunpack.c.h.b16 %v563
        %v867 = vunpack.c.l.b16 %v564
        %v868 = vunpack.c.h.b16 %v564
        %v869 = vunpack.c.l.b16 %v565
        %v870 = vunpack.c.h.b16 %v565
        %v871 = vunpack.c.l.b16 %v566
        %v872 = vunpack.c.h.b16 %v566
        %v873 = vunpack.c.l.b16 %v567
        %v874 = vunpack.c.h.b16 %v567
        %v875 = vunpack.c.l.b16 %v568
        %v876 = vunpack.c.h.b16 %v568
        %v877 = vunpack.c.l.b16 %v569
        %v878 = vunpack.c.h.b16 %v569
        %v879 = vunpack.c.l.b16 %v570
        %v880 = vunpack.c.h.b16 %v570
        %v881 = vunpack.c.l.b16 %v571
        %v882 = vunpack.c.h.b16 %v571
        %v883 = vunpack.c.l.b16 %v572
        %v884 = vunpack.c.h.b16 %v572
        %v885 = vunpack.c.l.b16 %v573
        %v886 = vunpack.c.h.b16 %v573
        %v887 = vunpack.c.l.b16 %v574
        %v888 = vunpack.c.h.b16 %v574
        %v889 = vunpack.c.l.b16 %v575
        %v890 = vunpack.c.h.b16 %v575
        %v891 = vunpack.c.l.b16 %v576
        %v892 = vunpack.c.h.b16 %v576
        %v893 = vunpack.c.l.b16 %v577
        %v894 = vunpack.c.h.b16 %v577
        %v895 = vunpack.c.l.b16 %v578
        %v896 = vunpack.c.h.b16 %v578
        %v897 = vunpack.c.l.b16 %v579
        %v898 = vunpack.c.h.b16 %v579
        %v899 = vpack.c.b16 %v713, %v707
        %v900 = vpack.c.b16 %v714, %v708
        %v901 = vpack.c.b16 %v715, %v709
        %v902 = vpack.c.b16 %v716, %v710
        %v903 = vpack.c.b16 %v717, %v711
        %v904 = vpack.c.b16 %v718, %v712
        %v905 = vpack.c.b16 %v725, %v719
        %v906 = vpack.c.b16 %v726, %v720
        %v907 = vpack.c.b16 %v727, %v721
        %v908 = vpack.c.b16 %v728, %v722
        %v909 = vpack.c.b16 %v729, %v723
        %v910 = vpack.c.b16 %v730, %v724
        %v911 = vpack.c.b16 %v737, %v731
        %v912 = vpack.c.b16 %v738, %v732
        %v913 = vpack.c.b16 %v739, %v733
        %v914 = vpack.c.b16 %v740, %v734
        %v915 = vpack.c.b16 %v741, %v735
        %v916 = vpack.c.b16 %v742, %v736
        %v917 = vpack.c.b16 %v749, %v743
        %v918 = vpack.c.b16 %v750, %v744
        %v919 = vpack.c.b16 %v751, %v745
        %v920 = vpack.c.b16 %v752, %v746
        %v921 = vpack.c.b16 %v753, %v747
        %v922 = vpack.c.b16 %v754, %v748
        %v923 = vpack.c.b16 %v761, %v755
        %v924 = vpack.c.b16 %v762, %v756
        %v925 = vpack.c.b16 %v763, %v757
        %v926 = vpack.c.b16 %v764, %v758
        %v927 = vpack.c.b16 %v765, %v759
        %v928 = vpack.c.b16 %v766, %v760
        %v929 = vpack.c.b16 %v773, %v767
        %v930 = vpack.c.b16 %v774, %v768
        %v931 = vpack.c.b16 %v775, %v769
        %v932 = vpack.c.b16 %v776, %v770
        %v933 = vpack.c.b16 %v777, %v771
        %v934 = vpack.c.b16 %v778, %v772
        %v935 = vpack.c.b16 %v785, %v779
        %v936 = vpack.c.b16 %v786, %v780
        %v937 = vpack.c.b16 %v787, %v781
        %v938 = vpack.c.b16 %v788, %v782
        %v939 = vpack.c.b16 %v789, %v783
        %v940 = vpack.c.b16 %v790, %v784
        %v941 = vpack.c.b16 %v797, %v791
        %v942 = vpack.c.b16 %v798, %v792
        %v943 = vpack.c.b16 %v799, %v793
        %v944 = vpack.c.b16 %v800, %v794
        %v945 = vpack.c.b16 %v801, %v795
        %v946 = vpack.c.b16 %v802, %v796
        %v947 = vpack.c.b16 %v809, %v803
        %v948 = vpack.c.b16 %v810, %v804
        %v949 = vpack.c.b16 %v811, %v805
        %v950 = vpack.c.b16 %v812, %v806
        %v951 = vpack.c.b16 %v813, %v807
        %v952 = vpack.c.b16 %v814, %v808
        %v953 = vpack.c.b16 %v821, %v815
        %v954 = vpack.c.b16 %v822, %v816
        %v955 = vpack.c.b16 %v823, %v817
        %v956 = vpack.c.b16 %v824, %v818
        %v957 = vpack.c.b16 %v825, %v819
        %v958 = vpack.c.b16 %v826, %v820
        %v959 = vpack.c.b16 %v833, %v827
        %v960 = vpack.c.b16 %v834, %v828
        %v961 = vpack.c.b16 %v835, %v829
        %v962 = vpack.c.b16 %v836, %v830
        %v963 = vpack.c.b16 %v837, %v831
        %v964 = vpack.c.b16 %v838, %v832
        %v965 = vpack.c.b16 %v845, %v839
        %v966 = vpack.c.b16 %v846, %v840
        %v967 = vpack.c.b16 %v847, %v841
        %v968 = vpack.c.b16 %v848, %v842
        %v969 = vpack.c.b16 %v849, %v843
        %v970 = vpack.c.b16 %v850, %v844
        %v971 = vpack.c.b16 %v857, %v851
        %v972 = vpack.c.b16 %v858, %v852
        %v973 = vpack.c.b16 %v859, %v853
        %v974 = vpack.c.b16 %v860, %v854
        %v975 = vpack.c.b16 %v861, %v855
        %v976 = vpack.c.b16 %v862, %v856
        %v977 = vpack.c.b16 %v869, %v863
        %v978 = vpack.c.b16 %v870, %v864
        %v979 = vpack.c.b16 %v871, %v865
        %v980 = vpack.c.b16 %v872, %v866
        %v981 = vpack.c.b16 %v873, %v867
        %v982 = vpack.c.b16 %v874, %v868
        %v983 = vpack.c.b16 %v881, %v875
        %v984 = vpack.c.b16 %v882, %v876
        %v985 = vpack.c.b16 %v883, %v877
        %v986 = vpack.c.b16 %v884, %v878
        %v987 = vpack.c.b16 %v885, %v879
        %v988 = vpack.c.b16 %v886, %v880
        %v989 = vpack.c.b16 %v893, %v887
        %v990 = vpack.c.b16 %v894, %v888
        %v991 = vpack.c.b16 %v895, %v889
        %v992 = vpack.c.b16 %v896, %v890
        %v993 = vpack.c.b16 %v897, %v891
        %v994 = vpack.c.b16 %v898, %v892
        %1091 = vmatprep.subr.bf16.mxu0 %v942
        %1092 = vmatpush1.bf16.msra.mxu0 %v941
        %1093 = vmatprep.subr.bf16.mxu0 %v936
        %1094 = vmatpush1.bf16.msra.mxu0 %v935
        %1095 = vmatprep.subr.bf16.mxu0 %v930
        %1096 = vmatpush1.bf16.msra.mxu0 %v929
        %1097 = vmatprep.subr.bf16.mxu0 %v924
        %1098 = vmatpush1.bf16.msra.mxu0 %v923
        %1099 = vmatprep.subr.bf16.mxu0 %v918
        %1100 = vmatpush1.bf16.msra.mxu0 %v917
        %1101 = vmatprep.subr.bf16.mxu0 %v912
        %1102 = vmatpush1.bf16.msra.mxu0 %v911
        %1103 = vmatprep.subr.bf16.mxu0 %v906
        %1104 = vmatpush1.bf16.msra.mxu0 %v905
        %1105 = vmatprep.subr.bf16.mxu0 %v900
        %1106 = vmatpush1.bf16.msra.mxu0 %v899
        %1107 = vmatprep.subr.bf16.mxu0 %v990
        %1108 = vmatpush2.bf16.msra.mxu0 %v989
        %1109 = vmatprep.subr.bf16.mxu0 %v984
        %1110 = vmatpush2.bf16.msra.mxu0 %v983
        %1111 = vmatprep.subr.bf16.mxu0 %v978
        %1112 = vmatpush2.bf16.msra.mxu0 %v977
        %1113 = vmatprep.subr.bf16.mxu0 %v972
        %1114 = vmatpush2.bf16.msra.mxu0 %v971
        %1115 = vmatprep.subr.bf16.mxu0 %v966
        %1116 = vmatpush2.bf16.msra.mxu0 %v965
        %1117 = vmatprep.subr.bf16.mxu0 %v960
        %1118 = vmatpush2.bf16.msra.mxu0 %v959
        %1119 = vmatprep.subr.bf16.mxu0 %v954
        %1120 = vmatpush2.bf16.msra.mxu0 %v953
        %1121 = vmatprep.subr.bf16.mxu0 %v948
        %1122 = vmatpush2.bf16.msra.mxu0 %v947
        %1123 = vmatprep.mubr.bf16.mxu0 %v469
        %1124 = vmatmul.mubr.bf16.gmra.mxu0 %v468
        %v1125 = vpop.f32.mrf.mxu0
        %v1126 = vadd.f32 %v584, %v1125
        %v1127 = vpop.f32.mrf.mxu0
        %v1128 = vadd.f32 %v588, %v1127
        %v1129 = vpop.f32.mrf.mxu0
        %v1130 = vadd.f32 %v584, %v1129
        %v1131 = vpop.f32.mrf.mxu0
        %v1132 = vadd.f32 %v588, %v1131
        %1133 = vmatprep.mubr.bf16.mxu0 %v471
        %1134 = vmatmul.mubr.bf16.gmra.mxu0 %v470
        %v1135 = vpop.f32.mrf.mxu0
        %v1136 = vadd.f32 %v584, %v1135
        %v1137 = vpop.f32.mrf.mxu0
        %v1138 = vadd.f32 %v588, %v1137
        %v1139 = vpop.f32.mrf.mxu0
        %v1140 = vadd.f32 %v584, %v1139
        %v1141 = vpop.f32.mrf.mxu0
        %v1142 = vadd.f32 %v588, %v1141
        %1143 = vmatprep.mubr.bf16.mxu0 %v473
        %1144 = vmatmul.mubr.bf16.gmra.mxu0 %v472
        %v1145 = vpop.f32.mrf.mxu0
        %v1146 = vadd.f32 %v584, %v1145
        %v1147 = vpop.f32.mrf.mxu0
        %v1148 = vadd.f32 %v588, %v1147
        %v1149 = vpop.f32.mrf.mxu0
        %v1150 = vadd.f32 %v584, %v1149
        %v1151 = vpop.f32.mrf.mxu0
        %v1152 = vadd.f32 %v588, %v1151
        %1153 = vmatprep.mubr.bf16.mxu0 %v475
        %1154 = vmatmul.mubr.bf16.gmra.mxu0 %v474
        %v1155 = vpop.f32.mrf.mxu0
        %v1156 = vadd.f32 %v584, %v1155
        %v1157 = vpop.f32.mrf.mxu0
        %v1158 = vadd.f32 %v588, %v1157
        %v1159 = vpop.f32.mrf.mxu0
        %v1160 = vadd.f32 %v584, %v1159
        %v1161 = vpop.f32.mrf.mxu0
        %v1162 = vadd.f32 %v588, %v1161
        %1163 = vmatprep.mubr.bf16.mxu0 %v477
        %1164 = vmatmul.mubr.bf16.gmra.mxu0 %v476
        %v1165 = vpop.f32.mrf.mxu0
        %v1166 = vadd.f32 %v584, %v1165
        %v1167 = vpop.f32.mrf.mxu0
        %v1168 = vadd.f32 %v588, %v1167
        %v1169 = vpop.f32.mrf.mxu0
        %v1170 = vadd.f32 %v584, %v1169
        %v1171 = vpop.f32.mrf.mxu0
        %v1172 = vadd.f32 %v588, %v1171
        %1173 = vmatprep.mubr.bf16.mxu0 %v479
        %1174 = vmatmul.mubr.bf16.gmra.mxu0 %v478
        %v1175 = vpop.f32.mrf.mxu0
        %v1176 = vadd.f32 %v584, %v1175
        %v1177 = vpop.f32.mrf.mxu0
        %v1178 = vadd.f32 %v588, %v1177
        %v1179 = vpop.f32.mrf.mxu0
        %v1180 = vadd.f32 %v584, %v1179
        %v1181 = vpop.f32.mrf.mxu0
        %v1182 = vadd.f32 %v588, %v1181
        %1183 = vmatprep.mubr.bf16.mxu0 %v481
        %1184 = vmatmul.mubr.bf16.gmra.mxu0 %v480
        %v1185 = vpop.f32.mrf.mxu0
        %v1186 = vadd.f32 %v584, %v1185
        %v1187 = vpop.f32.mrf.mxu0
        %v1188 = vadd.f32 %v588, %v1187
        %v1189 = vpop.f32.mrf.mxu0
        %v1190 = vadd.f32 %v584, %v1189
        %v1191 = vpop.f32.mrf.mxu0
        %v1192 = vadd.f32 %v588, %v1191
        %1193 = vmatprep.mubr.bf16.mxu0 %v483
        %1194 = vmatmul.mubr.bf16.gmra.mxu0 %v482
        %v1195 = vpop.f32.mrf.mxu0
        %v1196 = vadd.f32 %v584, %v1195
        %v1197 = vpop.f32.mrf.mxu0
        %v1198 = vadd.f32 %v588, %v1197
        %v1199 = vpop.f32.mrf.mxu0
        %v1200 = vadd.f32 %v584, %v1199
        %v1201 = vpop.f32.mrf.mxu0
        %v1202 = vadd.f32 %v588, %v1201
        %1203 = vdwg.mxu0
        %1204 = vmatprep.subr.bf16.mxu0 %v944
        %1205 = vmatpush1.bf16.msra.mxu0 %v943
        %1206 = vmatprep.subr.bf16.mxu0 %v938
        %1207 = vmatpush1.bf16.msra.mxu0 %v937
        %1208 = vmatprep.subr.bf16.mxu0 %v932
        %1209 = vmatpush1.bf16.msra.mxu0 %v931
        %1210 = vmatprep.subr.bf16.mxu0 %v926
        %1211 = vmatpush1.bf16.msra.mxu0 %v925
        %1212 = vmatprep.subr.bf16.mxu0 %v920
        %1213 = vmatpush1.bf16.msra.mxu0 %v919
        %1214 = vmatprep.subr.bf16.mxu0 %v914
        %1215 = vmatpush1.bf16.msra.mxu0 %v913
        %1216 = vmatprep.subr.bf16.mxu0 %v908
        %1217 = vmatpush1.bf16.msra.mxu0 %v907
        %1218 = vmatprep.subr.bf16.mxu0 %v902
        %1219 = vmatpush1.bf16.msra.mxu0 %v901
        %1220 = vmatprep.subr.bf16.mxu0 %v992
        %1221 = vmatpush2.bf16.msra.mxu0 %v991
        %1222 = vmatprep.subr.bf16.mxu0 %v986
        %1223 = vmatpush2.bf16.msra.mxu0 %v985
        %1224 = vmatprep.subr.bf16.mxu0 %v980
        %1225 = vmatpush2.bf16.msra.mxu0 %v979
        %1226 = vmatprep.subr.bf16.mxu0 %v974
        %1227 = vmatpush2.bf16.msra.mxu0 %v973
        %1228 = vmatprep.subr.bf16.mxu0 %v968
        %1229 = vmatpush2.bf16.msra.mxu0 %v967
        %1230 = vmatprep.subr.bf16.mxu0 %v962
        %1231 = vmatpush2.bf16.msra.mxu0 %v961
        %1232 = vmatprep.subr.bf16.mxu0 %v956
        %1233 = vmatpush2.bf16.msra.mxu0 %v955
        %1234 = vmatprep.subr.bf16.mxu0 %v950
        %1235 = vmatpush2.bf16.msra.mxu0 %v949
        %1236 = vmatprep.mubr.bf16.mxu0 %v469
        %1237 = vmatmul.mubr.bf16.gmra.mxu0 %v468
        %v1238 = vpop.f32.mrf.mxu0
        %v1239 = vadd.f32 %v592, %v1238
        %v1240 = vpop.f32.mrf.mxu0
        %v1241 = vadd.f32 %v596, %v1240
        %v1242 = vpop.f32.mrf.mxu0
        %v1243 = vadd.f32 %v592, %v1242
        %v1244 = vpop.f32.mrf.mxu0
        %v1245 = vadd.f32 %v596, %v1244
        %1246 = vmatprep.mubr.bf16.mxu0 %v471
        %1247 = vmatmul.mubr.bf16.gmra.mxu0 %v470
        %v1248 = vpop.f32.mrf.mxu0
        %v1249 = vadd.f32 %v592, %v1248
        %v1250 = vpop.f32.mrf.mxu0
        %v1251 = vadd.f32 %v596, %v1250
        %v1252 = vpop.f32.mrf.mxu0
        %v1253 = vadd.f32 %v592, %v1252
        %v1254 = vpop.f32.mrf.mxu0
        %v1255 = vadd.f32 %v596, %v1254
        %1256 = vmatprep.mubr.bf16.mxu0 %v473
        %1257 = vmatmul.mubr.bf16.gmra.mxu0 %v472
        %v1258 = vpop.f32.mrf.mxu0
        %v1259 = vadd.f32 %v592, %v1258
        %v1260 = vpop.f32.mrf.mxu0
        %v1261 = vadd.f32 %v596, %v1260
        %v1262 = vpop.f32.mrf.mxu0
        %v1263 = vadd.f32 %v592, %v1262
        %v1264 = vpop.f32.mrf.mxu0
        %v1265 = vadd.f32 %v596, %v1264
        %1266 = vmatprep.mubr.bf16.mxu0 %v475
        %1267 = vmatmul.mubr.bf16.gmra.mxu0 %v474
        %v1268 = vpop.f32.mrf.mxu0
        %v1269 = vadd.f32 %v592, %v1268
        %v1270 = vpop.f32.mrf.mxu0
        %v1271 = vadd.f32 %v596, %v1270
        %v1272 = vpop.f32.mrf.mxu0
        %v1273 = vadd.f32 %v592, %v1272
        %v1274 = vpop.f32.mrf.mxu0
        %v1275 = vadd.f32 %v596, %v1274
        %1276 = vmatprep.mubr.bf16.mxu0 %v477
        %1277 = vmatmul.mubr.bf16.gmra.mxu0 %v476
        %v1278 = vpop.f32.mrf.mxu0
        %v1279 = vadd.f32 %v592, %v1278
        %v1280 = vpop.f32.mrf.mxu0
        %v1281 = vadd.f32 %v596, %v1280
        %v1282 = vpop.f32.mrf.mxu0
        %v1283 = vadd.f32 %v592, %v1282
        %v1284 = vpop.f32.mrf.mxu0
        %v1285 = vadd.f32 %v596, %v1284
        %1286 = vmatprep.mubr.bf16.mxu0 %v479
        %1287 = vmatmul.mubr.bf16.gmra.mxu0 %v478
        %v1288 = vpop.f32.mrf.mxu0
        %v1289 = vadd.f32 %v592, %v1288
        %v1290 = vpop.f32.mrf.mxu0
        %v1291 = vadd.f32 %v596, %v1290
        %v1292 = vpop.f32.mrf.mxu0
        %v1293 = vadd.f32 %v592, %v1292
        %v1294 = vpop.f32.mrf.mxu0
        %v1295 = vadd.f32 %v596, %v1294
        %1296 = vmatprep.mubr.bf16.mxu0 %v481
        %1297 = vmatmul.mubr.bf16.gmra.mxu0 %v480
        %v1298 = vpop.f32.mrf.mxu0
        %v1299 = vadd.f32 %v592, %v1298
        %v1300 = vpop.f32.mrf.mxu0
        %v1301 = vadd.f32 %v596, %v1300
        %v1302 = vpop.f32.mrf.mxu0
        %v1303 = vadd.f32 %v592, %v1302
        %v1304 = vpop.f32.mrf.mxu0
        %v1305 = vadd.f32 %v596, %v1304
        %1306 = vmatprep.mubr.bf16.mxu0 %v483
        %1307 = vmatmul.mubr.bf16.gmra.mxu0 %v482
        %v1308 = vpop.f32.mrf.mxu0
        %v1309 = vadd.f32 %v592, %v1308
        %v1310 = vpop.f32.mrf.mxu0
        %v1311 = vadd.f32 %v596, %v1310
        %v1312 = vpop.f32.mrf.mxu0
        %v1313 = vadd.f32 %v592, %v1312
        %v1314 = vpop.f32.mrf.mxu0
        %v1315 = vadd.f32 %v596, %v1314
        %1316 = vdwg.mxu0
        %1317 = vmatprep.subr.bf16.mxu0 %v946
        %1318 = vmatpush1.bf16.msra.mxu0 %v945
        %1319 = vmatprep.subr.bf16.mxu0 %v940
        %1320 = vmatpush1.bf16.msra.mxu0 %v939
        %1321 = vmatprep.subr.bf16.mxu0 %v934
        %1322 = vmatpush1.bf16.msra.mxu0 %v933
        %1323 = vmatprep.subr.bf16.mxu0 %v928
        %1324 = vmatpush1.bf16.msra.mxu0 %v927
        %1325 = vmatprep.subr.bf16.mxu0 %v922
        %1326 = vmatpush1.bf16.msra.mxu0 %v921
        %1327 = vmatprep.subr.bf16.mxu0 %v916
        %1328 = vmatpush1.bf16.msra.mxu0 %v915
        %1329 = vmatprep.subr.bf16.mxu0 %v910
        %1330 = vmatpush1.bf16.msra.mxu0 %v909
        %1331 = vmatprep.subr.bf16.mxu0 %v904
        %1332 = vmatpush1.bf16.msra.mxu0 %v903
        %1333 = vmatprep.subr.bf16.mxu0 %v994
        %1334 = vmatpush2.bf16.msra.mxu0 %v993
        %1335 = vmatprep.subr.bf16.mxu0 %v988
        %1336 = vmatpush2.bf16.msra.mxu0 %v987
        %1337 = vmatprep.subr.bf16.mxu0 %v982
        %1338 = vmatpush2.bf16.msra.mxu0 %v981
        %1339 = vmatprep.subr.bf16.mxu0 %v976
        %1340 = vmatpush2.bf16.msra.mxu0 %v975
        %1341 = vmatprep.subr.bf16.mxu0 %v970
        %1342 = vmatpush2.bf16.msra.mxu0 %v969
        %1343 = vmatprep.subr.bf16.mxu0 %v964
        %1344 = vmatpush2.bf16.msra.mxu0 %v963
        %1345 = vmatprep.subr.bf16.mxu0 %v958
        %1346 = vmatpush2.bf16.msra.mxu0 %v957
        %1347 = vmatprep.subr.bf16.mxu0 %v952
        %1348 = vmatpush2.bf16.msra.mxu0 %v951
        %1349 = vmatprep.mubr.bf16.mxu0 %v469
        %1350 = vmatmul.mubr.bf16.gmra.mxu0 %v468
        %v1351 = vpop.f32.mrf.mxu0
        %v1352 = vadd.f32 %v600, %v1351
        %v1353 = vpop.f32.mrf.mxu0
        %v1354 = vadd.f32 %v604, %v1353
        %v1355 = vpop.f32.mrf.mxu0
        %v1356 = vadd.f32 %v600, %v1355
        %v1357 = vpop.f32.mrf.mxu0
        %v1358 = vadd.f32 %v604, %v1357
        %1359 = vmatprep.mubr.bf16.mxu0 %v471
        %1360 = vmatmul.mubr.bf16.gmra.mxu0 %v470
        %v1361 = vpop.f32.mrf.mxu0
        %v1362 = vadd.f32 %v600, %v1361
        %v1363 = vpop.f32.mrf.mxu0
        %v1364 = vadd.f32 %v604, %v1363
        %v1365 = vpop.f32.mrf.mxu0
        %v1366 = vadd.f32 %v600, %v1365
        %v1367 = vpop.f32.mrf.mxu0
        %v1368 = vadd.f32 %v604, %v1367
        %1369 = vmatprep.mubr.bf16.mxu0 %v473
        %1370 = vmatmul.mubr.bf16.gmra.mxu0 %v472
        %v1371 = vpop.f32.mrf.mxu0
        %v1372 = vadd.f32 %v600, %v1371
        %v1373 = vpop.f32.mrf.mxu0
        %v1374 = vadd.f32 %v604, %v1373
        %v1375 = vpop.f32.mrf.mxu0
        %v1376 = vadd.f32 %v600, %v1375
        %v1377 = vpop.f32.mrf.mxu0
        %v1378 = vadd.f32 %v604, %v1377
        %1379 = vmatprep.mubr.bf16.mxu0 %v475
        %1380 = vmatmul.mubr.bf16.gmra.mxu0 %v474
        %v1381 = vpop.f32.mrf.mxu0
        %v1382 = vadd.f32 %v600, %v1381
        %v1383 = vpop.f32.mrf.mxu0
        %v1384 = vadd.f32 %v604, %v1383
        %v1385 = vpop.f32.mrf.mxu0
        %v1386 = vadd.f32 %v600, %v1385
        %v1387 = vpop.f32.mrf.mxu0
        %v1388 = vadd.f32 %v604, %v1387
        %1389 = vmatprep.mubr.bf16.mxu0 %v477
        %1390 = vmatmul.mubr.bf16.gmra.mxu0 %v476
        %v1391 = vpop.f32.mrf.mxu0
        %v1392 = vadd.f32 %v600, %v1391
        %v1393 = vpop.f32.mrf.mxu0
        %v1394 = vadd.f32 %v604, %v1393
        %v1395 = vpop.f32.mrf.mxu0
        %v1396 = vadd.f32 %v600, %v1395
        %v1397 = vpop.f32.mrf.mxu0
        %v1398 = vadd.f32 %v604, %v1397
        %1399 = vmatprep.mubr.bf16.mxu0 %v479
        %1400 = vmatmul.mubr.bf16.gmra.mxu0 %v478
        %v1401 = vpop.f32.mrf.mxu0
        %v1402 = vadd.f32 %v600, %v1401
        %v1403 = vpop.f32.mrf.mxu0
        %v1404 = vadd.f32 %v604, %v1403
        %v1405 = vpop.f32.mrf.mxu0
        %v1406 = vadd.f32 %v600, %v1405
        %v1407 = vpop.f32.mrf.mxu0
        %v1408 = vadd.f32 %v604, %v1407
        %1409 = vmatprep.mubr.bf16.mxu0 %v481
        %1410 = vmatmul.mubr.bf16.gmra.mxu0 %v480
        %v1411 = vpop.f32.mrf.mxu0
        %v1412 = vadd.f32 %v600, %v1411
        %v1413 = vpop.f32.mrf.mxu0
        %v1414 = vadd.f32 %v604, %v1413
        %v1415 = vpop.f32.mrf.mxu0
        %v1416 = vadd.f32 %v600, %v1415
        %v1417 = vpop.f32.mrf.mxu0
        %v1418 = vadd.f32 %v604, %v1417
        %1419 = vmatprep.mubr.bf16.mxu0 %v483
        %1420 = vmatmul.mubr.bf16.gmra.mxu0 %v482
        %v1421 = vpop.f32.mrf.mxu0
        %v1422 = vadd.f32 %v600, %v1421
        %v1423 = vpop.f32.mrf.mxu0
        %v1424 = vadd.f32 %v604, %v1423
        %v1425 = vpop.f32.mrf.mxu0
        %v1426 = vadd.f32 %v600, %v1425
        %v1427 = vpop.f32.mrf.mxu0
        %v1428 = vadd.f32 %v604, %v1427
        %1429 = vdwg.mxu0
        %v1430 = vlaneseq
        %v1431 = vshrl.u32 %v1430, 7
        %v1432 = vadd.s32 %v1431, 8
        %v1433 = vadd.s32 %v1431, 16
        %v1434 = vadd.s32 %v1431, 24
        %v1435 = vlaneseq
        %v1436 = vand.u32 %v1435, 127
        %v1437 = vmul.u32 %v1431, 4
        %v1438 = vmul.u32 %v1432, 4
        %v1439 = vmul.u32 %v1433, 4
        %v1440 = vmul.u32 %v1434, 4
        %vm1441 = vcmp.eq.s32.totalorder %v1436, %v1437
        %vm1442 = vcmp.eq.s32.totalorder %v1436, %v1438
        %vm1443 = vcmp.eq.s32.totalorder %v1436, %v1439
        %vm1444 = vcmp.eq.s32.totalorder %v1436, %v1440
        %v1445 = vsel %vm1441, 1, 0
        %v1446 = vsel %vm1442, 1, 0
        %v1447 = vsel %vm1443, 1, 0
        %v1448 = vsel %vm1444, 1, 0
        %v1449 = vcvt.s32.f32 %v1445
        %v1450 = vcvt.s32.f32 %v1446
        %v1451 = vcvt.s32.f32 %v1447
        %v1452 = vcvt.s32.f32 %v1448
        %v1453 = vpack.c.bf16 %v1450, %v1449
        %v1454 = vpack.c.bf16 %v1452, %v1451
        %v1455 = vadd.s32 %v1437, 1
        %v1456 = vadd.s32 %v1438, 1
        %v1457 = vadd.s32 %v1439, 1
        %v1458 = vadd.s32 %v1440, 1
        %vm1459 = vcmp.eq.s32.totalorder %v1436, %v1455
        %vm1460 = vcmp.eq.s32.totalorder %v1436, %v1456
        %vm1461 = vcmp.eq.s32.totalorder %v1436, %v1457
        %vm1462 = vcmp.eq.s32.totalorder %v1436, %v1458
        %v1463 = vsel %vm1459, 1, 0
        %v1464 = vsel %vm1460, 1, 0
        %v1465 = vsel %vm1461, 1, 0
        %v1466 = vsel %vm1462, 1, 0
        %v1467 = vcvt.s32.f32 %v1463
        %v1468 = vcvt.s32.f32 %v1464
        %v1469 = vcvt.s32.f32 %v1465
        %v1470 = vcvt.s32.f32 %v1466
        %v1471 = vpack.c.bf16 %v1468, %v1467
        %v1472 = vpack.c.bf16 %v1470, %v1469
        %v1473 = vadd.s32 %v1437, 2
        %v1474 = vadd.s32 %v1438, 2
        %v1475 = vadd.s32 %v1439, 2
        %v1476 = vadd.s32 %v1440, 2
        %vm1477 = vcmp.eq.s32.totalorder %v1436, %v1473
        %vm1478 = vcmp.eq.s32.totalorder %v1436, %v1474
        %vm1479 = vcmp.eq.s32.totalorder %v1436, %v1475
        %vm1480 = vcmp.eq.s32.totalorder %v1436, %v1476
        %v1481 = vsel %vm1477, 1, 0
        %v1482 = vsel %vm1478, 1, 0
        %v1483 = vsel %vm1479, 1, 0
        %v1484 = vsel %vm1480, 1, 0
        %v1485 = vcvt.s32.f32 %v1481
        %v1486 = vcvt.s32.f32 %v1482
        %v1487 = vcvt.s32.f32 %v1483
        %v1488 = vcvt.s32.f32 %v1484
        %v1489 = vpack.c.bf16 %v1486, %v1485
        %v1490 = vpack.c.bf16 %v1488, %v1487
        %v1491 = vadd.s32 %v1437, 3
        %v1492 = vadd.s32 %v1438, 3
        %v1493 = vadd.s32 %v1439, 3
        %v1494 = vadd.s32 %v1440, 3
        %vm1495 = vcmp.eq.s32.totalorder %v1436, %v1491
        %vm1496 = vcmp.eq.s32.totalorder %v1436, %v1492
        %vm1497 = vcmp.eq.s32.totalorder %v1436, %v1493
        %vm1498 = vcmp.eq.s32.totalorder %v1436, %v1494
        %v1499 = vsel %vm1495, 1, 0
        %v1500 = vsel %vm1496, 1, 0
        %v1501 = vsel %vm1497, 1, 0
        %v1502 = vsel %vm1498, 1, 0
        %v1503 = vcvt.s32.f32 %v1499
        %v1504 = vcvt.s32.f32 %v1500
        %v1505 = vcvt.s32.f32 %v1501
        %v1506 = vcvt.s32.f32 %v1502
        %v1507 = vpack.c.bf16 %v1504, %v1503
        %v1508 = vpack.c.bf16 %v1506, %v1505
        %v1509 = vld [vmem:[%s344] sm:$0xff]
        %v1510 = vld [vmem:[%s344 + $0x8] sm:$0xff]
        %v1511 = vld [vmem:[%s344 + $0x10] sm:$0xff]
        %v1512 = vld [vmem:[%s344 + $0x18] sm:$0xff]
        %v1513 = vld [vmem:[%s344 + $0x20] sm:$0xff]
        %v1514 = vld [vmem:[%s344 + $0x28] sm:$0xff]
        %v1515 = vld [vmem:[%s344 + $0x30] sm:$0xff]
        %v1516 = vld [vmem:[%s344 + $0x38] sm:$0xff]
        %v1517 = vld [vmem:[%s344 + $0x40] sm:$0xff]
        %v1518 = vld [vmem:[%s344 + $0x48] sm:$0xff]
        %v1519 = vld [vmem:[%s344 + $0x50] sm:$0xff]
        %v1520 = vld [vmem:[%s344 + $0x58] sm:$0xff]
        %v1521 = vld [vmem:[%s344 + $0x60] sm:$0xff]
        %v1522 = vld [vmem:[%s344 + $0x68] sm:$0xff]
        %v1523 = vld [vmem:[%s344 + $0x70] sm:$0xff]
        %v1524 = vld [vmem:[%s344 + $0x78] sm:$0xff]
        %v1525 = vld [vmem:[%s344 + $0x80] sm:$0xff]
        %v1526 = vld [vmem:[%s344 + $0x88] sm:$0xff]
        %v1527 = vld [vmem:[%s344 + $0x90] sm:$0xff]
        %v1528 = vld [vmem:[%s344 + $0x98] sm:$0xff]
        %v1529 = vld [vmem:[%s344 + $0xa0] sm:$0xff]
        %v1530 = vld [vmem:[%s344 + $0xa8] sm:$0xff]
        %v1531 = vld [vmem:[%s344 + $0xb0] sm:$0xff]
        %v1532 = vld [vmem:[%s344 + $0xb8] sm:$0xff]
        %v1533 = vld [vmem:[%s344 + $0xc0] sm:$0xff]
        %v1534 = vld [vmem:[%s344 + $0xc8] sm:$0xff]
        %v1535 = vld [vmem:[%s344 + $0xd0] sm:$0xff]
        %v1536 = vld [vmem:[%s344 + $0xd8] sm:$0xff]
        %v1537 = vld [vmem:[%s344 + $0xe0] sm:$0xff]
        %v1538 = vld [vmem:[%s344 + $0xe8] sm:$0xff]
        %v1539 = vld [vmem:[%s344 + $0xf0] sm:$0xff]
        %v1540 = vld [vmem:[%s344 + $0xf8] sm:$0xff]
        %v1541 = vmul.f32 %v1126, 0.125
        %v1542 = vmul.f32 %v1130, 0.125
        %v1543 = vmul.f32 %v1136, 0.125
        %v1544 = vmul.f32 %v1140, 0.125
        %v1545 = vmul.f32 %v1146, 0.125
        %v1546 = vmul.f32 %v1150, 0.125
        %v1547 = vmul.f32 %v1156, 0.125
        %v1548 = vmul.f32 %v1160, 0.125
        %v1549 = vmul.f32 %v1166, 0.125
        %v1550 = vmul.f32 %v1170, 0.125
        %v1551 = vmul.f32 %v1176, 0.125
        %v1552 = vmul.f32 %v1180, 0.125
        %v1553 = vmul.f32 %v1186, 0.125
        %v1554 = vmul.f32 %v1190, 0.125
        %v1555 = vmul.f32 %v1196, 0.125
        %v1556 = vmul.f32 %v1200, 0.125
        %v1557 = vpack.c.bf16 %v1542, %v1541
        %v1558 = vpack.c.bf16 %v1544, %v1543
        %v1559 = vpack.c.bf16 %v1546, %v1545
        %v1560 = vpack.c.bf16 %v1548, %v1547
        %v1561 = vpack.c.bf16 %v1550, %v1549
        %v1562 = vpack.c.bf16 %v1552, %v1551
        %v1563 = vpack.c.bf16 %v1554, %v1553
        %v1564 = vpack.c.bf16 %v1556, %v1555
        %v1565 = vpack.c.bf16 %v1243, %v1239
        %v1566 = vpack.c.bf16 %v1253, %v1249
        %v1567 = vpack.c.bf16 %v1263, %v1259
        %v1568 = vpack.c.bf16 %v1273, %v1269
        %v1569 = vpack.c.bf16 %v1283, %v1279
        %v1570 = vpack.c.bf16 %v1293, %v1289
        %v1571 = vpack.c.bf16 %v1303, %v1299
        %v1572 = vpack.c.bf16 %v1313, %v1309
        %v1573 = vpack.c.bf16 %v1356, %v1352
        %v1574 = vpack.c.bf16 %v1366, %v1362
        %v1575 = vpack.c.bf16 %v1376, %v1372
        %v1576 = vpack.c.bf16 %v1386, %v1382
        %v1577 = vpack.c.bf16 %v1396, %v1392
        %v1578 = vpack.c.bf16 %v1406, %v1402
        %v1579 = vpack.c.bf16 %v1416, %v1412
        %v1580 = vpack.c.bf16 %v1426, %v1422
        %vm1581 = vcmask 523264
        %v1583 = vsel %vm1581, %v1557, 0
        %v1586 = vsel %vm1581, %v1558, 0
        %v1589 = vsel %vm1581, %v1559, 0
        %v1592 = vsel %vm1581, %v1560, 0
        %v1595 = vsel %vm1581, %v1561, 0
        %v1598 = vsel %vm1581, %v1562, 0
        %v1601 = vsel %vm1581, %v1563, 0
        %v1604 = vsel %vm1581, %v1564, 0
        %v1607 = vsel %vm1581, %v1565, 0
        %v1610 = vsel %vm1581, %v1566, 0
        %v1613 = vsel %vm1581, %v1567, 0
        %v1616 = vsel %vm1581, %v1568, 0
        %v1619 = vsel %vm1581, %v1569, 0
        %v1622 = vsel %vm1581, %v1570, 0
        %v1625 = vsel %vm1581, %v1571, 0
        %v1628 = vsel %vm1581, %v1572, 0
        %1630 = vmatprep.subr.bf16.mxu0 0
        %1631 = vmatpush1.bf16.xpose.msra.mxu0 %v1628
        %1632 = vmatprep.subr.bf16.mxu0 0
        %1633 = vmatpush1.bf16.xpose.msra.mxu0 %v1625
        %1634 = vmatprep.subr.bf16.mxu0 0
        %1635 = vmatpush1.bf16.xpose.msra.mxu0 %v1622
        %1636 = vmatprep.subr.bf16.mxu0 0
        %1637 = vmatpush1.bf16.xpose.msra.mxu0 %v1619
        %1638 = vmatprep.subr.bf16.mxu0 0
        %1639 = vmatpush1.bf16.xpose.msra.mxu0 %v1616
        %1640 = vmatprep.subr.bf16.mxu0 0
        %1641 = vmatpush1.bf16.xpose.msra.mxu0 %v1613
        %1642 = vmatprep.subr.bf16.mxu0 0
        %1643 = vmatpush1.bf16.xpose.msra.mxu0 %v1610
        %1644 = vmatprep.subr.bf16.mxu0 0
        %1645 = vmatpush1.bf16.xpose.msra.mxu0 %v1607
        %1646 = vmatprep.subr.bf16.mxu0 0
        %1647 = vmatpush2.bf16.xpose.msra.mxu0 0
        %1648 = vmatprep.subr.bf16.mxu0 0
        %1649 = vmatpush2.bf16.xpose.msra.mxu0 0
        %1650 = vmatprep.subr.bf16.mxu0 0
        %1651 = vmatpush2.bf16.xpose.msra.mxu0 0
        %1652 = vmatprep.subr.bf16.mxu0 0
        %1653 = vmatpush2.bf16.xpose.msra.mxu0 0
        %1654 = vmatprep.subr.bf16.mxu0 0
        %1655 = vmatpush2.bf16.xpose.msra.mxu0 0
        %1656 = vmatprep.subr.bf16.mxu0 0
        %1657 = vmatpush2.bf16.xpose.msra.mxu0 0
        %1658 = vmatprep.subr.bf16.mxu0 0
        %1659 = vmatpush2.bf16.xpose.msra.mxu0 0
        %1660 = vmatprep.subr.bf16.mxu0 0
        %1661 = vmatpush2.bf16.xpose.msra.mxu0 0
        %1662 = vmatprep.mubr.bf16.mxu0 0
        %1663 = vmatmul.mubr.bf16.gmra.mxu0 %v1583
        %v1664 = vpop.f32.mrf.mxu0
        %v1665 = vadd.f32 0.0, %v1664
        %v1666 = vpop.f32.mrf.mxu0
        %v1667 = vpop.f32.mrf.mxu0
        %v1668 = vadd.f32 0.0, %v1667
        %v1669 = vpop.f32.mrf.mxu0
        %1670 = vmatprep.mubr.bf16.mxu0 0
        %1671 = vmatmul.mubr.bf16.gmra.mxu0 %v1586
        %v1672 = vpop.f32.mrf.mxu0
        %v1673 = vadd.f32 0.0, %v1672
        %v1674 = vpop.f32.mrf.mxu0
        %v1675 = vpop.f32.mrf.mxu0
        %v1676 = vadd.f32 0.0, %v1675
        %v1677 = vpop.f32.mrf.mxu0
        %1678 = vmatprep.mubr.bf16.mxu0 0
        %1679 = vmatmul.mubr.bf16.gmra.mxu0 %v1589
        %v1680 = vpop.f32.mrf.mxu0
        %v1681 = vadd.f32 0.0, %v1680
        %v1682 = vpop.f32.mrf.mxu0
        %v1683 = vpop.f32.mrf.mxu0
        %v1684 = vadd.f32 0.0, %v1683
        %v1685 = vpop.f32.mrf.mxu0
        %1686 = vmatprep.mubr.bf16.mxu0 0
        %1687 = vmatmul.mubr.bf16.gmra.mxu0 %v1592
        %v1688 = vpop.f32.mrf.mxu0
        %v1689 = vadd.f32 0.0, %v1688
        %v1690 = vpop.f32.mrf.mxu0
        %v1691 = vpop.f32.mrf.mxu0
        %v1692 = vadd.f32 0.0, %v1691
        %v1693 = vpop.f32.mrf.mxu0
        %1694 = vmatprep.mubr.bf16.mxu0 0
        %1695 = vmatmul.mubr.bf16.gmra.mxu0 %v1595
        %v1696 = vpop.f32.mrf.mxu0
        %v1697 = vadd.f32 0.0, %v1696
        %v1698 = vpop.f32.mrf.mxu0
        %v1699 = vpop.f32.mrf.mxu0
        %v1700 = vadd.f32 0.0, %v1699
        %v1701 = vpop.f32.mrf.mxu0
        %1702 = vmatprep.mubr.bf16.mxu0 0
        %1703 = vmatmul.mubr.bf16.gmra.mxu0 %v1598
        %v1704 = vpop.f32.mrf.mxu0
        %v1705 = vadd.f32 0.0, %v1704
        %v1706 = vpop.f32.mrf.mxu0
        %v1707 = vpop.f32.mrf.mxu0
        %v1708 = vadd.f32 0.0, %v1707
        %v1709 = vpop.f32.mrf.mxu0
        %1710 = vmatprep.mubr.bf16.mxu0 0
        %1711 = vmatmul.mubr.bf16.gmra.mxu0 %v1601
        %v1712 = vpop.f32.mrf.mxu0
        %v1713 = vadd.f32 0.0, %v1712
        %v1714 = vpop.f32.mrf.mxu0
        %v1715 = vpop.f32.mrf.mxu0
        %v1716 = vadd.f32 0.0, %v1715
        %v1717 = vpop.f32.mrf.mxu0
        %1718 = vmatprep.mubr.bf16.mxu0 0
        %1719 = vmatmul.mubr.bf16.gmra.mxu0 %v1604
        %v1720 = vpop.f32.mrf.mxu0
        %v1721 = vadd.f32 0.0, %v1720
        %v1722 = vpop.f32.mrf.mxu0
        %v1723 = vpop.f32.mrf.mxu0
        %v1724 = vadd.f32 0.0, %v1723
        %v1725 = vpop.f32.mrf.mxu0
        %1726 = vdwg.mxu0
        %1727 = vmax.xlane.f32.xlu0 %v1665
        %v1728 = vpop.xlane.xlu0 %1727
        %1729 = vmax.xlane.f32.xlu0 %v1668
        %v1730 = vpop.xlane.xlu0 %1729
        %1731 = vmax.xlane.f32.xlu0 %v1673
        %v1732 = vpop.xlane.xlu0 %1731
        %1733 = vmax.xlane.f32.xlu0 %v1676
        %v1734 = vpop.xlane.xlu0 %1733
        %1735 = vmax.xlane.f32.xlu0 %v1681
        %v1736 = vpop.xlane.xlu0 %1735
        %1737 = vmax.xlane.f32.xlu0 %v1684
        %v1738 = vpop.xlane.xlu0 %1737
        %1739 = vmax.xlane.f32.xlu0 %v1689
        %v1740 = vpop.xlane.xlu0 %1739
        %1741 = vmax.xlane.f32.xlu0 %v1692
        %v1742 = vpop.xlane.xlu0 %1741
        %1743 = vmax.xlane.f32.xlu0 %v1697
        %v1744 = vpop.xlane.xlu0 %1743
        %1745 = vmax.xlane.f32.xlu0 %v1700
        %v1746 = vpop.xlane.xlu0 %1745
        %1747 = vmax.xlane.f32.xlu0 %v1705
        %v1748 = vpop.xlane.xlu0 %1747
        %1749 = vmax.xlane.f32.xlu0 %v1708
        %v1750 = vpop.xlane.xlu0 %1749
        %1751 = vmax.xlane.f32.xlu0 %v1713
        %v1752 = vpop.xlane.xlu0 %1751
        %1753 = vmax.xlane.f32.xlu0 %v1716
        %v1754 = vpop.xlane.xlu0 %1753
        %1755 = vmax.xlane.f32.xlu0 %v1721
        %v1756 = vpop.xlane.xlu0 %1755
        %1757 = vmax.xlane.f32.xlu0 %v1724
        %v1758 = vpop.xlane.xlu0 %1757
        %v1759 = vsub.f32 %v1665, %v1728
        %v1760 = vsub.f32 %v1668, %v1730
        %v1761 = vsub.f32 %v1673, %v1732
        %v1762 = vsub.f32 %v1676, %v1734
        %v1763 = vsub.f32 %v1681, %v1736
        %v1764 = vsub.f32 %v1684, %v1738
        %v1765 = vsub.f32 %v1689, %v1740
        %v1766 = vsub.f32 %v1692, %v1742
        %v1767 = vsub.f32 %v1697, %v1744
        %v1768 = vsub.f32 %v1700, %v1746
        %v1769 = vsub.f32 %v1705, %v1748
        %v1770 = vsub.f32 %v1708, %v1750
        %v1771 = vsub.f32 %v1713, %v1752
        %v1772 = vsub.f32 %v1716, %v1754
        %v1773 = vsub.f32 %v1721, %v1756
        %v1774 = vsub.f32 %v1724, %v1758
        %v1775 = vmul.f32 %v1759, 1.442695
        %v1776 = vpow.pop %v1775
        %v1777 = vmul.f32 %v1760, 1.442695
        %v1778 = vpow.pop %v1777
        %v1779 = vmul.f32 %v1761, 1.442695
        %v1780 = vpow.pop %v1779
        %v1781 = vmul.f32 %v1762, 1.442695
        %v1782 = vpow.pop %v1781
        %v1783 = vmul.f32 %v1763, 1.442695
        %v1784 = vpow.pop %v1783
        %v1785 = vmul.f32 %v1764, 1.442695
        %v1786 = vpow.pop %v1785
        %v1787 = vmul.f32 %v1765, 1.442695
        %v1788 = vpow.pop %v1787
        %v1789 = vmul.f32 %v1766, 1.442695
        %v1790 = vpow.pop %v1789
        %v1791 = vmul.f32 %v1767, 1.442695
        %v1792 = vpow.pop %v1791
        %v1793 = vmul.f32 %v1768, 1.442695
        %v1794 = vpow.pop %v1793
        %v1795 = vmul.f32 %v1769, 1.442695
        %v1796 = vpow.pop %v1795
        %v1797 = vmul.f32 %v1770, 1.442695
        %v1798 = vpow.pop %v1797
        %v1799 = vmul.f32 %v1771, 1.442695
        %v1800 = vpow.pop %v1799
        %v1801 = vmul.f32 %v1772, 1.442695
        %v1802 = vpow.pop %v1801
        %v1803 = vmul.f32 %v1773, 1.442695
        %v1804 = vpow.pop %v1803
        %v1805 = vmul.f32 %v1774, 1.442695
        %v1806 = vpow.pop %v1805
        %1807 = vadd.xlane.f32.xlu0 %v1776
        %v1808 = vpop.xlane.xlu0 %1807
        %1809 = vadd.xlane.f32.xlu0 %v1778
        %v1810 = vpop.xlane.xlu0 %1809
        %1811 = vadd.xlane.f32.xlu0 %v1780
        %v1812 = vpop.xlane.xlu0 %1811
        %1813 = vadd.xlane.f32.xlu0 %v1782
        %v1814 = vpop.xlane.xlu0 %1813
        %1815 = vadd.xlane.f32.xlu0 %v1784
        %v1816 = vpop.xlane.xlu0 %1815
        %1817 = vadd.xlane.f32.xlu0 %v1786
        %v1818 = vpop.xlane.xlu0 %1817
        %1819 = vadd.xlane.f32.xlu0 %v1788
        %v1820 = vpop.xlane.xlu0 %1819
        %1821 = vadd.xlane.f32.xlu0 %v1790
        %v1822 = vpop.xlane.xlu0 %1821
        %1823 = vadd.xlane.f32.xlu0 %v1792
        %v1824 = vpop.xlane.xlu0 %1823
        %1825 = vadd.xlane.f32.xlu0 %v1794
        %v1826 = vpop.xlane.xlu0 %1825
        %1827 = vadd.xlane.f32.xlu0 %v1796
        %v1828 = vpop.xlane.xlu0 %1827
        %1829 = vadd.xlane.f32.xlu0 %v1798
        %v1830 = vpop.xlane.xlu0 %1829
        %1831 = vadd.xlane.f32.xlu0 %v1800
        %v1832 = vpop.xlane.xlu0 %1831
        %1833 = vadd.xlane.f32.xlu0 %v1802
        %v1834 = vpop.xlane.xlu0 %1833
        %1835 = vadd.xlane.f32.xlu0 %v1804
        %v1836 = vpop.xlane.xlu0 %1835
        %1837 = vadd.xlane.f32.xlu0 %v1806
        %v1838 = vpop.xlane.xlu0 %1837
        %v1839 = vrcp.pop %v1808
        %v1840 = vrcp.pop %v1810
        %v1841 = vrcp.pop %v1812
        %v1842 = vrcp.pop %v1814
        %v1843 = vrcp.pop %v1816
        %v1844 = vrcp.pop %v1818
        %v1845 = vrcp.pop %v1820
        %v1846 = vrcp.pop %v1822
        %v1847 = vrcp.pop %v1824
        %v1848 = vrcp.pop %v1826
        %v1849 = vrcp.pop %v1828
        %v1850 = vrcp.pop %v1830
        %v1851 = vrcp.pop %v1832
        %v1852 = vrcp.pop %v1834
        %v1853 = vrcp.pop %v1836
        %v1854 = vrcp.pop %v1838
        %v1855 = vmul.f32 %v1776, %v1839
        %v1856 = vmul.f32 %v1778, %v1840
        %v1857 = vmul.f32 %v1780, %v1841
        %v1858 = vmul.f32 %v1782, %v1842
        %v1859 = vmul.f32 %v1784, %v1843
        %v1860 = vmul.f32 %v1786, %v1844
        %v1861 = vmul.f32 %v1788, %v1845
        %v1862 = vmul.f32 %v1790, %v1846
        %v1863 = vmul.f32 %v1792, %v1847
        %v1864 = vmul.f32 %v1794, %v1848
        %v1865 = vmul.f32 %v1796, %v1849
        %v1866 = vmul.f32 %v1798, %v1850
        %v1867 = vmul.f32 %v1800, %v1851
        %v1868 = vmul.f32 %v1802, %v1852
        %v1869 = vmul.f32 %v1804, %v1853
        %v1870 = vmul.f32 %v1806, %v1854
        %v1871 = vpack.c.bf16 %v1856, %v1855
        %v1872 = vpack.c.bf16 %v1858, %v1857
        %v1873 = vpack.c.bf16 %v1860, %v1859
        %v1874 = vpack.c.bf16 %v1862, %v1861
        %v1875 = vpack.c.bf16 %v1864, %v1863
        %v1876 = vpack.c.bf16 %v1866, %v1865
        %v1877 = vpack.c.bf16 %v1868, %v1867
        %v1878 = vpack.c.bf16 %v1870, %v1869
        %1879 = vmatprep.subr.bf16.mxu0 0
        %1880 = vmatpush1.bf16.msra.mxu0 %v1580
        %1881 = vmatprep.subr.bf16.mxu0 0
        %1882 = vmatpush1.bf16.msra.mxu0 %v1579
        %1883 = vmatprep.subr.bf16.mxu0 0
        %1884 = vmatpush1.bf16.msra.mxu0 %v1578
        %1885 = vmatprep.subr.bf16.mxu0 0
        %1886 = vmatpush1.bf16.msra.mxu0 %v1577
        %1887 = vmatprep.subr.bf16.mxu0 0
        %1888 = vmatpush1.bf16.msra.mxu0 %v1576
        %1889 = vmatprep.subr.bf16.mxu0 0
        %1890 = vmatpush1.bf16.msra.mxu0 %v1575
        %1891 = vmatprep.subr.bf16.mxu0 0
        %1892 = vmatpush1.bf16.msra.mxu0 %v1574
        %1893 = vmatprep.subr.bf16.mxu0 0
        %1894 = vmatpush1.bf16.msra.mxu0 %v1573
        %1895 = vmatprep.subr.bf16.mxu0 0
        %1896 = vmatpush2.bf16.msra.mxu0 0
        %1897 = vmatprep.subr.bf16.mxu0 0
        %1898 = vmatpush2.bf16.msra.mxu0 0
        %1899 = vmatprep.subr.bf16.mxu0 0
        %1900 = vmatpush2.bf16.msra.mxu0 0
        %1901 = vmatprep.subr.bf16.mxu0 0
        %1902 = vmatpush2.bf16.msra.mxu0 0
        %1903 = vmatprep.subr.bf16.mxu0 0
        %1904 = vmatpush2.bf16.msra.mxu0 0
        %1905 = vmatprep.subr.bf16.mxu0 0
        %1906 = vmatpush2.bf16.msra.mxu0 0
        %1907 = vmatprep.subr.bf16.mxu0 0
        %1908 = vmatpush2.bf16.msra.mxu0 0
        %1909 = vmatprep.subr.bf16.mxu0 0
        %1910 = vmatpush2.bf16.msra.mxu0 0
        %1911 = vmatprep.mubr.bf16.mxu0 0
        %1912 = vmatmul.mubr.bf16.gmra.mxu0 %v1871
        %v1913 = vpop.f32.mrf.mxu0
        %v1914 = vadd.f32 0.0, %v1913
        %v1915 = vpop.f32.mrf.mxu0
        %v1916 = vpop.f32.mrf.mxu0
        %v1917 = vadd.f32 0.0, %v1916
        %v1918 = vpop.f32.mrf.mxu0
        %1919 = vmatprep.mubr.bf16.mxu0 0
        %1920 = vmatmul.mubr.bf16.gmra.mxu0 %v1872
        %v1921 = vpop.f32.mrf.mxu0
        %v1922 = vadd.f32 0.0, %v1921
        %v1923 = vpop.f32.mrf.mxu0
        %v1924 = vpop.f32.mrf.mxu0
        %v1925 = vadd.f32 0.0, %v1924
        %v1926 = vpop.f32.mrf.mxu0
        %1927 = vmatprep.mubr.bf16.mxu0 0
        %1928 = vmatmul.mubr.bf16.gmra.mxu0 %v1873
        %v1929 = vpop.f32.mrf.mxu0
        %v1930 = vadd.f32 0.0, %v1929
        %v1931 = vpop.f32.mrf.mxu0
        %v1932 = vpop.f32.mrf.mxu0
        %v1933 = vadd.f32 0.0, %v1932
        %v1934 = vpop.f32.mrf.mxu0
        %1935 = vmatprep.mubr.bf16.mxu0 0
        %1936 = vmatmul.mubr.bf16.gmra.mxu0 %v1874
        %v1937 = vpop.f32.mrf.mxu0
        %v1938 = vadd.f32 0.0, %v1937
        %v1939 = vpop.f32.mrf.mxu0
        %v1940 = vpop.f32.mrf.mxu0
        %v1941 = vadd.f32 0.0, %v1940
        %v1942 = vpop.f32.mrf.mxu0
        %1943 = vmatprep.mubr.bf16.mxu0 0
        %1944 = vmatmul.mubr.bf16.gmra.mxu0 %v1875
        %v1945 = vpop.f32.mrf.mxu0
        %v1946 = vadd.f32 0.0, %v1945
        %v1947 = vpop.f32.mrf.mxu0
        %v1948 = vpop.f32.mrf.mxu0
        %v1949 = vadd.f32 0.0, %v1948
        %v1950 = vpop.f32.mrf.mxu0
        %1951 = vmatprep.mubr.bf16.mxu0 0
        %1952 = vmatmul.mubr.bf16.gmra.mxu0 %v1876
        %v1953 = vpop.f32.mrf.mxu0
        %v1954 = vadd.f32 0.0, %v1953
        %v1955 = vpop.f32.mrf.mxu0
        %v1956 = vpop.f32.mrf.mxu0
        %v1957 = vadd.f32 0.0, %v1956
        %v1958 = vpop.f32.mrf.mxu0
        %1959 = vmatprep.mubr.bf16.mxu0 0
        %1960 = vmatmul.mubr.bf16.gmra.mxu0 %v1877
        %v1961 = vpop.f32.mrf.mxu0
        %v1962 = vadd.f32 0.0, %v1961
        %v1963 = vpop.f32.mrf.mxu0
        %v1964 = vpop.f32.mrf.mxu0
        %v1965 = vadd.f32 0.0, %v1964
        %v1966 = vpop.f32.mrf.mxu0
        %1967 = vmatprep.mubr.bf16.mxu0 0
        %1968 = vmatmul.mubr.bf16.gmra.mxu0 %v1878
        %v1969 = vpop.f32.mrf.mxu0
        %v1970 = vadd.f32 0.0, %v1969
        %v1971 = vpop.f32.mrf.mxu0
        %v1972 = vpop.f32.mrf.mxu0
        %v1973 = vadd.f32 0.0, %v1972
        %v1974 = vpop.f32.mrf.mxu0
        %1975 = vdwg.mxu0
        %v1976 = vpack.c.bf16 %v1917, %v1914
        %v1977 = vpack.c.bf16 %v1925, %v1922
        %v1978 = vpack.c.bf16 %v1933, %v1930
        %v1979 = vpack.c.bf16 %v1941, %v1938
        %v1980 = vpack.c.bf16 %v1949, %v1946
        %v1981 = vpack.c.bf16 %v1957, %v1954
        %v1982 = vpack.c.bf16 %v1965, %v1962
        %v1983 = vpack.c.bf16 %v1973, %v1970
        %1984 = vmatprep.subr.bf16.mxu0 0
        %1985 = vmatpush1.bf16.msra.mxu0 %v1983
        %1986 = vmatprep.subr.bf16.mxu0 0
        %1987 = vmatpush1.bf16.msra.mxu0 %v1982
        %1988 = vmatprep.subr.bf16.mxu0 0
        %1989 = vmatpush1.bf16.msra.mxu0 %v1981
        %1990 = vmatprep.subr.bf16.mxu0 0
        %1991 = vmatpush1.bf16.msra.mxu0 %v1980
        %1992 = vmatprep.subr.bf16.mxu0 0
        %1993 = vmatpush1.bf16.msra.mxu0 %v1979
        %1994 = vmatprep.subr.bf16.mxu0 0
        %1995 = vmatpush1.bf16.msra.mxu0 %v1978
        %1996 = vmatprep.subr.bf16.mxu0 0
        %1997 = vmatpush1.bf16.msra.mxu0 %v1977
        %1998 = vmatprep.subr.bf16.mxu0 0
        %1999 = vmatpush1.bf16.msra.mxu0 %v1976
        %2000 = vmatprep.subr.bf16.mxu0 0
        %2001 = vmatpush2.bf16.msra.mxu0 0
        %2002 = vmatprep.subr.bf16.mxu0 0
        %2003 = vmatpush2.bf16.msra.mxu0 0
        %2004 = vmatprep.subr.bf16.mxu0 0
        %2005 = vmatpush2.bf16.msra.mxu0 0
        %2006 = vmatprep.subr.bf16.mxu0 0
        %2007 = vmatpush2.bf16.msra.mxu0 0
        %2008 = vmatprep.subr.bf16.mxu0 0
        %2009 = vmatpush2.bf16.msra.mxu0 0
        %2010 = vmatprep.subr.bf16.mxu0 0
        %2011 = vmatpush2.bf16.msra.mxu0 0
        %2012 = vmatprep.subr.bf16.mxu0 0
        %2013 = vmatpush2.bf16.msra.mxu0 0
        %2014 = vmatprep.subr.bf16.mxu0 0
        %2015 = vmatpush2.bf16.msra.mxu0 0
        %2016 = vmatprep.mubr.bf16.mxu0 0
        %2017 = vmatmul.mubr.bf16.gmra.mxu0 %v1453
        %v2018 = vpop.f32.mrf.mxu0
        %v2019 = vadd.f32 0.0, %v2018
        %v2020 = vpop.f32.mrf.mxu0
        %v2021 = vpop.f32.mrf.mxu0
        %v2022 = vadd.f32 0.0, %v2021
        %v2023 = vpop.f32.mrf.mxu0
        %2024 = vmatprep.mubr.bf16.mxu0 0
        %2025 = vmatmul.mubr.bf16.gmra.mxu0 %v1454
        %v2026 = vpop.f32.mrf.mxu0
        %v2027 = vadd.f32 0.0, %v2026
        %v2028 = vpop.f32.mrf.mxu0
        %v2029 = vpop.f32.mrf.mxu0
        %v2030 = vadd.f32 0.0, %v2029
        %v2031 = vpop.f32.mrf.mxu0
        %2032 = vdwg.mxu0
        %v2033 = vpack.c.bf16 %v2022, %v2019
        %v2034 = vpack.c.bf16 %v2030, %v2027
        %2035 = vmatprep.subr.bf16.mxu0 0
        %2036 = vmatpush1.bf16.msra.mxu0 %v1983
        %2037 = vmatprep.subr.bf16.mxu0 0
        %2038 = vmatpush1.bf16.msra.mxu0 %v1982
        %2039 = vmatprep.subr.bf16.mxu0 0
        %2040 = vmatpush1.bf16.msra.mxu0 %v1981
        %2041 = vmatprep.subr.bf16.mxu0 0
        %2042 = vmatpush1.bf16.msra.mxu0 %v1980
        %2043 = vmatprep.subr.bf16.mxu0 0
        %2044 = vmatpush1.bf16.msra.mxu0 %v1979
        %2045 = vmatprep.subr.bf16.mxu0 0
        %2046 = vmatpush1.bf16.msra.mxu0 %v1978
        %2047 = vmatprep.subr.bf16.mxu0 0
        %2048 = vmatpush1.bf16.msra.mxu0 %v1977
        %2049 = vmatprep.subr.bf16.mxu0 0
        %2050 = vmatpush1.bf16.msra.mxu0 %v1976
        %2051 = vmatprep.subr.bf16.mxu0 0
        %2052 = vmatpush2.bf16.msra.mxu0 0
        %2053 = vmatprep.subr.bf16.mxu0 0
        %2054 = vmatpush2.bf16.msra.mxu0 0
        %2055 = vmatprep.subr.bf16.mxu0 0
        %2056 = vmatpush2.bf16.msra.mxu0 0
        %2057 = vmatprep.subr.bf16.mxu0 0
        %2058 = vmatpush2.bf16.msra.mxu0 0
        %2059 = vmatprep.subr.bf16.mxu0 0
        %2060 = vmatpush2.bf16.msra.mxu0 0
        %2061 = vmatprep.subr.bf16.mxu0 0
        %2062 = vmatpush2.bf16.msra.mxu0 0
        %2063 = vmatprep.subr.bf16.mxu0 0
        %2064 = vmatpush2.bf16.msra.mxu0 0
        %2065 = vmatprep.subr.bf16.mxu0 0
        %2066 = vmatpush2.bf16.msra.mxu0 0
        %2067 = vmatprep.mubr.bf16.mxu0 0
        %2068 = vmatmul.mubr.bf16.gmra.mxu0 %v1471
        %v2069 = vpop.f32.mrf.mxu0
        %v2070 = vadd.f32 0.0, %v2069
        %v2071 = vpop.f32.mrf.mxu0
        %v2072 = vpop.f32.mrf.mxu0
        %v2073 = vadd.f32 0.0, %v2072
        %v2074 = vpop.f32.mrf.mxu0
        %2075 = vmatprep.mubr.bf16.mxu0 0
        %2076 = vmatmul.mubr.bf16.gmra.mxu0 %v1472
        %v2077 = vpop.f32.mrf.mxu0
        %v2078 = vadd.f32 0.0, %v2077
        %v2079 = vpop.f32.mrf.mxu0
        %v2080 = vpop.f32.mrf.mxu0
        %v2081 = vadd.f32 0.0, %v2080
        %v2082 = vpop.f32.mrf.mxu0
        %2083 = vdwg.mxu0
        %v2084 = vpack.c.bf16 %v2073, %v2070
        %v2085 = vpack.c.bf16 %v2081, %v2078
        %v2094 = vunpack.c.l.b16 %v1517
        %v2095 = vunpack.c.h.b16 %v1517
        %v2096 = vunpack.c.l.b16 %v1518
        %v2097 = vunpack.c.h.b16 %v1518
        %v2098 = vunpack.c.l.b16 %v1519
        %v2099 = vunpack.c.h.b16 %v1519
        %v2100 = vunpack.c.l.b16 %v1520
        %v2101 = vunpack.c.h.b16 %v1520
        %v2102 = vunpack.c.l.b16 %v1521
        %v2103 = vunpack.c.h.b16 %v1521
        %v2104 = vunpack.c.l.b16 %v1522
        %v2105 = vunpack.c.h.b16 %v1522
        %v2106 = vunpack.c.l.b16 %v1523
        %v2107 = vunpack.c.h.b16 %v1523
        %v2108 = vunpack.c.l.b16 %v1524
        %v2109 = vunpack.c.h.b16 %v1524
        %v2110 = vpack.c.b16 %v2096, %v2094
        %v2111 = vpack.c.b16 %v2097, %v2095
        %v2112 = vpack.c.b16 %v2100, %v2098
        %v2113 = vpack.c.b16 %v2101, %v2099
        %v2114 = vpack.c.b16 %v2104, %v2102
        %v2115 = vpack.c.b16 %v2105, %v2103
        %v2116 = vpack.c.b16 %v2108, %v2106
        %v2117 = vpack.c.b16 %v2109, %v2107
        %v2127 = vsel %vm1581, %v2084, 0
        %v2130 = vsel %vm1581, %v2085, 0
        %2132 = vmatprep.subr.bf16.mxu0 0
        %2133 = vmatpush1.bf16.msra.mxu0 0
        %2134 = vmatprep.subr.bf16.mxu0 0
        %2135 = vmatpush1.bf16.msra.mxu0 0
        %2136 = vmatprep.subr.bf16.mxu0 0
        %2137 = vmatpush1.bf16.msra.mxu0 0
        %2138 = vmatprep.subr.bf16.mxu0 0
        %2139 = vmatpush1.bf16.msra.mxu0 0
        %2140 = vmatprep.subr.bf16.mxu0 %v2117
        %2141 = vmatpush1.bf16.msra.mxu0 %v2116
        %2142 = vmatprep.subr.bf16.mxu0 %v2115
        %2143 = vmatpush1.bf16.msra.mxu0 %v2114
        %2144 = vmatprep.subr.bf16.mxu0 %v2113
        %2145 = vmatpush1.bf16.msra.mxu0 %v2112
        %2146 = vmatprep.subr.bf16.mxu0 %v2111
        %2147 = vmatpush1.bf16.msra.mxu0 %v2110
        %2148 = vmatprep.subr.bf16.mxu0 0
        %2149 = vmatpush2.bf16.msra.mxu0 0
        %2150 = vmatprep.subr.bf16.mxu0 0
        %2151 = vmatpush2.bf16.msra.mxu0 0
        %2152 = vmatprep.subr.bf16.mxu0 0
        %2153 = vmatpush2.bf16.msra.mxu0 0
        %2154 = vmatprep.subr.bf16.mxu0 0
        %2155 = vmatpush2.bf16.msra.mxu0 0
        %2156 = vmatprep.subr.bf16.mxu0 0
        %2157 = vmatpush2.bf16.msra.mxu0 0
        %2158 = vmatprep.subr.bf16.mxu0 0
        %2159 = vmatpush2.bf16.msra.mxu0 0
        %2160 = vmatprep.subr.bf16.mxu0 0
        %2161 = vmatpush2.bf16.msra.mxu0 0
        %2162 = vmatprep.subr.bf16.mxu0 0
        %2163 = vmatpush2.bf16.msra.mxu0 0
        %2164 = vmatprep.mubr.bf16.mxu0 0
        %2165 = vmatmul.mubr.bf16.gmra.mxu0 %v2127
        %v2166 = vpop.f32.mrf.mxu0
        %v2167 = vadd.f32 0.0, %v2166
        %v2168 = vpop.f32.mrf.mxu0
        %v2169 = vadd.f32 0.0, %v2168
        %v2170 = vpop.f32.mrf.mxu0
        %v2171 = vadd.f32 0.0, %v2170
        %v2172 = vpop.f32.mrf.mxu0
        %v2173 = vadd.f32 0.0, %v2172
        %2174 = vmatprep.mubr.bf16.mxu0 0
        %2175 = vmatmul.mubr.bf16.gmra.mxu0 %v2130
        %v2176 = vpop.f32.mrf.mxu0
        %v2177 = vadd.f32 0.0, %v2176
        %v2178 = vpop.f32.mrf.mxu0
        %v2179 = vadd.f32 0.0, %v2178
        %v2180 = vpop.f32.mrf.mxu0
        %v2181 = vadd.f32 0.0, %v2180
        %v2182 = vpop.f32.mrf.mxu0
        %v2183 = vadd.f32 0.0, %v2182
        %2184 = vdwg.mxu0
        %v2193 = vunpack.c.l.b16 %v1509
        %v2194 = vunpack.c.h.b16 %v1509
        %v2195 = vunpack.c.l.b16 %v1510
        %v2196 = vunpack.c.h.b16 %v1510
        %v2197 = vunpack.c.l.b16 %v1511
        %v2198 = vunpack.c.h.b16 %v1511
        %v2199 = vunpack.c.l.b16 %v1512
        %v2200 = vunpack.c.h.b16 %v1512
        %v2201 = vunpack.c.l.b16 %v1513
        %v2202 = vunpack.c.h.b16 %v1513
        %v2203 = vunpack.c.l.b16 %v1514
        %v2204 = vunpack.c.h.b16 %v1514
        %v2205 = vunpack.c.l.b16 %v1515
        %v2206 = vunpack.c.h.b16 %v1515
        %v2207 = vunpack.c.l.b16 %v1516
        %v2208 = vunpack.c.h.b16 %v1516
        %v2209 = vpack.c.b16 %v2195, %v2193
        %v2210 = vpack.c.b16 %v2196, %v2194
        %v2211 = vpack.c.b16 %v2199, %v2197
        %v2212 = vpack.c.b16 %v2200, %v2198
        %v2213 = vpack.c.b16 %v2203, %v2201
        %v2214 = vpack.c.b16 %v2204, %v2202
        %v2215 = vpack.c.b16 %v2207, %v2205
        %v2216 = vpack.c.b16 %v2208, %v2206
        %v2226 = vsel %vm1581, %v2033, 0
        %v2229 = vsel %vm1581, %v2034, 0
        %2231 = vmatprep.subr.bf16.mxu0 0
        %2232 = vmatpush1.bf16.msra.mxu0 0
        %2233 = vmatprep.subr.bf16.mxu0 0
        %2234 = vmatpush1.bf16.msra.mxu0 0
        %2235 = vmatprep.subr.bf16.mxu0 0
        %2236 = vmatpush1.bf16.msra.mxu0 0
        %2237 = vmatprep.subr.bf16.mxu0 0
        %2238 = vmatpush1.bf16.msra.mxu0 0
        %2239 = vmatprep.subr.bf16.mxu0 %v2216
        %2240 = vmatpush1.bf16.msra.mxu0 %v2215
        %2241 = vmatprep.subr.bf16.mxu0 %v2214
        %2242 = vmatpush1.bf16.msra.mxu0 %v2213
        %2243 = vmatprep.subr.bf16.mxu0 %v2212
        %2244 = vmatpush1.bf16.msra.mxu0 %v2211
        %2245 = vmatprep.subr.bf16.mxu0 %v2210
        %2246 = vmatpush1.bf16.msra.mxu0 %v2209
        %2247 = vmatprep.subr.bf16.mxu0 0
        %2248 = vmatpush2.bf16.msra.mxu0 0
        %2249 = vmatprep.subr.bf16.mxu0 0
        %2250 = vmatpush2.bf16.msra.mxu0 0
        %2251 = vmatprep.subr.bf16.mxu0 0
        %2252 = vmatpush2.bf16.msra.mxu0 0
        %2253 = vmatprep.subr.bf16.mxu0 0
        %2254 = vmatpush2.bf16.msra.mxu0 0
        %2255 = vmatprep.subr.bf16.mxu0 0
        %2256 = vmatpush2.bf16.msra.mxu0 0
        %2257 = vmatprep.subr.bf16.mxu0 0
        %2258 = vmatpush2.bf16.msra.mxu0 0
        %2259 = vmatprep.subr.bf16.mxu0 0
        %2260 = vmatpush2.bf16.msra.mxu0 0
        %2261 = vmatprep.subr.bf16.mxu0 0
        %2262 = vmatpush2.bf16.msra.mxu0 0
        %2263 = vmatprep.mubr.bf16.mxu0 0
        %2264 = vmatmul.mubr.bf16.gmra.mxu0 %v2226
        %v2265 = vpop.f32.mrf.mxu0
        %v2266 = vadd.f32 %v2167, %v2265
        %v2267 = vpop.f32.mrf.mxu0
        %v2268 = vadd.f32 %v2169, %v2267
        %v2269 = vpop.f32.mrf.mxu0
        %v2270 = vadd.f32 %v2171, %v2269
        %v2271 = vpop.f32.mrf.mxu0
        %v2272 = vadd.f32 %v2173, %v2271
        %2273 = vmatprep.mubr.bf16.mxu0 0
        %2274 = vmatmul.mubr.bf16.gmra.mxu0 %v2229
        %v2275 = vpop.f32.mrf.mxu0
        %v2276 = vadd.f32 %v2177, %v2275
        %v2277 = vpop.f32.mrf.mxu0
        %v2278 = vadd.f32 %v2179, %v2277
        %v2279 = vpop.f32.mrf.mxu0
        %v2280 = vadd.f32 %v2181, %v2279
        %v2281 = vpop.f32.mrf.mxu0
        %v2282 = vadd.f32 %v2183, %v2281
        %2283 = vdwg.mxu0
        %2284 = vmatprep.subr.bf16.mxu0 0
        %2285 = vmatpush1.bf16.msra.mxu0 %v1983
        %2286 = vmatprep.subr.bf16.mxu0 0
        %2287 = vmatpush1.bf16.msra.mxu0 %v1982
        %2288 = vmatprep.subr.bf16.mxu0 0
        %2289 = vmatpush1.bf16.msra.mxu0 %v1981
        %2290 = vmatprep.subr.bf16.mxu0 0
        %2291 = vmatpush1.bf16.msra.mxu0 %v1980
        %2292 = vmatprep.subr.bf16.mxu0 0
        %2293 = vmatpush1.bf16.msra.mxu0 %v1979
        %2294 = vmatprep.subr.bf16.mxu0 0
        %2295 = vmatpush1.bf16.msra.mxu0 %v1978
        %2296 = vmatprep.subr.bf16.mxu0 0
        %2297 = vmatpush1.bf16.msra.mxu0 %v1977
        %2298 = vmatprep.subr.bf16.mxu0 0
        %2299 = vmatpush1.bf16.msra.mxu0 %v1976
        %2300 = vmatprep.subr.bf16.mxu0 0
        %2301 = vmatpush2.bf16.msra.mxu0 0
        %2302 = vmatprep.subr.bf16.mxu0 0
        %2303 = vmatpush2.bf16.msra.mxu0 0
        %2304 = vmatprep.subr.bf16.mxu0 0
        %2305 = vmatpush2.bf16.msra.mxu0 0
        %2306 = vmatprep.subr.bf16.mxu0 0
        %2307 = vmatpush2.bf16.msra.mxu0 0
        %2308 = vmatprep.subr.bf16.mxu0 0
        %2309 = vmatpush2.bf16.msra.mxu0 0
        %2310 = vmatprep.subr.bf16.mxu0 0
        %2311 = vmatpush2.bf16.msra.mxu0 0
        %2312 = vmatprep.subr.bf16.mxu0 0
        %2313 = vmatpush2.bf16.msra.mxu0 0
        %2314 = vmatprep.subr.bf16.mxu0 0
        %2315 = vmatpush2.bf16.msra.mxu0 0
        %2316 = vmatprep.mubr.bf16.mxu0 0
        %2317 = vmatmul.mubr.bf16.gmra.mxu0 %v1489
        %v2318 = vpop.f32.mrf.mxu0
        %v2319 = vadd.f32 0.0, %v2318
        %v2320 = vpop.f32.mrf.mxu0
        %v2321 = vpop.f32.mrf.mxu0
        %v2322 = vadd.f32 0.0, %v2321
        %v2323 = vpop.f32.mrf.mxu0
        %2324 = vmatprep.mubr.bf16.mxu0 0
        %2325 = vmatmul.mubr.bf16.gmra.mxu0 %v1490
        %v2326 = vpop.f32.mrf.mxu0
        %v2327 = vadd.f32 0.0, %v2326
        %v2328 = vpop.f32.mrf.mxu0
        %v2329 = vpop.f32.mrf.mxu0
        %v2330 = vadd.f32 0.0, %v2329
        %v2331 = vpop.f32.mrf.mxu0
        %2332 = vdwg.mxu0
        %v2333 = vpack.c.bf16 %v2322, %v2319
        %v2334 = vpack.c.bf16 %v2330, %v2327
        %v2343 = vunpack.c.l.b16 %v1525
        %v2344 = vunpack.c.h.b16 %v1525
        %v2345 = vunpack.c.l.b16 %v1526
        %v2346 = vunpack.c.h.b16 %v1526
        %v2347 = vunpack.c.l.b16 %v1527
        %v2348 = vunpack.c.h.b16 %v1527
        %v2349 = vunpack.c.l.b16 %v1528
        %v2350 = vunpack.c.h.b16 %v1528
        %v2351 = vunpack.c.l.b16 %v1529
        %v2352 = vunpack.c.h.b16 %v1529
        %v2353 = vunpack.c.l.b16 %v1530
        %v2354 = vunpack.c.h.b16 %v1530
        %v2355 = vunpack.c.l.b16 %v1531
        %v2356 = vunpack.c.h.b16 %v1531
        %v2357 = vunpack.c.l.b16 %v1532
        %v2358 = vunpack.c.h.b16 %v1532
        %v2359 = vpack.c.b16 %v2345, %v2343
        %v2360 = vpack.c.b16 %v2346, %v2344
        %v2361 = vpack.c.b16 %v2349, %v2347
        %v2362 = vpack.c.b16 %v2350, %v2348
        %v2363 = vpack.c.b16 %v2353, %v2351
        %v2364 = vpack.c.b16 %v2354, %v2352
        %v2365 = vpack.c.b16 %v2357, %v2355
        %v2366 = vpack.c.b16 %v2358, %v2356
        %v2376 = vsel %vm1581, %v2333, 0
        %v2379 = vsel %vm1581, %v2334, 0
        %2381 = vmatprep.subr.bf16.mxu0 0
        %2382 = vmatpush1.bf16.msra.mxu0 0
        %2383 = vmatprep.subr.bf16.mxu0 0
        %2384 = vmatpush1.bf16.msra.mxu0 0
        %2385 = vmatprep.subr.bf16.mxu0 0
        %2386 = vmatpush1.bf16.msra.mxu0 0
        %2387 = vmatprep.subr.bf16.mxu0 0
        %2388 = vmatpush1.bf16.msra.mxu0 0
        %2389 = vmatprep.subr.bf16.mxu0 %v2366
        %2390 = vmatpush1.bf16.msra.mxu0 %v2365
        %2391 = vmatprep.subr.bf16.mxu0 %v2364
        %2392 = vmatpush1.bf16.msra.mxu0 %v2363
        %2393 = vmatprep.subr.bf16.mxu0 %v2362
        %2394 = vmatpush1.bf16.msra.mxu0 %v2361
        %2395 = vmatprep.subr.bf16.mxu0 %v2360
        %2396 = vmatpush1.bf16.msra.mxu0 %v2359
        %2397 = vmatprep.subr.bf16.mxu0 0
        %2398 = vmatpush2.bf16.msra.mxu0 0
        %2399 = vmatprep.subr.bf16.mxu0 0
        %2400 = vmatpush2.bf16.msra.mxu0 0
        %2401 = vmatprep.subr.bf16.mxu0 0
        %2402 = vmatpush2.bf16.msra.mxu0 0
        %2403 = vmatprep.subr.bf16.mxu0 0
        %2404 = vmatpush2.bf16.msra.mxu0 0
        %2405 = vmatprep.subr.bf16.mxu0 0
        %2406 = vmatpush2.bf16.msra.mxu0 0
        %2407 = vmatprep.subr.bf16.mxu0 0
        %2408 = vmatpush2.bf16.msra.mxu0 0
        %2409 = vmatprep.subr.bf16.mxu0 0
        %2410 = vmatpush2.bf16.msra.mxu0 0
        %2411 = vmatprep.subr.bf16.mxu0 0
        %2412 = vmatpush2.bf16.msra.mxu0 0
        %2413 = vmatprep.mubr.bf16.mxu0 0
        %2414 = vmatmul.mubr.bf16.gmra.mxu0 %v2376
        %v2415 = vpop.f32.mrf.mxu0
        %v2416 = vadd.f32 0.0, %v2415
        %v2417 = vpop.f32.mrf.mxu0
        %v2418 = vadd.f32 0.0, %v2417
        %v2419 = vpop.f32.mrf.mxu0
        %v2420 = vadd.f32 0.0, %v2419
        %v2421 = vpop.f32.mrf.mxu0
        %v2422 = vadd.f32 0.0, %v2421
        %2423 = vmatprep.mubr.bf16.mxu0 0
        %2424 = vmatmul.mubr.bf16.gmra.mxu0 %v2379
        %v2425 = vpop.f32.mrf.mxu0
        %v2426 = vadd.f32 0.0, %v2425
        %v2427 = vpop.f32.mrf.mxu0
        %v2428 = vadd.f32 0.0, %v2427
        %v2429 = vpop.f32.mrf.mxu0
        %v2430 = vadd.f32 0.0, %v2429
        %v2431 = vpop.f32.mrf.mxu0
        %v2432 = vadd.f32 0.0, %v2431
        %2433 = vdwg.mxu0
        %v2434 = vadd.f32 %v2266, %v2416
        %v2435 = vadd.f32 %v2268, %v2418
        %v2436 = vadd.f32 %v2270, %v2420
        %v2437 = vadd.f32 %v2272, %v2422
        %v2438 = vadd.f32 %v2276, %v2426
        %v2439 = vadd.f32 %v2278, %v2428
        %v2440 = vadd.f32 %v2280, %v2430
        %v2441 = vadd.f32 %v2282, %v2432
        %2442 = vmatprep.subr.bf16.mxu0 0
        %2443 = vmatpush1.bf16.msra.mxu0 %v1983
        %2444 = vmatprep.subr.bf16.mxu0 0
        %2445 = vmatpush1.bf16.msra.mxu0 %v1982
        %2446 = vmatprep.subr.bf16.mxu0 0
        %2447 = vmatpush1.bf16.msra.mxu0 %v1981
        %2448 = vmatprep.subr.bf16.mxu0 0
        %2449 = vmatpush1.bf16.msra.mxu0 %v1980
        %2450 = vmatprep.subr.bf16.mxu0 0
        %2451 = vmatpush1.bf16.msra.mxu0 %v1979
        %2452 = vmatprep.subr.bf16.mxu0 0
        %2453 = vmatpush1.bf16.msra.mxu0 %v1978
        %2454 = vmatprep.subr.bf16.mxu0 0
        %2455 = vmatpush1.bf16.msra.mxu0 %v1977
        %2456 = vmatprep.subr.bf16.mxu0 0
        %2457 = vmatpush1.bf16.msra.mxu0 %v1976
        %2458 = vmatprep.subr.bf16.mxu0 0
        %2459 = vmatpush2.bf16.msra.mxu0 0
        %2460 = vmatprep.subr.bf16.mxu0 0
        %2461 = vmatpush2.bf16.msra.mxu0 0
        %2462 = vmatprep.subr.bf16.mxu0 0
        %2463 = vmatpush2.bf16.msra.mxu0 0
        %2464 = vmatprep.subr.bf16.mxu0 0
        %2465 = vmatpush2.bf16.msra.mxu0 0
        %2466 = vmatprep.subr.bf16.mxu0 0
        %2467 = vmatpush2.bf16.msra.mxu0 0
        %2468 = vmatprep.subr.bf16.mxu0 0
        %2469 = vmatpush2.bf16.msra.mxu0 0
        %2470 = vmatprep.subr.bf16.mxu0 0
        %2471 = vmatpush2.bf16.msra.mxu0 0
        %2472 = vmatprep.subr.bf16.mxu0 0
        %2473 = vmatpush2.bf16.msra.mxu0 0
        %2474 = vmatprep.mubr.bf16.mxu0 0
        %2475 = vmatmul.mubr.bf16.gmra.mxu0 %v1507
        %v2476 = vpop.f32.mrf.mxu0
        %v2477 = vadd.f32 0.0, %v2476
        %v2478 = vpop.f32.mrf.mxu0
        %v2479 = vpop.f32.mrf.mxu0
        %v2480 = vadd.f32 0.0, %v2479
        %v2481 = vpop.f32.mrf.mxu0
        %2482 = vmatprep.mubr.bf16.mxu0 0
        %2483 = vmatmul.mubr.bf16.gmra.mxu0 %v1508
        %v2484 = vpop.f32.mrf.mxu0
        %v2485 = vadd.f32 0.0, %v2484
        %v2486 = vpop.f32.mrf.mxu0
        %v2487 = vpop.f32.mrf.mxu0
        %v2488 = vadd.f32 0.0, %v2487
        %v2489 = vpop.f32.mrf.mxu0
        %2490 = vdwg.mxu0
        %v2491 = vpack.c.bf16 %v2480, %v2477
        %v2492 = vpack.c.bf16 %v2488, %v2485
        %v2501 = vunpack.c.l.b16 %v1533
        %v2502 = vunpack.c.h.b16 %v1533
        %v2503 = vunpack.c.l.b16 %v1534
        %v2504 = vunpack.c.h.b16 %v1534
        %v2505 = vunpack.c.l.b16 %v1535
        %v2506 = vunpack.c.h.b16 %v1535
        %v2507 = vunpack.c.l.b16 %v1536
        %v2508 = vunpack.c.h.b16 %v1536
        %v2509 = vunpack.c.l.b16 %v1537
        %v2510 = vunpack.c.h.b16 %v1537
        %v2511 = vunpack.c.l.b16 %v1538
        %v2512 = vunpack.c.h.b16 %v1538
        %v2513 = vunpack.c.l.b16 %v1539
        %v2514 = vunpack.c.h.b16 %v1539
        %v2515 = vunpack.c.l.b16 %v1540
        %v2516 = vunpack.c.h.b16 %v1540
        %v2517 = vpack.c.b16 %v2503, %v2501
        %v2518 = vpack.c.b16 %v2504, %v2502
        %v2519 = vpack.c.b16 %v2507, %v2505
        %v2520 = vpack.c.b16 %v2508, %v2506
        %v2521 = vpack.c.b16 %v2511, %v2509
        %v2522 = vpack.c.b16 %v2512, %v2510
        %v2523 = vpack.c.b16 %v2515, %v2513
        %v2524 = vpack.c.b16 %v2516, %v2514
        %v2534 = vsel %vm1581, %v2491, 0
        %v2537 = vsel %vm1581, %v2492, 0
        %2539 = vmatprep.subr.bf16.mxu0 0
        %2540 = vmatpush1.bf16.msra.mxu0 0
        %2541 = vmatprep.subr.bf16.mxu0 0
        %2542 = vmatpush1.bf16.msra.mxu0 0
        %2543 = vmatprep.subr.bf16.mxu0 0
        %2544 = vmatpush1.bf16.msra.mxu0 0
        %2545 = vmatprep.subr.bf16.mxu0 0
        %2546 = vmatpush1.bf16.msra.mxu0 0
        %2547 = vmatprep.subr.bf16.mxu0 %v2524
        %2548 = vmatpush1.bf16.msra.mxu0 %v2523
        %2549 = vmatprep.subr.bf16.mxu0 %v2522
        %2550 = vmatpush1.bf16.msra.mxu0 %v2521
        %2551 = vmatprep.subr.bf16.mxu0 %v2520
        %2552 = vmatpush1.bf16.msra.mxu0 %v2519
        %2553 = vmatprep.subr.bf16.mxu0 %v2518
        %2554 = vmatpush1.bf16.msra.mxu0 %v2517
        %2555 = vmatprep.subr.bf16.mxu0 0
        %2556 = vmatpush2.bf16.msra.mxu0 0
        %2557 = vmatprep.subr.bf16.mxu0 0
        %2558 = vmatpush2.bf16.msra.mxu0 0
        %2559 = vmatprep.subr.bf16.mxu0 0
        %2560 = vmatpush2.bf16.msra.mxu0 0
        %2561 = vmatprep.subr.bf16.mxu0 0
        %2562 = vmatpush2.bf16.msra.mxu0 0
        %2563 = vmatprep.subr.bf16.mxu0 0
        %2564 = vmatpush2.bf16.msra.mxu0 0
        %2565 = vmatprep.subr.bf16.mxu0 0
        %2566 = vmatpush2.bf16.msra.mxu0 0
        %2567 = vmatprep.subr.bf16.mxu0 0
        %2568 = vmatpush2.bf16.msra.mxu0 0
        %2569 = vmatprep.subr.bf16.mxu0 0
        %2570 = vmatpush2.bf16.msra.mxu0 0
        %2571 = vmatprep.mubr.bf16.mxu0 0
        %2572 = vmatmul.mubr.bf16.gmra.mxu0 %v2534
        %v2573 = vpop.f32.mrf.mxu0
        %v2574 = vadd.f32 0.0, %v2573
        %v2575 = vpop.f32.mrf.mxu0
        %v2576 = vadd.f32 0.0, %v2575
        %v2577 = vpop.f32.mrf.mxu0
        %v2578 = vadd.f32 0.0, %v2577
        %v2579 = vpop.f32.mrf.mxu0
        %v2580 = vadd.f32 0.0, %v2579
        %2581 = vmatprep.mubr.bf16.mxu0 0
        %2582 = vmatmul.mubr.bf16.gmra.mxu0 %v2537
        %v2583 = vpop.f32.mrf.mxu0
        %v2584 = vadd.f32 0.0, %v2583
        %v2585 = vpop.f32.mrf.mxu0
        %v2586 = vadd.f32 0.0, %v2585
        %v2587 = vpop.f32.mrf.mxu0
        %v2588 = vadd.f32 0.0, %v2587
        %v2589 = vpop.f32.mrf.mxu0
        %v2590 = vadd.f32 0.0, %v2589
        %2591 = vdwg.mxu0
        %v2592 = vadd.f32 %v2434, %v2574
        %v2593 = vadd.f32 %v2435, %v2576
        %v2594 = vadd.f32 %v2436, %v2578
        %v2595 = vadd.f32 %v2437, %v2580
        %v2596 = vadd.f32 %v2438, %v2584
        %v2597 = vadd.f32 %v2439, %v2586
        %v2598 = vadd.f32 %v2440, %v2588
        %v2599 = vadd.f32 %v2441, %v2590
        %2608 = vrot.lane.b32.xlu0 %v1557, 64
        %v2609 = vpop.permute.xlu0 %2608
        %2610 = vrot.lane.b32.xlu0 %v1558, 64
        %v2611 = vpop.permute.xlu0 %2610
        %2612 = vrot.lane.b32.xlu0 %v1559, 64
        %v2613 = vpop.permute.xlu0 %2612
        %2614 = vrot.lane.b32.xlu0 %v1560, 64
        %v2615 = vpop.permute.xlu0 %2614
        %2616 = vrot.lane.b32.xlu0 %v1561, 64
        %v2617 = vpop.permute.xlu0 %2616
        %2618 = vrot.lane.b32.xlu0 %v1562, 64
        %v2619 = vpop.permute.xlu0 %2618
        %2620 = vrot.lane.b32.xlu0 %v1563, 64
        %v2621 = vpop.permute.xlu0 %2620
        %2622 = vrot.lane.b32.xlu0 %v1564, 64
        %v2623 = vpop.permute.xlu0 %2622
        %2632 = vrot.lane.b32.xlu0 %v1565, 64
        %v2633 = vpop.permute.xlu0 %2632
        %2634 = vrot.lane.b32.xlu0 %v1566, 64
        %v2635 = vpop.permute.xlu0 %2634
        %2636 = vrot.lane.b32.xlu0 %v1567, 64
        %v2637 = vpop.permute.xlu0 %2636
        %2638 = vrot.lane.b32.xlu0 %v1568, 64
        %v2639 = vpop.permute.xlu0 %2638
        %2640 = vrot.lane.b32.xlu0 %v1569, 64
        %v2641 = vpop.permute.xlu0 %2640
        %2642 = vrot.lane.b32.xlu0 %v1570, 64
        %v2643 = vpop.permute.xlu0 %2642
        %2644 = vrot.lane.b32.xlu0 %v1571, 64
        %v2645 = vpop.permute.xlu0 %2644
        %2646 = vrot.lane.b32.xlu0 %v1572, 64
        %v2647 = vpop.permute.xlu0 %2646
        %v2649 = vsel %vm1581, %v2609, 0
        %v2652 = vsel %vm1581, %v2611, 0
        %v2655 = vsel %vm1581, %v2613, 0
        %v2658 = vsel %vm1581, %v2615, 0
        %v2661 = vsel %vm1581, %v2617, 0
        %v2664 = vsel %vm1581, %v2619, 0
        %v2667 = vsel %vm1581, %v2621, 0
        %v2670 = vsel %vm1581, %v2623, 0
        %v2673 = vsel %vm1581, %v2633, 0
        %v2676 = vsel %vm1581, %v2635, 0
        %v2679 = vsel %vm1581, %v2637, 0
        %v2682 = vsel %vm1581, %v2639, 0
        %v2685 = vsel %vm1581, %v2641, 0
        %v2688 = vsel %vm1581, %v2643, 0
        %v2691 = vsel %vm1581, %v2645, 0
        %v2694 = vsel %vm1581, %v2647, 0
        %2696 = vmatprep.subr.bf16.mxu0 0
        %2697 = vmatpush1.bf16.xpose.msra.mxu0 %v2694
        %2698 = vmatprep.subr.bf16.mxu0 0
        %2699 = vmatpush1.bf16.xpose.msra.mxu0 %v2691
        %2700 = vmatprep.subr.bf16.mxu0 0
        %2701 = vmatpush1.bf16.xpose.msra.mxu0 %v2688
        %2702 = vmatprep.subr.bf16.mxu0 0
        %2703 = vmatpush1.bf16.xpose.msra.mxu0 %v2685
        %2704 = vmatprep.subr.bf16.mxu0 0
        %2705 = vmatpush1.bf16.xpose.msra.mxu0 %v2682
        %2706 = vmatprep.subr.bf16.mxu0 0
        %2707 = vmatpush1.bf16.xpose.msra.mxu0 %v2679
        %2708 = vmatprep.subr.bf16.mxu0 0
        %2709 = vmatpush1.bf16.xpose.msra.mxu0 %v2676
        %2710 = vmatprep.subr.bf16.mxu0 0
        %2711 = vmatpush1.bf16.xpose.msra.mxu0 %v2673
        %2712 = vmatprep.subr.bf16.mxu0 0
        %2713 = vmatpush2.bf16.xpose.msra.mxu0 0
        %2714 = vmatprep.subr.bf16.mxu0 0
        %2715 = vmatpush2.bf16.xpose.msra.mxu0 0
        %2716 = vmatprep.subr.bf16.mxu0 0
        %2717 = vmatpush2.bf16.xpose.msra.mxu0 0
        %2718 = vmatprep.subr.bf16.mxu0 0
        %2719 = vmatpush2.bf16.xpose.msra.mxu0 0
        %2720 = vmatprep.subr.bf16.mxu0 0
        %2721 = vmatpush2.bf16.xpose.msra.mxu0 0
        %2722 = vmatprep.subr.bf16.mxu0 0
        %2723 = vmatpush2.bf16.xpose.msra.mxu0 0
        %2724 = vmatprep.subr.bf16.mxu0 0
        %2725 = vmatpush2.bf16.xpose.msra.mxu0 0
        %2726 = vmatprep.subr.bf16.mxu0 0
        %2727 = vmatpush2.bf16.xpose.msra.mxu0 0
        %2728 = vmatprep.mubr.bf16.mxu0 0
        %2729 = vmatmul.mubr.bf16.gmra.mxu0 %v2649
        %v2730 = vpop.f32.mrf.mxu0
        %v2731 = vadd.f32 0.0, %v2730
        %v2732 = vpop.f32.mrf.mxu0
        %v2733 = vpop.f32.mrf.mxu0
        %v2734 = vadd.f32 0.0, %v2733
        %v2735 = vpop.f32.mrf.mxu0
        %2736 = vmatprep.mubr.bf16.mxu0 0
        %2737 = vmatmul.mubr.bf16.gmra.mxu0 %v2652
        %v2738 = vpop.f32.mrf.mxu0
        %v2739 = vadd.f32 0.0, %v2738
        %v2740 = vpop.f32.mrf.mxu0
        %v2741 = vpop.f32.mrf.mxu0
        %v2742 = vadd.f32 0.0, %v2741
        %v2743 = vpop.f32.mrf.mxu0
        %2744 = vmatprep.mubr.bf16.mxu0 0
        %2745 = vmatmul.mubr.bf16.gmra.mxu0 %v2655
        %v2746 = vpop.f32.mrf.mxu0
        %v2747 = vadd.f32 0.0, %v2746
        %v2748 = vpop.f32.mrf.mxu0
        %v2749 = vpop.f32.mrf.mxu0
        %v2750 = vadd.f32 0.0, %v2749
        %v2751 = vpop.f32.mrf.mxu0
        %2752 = vmatprep.mubr.bf16.mxu0 0
        %2753 = vmatmul.mubr.bf16.gmra.mxu0 %v2658
        %v2754 = vpop.f32.mrf.mxu0
        %v2755 = vadd.f32 0.0, %v2754
        %v2756 = vpop.f32.mrf.mxu0
        %v2757 = vpop.f32.mrf.mxu0
        %v2758 = vadd.f32 0.0, %v2757
        %v2759 = vpop.f32.mrf.mxu0
        %2760 = vmatprep.mubr.bf16.mxu0 0
        %2761 = vmatmul.mubr.bf16.gmra.mxu0 %v2661
        %v2762 = vpop.f32.mrf.mxu0
        %v2763 = vadd.f32 0.0, %v2762
        %v2764 = vpop.f32.mrf.mxu0
        %v2765 = vpop.f32.mrf.mxu0
        %v2766 = vadd.f32 0.0, %v2765
        %v2767 = vpop.f32.mrf.mxu0
        %2768 = vmatprep.mubr.bf16.mxu0 0
        %2769 = vmatmul.mubr.bf16.gmra.mxu0 %v2664
        %v2770 = vpop.f32.mrf.mxu0
        %v2771 = vadd.f32 0.0, %v2770
        %v2772 = vpop.f32.mrf.mxu0
        %v2773 = vpop.f32.mrf.mxu0
        %v2774 = vadd.f32 0.0, %v2773
        %v2775 = vpop.f32.mrf.mxu0
        %2776 = vmatprep.mubr.bf16.mxu0 0
        %2777 = vmatmul.mubr.bf16.gmra.mxu0 %v2667
        %v2778 = vpop.f32.mrf.mxu0
        %v2779 = vadd.f32 0.0, %v2778
        %v2780 = vpop.f32.mrf.mxu0
        %v2781 = vpop.f32.mrf.mxu0
        %v2782 = vadd.f32 0.0, %v2781
        %v2783 = vpop.f32.mrf.mxu0
        %2784 = vmatprep.mubr.bf16.mxu0 0
        %2785 = vmatmul.mubr.bf16.gmra.mxu0 %v2670
        %v2786 = vpop.f32.mrf.mxu0
        %v2787 = vadd.f32 0.0, %v2786
        %v2788 = vpop.f32.mrf.mxu0
        %v2789 = vpop.f32.mrf.mxu0
        %v2790 = vadd.f32 0.0, %v2789
        %v2791 = vpop.f32.mrf.mxu0
        %2792 = vdwg.mxu0
        %2793 = vmax.xlane.f32.xlu0 %v2731
        %v2794 = vpop.xlane.xlu0 %2793
        %2795 = vmax.xlane.f32.xlu0 %v2734
        %v2796 = vpop.xlane.xlu0 %2795
        %2797 = vmax.xlane.f32.xlu0 %v2739
        %v2798 = vpop.xlane.xlu0 %2797
        %2799 = vmax.xlane.f32.xlu0 %v2742
        %v2800 = vpop.xlane.xlu0 %2799
        %2801 = vmax.xlane.f32.xlu0 %v2747
        %v2802 = vpop.xlane.xlu0 %2801
        %2803 = vmax.xlane.f32.xlu0 %v2750
        %v2804 = vpop.xlane.xlu0 %2803
        %2805 = vmax.xlane.f32.xlu0 %v2755
        %v2806 = vpop.xlane.xlu0 %2805
        %2807 = vmax.xlane.f32.xlu0 %v2758
        %v2808 = vpop.xlane.xlu0 %2807
        %2809 = vmax.xlane.f32.xlu0 %v2763
        %v2810 = vpop.xlane.xlu0 %2809
        %2811 = vmax.xlane.f32.xlu0 %v2766
        %v2812 = vpop.xlane.xlu0 %2811
        %2813 = vmax.xlane.f32.xlu0 %v2771
        %v2814 = vpop.xlane.xlu0 %2813
        %2815 = vmax.xlane.f32.xlu0 %v2774
        %v2816 = vpop.xlane.xlu0 %2815
        %2817 = vmax.xlane.f32.xlu0 %v2779
        %v2818 = vpop.xlane.xlu0 %2817
        %2819 = vmax.xlane.f32.xlu0 %v2782
        %v2820 = vpop.xlane.xlu0 %2819
        %2821 = vmax.xlane.f32.xlu0 %v2787
        %v2822 = vpop.xlane.xlu0 %2821
        %2823 = vmax.xlane.f32.xlu0 %v2790
        %v2824 = vpop.xlane.xlu0 %2823
        %v2825 = vsub.f32 %v2731, %v2794
        %v2826 = vsub.f32 %v2734, %v2796
        %v2827 = vsub.f32 %v2739, %v2798
        %v2828 = vsub.f32 %v2742, %v2800
        %v2829 = vsub.f32 %v2747, %v2802
        %v2830 = vsub.f32 %v2750, %v2804
        %v2831 = vsub.f32 %v2755, %v2806
        %v2832 = vsub.f32 %v2758, %v2808
        %v2833 = vsub.f32 %v2763, %v2810
        %v2834 = vsub.f32 %v2766, %v2812
        %v2835 = vsub.f32 %v2771, %v2814
        %v2836 = vsub.f32 %v2774, %v2816
        %v2837 = vsub.f32 %v2779, %v2818
        %v2838 = vsub.f32 %v2782, %v2820
        %v2839 = vsub.f32 %v2787, %v2822
        %v2840 = vsub.f32 %v2790, %v2824
        %v2841 = vmul.f32 %v2825, 1.442695
        %v2842 = vpow.pop %v2841
        %v2843 = vmul.f32 %v2826, 1.442695
        %v2844 = vpow.pop %v2843
        %v2845 = vmul.f32 %v2827, 1.442695
        %v2846 = vpow.pop %v2845
        %v2847 = vmul.f32 %v2828, 1.442695
        %v2848 = vpow.pop %v2847
        %v2849 = vmul.f32 %v2829, 1.442695
        %v2850 = vpow.pop %v2849
        %v2851 = vmul.f32 %v2830, 1.442695
        %v2852 = vpow.pop %v2851
        %v2853 = vmul.f32 %v2831, 1.442695
        %v2854 = vpow.pop %v2853
        %v2855 = vmul.f32 %v2832, 1.442695
        %v2856 = vpow.pop %v2855
        %v2857 = vmul.f32 %v2833, 1.442695
        %v2858 = vpow.pop %v2857
        %v2859 = vmul.f32 %v2834, 1.442695
        %v2860 = vpow.pop %v2859
        %v2861 = vmul.f32 %v2835, 1.442695
        %v2862 = vpow.pop %v2861
        %v2863 = vmul.f32 %v2836, 1.442695
        %v2864 = vpow.pop %v2863
        %v2865 = vmul.f32 %v2837, 1.442695
        %v2866 = vpow.pop %v2865
        %v2867 = vmul.f32 %v2838, 1.442695
        %v2868 = vpow.pop %v2867
        %v2869 = vmul.f32 %v2839, 1.442695
        %v2870 = vpow.pop %v2869
        %v2871 = vmul.f32 %v2840, 1.442695
        %v2872 = vpow.pop %v2871
        %2873 = vadd.xlane.f32.xlu0 %v2842
        %v2874 = vpop.xlane.xlu0 %2873
        %2875 = vadd.xlane.f32.xlu0 %v2844
        %v2876 = vpop.xlane.xlu0 %2875
        %2877 = vadd.xlane.f32.xlu0 %v2846
        %v2878 = vpop.xlane.xlu0 %2877
        %2879 = vadd.xlane.f32.xlu0 %v2848
        %v2880 = vpop.xlane.xlu0 %2879
        %2881 = vadd.xlane.f32.xlu0 %v2850
        %v2882 = vpop.xlane.xlu0 %2881
        %2883 = vadd.xlane.f32.xlu0 %v2852
        %v2884 = vpop.xlane.xlu0 %2883
        %2885 = vadd.xlane.f32.xlu0 %v2854
        %v2886 = vpop.xlane.xlu0 %2885
        %2887 = vadd.xlane.f32.xlu0 %v2856
        %v2888 = vpop.xlane.xlu0 %2887
        %2889 = vadd.xlane.f32.xlu0 %v2858
        %v2890 = vpop.xlane.xlu0 %2889
        %2891 = vadd.xlane.f32.xlu0 %v2860
        %v2892 = vpop.xlane.xlu0 %2891
        %2893 = vadd.xlane.f32.xlu0 %v2862
        %v2894 = vpop.xlane.xlu0 %2893
        %2895 = vadd.xlane.f32.xlu0 %v2864
        %v2896 = vpop.xlane.xlu0 %2895
        %2897 = vadd.xlane.f32.xlu0 %v2866
        %v2898 = vpop.xlane.xlu0 %2897
        %2899 = vadd.xlane.f32.xlu0 %v2868
        %v2900 = vpop.xlane.xlu0 %2899
        %2901 = vadd.xlane.f32.xlu0 %v2870
        %v2902 = vpop.xlane.xlu0 %2901
        %2903 = vadd.xlane.f32.xlu0 %v2872
        %v2904 = vpop.xlane.xlu0 %2903
        %v2905 = vrcp.pop %v2874
        %v2906 = vrcp.pop %v2876
        %v2907 = vrcp.pop %v2878
        %v2908 = vrcp.pop %v2880
        %v2909 = vrcp.pop %v2882
        %v2910 = vrcp.pop %v2884
        %v2911 = vrcp.pop %v2886
        %v2912 = vrcp.pop %v2888
        %v2913 = vrcp.pop %v2890
        %v2914 = vrcp.pop %v2892
        %v2915 = vrcp.pop %v2894
        %v2916 = vrcp.pop %v2896
        %v2917 = vrcp.pop %v2898
        %v2918 = vrcp.pop %v2900
        %v2919 = vrcp.pop %v2902
        %v2920 = vrcp.pop %v2904
        %v2921 = vmul.f32 %v2842, %v2905
        %v2922 = vmul.f32 %v2844, %v2906
        %v2923 = vmul.f32 %v2846, %v2907
        %v2924 = vmul.f32 %v2848, %v2908
        %v2925 = vmul.f32 %v2850, %v2909
        %v2926 = vmul.f32 %v2852, %v2910
        %v2927 = vmul.f32 %v2854, %v2911
        %v2928 = vmul.f32 %v2856, %v2912
        %v2929 = vmul.f32 %v2858, %v2913
        %v2930 = vmul.f32 %v2860, %v2914
        %v2931 = vmul.f32 %v2862, %v2915
        %v2932 = vmul.f32 %v2864, %v2916
        %v2933 = vmul.f32 %v2866, %v2917
        %v2934 = vmul.f32 %v2868, %v2918
        %v2935 = vmul.f32 %v2870, %v2919
        %v2936 = vmul.f32 %v2872, %v2920
        %v2937 = vpack.c.bf16 %v2922, %v2921
        %v2938 = vpack.c.bf16 %v2924, %v2923
        %v2939 = vpack.c.bf16 %v2926, %v2925
        %v2940 = vpack.c.bf16 %v2928, %v2927
        %v2941 = vpack.c.bf16 %v2930, %v2929
        %v2942 = vpack.c.bf16 %v2932, %v2931
        %v2943 = vpack.c.bf16 %v2934, %v2933
        %v2944 = vpack.c.bf16 %v2936, %v2935
        %2953 = vrot.lane.b32.xlu0 %v1573, 64
        %v2954 = vpop.permute.xlu0 %2953
        %2955 = vrot.lane.b32.xlu0 %v1574, 64
        %v2956 = vpop.permute.xlu0 %2955
        %2957 = vrot.lane.b32.xlu0 %v1575, 64
        %v2958 = vpop.permute.xlu0 %2957
        %2959 = vrot.lane.b32.xlu0 %v1576, 64
        %v2960 = vpop.permute.xlu0 %2959
        %2961 = vrot.lane.b32.xlu0 %v1577, 64
        %v2962 = vpop.permute.xlu0 %2961
        %2963 = vrot.lane.b32.xlu0 %v1578, 64
        %v2964 = vpop.permute.xlu0 %2963
        %2965 = vrot.lane.b32.xlu0 %v1579, 64
        %v2966 = vpop.permute.xlu0 %2965
        %2967 = vrot.lane.b32.xlu0 %v1580, 64
        %v2968 = vpop.permute.xlu0 %2967
        %2977 = vmatprep.subr.bf16.mxu0 0
        %2978 = vmatpush1.bf16.msra.mxu0 %v2968
        %2979 = vmatprep.subr.bf16.mxu0 0
        %2980 = vmatpush1.bf16.msra.mxu0 %v2966
        %2981 = vmatprep.subr.bf16.mxu0 0
        %2982 = vmatpush1.bf16.msra.mxu0 %v2964
        %2983 = vmatprep.subr.bf16.mxu0 0
        %2984 = vmatpush1.bf16.msra.mxu0 %v2962
        %2985 = vmatprep.subr.bf16.mxu0 0
        %2986 = vmatpush1.bf16.msra.mxu0 %v2960
        %2987 = vmatprep.subr.bf16.mxu0 0
        %2988 = vmatpush1.bf16.msra.mxu0 %v2958
        %2989 = vmatprep.subr.bf16.mxu0 0
        %2990 = vmatpush1.bf16.msra.mxu0 %v2956
        %2991 = vmatprep.subr.bf16.mxu0 0
        %2992 = vmatpush1.bf16.msra.mxu0 %v2954
        %2993 = vmatprep.subr.bf16.mxu0 0
        %2994 = vmatpush2.bf16.msra.mxu0 0
        %2995 = vmatprep.subr.bf16.mxu0 0
        %2996 = vmatpush2.bf16.msra.mxu0 0
        %2997 = vmatprep.subr.bf16.mxu0 0
        %2998 = vmatpush2.bf16.msra.mxu0 0
        %2999 = vmatprep.subr.bf16.mxu0 0
        %3000 = vmatpush2.bf16.msra.mxu0 0
        %3001 = vmatprep.subr.bf16.mxu0 0
        %3002 = vmatpush2.bf16.msra.mxu0 0
        %3003 = vmatprep.subr.bf16.mxu0 0
        %3004 = vmatpush2.bf16.msra.mxu0 0
        %3005 = vmatprep.subr.bf16.mxu0 0
        %3006 = vmatpush2.bf16.msra.mxu0 0
        %3007 = vmatprep.subr.bf16.mxu0 0
        %3008 = vmatpush2.bf16.msra.mxu0 0
        %3009 = vmatprep.mubr.bf16.mxu0 0
        %3010 = vmatmul.mubr.bf16.gmra.mxu0 %v2937
        %v3011 = vpop.f32.mrf.mxu0
        %v3012 = vadd.f32 0.0, %v3011
        %v3013 = vpop.f32.mrf.mxu0
        %v3014 = vpop.f32.mrf.mxu0
        %v3015 = vadd.f32 0.0, %v3014
        %v3016 = vpop.f32.mrf.mxu0
        %3017 = vmatprep.mubr.bf16.mxu0 0
        %3018 = vmatmul.mubr.bf16.gmra.mxu0 %v2938
        %v3019 = vpop.f32.mrf.mxu0
        %v3020 = vadd.f32 0.0, %v3019
        %v3021 = vpop.f32.mrf.mxu0
        %v3022 = vpop.f32.mrf.mxu0
        %v3023 = vadd.f32 0.0, %v3022
        %v3024 = vpop.f32.mrf.mxu0
        %3025 = vmatprep.mubr.bf16.mxu0 0
        %3026 = vmatmul.mubr.bf16.gmra.mxu0 %v2939
        %v3027 = vpop.f32.mrf.mxu0
        %v3028 = vadd.f32 0.0, %v3027
        %v3029 = vpop.f32.mrf.mxu0
        %v3030 = vpop.f32.mrf.mxu0
        %v3031 = vadd.f32 0.0, %v3030
        %v3032 = vpop.f32.mrf.mxu0
        %3033 = vmatprep.mubr.bf16.mxu0 0
        %3034 = vmatmul.mubr.bf16.gmra.mxu0 %v2940
        %v3035 = vpop.f32.mrf.mxu0
        %v3036 = vadd.f32 0.0, %v3035
        %v3037 = vpop.f32.mrf.mxu0
        %v3038 = vpop.f32.mrf.mxu0
        %v3039 = vadd.f32 0.0, %v3038
        %v3040 = vpop.f32.mrf.mxu0
        %3041 = vmatprep.mubr.bf16.mxu0 0
        %3042 = vmatmul.mubr.bf16.gmra.mxu0 %v2941
        %v3043 = vpop.f32.mrf.mxu0
        %v3044 = vadd.f32 0.0, %v3043
        %v3045 = vpop.f32.mrf.mxu0
        %v3046 = vpop.f32.mrf.mxu0
        %v3047 = vadd.f32 0.0, %v3046
        %v3048 = vpop.f32.mrf.mxu0
        %3049 = vmatprep.mubr.bf16.mxu0 0
        %3050 = vmatmul.mubr.bf16.gmra.mxu0 %v2942
        %v3051 = vpop.f32.mrf.mxu0
        %v3052 = vadd.f32 0.0, %v3051
        %v3053 = vpop.f32.mrf.mxu0
        %v3054 = vpop.f32.mrf.mxu0
        %v3055 = vadd.f32 0.0, %v3054
        %v3056 = vpop.f32.mrf.mxu0
        %3057 = vmatprep.mubr.bf16.mxu0 0
        %3058 = vmatmul.mubr.bf16.gmra.mxu0 %v2943
        %v3059 = vpop.f32.mrf.mxu0
        %v3060 = vadd.f32 0.0, %v3059
        %v3061 = vpop.f32.mrf.mxu0
        %v3062 = vpop.f32.mrf.mxu0
        %v3063 = vadd.f32 0.0, %v3062
        %v3064 = vpop.f32.mrf.mxu0
        %3065 = vmatprep.mubr.bf16.mxu0 0
        %3066 = vmatmul.mubr.bf16.gmra.mxu0 %v2944
        %v3067 = vpop.f32.mrf.mxu0
        %v3068 = vadd.f32 0.0, %v3067
        %v3069 = vpop.f32.mrf.mxu0
        %v3070 = vpop.f32.mrf.mxu0
        %v3071 = vadd.f32 0.0, %v3070
        %v3072 = vpop.f32.mrf.mxu0
        %3073 = vdwg.mxu0
        %v3074 = vpack.c.bf16 %v3015, %v3012
        %v3075 = vpack.c.bf16 %v3023, %v3020
        %v3076 = vpack.c.bf16 %v3031, %v3028
        %v3077 = vpack.c.bf16 %v3039, %v3036
        %v3078 = vpack.c.bf16 %v3047, %v3044
        %v3079 = vpack.c.bf16 %v3055, %v3052
        %v3080 = vpack.c.bf16 %v3063, %v3060
        %v3081 = vpack.c.bf16 %v3071, %v3068
        %3082 = vmatprep.subr.bf16.mxu0 0
        %3083 = vmatpush1.bf16.msra.mxu0 %v3081
        %3084 = vmatprep.subr.bf16.mxu0 0
        %3085 = vmatpush1.bf16.msra.mxu0 %v3080
        %3086 = vmatprep.subr.bf16.mxu0 0
        %3087 = vmatpush1.bf16.msra.mxu0 %v3079
        %3088 = vmatprep.subr.bf16.mxu0 0
        %3089 = vmatpush1.bf16.msra.mxu0 %v3078
        %3090 = vmatprep.subr.bf16.mxu0 0
        %3091 = vmatpush1.bf16.msra.mxu0 %v3077
        %3092 = vmatprep.subr.bf16.mxu0 0
        %3093 = vmatpush1.bf16.msra.mxu0 %v3076
        %3094 = vmatprep.subr.bf16.mxu0 0
        %3095 = vmatpush1.bf16.msra.mxu0 %v3075
        %3096 = vmatprep.subr.bf16.mxu0 0
        %3097 = vmatpush1.bf16.msra.mxu0 %v3074
        %3098 = vmatprep.subr.bf16.mxu0 0
        %3099 = vmatpush2.bf16.msra.mxu0 0
        %3100 = vmatprep.subr.bf16.mxu0 0
        %3101 = vmatpush2.bf16.msra.mxu0 0
        %3102 = vmatprep.subr.bf16.mxu0 0
        %3103 = vmatpush2.bf16.msra.mxu0 0
        %3104 = vmatprep.subr.bf16.mxu0 0
        %3105 = vmatpush2.bf16.msra.mxu0 0
        %3106 = vmatprep.subr.bf16.mxu0 0
        %3107 = vmatpush2.bf16.msra.mxu0 0
        %3108 = vmatprep.subr.bf16.mxu0 0
        %3109 = vmatpush2.bf16.msra.mxu0 0
        %3110 = vmatprep.subr.bf16.mxu0 0
        %3111 = vmatpush2.bf16.msra.mxu0 0
        %3112 = vmatprep.subr.bf16.mxu0 0
        %3113 = vmatpush2.bf16.msra.mxu0 0
        %3114 = vmatprep.mubr.bf16.mxu0 0
        %3115 = vmatmul.mubr.bf16.gmra.mxu0 %v1453
        %v3116 = vpop.f32.mrf.mxu0
        %v3117 = vadd.f32 0.0, %v3116
        %v3118 = vpop.f32.mrf.mxu0
        %v3119 = vpop.f32.mrf.mxu0
        %v3120 = vadd.f32 0.0, %v3119
        %v3121 = vpop.f32.mrf.mxu0
        %3122 = vmatprep.mubr.bf16.mxu0 0
        %3123 = vmatmul.mubr.bf16.gmra.mxu0 %v1454
        %v3124 = vpop.f32.mrf.mxu0
        %v3125 = vadd.f32 0.0, %v3124
        %v3126 = vpop.f32.mrf.mxu0
        %v3127 = vpop.f32.mrf.mxu0
        %v3128 = vadd.f32 0.0, %v3127
        %v3129 = vpop.f32.mrf.mxu0
        %3130 = vdwg.mxu0
        %v3131 = vpack.c.bf16 %v3120, %v3117
        %v3132 = vpack.c.bf16 %v3128, %v3125
        %3133 = vmatprep.subr.bf16.mxu0 0
        %3134 = vmatpush1.bf16.msra.mxu0 %v3081
        %3135 = vmatprep.subr.bf16.mxu0 0
        %3136 = vmatpush1.bf16.msra.mxu0 %v3080
        %3137 = vmatprep.subr.bf16.mxu0 0
        %3138 = vmatpush1.bf16.msra.mxu0 %v3079
        %3139 = vmatprep.subr.bf16.mxu0 0
        %3140 = vmatpush1.bf16.msra.mxu0 %v3078
        %3141 = vmatprep.subr.bf16.mxu0 0
        %3142 = vmatpush1.bf16.msra.mxu0 %v3077
        %3143 = vmatprep.subr.bf16.mxu0 0
        %3144 = vmatpush1.bf16.msra.mxu0 %v3076
        %3145 = vmatprep.subr.bf16.mxu0 0
        %3146 = vmatpush1.bf16.msra.mxu0 %v3075
        %3147 = vmatprep.subr.bf16.mxu0 0
        %3148 = vmatpush1.bf16.msra.mxu0 %v3074
        %3149 = vmatprep.subr.bf16.mxu0 0
        %3150 = vmatpush2.bf16.msra.mxu0 0
        %3151 = vmatprep.subr.bf16.mxu0 0
        %3152 = vmatpush2.bf16.msra.mxu0 0
        %3153 = vmatprep.subr.bf16.mxu0 0
        %3154 = vmatpush2.bf16.msra.mxu0 0
        %3155 = vmatprep.subr.bf16.mxu0 0
        %3156 = vmatpush2.bf16.msra.mxu0 0
        %3157 = vmatprep.subr.bf16.mxu0 0
        %3158 = vmatpush2.bf16.msra.mxu0 0
        %3159 = vmatprep.subr.bf16.mxu0 0
        %3160 = vmatpush2.bf16.msra.mxu0 0
        %3161 = vmatprep.subr.bf16.mxu0 0
        %3162 = vmatpush2.bf16.msra.mxu0 0
        %3163 = vmatprep.subr.bf16.mxu0 0
        %3164 = vmatpush2.bf16.msra.mxu0 0
        %3165 = vmatprep.mubr.bf16.mxu0 0
        %3166 = vmatmul.mubr.bf16.gmra.mxu0 %v1471
        %v3167 = vpop.f32.mrf.mxu0
        %v3168 = vadd.f32 0.0, %v3167
        %v3169 = vpop.f32.mrf.mxu0
        %v3170 = vpop.f32.mrf.mxu0
        %v3171 = vadd.f32 0.0, %v3170
        %v3172 = vpop.f32.mrf.mxu0
        %3173 = vmatprep.mubr.bf16.mxu0 0
        %3174 = vmatmul.mubr.bf16.gmra.mxu0 %v1472
        %v3175 = vpop.f32.mrf.mxu0
        %v3176 = vadd.f32 0.0, %v3175
        %v3177 = vpop.f32.mrf.mxu0
        %v3178 = vpop.f32.mrf.mxu0
        %v3179 = vadd.f32 0.0, %v3178
        %v3180 = vpop.f32.mrf.mxu0
        %3181 = vdwg.mxu0
        %v3182 = vpack.c.bf16 %v3171, %v3168
        %v3183 = vpack.c.bf16 %v3179, %v3176
        %v3185 = vsel %vm1581, %v3182, 0
        %v3188 = vsel %vm1581, %v3183, 0
        %3190 = vmatprep.subr.bf16.mxu0 0
        %3191 = vmatpush1.bf16.msra.mxu0 0
        %3192 = vmatprep.subr.bf16.mxu0 0
        %3193 = vmatpush1.bf16.msra.mxu0 0
        %3194 = vmatprep.subr.bf16.mxu0 0
        %3195 = vmatpush1.bf16.msra.mxu0 0
        %3196 = vmatprep.subr.bf16.mxu0 0
        %3197 = vmatpush1.bf16.msra.mxu0 0
        %3198 = vmatprep.subr.bf16.mxu0 %v2117
        %3199 = vmatpush1.bf16.msra.mxu0 %v2116
        %3200 = vmatprep.subr.bf16.mxu0 %v2115
        %3201 = vmatpush1.bf16.msra.mxu0 %v2114
        %3202 = vmatprep.subr.bf16.mxu0 %v2113
        %3203 = vmatpush1.bf16.msra.mxu0 %v2112
        %3204 = vmatprep.subr.bf16.mxu0 %v2111
        %3205 = vmatpush1.bf16.msra.mxu0 %v2110
        %3206 = vmatprep.subr.bf16.mxu0 0
        %3207 = vmatpush2.bf16.msra.mxu0 0
        %3208 = vmatprep.subr.bf16.mxu0 0
        %3209 = vmatpush2.bf16.msra.mxu0 0
        %3210 = vmatprep.subr.bf16.mxu0 0
        %3211 = vmatpush2.bf16.msra.mxu0 0
        %3212 = vmatprep.subr.bf16.mxu0 0
        %3213 = vmatpush2.bf16.msra.mxu0 0
        %3214 = vmatprep.subr.bf16.mxu0 0
        %3215 = vmatpush2.bf16.msra.mxu0 0
        %3216 = vmatprep.subr.bf16.mxu0 0
        %3217 = vmatpush2.bf16.msra.mxu0 0
        %3218 = vmatprep.subr.bf16.mxu0 0
        %3219 = vmatpush2.bf16.msra.mxu0 0
        %3220 = vmatprep.subr.bf16.mxu0 0
        %3221 = vmatpush2.bf16.msra.mxu0 0
        %3222 = vmatprep.mubr.bf16.mxu0 0
        %3223 = vmatmul.mubr.bf16.gmra.mxu0 %v3185
        %v3224 = vpop.f32.mrf.mxu0
        %v3225 = vadd.f32 0.0, %v3224
        %v3226 = vpop.f32.mrf.mxu0
        %v3227 = vadd.f32 0.0, %v3226
        %v3228 = vpop.f32.mrf.mxu0
        %v3229 = vadd.f32 0.0, %v3228
        %v3230 = vpop.f32.mrf.mxu0
        %v3231 = vadd.f32 0.0, %v3230
        %3232 = vmatprep.mubr.bf16.mxu0 0
        %3233 = vmatmul.mubr.bf16.gmra.mxu0 %v3188
        %v3234 = vpop.f32.mrf.mxu0
        %v3235 = vadd.f32 0.0, %v3234
        %v3236 = vpop.f32.mrf.mxu0
        %v3237 = vadd.f32 0.0, %v3236
        %v3238 = vpop.f32.mrf.mxu0
        %v3239 = vadd.f32 0.0, %v3238
        %v3240 = vpop.f32.mrf.mxu0
        %v3241 = vadd.f32 0.0, %v3240
        %3242 = vdwg.mxu0
        %v3244 = vsel %vm1581, %v3131, 0
        %v3247 = vsel %vm1581, %v3132, 0
        %3249 = vmatprep.subr.bf16.mxu0 0
        %3250 = vmatpush1.bf16.msra.mxu0 0
        %3251 = vmatprep.subr.bf16.mxu0 0
        %3252 = vmatpush1.bf16.msra.mxu0 0
        %3253 = vmatprep.subr.bf16.mxu0 0
        %3254 = vmatpush1.bf16.msra.mxu0 0
        %3255 = vmatprep.subr.bf16.mxu0 0
        %3256 = vmatpush1.bf16.msra.mxu0 0
        %3257 = vmatprep.subr.bf16.mxu0 %v2216
        %3258 = vmatpush1.bf16.msra.mxu0 %v2215
        %3259 = vmatprep.subr.bf16.mxu0 %v2214
        %3260 = vmatpush1.bf16.msra.mxu0 %v2213
        %3261 = vmatprep.subr.bf16.mxu0 %v2212
        %3262 = vmatpush1.bf16.msra.mxu0 %v2211
        %3263 = vmatprep.subr.bf16.mxu0 %v2210
        %3264 = vmatpush1.bf16.msra.mxu0 %v2209
        %3265 = vmatprep.subr.bf16.mxu0 0
        %3266 = vmatpush2.bf16.msra.mxu0 0
        %3267 = vmatprep.subr.bf16.mxu0 0
        %3268 = vmatpush2.bf16.msra.mxu0 0
        %3269 = vmatprep.subr.bf16.mxu0 0
        %3270 = vmatpush2.bf16.msra.mxu0 0
        %3271 = vmatprep.subr.bf16.mxu0 0
        %3272 = vmatpush2.bf16.msra.mxu0 0
        %3273 = vmatprep.subr.bf16.mxu0 0
        %3274 = vmatpush2.bf16.msra.mxu0 0
        %3275 = vmatprep.subr.bf16.mxu0 0
        %3276 = vmatpush2.bf16.msra.mxu0 0
        %3277 = vmatprep.subr.bf16.mxu0 0
        %3278 = vmatpush2.bf16.msra.mxu0 0
        %3279 = vmatprep.subr.bf16.mxu0 0
        %3280 = vmatpush2.bf16.msra.mxu0 0
        %3281 = vmatprep.mubr.bf16.mxu0 0
        %3282 = vmatmul.mubr.bf16.gmra.mxu0 %v3244
        %v3283 = vpop.f32.mrf.mxu0
        %v3284 = vadd.f32 %v3225, %v3283
        %v3285 = vpop.f32.mrf.mxu0
        %v3286 = vadd.f32 %v3227, %v3285
        %v3287 = vpop.f32.mrf.mxu0
        %v3288 = vadd.f32 %v3229, %v3287
        %v3289 = vpop.f32.mrf.mxu0
        %v3290 = vadd.f32 %v3231, %v3289
        %3291 = vmatprep.mubr.bf16.mxu0 0
        %3292 = vmatmul.mubr.bf16.gmra.mxu0 %v3247
        %v3293 = vpop.f32.mrf.mxu0
        %v3294 = vadd.f32 %v3235, %v3293
        %v3295 = vpop.f32.mrf.mxu0
        %v3296 = vadd.f32 %v3237, %v3295
        %v3297 = vpop.f32.mrf.mxu0
        %v3298 = vadd.f32 %v3239, %v3297
        %v3299 = vpop.f32.mrf.mxu0
        %v3300 = vadd.f32 %v3241, %v3299
        %3301 = vdwg.mxu0
        %3302 = vmatprep.subr.bf16.mxu0 0
        %3303 = vmatpush1.bf16.msra.mxu0 %v3081
        %3304 = vmatprep.subr.bf16.mxu0 0
        %3305 = vmatpush1.bf16.msra.mxu0 %v3080
        %3306 = vmatprep.subr.bf16.mxu0 0
        %3307 = vmatpush1.bf16.msra.mxu0 %v3079
        %3308 = vmatprep.subr.bf16.mxu0 0
        %3309 = vmatpush1.bf16.msra.mxu0 %v3078
        %3310 = vmatprep.subr.bf16.mxu0 0
        %3311 = vmatpush1.bf16.msra.mxu0 %v3077
        %3312 = vmatprep.subr.bf16.mxu0 0
        %3313 = vmatpush1.bf16.msra.mxu0 %v3076
        %3314 = vmatprep.subr.bf16.mxu0 0
        %3315 = vmatpush1.bf16.msra.mxu0 %v3075
        %3316 = vmatprep.subr.bf16.mxu0 0
        %3317 = vmatpush1.bf16.msra.mxu0 %v3074
        %3318 = vmatprep.subr.bf16.mxu0 0
        %3319 = vmatpush2.bf16.msra.mxu0 0
        %3320 = vmatprep.subr.bf16.mxu0 0
        %3321 = vmatpush2.bf16.msra.mxu0 0
        %3322 = vmatprep.subr.bf16.mxu0 0
        %3323 = vmatpush2.bf16.msra.mxu0 0
        %3324 = vmatprep.subr.bf16.mxu0 0
        %3325 = vmatpush2.bf16.msra.mxu0 0
        %3326 = vmatprep.subr.bf16.mxu0 0
        %3327 = vmatpush2.bf16.msra.mxu0 0
        %3328 = vmatprep.subr.bf16.mxu0 0
        %3329 = vmatpush2.bf16.msra.mxu0 0
        %3330 = vmatprep.subr.bf16.mxu0 0
        %3331 = vmatpush2.bf16.msra.mxu0 0
        %3332 = vmatprep.subr.bf16.mxu0 0
        %3333 = vmatpush2.bf16.msra.mxu0 0
        %3334 = vmatprep.mubr.bf16.mxu0 0
        %3335 = vmatmul.mubr.bf16.gmra.mxu0 %v1489
        %v3336 = vpop.f32.mrf.mxu0
        %v3337 = vadd.f32 0.0, %v3336
        %v3338 = vpop.f32.mrf.mxu0
        %v3339 = vpop.f32.mrf.mxu0
        %v3340 = vadd.f32 0.0, %v3339
        %v3341 = vpop.f32.mrf.mxu0
        %3342 = vmatprep.mubr.bf16.mxu0 0
        %3343 = vmatmul.mubr.bf16.gmra.mxu0 %v1490
        %v3344 = vpop.f32.mrf.mxu0
        %v3345 = vadd.f32 0.0, %v3344
        %v3346 = vpop.f32.mrf.mxu0
        %v3347 = vpop.f32.mrf.mxu0
        %v3348 = vadd.f32 0.0, %v3347
        %v3349 = vpop.f32.mrf.mxu0
        %3350 = vdwg.mxu0
        %v3351 = vpack.c.bf16 %v3340, %v3337
        %v3352 = vpack.c.bf16 %v3348, %v3345
        %v3354 = vsel %vm1581, %v3351, 0
        %v3357 = vsel %vm1581, %v3352, 0
        %3359 = vmatprep.subr.bf16.mxu0 0
        %3360 = vmatpush1.bf16.msra.mxu0 0
        %3361 = vmatprep.subr.bf16.mxu0 0
        %3362 = vmatpush1.bf16.msra.mxu0 0
        %3363 = vmatprep.subr.bf16.mxu0 0
        %3364 = vmatpush1.bf16.msra.mxu0 0
        %3365 = vmatprep.subr.bf16.mxu0 0
        %3366 = vmatpush1.bf16.msra.mxu0 0
        %3367 = vmatprep.subr.bf16.mxu0 %v2366
        %3368 = vmatpush1.bf16.msra.mxu0 %v2365
        %3369 = vmatprep.subr.bf16.mxu0 %v2364
        %3370 = vmatpush1.bf16.msra.mxu0 %v2363
        %3371 = vmatprep.subr.bf16.mxu0 %v2362
        %3372 = vmatpush1.bf16.msra.mxu0 %v2361
        %3373 = vmatprep.subr.bf16.mxu0 %v2360
        %3374 = vmatpush1.bf16.msra.mxu0 %v2359
        %3375 = vmatprep.subr.bf16.mxu0 0
        %3376 = vmatpush2.bf16.msra.mxu0 0
        %3377 = vmatprep.subr.bf16.mxu0 0
        %3378 = vmatpush2.bf16.msra.mxu0 0
        %3379 = vmatprep.subr.bf16.mxu0 0
        %3380 = vmatpush2.bf16.msra.mxu0 0
        %3381 = vmatprep.subr.bf16.mxu0 0
        %3382 = vmatpush2.bf16.msra.mxu0 0
        %3383 = vmatprep.subr.bf16.mxu0 0
        %3384 = vmatpush2.bf16.msra.mxu0 0
        %3385 = vmatprep.subr.bf16.mxu0 0
        %3386 = vmatpush2.bf16.msra.mxu0 0
        %3387 = vmatprep.subr.bf16.mxu0 0
        %3388 = vmatpush2.bf16.msra.mxu0 0
        %3389 = vmatprep.subr.bf16.mxu0 0
        %3390 = vmatpush2.bf16.msra.mxu0 0
        %3391 = vmatprep.mubr.bf16.mxu0 0
        %3392 = vmatmul.mubr.bf16.gmra.mxu0 %v3354
        %v3393 = vpop.f32.mrf.mxu0
        %v3394 = vadd.f32 0.0, %v3393
        %v3395 = vpop.f32.mrf.mxu0
        %v3396 = vadd.f32 0.0, %v3395
        %v3397 = vpop.f32.mrf.mxu0
        %v3398 = vadd.f32 0.0, %v3397
        %v3399 = vpop.f32.mrf.mxu0
        %v3400 = vadd.f32 0.0, %v3399
        %3401 = vmatprep.mubr.bf16.mxu0 0
        %3402 = vmatmul.mubr.bf16.gmra.mxu0 %v3357
        %v3403 = vpop.f32.mrf.mxu0
        %v3404 = vadd.f32 0.0, %v3403
        %v3405 = vpop.f32.mrf.mxu0
        %v3406 = vadd.f32 0.0, %v3405
        %v3407 = vpop.f32.mrf.mxu0
        %v3408 = vadd.f32 0.0, %v3407
        %v3409 = vpop.f32.mrf.mxu0
        %v3410 = vadd.f32 0.0, %v3409
        %3411 = vdwg.mxu0
        %v3412 = vadd.f32 %v3284, %v3394
        %v3413 = vadd.f32 %v3286, %v3396
        %v3414 = vadd.f32 %v3288, %v3398
        %v3415 = vadd.f32 %v3290, %v3400
        %v3416 = vadd.f32 %v3294, %v3404
        %v3417 = vadd.f32 %v3296, %v3406
        %v3418 = vadd.f32 %v3298, %v3408
        %v3419 = vadd.f32 %v3300, %v3410
        %3420 = vmatprep.subr.bf16.mxu0 0
        %3421 = vmatpush1.bf16.msra.mxu0 %v3081
        %3422 = vmatprep.subr.bf16.mxu0 0
        %3423 = vmatpush1.bf16.msra.mxu0 %v3080
        %3424 = vmatprep.subr.bf16.mxu0 0
        %3425 = vmatpush1.bf16.msra.mxu0 %v3079
        %3426 = vmatprep.subr.bf16.mxu0 0
        %3427 = vmatpush1.bf16.msra.mxu0 %v3078
        %3428 = vmatprep.subr.bf16.mxu0 0
        %3429 = vmatpush1.bf16.msra.mxu0 %v3077
        %3430 = vmatprep.subr.bf16.mxu0 0
        %3431 = vmatpush1.bf16.msra.mxu0 %v3076
        %3432 = vmatprep.subr.bf16.mxu0 0
        %3433 = vmatpush1.bf16.msra.mxu0 %v3075
        %3434 = vmatprep.subr.bf16.mxu0 0
        %3435 = vmatpush1.bf16.msra.mxu0 %v3074
        %3436 = vmatprep.subr.bf16.mxu0 0
        %3437 = vmatpush2.bf16.msra.mxu0 0
        %3438 = vmatprep.subr.bf16.mxu0 0
        %3439 = vmatpush2.bf16.msra.mxu0 0
        %3440 = vmatprep.subr.bf16.mxu0 0
        %3441 = vmatpush2.bf16.msra.mxu0 0
        %3442 = vmatprep.subr.bf16.mxu0 0
        %3443 = vmatpush2.bf16.msra.mxu0 0
        %3444 = vmatprep.subr.bf16.mxu0 0
        %3445 = vmatpush2.bf16.msra.mxu0 0
        %3446 = vmatprep.subr.bf16.mxu0 0
        %3447 = vmatpush2.bf16.msra.mxu0 0
        %3448 = vmatprep.subr.bf16.mxu0 0
        %3449 = vmatpush2.bf16.msra.mxu0 0
        %3450 = vmatprep.subr.bf16.mxu0 0
        %3451 = vmatpush2.bf16.msra.mxu0 0
        %3452 = vmatprep.mubr.bf16.mxu0 0
        %3453 = vmatmul.mubr.bf16.gmra.mxu0 %v1507
        %v3454 = vpop.f32.mrf.mxu0
        %v3455 = vadd.f32 0.0, %v3454
        %v3456 = vpop.f32.mrf.mxu0
        %v3457 = vpop.f32.mrf.mxu0
        %v3458 = vadd.f32 0.0, %v3457
        %v3459 = vpop.f32.mrf.mxu0
        %3460 = vmatprep.mubr.bf16.mxu0 0
        %3461 = vmatmul.mubr.bf16.gmra.mxu0 %v1508
        %v3462 = vpop.f32.mrf.mxu0
        %v3463 = vadd.f32 0.0, %v3462
        %v3464 = vpop.f32.mrf.mxu0
        %v3465 = vpop.f32.mrf.mxu0
        %v3466 = vadd.f32 0.0, %v3465
        %v3467 = vpop.f32.mrf.mxu0
        %3468 = vdwg.mxu0
        %v3469 = vpack.c.bf16 %v3458, %v3455
        %v3470 = vpack.c.bf16 %v3466, %v3463
        %v3472 = vsel %vm1581, %v3469, 0
        %v3475 = vsel %vm1581, %v3470, 0
        %3477 = vmatprep.subr.bf16.mxu0 0
        %3478 = vmatpush1.bf16.msra.mxu0 0
        %3479 = vmatprep.subr.bf16.mxu0 0
        %3480 = vmatpush1.bf16.msra.mxu0 0
        %3481 = vmatprep.subr.bf16.mxu0 0
        %3482 = vmatpush1.bf16.msra.mxu0 0
        %3483 = vmatprep.subr.bf16.mxu0 0
        %3484 = vmatpush1.bf16.msra.mxu0 0
        %3485 = vmatprep.subr.bf16.mxu0 %v2524
        %3486 = vmatpush1.bf16.msra.mxu0 %v2523
        %3487 = vmatprep.subr.bf16.mxu0 %v2522
        %3488 = vmatpush1.bf16.msra.mxu0 %v2521
        %3489 = vmatprep.subr.bf16.mxu0 %v2520
        %3490 = vmatpush1.bf16.msra.mxu0 %v2519
        %3491 = vmatprep.subr.bf16.mxu0 %v2518
        %3492 = vmatpush1.bf16.msra.mxu0 %v2517
        %3493 = vmatprep.subr.bf16.mxu0 0
        %3494 = vmatpush2.bf16.msra.mxu0 0
        %3495 = vmatprep.subr.bf16.mxu0 0
        %3496 = vmatpush2.bf16.msra.mxu0 0
        %3497 = vmatprep.subr.bf16.mxu0 0
        %3498 = vmatpush2.bf16.msra.mxu0 0
        %3499 = vmatprep.subr.bf16.mxu0 0
        %3500 = vmatpush2.bf16.msra.mxu0 0
        %3501 = vmatprep.subr.bf16.mxu0 0
        %3502 = vmatpush2.bf16.msra.mxu0 0
        %3503 = vmatprep.subr.bf16.mxu0 0
        %3504 = vmatpush2.bf16.msra.mxu0 0
        %3505 = vmatprep.subr.bf16.mxu0 0
        %3506 = vmatpush2.bf16.msra.mxu0 0
        %3507 = vmatprep.subr.bf16.mxu0 0
        %3508 = vmatpush2.bf16.msra.mxu0 0
        %3509 = vmatprep.mubr.bf16.mxu0 0
        %3510 = vmatmul.mubr.bf16.gmra.mxu0 %v3472
        %v3511 = vpop.f32.mrf.mxu0
        %v3512 = vadd.f32 0.0, %v3511
        %v3513 = vpop.f32.mrf.mxu0
        %v3514 = vadd.f32 0.0, %v3513
        %v3515 = vpop.f32.mrf.mxu0
        %v3516 = vadd.f32 0.0, %v3515
        %v3517 = vpop.f32.mrf.mxu0
        %v3518 = vadd.f32 0.0, %v3517
        %3519 = vmatprep.mubr.bf16.mxu0 0
        %3520 = vmatmul.mubr.bf16.gmra.mxu0 %v3475
        %v3521 = vpop.f32.mrf.mxu0
        %v3522 = vadd.f32 0.0, %v3521
        %v3523 = vpop.f32.mrf.mxu0
        %v3524 = vadd.f32 0.0, %v3523
        %v3525 = vpop.f32.mrf.mxu0
        %v3526 = vadd.f32 0.0, %v3525
        %v3527 = vpop.f32.mrf.mxu0
        %v3528 = vadd.f32 0.0, %v3527
        %3529 = vdwg.mxu0
        %v3530 = vadd.f32 %v3412, %v3512
        %v3531 = vadd.f32 %v3413, %v3514
        %v3532 = vadd.f32 %v3414, %v3516
        %v3533 = vadd.f32 %v3415, %v3518
        %v3534 = vadd.f32 %v3416, %v3522
        %v3535 = vadd.f32 %v3417, %v3524
        %v3536 = vadd.f32 %v3418, %v3526
        %v3537 = vadd.f32 %v3419, %v3528
        %v3538 = vmul.f32 %v1128, 0.125
        %v3539 = vmul.f32 %v1132, 0.125
        %v3540 = vmul.f32 %v1138, 0.125
        %v3541 = vmul.f32 %v1142, 0.125
        %v3542 = vmul.f32 %v1148, 0.125
        %v3543 = vmul.f32 %v1152, 0.125
        %v3544 = vmul.f32 %v1158, 0.125
        %v3545 = vmul.f32 %v1162, 0.125
        %v3546 = vmul.f32 %v1168, 0.125
        %v3547 = vmul.f32 %v1172, 0.125
        %v3548 = vmul.f32 %v1178, 0.125
        %v3549 = vmul.f32 %v1182, 0.125
        %v3550 = vmul.f32 %v1188, 0.125
        %v3551 = vmul.f32 %v1192, 0.125
        %v3552 = vmul.f32 %v1198, 0.125
        %v3553 = vmul.f32 %v1202, 0.125
        %v3554 = vpack.c.bf16 %v3539, %v3538
        %v3555 = vpack.c.bf16 %v3541, %v3540
        %v3556 = vpack.c.bf16 %v3543, %v3542
        %v3557 = vpack.c.bf16 %v3545, %v3544
        %v3558 = vpack.c.bf16 %v3547, %v3546
        %v3559 = vpack.c.bf16 %v3549, %v3548
        %v3560 = vpack.c.bf16 %v3551, %v3550
        %v3561 = vpack.c.bf16 %v3553, %v3552
        %v3562 = vpack.c.bf16 %v1245, %v1241
        %v3563 = vpack.c.bf16 %v1255, %v1251
        %v3564 = vpack.c.bf16 %v1265, %v1261
        %v3565 = vpack.c.bf16 %v1275, %v1271
        %v3566 = vpack.c.bf16 %v1285, %v1281
        %v3567 = vpack.c.bf16 %v1295, %v1291
        %v3568 = vpack.c.bf16 %v1305, %v1301
        %v3569 = vpack.c.bf16 %v1315, %v1311
        %v3570 = vpack.c.bf16 %v1358, %v1354
        %v3571 = vpack.c.bf16 %v1368, %v1364
        %v3572 = vpack.c.bf16 %v1378, %v1374
        %v3573 = vpack.c.bf16 %v1388, %v1384
        %v3574 = vpack.c.bf16 %v1398, %v1394
        %v3575 = vpack.c.bf16 %v1408, %v1404
        %v3576 = vpack.c.bf16 %v1418, %v1414
        %v3577 = vpack.c.bf16 %v1428, %v1424
        %v3579 = vsel %vm1581, %v3554, 0
        %v3582 = vsel %vm1581, %v3555, 0
        %v3585 = vsel %vm1581, %v3556, 0
        %v3588 = vsel %vm1581, %v3557, 0
        %v3591 = vsel %vm1581, %v3558, 0
        %v3594 = vsel %vm1581, %v3559, 0
        %v3597 = vsel %vm1581, %v3560, 0
        %v3600 = vsel %vm1581, %v3561, 0
        %v3603 = vsel %vm1581, %v3562, 0
        %v3606 = vsel %vm1581, %v3563, 0
        %v3609 = vsel %vm1581, %v3564, 0
        %v3612 = vsel %vm1581, %v3565, 0
        %v3615 = vsel %vm1581, %v3566, 0
        %v3618 = vsel %vm1581, %v3567, 0
        %v3621 = vsel %vm1581, %v3568, 0
        %v3624 = vsel %vm1581, %v3569, 0
        %3626 = vmatprep.subr.bf16.mxu0 0
        %3627 = vmatpush1.bf16.xpose.msra.mxu0 %v3624
        %3628 = vmatprep.subr.bf16.mxu0 0
        %3629 = vmatpush1.bf16.xpose.msra.mxu0 %v3621
        %3630 = vmatprep.subr.bf16.mxu0 0
        %3631 = vmatpush1.bf16.xpose.msra.mxu0 %v3618
        %3632 = vmatprep.subr.bf16.mxu0 0
        %3633 = vmatpush1.bf16.xpose.msra.mxu0 %v3615
        %3634 = vmatprep.subr.bf16.mxu0 0
        %3635 = vmatpush1.bf16.xpose.msra.mxu0 %v3612
        %3636 = vmatprep.subr.bf16.mxu0 0
        %3637 = vmatpush1.bf16.xpose.msra.mxu0 %v3609
        %3638 = vmatprep.subr.bf16.mxu0 0
        %3639 = vmatpush1.bf16.xpose.msra.mxu0 %v3606
        %3640 = vmatprep.subr.bf16.mxu0 0
        %3641 = vmatpush1.bf16.xpose.msra.mxu0 %v3603
        %3642 = vmatprep.subr.bf16.mxu0 0
        %3643 = vmatpush2.bf16.xpose.msra.mxu0 0
        %3644 = vmatprep.subr.bf16.mxu0 0
        %3645 = vmatpush2.bf16.xpose.msra.mxu0 0
        %3646 = vmatprep.subr.bf16.mxu0 0
        %3647 = vmatpush2.bf16.xpose.msra.mxu0 0
        %3648 = vmatprep.subr.bf16.mxu0 0
        %3649 = vmatpush2.bf16.xpose.msra.mxu0 0
        %3650 = vmatprep.subr.bf16.mxu0 0
        %3651 = vmatpush2.bf16.xpose.msra.mxu0 0
        %3652 = vmatprep.subr.bf16.mxu0 0
        %3653 = vmatpush2.bf16.xpose.msra.mxu0 0
        %3654 = vmatprep.subr.bf16.mxu0 0
        %3655 = vmatpush2.bf16.xpose.msra.mxu0 0
        %3656 = vmatprep.subr.bf16.mxu0 0
        %3657 = vmatpush2.bf16.xpose.msra.mxu0 0
        %3658 = vmatprep.mubr.bf16.mxu0 0
        %3659 = vmatmul.mubr.bf16.gmra.mxu0 %v3579
        %v3660 = vpop.f32.mrf.mxu0
        %v3661 = vadd.f32 0.0, %v3660
        %v3662 = vpop.f32.mrf.mxu0
        %v3663 = vpop.f32.mrf.mxu0
        %v3664 = vadd.f32 0.0, %v3663
        %v3665 = vpop.f32.mrf.mxu0
        %3666 = vmatprep.mubr.bf16.mxu0 0
        %3667 = vmatmul.mubr.bf16.gmra.mxu0 %v3582
        %v3668 = vpop.f32.mrf.mxu0
        %v3669 = vadd.f32 0.0, %v3668
        %v3670 = vpop.f32.mrf.mxu0
        %v3671 = vpop.f32.mrf.mxu0
        %v3672 = vadd.f32 0.0, %v3671
        %v3673 = vpop.f32.mrf.mxu0
        %3674 = vmatprep.mubr.bf16.mxu0 0
        %3675 = vmatmul.mubr.bf16.gmra.mxu0 %v3585
        %v3676 = vpop.f32.mrf.mxu0
        %v3677 = vadd.f32 0.0, %v3676
        %v3678 = vpop.f32.mrf.mxu0
        %v3679 = vpop.f32.mrf.mxu0
        %v3680 = vadd.f32 0.0, %v3679
        %v3681 = vpop.f32.mrf.mxu0
        %3682 = vmatprep.mubr.bf16.mxu0 0
        %3683 = vmatmul.mubr.bf16.gmra.mxu0 %v3588
        %v3684 = vpop.f32.mrf.mxu0
        %v3685 = vadd.f32 0.0, %v3684
        %v3686 = vpop.f32.mrf.mxu0
        %v3687 = vpop.f32.mrf.mxu0
        %v3688 = vadd.f32 0.0, %v3687
        %v3689 = vpop.f32.mrf.mxu0
        %3690 = vmatprep.mubr.bf16.mxu0 0
        %3691 = vmatmul.mubr.bf16.gmra.mxu0 %v3591
        %v3692 = vpop.f32.mrf.mxu0
        %v3693 = vadd.f32 0.0, %v3692
        %v3694 = vpop.f32.mrf.mxu0
        %v3695 = vpop.f32.mrf.mxu0
        %v3696 = vadd.f32 0.0, %v3695
        %v3697 = vpop.f32.mrf.mxu0
        %3698 = vmatprep.mubr.bf16.mxu0 0
        %3699 = vmatmul.mubr.bf16.gmra.mxu0 %v3594
        %v3700 = vpop.f32.mrf.mxu0
        %v3701 = vadd.f32 0.0, %v3700
        %v3702 = vpop.f32.mrf.mxu0
        %v3703 = vpop.f32.mrf.mxu0
        %v3704 = vadd.f32 0.0, %v3703
        %v3705 = vpop.f32.mrf.mxu0
        %3706 = vmatprep.mubr.bf16.mxu0 0
        %3707 = vmatmul.mubr.bf16.gmra.mxu0 %v3597
        %v3708 = vpop.f32.mrf.mxu0
        %v3709 = vadd.f32 0.0, %v3708
        %v3710 = vpop.f32.mrf.mxu0
        %v3711 = vpop.f32.mrf.mxu0
        %v3712 = vadd.f32 0.0, %v3711
        %v3713 = vpop.f32.mrf.mxu0
        %3714 = vmatprep.mubr.bf16.mxu0 0
        %3715 = vmatmul.mubr.bf16.gmra.mxu0 %v3600
        %v3716 = vpop.f32.mrf.mxu0
        %v3717 = vadd.f32 0.0, %v3716
        %v3718 = vpop.f32.mrf.mxu0
        %v3719 = vpop.f32.mrf.mxu0
        %v3720 = vadd.f32 0.0, %v3719
        %v3721 = vpop.f32.mrf.mxu0
        %3722 = vdwg.mxu0
        %3723 = vmax.xlane.f32.xlu0 %v3661
        %v3724 = vpop.xlane.xlu0 %3723
        %3725 = vmax.xlane.f32.xlu0 %v3664
        %v3726 = vpop.xlane.xlu0 %3725
        %3727 = vmax.xlane.f32.xlu0 %v3669
        %v3728 = vpop.xlane.xlu0 %3727
        %3729 = vmax.xlane.f32.xlu0 %v3672
        %v3730 = vpop.xlane.xlu0 %3729
        %3731 = vmax.xlane.f32.xlu0 %v3677
        %v3732 = vpop.xlane.xlu0 %3731
        %3733 = vmax.xlane.f32.xlu0 %v3680
        %v3734 = vpop.xlane.xlu0 %3733
        %3735 = vmax.xlane.f32.xlu0 %v3685
        %v3736 = vpop.xlane.xlu0 %3735
        %3737 = vmax.xlane.f32.xlu0 %v3688
        %v3738 = vpop.xlane.xlu0 %3737
        %3739 = vmax.xlane.f32.xlu0 %v3693
        %v3740 = vpop.xlane.xlu0 %3739
        %3741 = vmax.xlane.f32.xlu0 %v3696
        %v3742 = vpop.xlane.xlu0 %3741
        %3743 = vmax.xlane.f32.xlu0 %v3701
        %v3744 = vpop.xlane.xlu0 %3743
        %3745 = vmax.xlane.f32.xlu0 %v3704
        %v3746 = vpop.xlane.xlu0 %3745
        %3747 = vmax.xlane.f32.xlu0 %v3709
        %v3748 = vpop.xlane.xlu0 %3747
        %3749 = vmax.xlane.f32.xlu0 %v3712
        %v3750 = vpop.xlane.xlu0 %3749
        %3751 = vmax.xlane.f32.xlu0 %v3717
        %v3752 = vpop.xlane.xlu0 %3751
        %3753 = vmax.xlane.f32.xlu0 %v3720
        %v3754 = vpop.xlane.xlu0 %3753
        %v3755 = vsub.f32 %v3661, %v3724
        %v3756 = vsub.f32 %v3664, %v3726
        %v3757 = vsub.f32 %v3669, %v3728
        %v3758 = vsub.f32 %v3672, %v3730
        %v3759 = vsub.f32 %v3677, %v3732
        %v3760 = vsub.f32 %v3680, %v3734
        %v3761 = vsub.f32 %v3685, %v3736
        %v3762 = vsub.f32 %v3688, %v3738
        %v3763 = vsub.f32 %v3693, %v3740
        %v3764 = vsub.f32 %v3696, %v3742
        %v3765 = vsub.f32 %v3701, %v3744
        %v3766 = vsub.f32 %v3704, %v3746
        %v3767 = vsub.f32 %v3709, %v3748
        %v3768 = vsub.f32 %v3712, %v3750
        %v3769 = vsub.f32 %v3717, %v3752
        %v3770 = vsub.f32 %v3720, %v3754
        %v3771 = vmul.f32 %v3755, 1.442695
        %v3772 = vpow.pop %v3771
        %v3773 = vmul.f32 %v3756, 1.442695
        %v3774 = vpow.pop %v3773
        %v3775 = vmul.f32 %v3757, 1.442695
        %v3776 = vpow.pop %v3775
        %v3777 = vmul.f32 %v3758, 1.442695
        %v3778 = vpow.pop %v3777
        %v3779 = vmul.f32 %v3759, 1.442695
        %v3780 = vpow.pop %v3779
        %v3781 = vmul.f32 %v3760, 1.442695
        %v3782 = vpow.pop %v3781
        %v3783 = vmul.f32 %v3761, 1.442695
        %v3784 = vpow.pop %v3783
        %v3785 = vmul.f32 %v3762, 1.442695
        %v3786 = vpow.pop %v3785
        %v3787 = vmul.f32 %v3763, 1.442695
        %v3788 = vpow.pop %v3787
        %v3789 = vmul.f32 %v3764, 1.442695
        %v3790 = vpow.pop %v3789
        %v3791 = vmul.f32 %v3765, 1.442695
        %v3792 = vpow.pop %v3791
        %v3793 = vmul.f32 %v3766, 1.442695
        %v3794 = vpow.pop %v3793
        %v3795 = vmul.f32 %v3767, 1.442695
        %v3796 = vpow.pop %v3795
        %v3797 = vmul.f32 %v3768, 1.442695
        %v3798 = vpow.pop %v3797
        %v3799 = vmul.f32 %v3769, 1.442695
        %v3800 = vpow.pop %v3799
        %v3801 = vmul.f32 %v3770, 1.442695
        %v3802 = vpow.pop %v3801
        %3803 = vadd.xlane.f32.xlu0 %v3772
        %v3804 = vpop.xlane.xlu0 %3803
        %3805 = vadd.xlane.f32.xlu0 %v3774
        %v3806 = vpop.xlane.xlu0 %3805
        %3807 = vadd.xlane.f32.xlu0 %v3776
        %v3808 = vpop.xlane.xlu0 %3807
        %3809 = vadd.xlane.f32.xlu0 %v3778
        %v3810 = vpop.xlane.xlu0 %3809
        %3811 = vadd.xlane.f32.xlu0 %v3780
        %v3812 = vpop.xlane.xlu0 %3811
        %3813 = vadd.xlane.f32.xlu0 %v3782
        %v3814 = vpop.xlane.xlu0 %3813
        %3815 = vadd.xlane.f32.xlu0 %v3784
        %v3816 = vpop.xlane.xlu0 %3815
        %3817 = vadd.xlane.f32.xlu0 %v3786
        %v3818 = vpop.xlane.xlu0 %3817
        %3819 = vadd.xlane.f32.xlu0 %v3788
        %v3820 = vpop.xlane.xlu0 %3819
        %3821 = vadd.xlane.f32.xlu0 %v3790
        %v3822 = vpop.xlane.xlu0 %3821
        %3823 = vadd.xlane.f32.xlu0 %v3792
        %v3824 = vpop.xlane.xlu0 %3823
        %3825 = vadd.xlane.f32.xlu0 %v3794
        %v3826 = vpop.xlane.xlu0 %3825
        %3827 = vadd.xlane.f32.xlu0 %v3796
        %v3828 = vpop.xlane.xlu0 %3827
        %3829 = vadd.xlane.f32.xlu0 %v3798
        %v3830 = vpop.xlane.xlu0 %3829
        %3831 = vadd.xlane.f32.xlu0 %v3800
        %v3832 = vpop.xlane.xlu0 %3831
        %3833 = vadd.xlane.f32.xlu0 %v3802
        %v3834 = vpop.xlane.xlu0 %3833
        %v3835 = vrcp.pop %v3804
        %v3836 = vrcp.pop %v3806
        %v3837 = vrcp.pop %v3808
        %v3838 = vrcp.pop %v3810
        %v3839 = vrcp.pop %v3812
        %v3840 = vrcp.pop %v3814
        %v3841 = vrcp.pop %v3816
        %v3842 = vrcp.pop %v3818
        %v3843 = vrcp.pop %v3820
        %v3844 = vrcp.pop %v3822
        %v3845 = vrcp.pop %v3824
        %v3846 = vrcp.pop %v3826
        %v3847 = vrcp.pop %v3828
        %v3848 = vrcp.pop %v3830
        %v3849 = vrcp.pop %v3832
        %v3850 = vrcp.pop %v3834
        %v3851 = vmul.f32 %v3772, %v3835
        %v3852 = vmul.f32 %v3774, %v3836
        %v3853 = vmul.f32 %v3776, %v3837
        %v3854 = vmul.f32 %v3778, %v3838
        %v3855 = vmul.f32 %v3780, %v3839
        %v3856 = vmul.f32 %v3782, %v3840
        %v3857 = vmul.f32 %v3784, %v3841
        %v3858 = vmul.f32 %v3786, %v3842
        %v3859 = vmul.f32 %v3788, %v3843
        %v3860 = vmul.f32 %v3790, %v3844
        %v3861 = vmul.f32 %v3792, %v3845
        %v3862 = vmul.f32 %v3794, %v3846
        %v3863 = vmul.f32 %v3796, %v3847
        %v3864 = vmul.f32 %v3798, %v3848
        %v3865 = vmul.f32 %v3800, %v3849
        %v3866 = vmul.f32 %v3802, %v3850
        %v3867 = vpack.c.bf16 %v3852, %v3851
        %v3868 = vpack.c.bf16 %v3854, %v3853
        %v3869 = vpack.c.bf16 %v3856, %v3855
        %v3870 = vpack.c.bf16 %v3858, %v3857
        %v3871 = vpack.c.bf16 %v3860, %v3859
        %v3872 = vpack.c.bf16 %v3862, %v3861
        %v3873 = vpack.c.bf16 %v3864, %v3863
        %v3874 = vpack.c.bf16 %v3866, %v3865
        %3875 = vmatprep.subr.bf16.mxu0 0
        %3876 = vmatpush1.bf16.msra.mxu0 %v3577
        %3877 = vmatprep.subr.bf16.mxu0 0
        %3878 = vmatpush1.bf16.msra.mxu0 %v3576
        %3879 = vmatprep.subr.bf16.mxu0 0
        %3880 = vmatpush1.bf16.msra.mxu0 %v3575
        %3881 = vmatprep.subr.bf16.mxu0 0
        %3882 = vmatpush1.bf16.msra.mxu0 %v3574
        %3883 = vmatprep.subr.bf16.mxu0 0
        %3884 = vmatpush1.bf16.msra.mxu0 %v3573
        %3885 = vmatprep.subr.bf16.mxu0 0
        %3886 = vmatpush1.bf16.msra.mxu0 %v3572
        %3887 = vmatprep.subr.bf16.mxu0 0
        %3888 = vmatpush1.bf16.msra.mxu0 %v3571
        %3889 = vmatprep.subr.bf16.mxu0 0
        %3890 = vmatpush1.bf16.msra.mxu0 %v3570
        %3891 = vmatprep.subr.bf16.mxu0 0
        %3892 = vmatpush2.bf16.msra.mxu0 0
        %3893 = vmatprep.subr.bf16.mxu0 0
        %3894 = vmatpush2.bf16.msra.mxu0 0
        %3895 = vmatprep.subr.bf16.mxu0 0
        %3896 = vmatpush2.bf16.msra.mxu0 0
        %3897 = vmatprep.subr.bf16.mxu0 0
        %3898 = vmatpush2.bf16.msra.mxu0 0
        %3899 = vmatprep.subr.bf16.mxu0 0
        %3900 = vmatpush2.bf16.msra.mxu0 0
        %3901 = vmatprep.subr.bf16.mxu0 0
        %3902 = vmatpush2.bf16.msra.mxu0 0
        %3903 = vmatprep.subr.bf16.mxu0 0
        %3904 = vmatpush2.bf16.msra.mxu0 0
        %3905 = vmatprep.subr.bf16.mxu0 0
        %3906 = vmatpush2.bf16.msra.mxu0 0
        %3907 = vmatprep.mubr.bf16.mxu0 0
        %3908 = vmatmul.mubr.bf16.gmra.mxu0 %v3867
        %v3909 = vpop.f32.mrf.mxu0
        %v3910 = vadd.f32 0.0, %v3909
        %v3911 = vpop.f32.mrf.mxu0
        %v3912 = vpop.f32.mrf.mxu0
        %v3913 = vadd.f32 0.0, %v3912
        %v3914 = vpop.f32.mrf.mxu0
        %3915 = vmatprep.mubr.bf16.mxu0 0
        %3916 = vmatmul.mubr.bf16.gmra.mxu0 %v3868
        %v3917 = vpop.f32.mrf.mxu0
        %v3918 = vadd.f32 0.0, %v3917
        %v3919 = vpop.f32.mrf.mxu0
        %v3920 = vpop.f32.mrf.mxu0
        %v3921 = vadd.f32 0.0, %v3920
        %v3922 = vpop.f32.mrf.mxu0
        %3923 = vmatprep.mubr.bf16.mxu0 0
        %3924 = vmatmul.mubr.bf16.gmra.mxu0 %v3869
        %v3925 = vpop.f32.mrf.mxu0
        %v3926 = vadd.f32 0.0, %v3925
        %v3927 = vpop.f32.mrf.mxu0
        %v3928 = vpop.f32.mrf.mxu0
        %v3929 = vadd.f32 0.0, %v3928
        %v3930 = vpop.f32.mrf.mxu0
        %3931 = vmatprep.mubr.bf16.mxu0 0
        %3932 = vmatmul.mubr.bf16.gmra.mxu0 %v3870
        %v3933 = vpop.f32.mrf.mxu0
        %v3934 = vadd.f32 0.0, %v3933
        %v3935 = vpop.f32.mrf.mxu0
        %v3936 = vpop.f32.mrf.mxu0
        %v3937 = vadd.f32 0.0, %v3936
        %v3938 = vpop.f32.mrf.mxu0
        %3939 = vmatprep.mubr.bf16.mxu0 0
        %3940 = vmatmul.mubr.bf16.gmra.mxu0 %v3871
        %v3941 = vpop.f32.mrf.mxu0
        %v3942 = vadd.f32 0.0, %v3941
        %v3943 = vpop.f32.mrf.mxu0
        %v3944 = vpop.f32.mrf.mxu0
        %v3945 = vadd.f32 0.0, %v3944
        %v3946 = vpop.f32.mrf.mxu0
        %3947 = vmatprep.mubr.bf16.mxu0 0
        %3948 = vmatmul.mubr.bf16.gmra.mxu0 %v3872
        %v3949 = vpop.f32.mrf.mxu0
        %v3950 = vadd.f32 0.0, %v3949
        %v3951 = vpop.f32.mrf.mxu0
        %v3952 = vpop.f32.mrf.mxu0
        %v3953 = vadd.f32 0.0, %v3952
        %v3954 = vpop.f32.mrf.mxu0
        %3955 = vmatprep.mubr.bf16.mxu0 0
        %3956 = vmatmul.mubr.bf16.gmra.mxu0 %v3873
        %v3957 = vpop.f32.mrf.mxu0
        %v3958 = vadd.f32 0.0, %v3957
        %v3959 = vpop.f32.mrf.mxu0
        %v3960 = vpop.f32.mrf.mxu0
        %v3961 = vadd.f32 0.0, %v3960
        %v3962 = vpop.f32.mrf.mxu0
        %3963 = vmatprep.mubr.bf16.mxu0 0
        %3964 = vmatmul.mubr.bf16.gmra.mxu0 %v3874
        %v3965 = vpop.f32.mrf.mxu0
        %v3966 = vadd.f32 0.0, %v3965
        %v3967 = vpop.f32.mrf.mxu0
        %v3968 = vpop.f32.mrf.mxu0
        %v3969 = vadd.f32 0.0, %v3968
        %v3970 = vpop.f32.mrf.mxu0
        %3971 = vdwg.mxu0
        %v3972 = vpack.c.bf16 %v3913, %v3910
        %v3973 = vpack.c.bf16 %v3921, %v3918
        %v3974 = vpack.c.bf16 %v3929, %v3926
        %v3975 = vpack.c.bf16 %v3937, %v3934
        %v3976 = vpack.c.bf16 %v3945, %v3942
        %v3977 = vpack.c.bf16 %v3953, %v3950
        %v3978 = vpack.c.bf16 %v3961, %v3958
        %v3979 = vpack.c.bf16 %v3969, %v3966
        %3980 = vmatprep.subr.bf16.mxu0 0
        %3981 = vmatpush1.bf16.msra.mxu0 %v3979
        %3982 = vmatprep.subr.bf16.mxu0 0
        %3983 = vmatpush1.bf16.msra.mxu0 %v3978
        %3984 = vmatprep.subr.bf16.mxu0 0
        %3985 = vmatpush1.bf16.msra.mxu0 %v3977
        %3986 = vmatprep.subr.bf16.mxu0 0
        %3987 = vmatpush1.bf16.msra.mxu0 %v3976
        %3988 = vmatprep.subr.bf16.mxu0 0
        %3989 = vmatpush1.bf16.msra.mxu0 %v3975
        %3990 = vmatprep.subr.bf16.mxu0 0
        %3991 = vmatpush1.bf16.msra.mxu0 %v3974
        %3992 = vmatprep.subr.bf16.mxu0 0
        %3993 = vmatpush1.bf16.msra.mxu0 %v3973
        %3994 = vmatprep.subr.bf16.mxu0 0
        %3995 = vmatpush1.bf16.msra.mxu0 %v3972
        %3996 = vmatprep.subr.bf16.mxu0 0
        %3997 = vmatpush2.bf16.msra.mxu0 0
        %3998 = vmatprep.subr.bf16.mxu0 0
        %3999 = vmatpush2.bf16.msra.mxu0 0
        %4000 = vmatprep.subr.bf16.mxu0 0
        %4001 = vmatpush2.bf16.msra.mxu0 0
        %4002 = vmatprep.subr.bf16.mxu0 0
        %4003 = vmatpush2.bf16.msra.mxu0 0
        %4004 = vmatprep.subr.bf16.mxu0 0
        %4005 = vmatpush2.bf16.msra.mxu0 0
        %4006 = vmatprep.subr.bf16.mxu0 0
        %4007 = vmatpush2.bf16.msra.mxu0 0
        %4008 = vmatprep.subr.bf16.mxu0 0
        %4009 = vmatpush2.bf16.msra.mxu0 0
        %4010 = vmatprep.subr.bf16.mxu0 0
        %4011 = vmatpush2.bf16.msra.mxu0 0
        %4012 = vmatprep.mubr.bf16.mxu0 0
        %4013 = vmatmul.mubr.bf16.gmra.mxu0 %v1453
        %v4014 = vpop.f32.mrf.mxu0
        %v4015 = vadd.f32 0.0, %v4014
        %v4016 = vpop.f32.mrf.mxu0
        %v4017 = vpop.f32.mrf.mxu0
        %v4018 = vadd.f32 0.0, %v4017
        %v4019 = vpop.f32.mrf.mxu0
        %4020 = vmatprep.mubr.bf16.mxu0 0
        %4021 = vmatmul.mubr.bf16.gmra.mxu0 %v1454
        %v4022 = vpop.f32.mrf.mxu0
        %v4023 = vadd.f32 0.0, %v4022
        %v4024 = vpop.f32.mrf.mxu0
        %v4025 = vpop.f32.mrf.mxu0
        %v4026 = vadd.f32 0.0, %v4025
        %v4027 = vpop.f32.mrf.mxu0
        %4028 = vdwg.mxu0
        %v4029 = vpack.c.bf16 %v4018, %v4015
        %v4030 = vpack.c.bf16 %v4026, %v4023
        %4031 = vmatprep.subr.bf16.mxu0 0
        %4032 = vmatpush1.bf16.msra.mxu0 %v3979
        %4033 = vmatprep.subr.bf16.mxu0 0
        %4034 = vmatpush1.bf16.msra.mxu0 %v3978
        %4035 = vmatprep.subr.bf16.mxu0 0
        %4036 = vmatpush1.bf16.msra.mxu0 %v3977
        %4037 = vmatprep.subr.bf16.mxu0 0
        %4038 = vmatpush1.bf16.msra.mxu0 %v3976
        %4039 = vmatprep.subr.bf16.mxu0 0
        %4040 = vmatpush1.bf16.msra.mxu0 %v3975
        %4041 = vmatprep.subr.bf16.mxu0 0
        %4042 = vmatpush1.bf16.msra.mxu0 %v3974
        %4043 = vmatprep.subr.bf16.mxu0 0
        %4044 = vmatpush1.bf16.msra.mxu0 %v3973
        %4045 = vmatprep.subr.bf16.mxu0 0
        %4046 = vmatpush1.bf16.msra.mxu0 %v3972
        %4047 = vmatprep.subr.bf16.mxu0 0
        %4048 = vmatpush2.bf16.msra.mxu0 0
        %4049 = vmatprep.subr.bf16.mxu0 0
        %4050 = vmatpush2.bf16.msra.mxu0 0
        %4051 = vmatprep.subr.bf16.mxu0 0
        %4052 = vmatpush2.bf16.msra.mxu0 0
        %4053 = vmatprep.subr.bf16.mxu0 0
        %4054 = vmatpush2.bf16.msra.mxu0 0
        %4055 = vmatprep.subr.bf16.mxu0 0
        %4056 = vmatpush2.bf16.msra.mxu0 0
        %4057 = vmatprep.subr.bf16.mxu0 0
        %4058 = vmatpush2.bf16.msra.mxu0 0
        %4059 = vmatprep.subr.bf16.mxu0 0
        %4060 = vmatpush2.bf16.msra.mxu0 0
        %4061 = vmatprep.subr.bf16.mxu0 0
        %4062 = vmatpush2.bf16.msra.mxu0 0
        %4063 = vmatprep.mubr.bf16.mxu0 0
        %4064 = vmatmul.mubr.bf16.gmra.mxu0 %v1471
        %v4065 = vpop.f32.mrf.mxu0
        %v4066 = vadd.f32 0.0, %v4065
        %v4067 = vpop.f32.mrf.mxu0
        %v4068 = vpop.f32.mrf.mxu0
        %v4069 = vadd.f32 0.0, %v4068
        %v4070 = vpop.f32.mrf.mxu0
        %4071 = vmatprep.mubr.bf16.mxu0 0
        %4072 = vmatmul.mubr.bf16.gmra.mxu0 %v1472
        %v4073 = vpop.f32.mrf.mxu0
        %v4074 = vadd.f32 0.0, %v4073
        %v4075 = vpop.f32.mrf.mxu0
        %v4076 = vpop.f32.mrf.mxu0
        %v4077 = vadd.f32 0.0, %v4076
        %v4078 = vpop.f32.mrf.mxu0
        %4079 = vdwg.mxu0
        %v4080 = vpack.c.bf16 %v4069, %v4066
        %v4081 = vpack.c.bf16 %v4077, %v4074
        %v4083 = vsel %vm1581, %v4080, 0
        %v4086 = vsel %vm1581, %v4081, 0
        %4088 = vmatprep.subr.bf16.mxu0 0
        %4089 = vmatpush1.bf16.msra.mxu0 0
        %4090 = vmatprep.subr.bf16.mxu0 0
        %4091 = vmatpush1.bf16.msra.mxu0 0
        %4092 = vmatprep.subr.bf16.mxu0 0
        %4093 = vmatpush1.bf16.msra.mxu0 0
        %4094 = vmatprep.subr.bf16.mxu0 0
        %4095 = vmatpush1.bf16.msra.mxu0 0
        %4096 = vmatprep.subr.bf16.mxu0 %v2117
        %4097 = vmatpush1.bf16.msra.mxu0 %v2116
        %4098 = vmatprep.subr.bf16.mxu0 %v2115
        %4099 = vmatpush1.bf16.msra.mxu0 %v2114
        %4100 = vmatprep.subr.bf16.mxu0 %v2113
        %4101 = vmatpush1.bf16.msra.mxu0 %v2112
        %4102 = vmatprep.subr.bf16.mxu0 %v2111
        %4103 = vmatpush1.bf16.msra.mxu0 %v2110
        %4104 = vmatprep.subr.bf16.mxu0 0
        %4105 = vmatpush2.bf16.msra.mxu0 0
        %4106 = vmatprep.subr.bf16.mxu0 0
        %4107 = vmatpush2.bf16.msra.mxu0 0
        %4108 = vmatprep.subr.bf16.mxu0 0
        %4109 = vmatpush2.bf16.msra.mxu0 0
        %4110 = vmatprep.subr.bf16.mxu0 0
        %4111 = vmatpush2.bf16.msra.mxu0 0
        %4112 = vmatprep.subr.bf16.mxu0 0
        %4113 = vmatpush2.bf16.msra.mxu0 0
        %4114 = vmatprep.subr.bf16.mxu0 0
        %4115 = vmatpush2.bf16.msra.mxu0 0
        %4116 = vmatprep.subr.bf16.mxu0 0
        %4117 = vmatpush2.bf16.msra.mxu0 0
        %4118 = vmatprep.subr.bf16.mxu0 0
        %4119 = vmatpush2.bf16.msra.mxu0 0
        %4120 = vmatprep.mubr.bf16.mxu0 0
        %4121 = vmatmul.mubr.bf16.gmra.mxu0 %v4083
        %v4122 = vpop.f32.mrf.mxu0
        %v4123 = vadd.f32 0.0, %v4122
        %v4124 = vpop.f32.mrf.mxu0
        %v4125 = vadd.f32 0.0, %v4124
        %v4126 = vpop.f32.mrf.mxu0
        %v4127 = vadd.f32 0.0, %v4126
        %v4128 = vpop.f32.mrf.mxu0
        %v4129 = vadd.f32 0.0, %v4128
        %4130 = vmatprep.mubr.bf16.mxu0 0
        %4131 = vmatmul.mubr.bf16.gmra.mxu0 %v4086
        %v4132 = vpop.f32.mrf.mxu0
        %v4133 = vadd.f32 0.0, %v4132
        %v4134 = vpop.f32.mrf.mxu0
        %v4135 = vadd.f32 0.0, %v4134
        %v4136 = vpop.f32.mrf.mxu0
        %v4137 = vadd.f32 0.0, %v4136
        %v4138 = vpop.f32.mrf.mxu0
        %v4139 = vadd.f32 0.0, %v4138
        %4140 = vdwg.mxu0
        %v4142 = vsel %vm1581, %v4029, 0
        %v4145 = vsel %vm1581, %v4030, 0
        %4147 = vmatprep.subr.bf16.mxu0 0
        %4148 = vmatpush1.bf16.msra.mxu0 0
        %4149 = vmatprep.subr.bf16.mxu0 0
        %4150 = vmatpush1.bf16.msra.mxu0 0
        %4151 = vmatprep.subr.bf16.mxu0 0
        %4152 = vmatpush1.bf16.msra.mxu0 0
        %4153 = vmatprep.subr.bf16.mxu0 0
        %4154 = vmatpush1.bf16.msra.mxu0 0
        %4155 = vmatprep.subr.bf16.mxu0 %v2216
        %4156 = vmatpush1.bf16.msra.mxu0 %v2215
        %4157 = vmatprep.subr.bf16.mxu0 %v2214
        %4158 = vmatpush1.bf16.msra.mxu0 %v2213
        %4159 = vmatprep.subr.bf16.mxu0 %v2212
        %4160 = vmatpush1.bf16.msra.mxu0 %v2211
        %4161 = vmatprep.subr.bf16.mxu0 %v2210
        %4162 = vmatpush1.bf16.msra.mxu0 %v2209
        %4163 = vmatprep.subr.bf16.mxu0 0
        %4164 = vmatpush2.bf16.msra.mxu0 0
        %4165 = vmatprep.subr.bf16.mxu0 0
        %4166 = vmatpush2.bf16.msra.mxu0 0
        %4167 = vmatprep.subr.bf16.mxu0 0
        %4168 = vmatpush2.bf16.msra.mxu0 0
        %4169 = vmatprep.subr.bf16.mxu0 0
        %4170 = vmatpush2.bf16.msra.mxu0 0
        %4171 = vmatprep.subr.bf16.mxu0 0
        %4172 = vmatpush2.bf16.msra.mxu0 0
        %4173 = vmatprep.subr.bf16.mxu0 0
        %4174 = vmatpush2.bf16.msra.mxu0 0
        %4175 = vmatprep.subr.bf16.mxu0 0
        %4176 = vmatpush2.bf16.msra.mxu0 0
        %4177 = vmatprep.subr.bf16.mxu0 0
        %4178 = vmatpush2.bf16.msra.mxu0 0
        %4179 = vmatprep.mubr.bf16.mxu0 0
        %4180 = vmatmul.mubr.bf16.gmra.mxu0 %v4142
        %v4181 = vpop.f32.mrf.mxu0
        %v4182 = vadd.f32 %v4123, %v4181
        %v4183 = vpop.f32.mrf.mxu0
        %v4184 = vadd.f32 %v4125, %v4183
        %v4185 = vpop.f32.mrf.mxu0
        %v4186 = vadd.f32 %v4127, %v4185
        %v4187 = vpop.f32.mrf.mxu0
        %v4188 = vadd.f32 %v4129, %v4187
        %4189 = vmatprep.mubr.bf16.mxu0 0
        %4190 = vmatmul.mubr.bf16.gmra.mxu0 %v4145
        %v4191 = vpop.f32.mrf.mxu0
        %v4192 = vadd.f32 %v4133, %v4191
        %v4193 = vpop.f32.mrf.mxu0
        %v4194 = vadd.f32 %v4135, %v4193
        %v4195 = vpop.f32.mrf.mxu0
        %v4196 = vadd.f32 %v4137, %v4195
        %v4197 = vpop.f32.mrf.mxu0
        %v4198 = vadd.f32 %v4139, %v4197
        %4199 = vdwg.mxu0
        %4200 = vmatprep.subr.bf16.mxu0 0
        %4201 = vmatpush1.bf16.msra.mxu0 %v3979
        %4202 = vmatprep.subr.bf16.mxu0 0
        %4203 = vmatpush1.bf16.msra.mxu0 %v3978
        %4204 = vmatprep.subr.bf16.mxu0 0
        %4205 = vmatpush1.bf16.msra.mxu0 %v3977
        %4206 = vmatprep.subr.bf16.mxu0 0
        %4207 = vmatpush1.bf16.msra.mxu0 %v3976
        %4208 = vmatprep.subr.bf16.mxu0 0
        %4209 = vmatpush1.bf16.msra.mxu0 %v3975
        %4210 = vmatprep.subr.bf16.mxu0 0
        %4211 = vmatpush1.bf16.msra.mxu0 %v3974
        %4212 = vmatprep.subr.bf16.mxu0 0
        %4213 = vmatpush1.bf16.msra.mxu0 %v3973
        %4214 = vmatprep.subr.bf16.mxu0 0
        %4215 = vmatpush1.bf16.msra.mxu0 %v3972
        %4216 = vmatprep.subr.bf16.mxu0 0
        %4217 = vmatpush2.bf16.msra.mxu0 0
        %4218 = vmatprep.subr.bf16.mxu0 0
        %4219 = vmatpush2.bf16.msra.mxu0 0
        %4220 = vmatprep.subr.bf16.mxu0 0
        %4221 = vmatpush2.bf16.msra.mxu0 0
        %4222 = vmatprep.subr.bf16.mxu0 0
        %4223 = vmatpush2.bf16.msra.mxu0 0
        %4224 = vmatprep.subr.bf16.mxu0 0
        %4225 = vmatpush2.bf16.msra.mxu0 0
        %4226 = vmatprep.subr.bf16.mxu0 0
        %4227 = vmatpush2.bf16.msra.mxu0 0
        %4228 = vmatprep.subr.bf16.mxu0 0
        %4229 = vmatpush2.bf16.msra.mxu0 0
        %4230 = vmatprep.subr.bf16.mxu0 0
        %4231 = vmatpush2.bf16.msra.mxu0 0
        %4232 = vmatprep.mubr.bf16.mxu0 0
        %4233 = vmatmul.mubr.bf16.gmra.mxu0 %v1489
        %v4234 = vpop.f32.mrf.mxu0
        %v4235 = vadd.f32 0.0, %v4234
        %v4236 = vpop.f32.mrf.mxu0
        %v4237 = vpop.f32.mrf.mxu0
        %v4238 = vadd.f32 0.0, %v4237
        %v4239 = vpop.f32.mrf.mxu0
        %4240 = vmatprep.mubr.bf16.mxu0 0
        %4241 = vmatmul.mubr.bf16.gmra.mxu0 %v1490
        %v4242 = vpop.f32.mrf.mxu0
        %v4243 = vadd.f32 0.0, %v4242
        %v4244 = vpop.f32.mrf.mxu0
        %v4245 = vpop.f32.mrf.mxu0
        %v4246 = vadd.f32 0.0, %v4245
        %v4247 = vpop.f32.mrf.mxu0
        %4248 = vdwg.mxu0
        %v4249 = vpack.c.bf16 %v4238, %v4235
        %v4250 = vpack.c.bf16 %v4246, %v4243
        %v4252 = vsel %vm1581, %v4249, 0
        %v4255 = vsel %vm1581, %v4250, 0
        %4257 = vmatprep.subr.bf16.mxu0 0
        %4258 = vmatpush1.bf16.msra.mxu0 0
        %4259 = vmatprep.subr.bf16.mxu0 0
        %4260 = vmatpush1.bf16.msra.mxu0 0
        %4261 = vmatprep.subr.bf16.mxu0 0
        %4262 = vmatpush1.bf16.msra.mxu0 0
        %4263 = vmatprep.subr.bf16.mxu0 0
        %4264 = vmatpush1.bf16.msra.mxu0 0
        %4265 = vmatprep.subr.bf16.mxu0 %v2366
        %4266 = vmatpush1.bf16.msra.mxu0 %v2365
        %4267 = vmatprep.subr.bf16.mxu0 %v2364
        %4268 = vmatpush1.bf16.msra.mxu0 %v2363
        %4269 = vmatprep.subr.bf16.mxu0 %v2362
        %4270 = vmatpush1.bf16.msra.mxu0 %v2361
        %4271 = vmatprep.subr.bf16.mxu0 %v2360
        %4272 = vmatpush1.bf16.msra.mxu0 %v2359
        %4273 = vmatprep.subr.bf16.mxu0 0
        %4274 = vmatpush2.bf16.msra.mxu0 0
        %4275 = vmatprep.subr.bf16.mxu0 0
        %4276 = vmatpush2.bf16.msra.mxu0 0
        %4277 = vmatprep.subr.bf16.mxu0 0
        %4278 = vmatpush2.bf16.msra.mxu0 0
        %4279 = vmatprep.subr.bf16.mxu0 0
        %4280 = vmatpush2.bf16.msra.mxu0 0
        %4281 = vmatprep.subr.bf16.mxu0 0
        %4282 = vmatpush2.bf16.msra.mxu0 0
        %4283 = vmatprep.subr.bf16.mxu0 0
        %4284 = vmatpush2.bf16.msra.mxu0 0
        %4285 = vmatprep.subr.bf16.mxu0 0
        %4286 = vmatpush2.bf16.msra.mxu0 0
        %4287 = vmatprep.subr.bf16.mxu0 0
        %4288 = vmatpush2.bf16.msra.mxu0 0
        %4289 = vmatprep.mubr.bf16.mxu0 0
        %4290 = vmatmul.mubr.bf16.gmra.mxu0 %v4252
        %v4291 = vpop.f32.mrf.mxu0
        %v4292 = vadd.f32 0.0, %v4291
        %v4293 = vpop.f32.mrf.mxu0
        %v4294 = vadd.f32 0.0, %v4293
        %v4295 = vpop.f32.mrf.mxu0
        %v4296 = vadd.f32 0.0, %v4295
        %v4297 = vpop.f32.mrf.mxu0
        %v4298 = vadd.f32 0.0, %v4297
        %4299 = vmatprep.mubr.bf16.mxu0 0
        %4300 = vmatmul.mubr.bf16.gmra.mxu0 %v4255
        %v4301 = vpop.f32.mrf.mxu0
        %v4302 = vadd.f32 0.0, %v4301
        %v4303 = vpop.f32.mrf.mxu0
        %v4304 = vadd.f32 0.0, %v4303
        %v4305 = vpop.f32.mrf.mxu0
        %v4306 = vadd.f32 0.0, %v4305
        %v4307 = vpop.f32.mrf.mxu0
        %v4308 = vadd.f32 0.0, %v4307
        %4309 = vdwg.mxu0
        %v4310 = vadd.f32 %v4182, %v4292
        %v4311 = vadd.f32 %v4184, %v4294
        %v4312 = vadd.f32 %v4186, %v4296
        %v4313 = vadd.f32 %v4188, %v4298
        %v4314 = vadd.f32 %v4192, %v4302
        %v4315 = vadd.f32 %v4194, %v4304
        %v4316 = vadd.f32 %v4196, %v4306
        %v4317 = vadd.f32 %v4198, %v4308
        %4318 = vmatprep.subr.bf16.mxu0 0
        %4319 = vmatpush1.bf16.msra.mxu0 %v3979
        %4320 = vmatprep.subr.bf16.mxu0 0
        %4321 = vmatpush1.bf16.msra.mxu0 %v3978
        %4322 = vmatprep.subr.bf16.mxu0 0
        %4323 = vmatpush1.bf16.msra.mxu0 %v3977
        %4324 = vmatprep.subr.bf16.mxu0 0
        %4325 = vmatpush1.bf16.msra.mxu0 %v3976
        %4326 = vmatprep.subr.bf16.mxu0 0
        %4327 = vmatpush1.bf16.msra.mxu0 %v3975
        %4328 = vmatprep.subr.bf16.mxu0 0
        %4329 = vmatpush1.bf16.msra.mxu0 %v3974
        %4330 = vmatprep.subr.bf16.mxu0 0
        %4331 = vmatpush1.bf16.msra.mxu0 %v3973
        %4332 = vmatprep.subr.bf16.mxu0 0
        %4333 = vmatpush1.bf16.msra.mxu0 %v3972
        %4334 = vmatprep.subr.bf16.mxu0 0
        %4335 = vmatpush2.bf16.msra.mxu0 0
        %4336 = vmatprep.subr.bf16.mxu0 0
        %4337 = vmatpush2.bf16.msra.mxu0 0
        %4338 = vmatprep.subr.bf16.mxu0 0
        %4339 = vmatpush2.bf16.msra.mxu0 0
        %4340 = vmatprep.subr.bf16.mxu0 0
        %4341 = vmatpush2.bf16.msra.mxu0 0
        %4342 = vmatprep.subr.bf16.mxu0 0
        %4343 = vmatpush2.bf16.msra.mxu0 0
        %4344 = vmatprep.subr.bf16.mxu0 0
        %4345 = vmatpush2.bf16.msra.mxu0 0
        %4346 = vmatprep.subr.bf16.mxu0 0
        %4347 = vmatpush2.bf16.msra.mxu0 0
        %4348 = vmatprep.subr.bf16.mxu0 0
        %4349 = vmatpush2.bf16.msra.mxu0 0
        %4350 = vmatprep.mubr.bf16.mxu0 0
        %4351 = vmatmul.mubr.bf16.gmra.mxu0 %v1507
        %v4352 = vpop.f32.mrf.mxu0
        %v4353 = vadd.f32 0.0, %v4352
        %v4354 = vpop.f32.mrf.mxu0
        %v4355 = vpop.f32.mrf.mxu0
        %v4356 = vadd.f32 0.0, %v4355
        %v4357 = vpop.f32.mrf.mxu0
        %4358 = vmatprep.mubr.bf16.mxu0 0
        %4359 = vmatmul.mubr.bf16.gmra.mxu0 %v1508
        %v4360 = vpop.f32.mrf.mxu0
        %v4361 = vadd.f32 0.0, %v4360
        %v4362 = vpop.f32.mrf.mxu0
        %v4363 = vpop.f32.mrf.mxu0
        %v4364 = vadd.f32 0.0, %v4363
        %v4365 = vpop.f32.mrf.mxu0
        %4366 = vdwg.mxu0
        %v4367 = vpack.c.bf16 %v4356, %v4353
        %v4368 = vpack.c.bf16 %v4364, %v4361
        %v4370 = vsel %vm1581, %v4367, 0
        %v4373 = vsel %vm1581, %v4368, 0
        %4375 = vmatprep.subr.bf16.mxu0 0
        %4376 = vmatpush1.bf16.msra.mxu0 0
        %4377 = vmatprep.subr.bf16.mxu0 0
        %4378 = vmatpush1.bf16.msra.mxu0 0
        %4379 = vmatprep.subr.bf16.mxu0 0
        %4380 = vmatpush1.bf16.msra.mxu0 0
        %4381 = vmatprep.subr.bf16.mxu0 0
        %4382 = vmatpush1.bf16.msra.mxu0 0
        %4383 = vmatprep.subr.bf16.mxu0 %v2524
        %4384 = vmatpush1.bf16.msra.mxu0 %v2523
        %4385 = vmatprep.subr.bf16.mxu0 %v2522
        %4386 = vmatpush1.bf16.msra.mxu0 %v2521
        %4387 = vmatprep.subr.bf16.mxu0 %v2520
        %4388 = vmatpush1.bf16.msra.mxu0 %v2519
        %4389 = vmatprep.subr.bf16.mxu0 %v2518
        %4390 = vmatpush1.bf16.msra.mxu0 %v2517
        %4391 = vmatprep.subr.bf16.mxu0 0
        %4392 = vmatpush2.bf16.msra.mxu0 0
        %4393 = vmatprep.subr.bf16.mxu0 0
        %4394 = vmatpush2.bf16.msra.mxu0 0
        %4395 = vmatprep.subr.bf16.mxu0 0
        %4396 = vmatpush2.bf16.msra.mxu0 0
        %4397 = vmatprep.subr.bf16.mxu0 0
        %4398 = vmatpush2.bf16.msra.mxu0 0
        %4399 = vmatprep.subr.bf16.mxu0 0
        %4400 = vmatpush2.bf16.msra.mxu0 0
        %4401 = vmatprep.subr.bf16.mxu0 0
        %4402 = vmatpush2.bf16.msra.mxu0 0
        %4403 = vmatprep.subr.bf16.mxu0 0
        %4404 = vmatpush2.bf16.msra.mxu0 0
        %4405 = vmatprep.subr.bf16.mxu0 0
        %4406 = vmatpush2.bf16.msra.mxu0 0
        %4407 = vmatprep.mubr.bf16.mxu0 0
        %4408 = vmatmul.mubr.bf16.gmra.mxu0 %v4370
        %v4409 = vpop.f32.mrf.mxu0
        %v4410 = vadd.f32 0.0, %v4409
        %v4411 = vpop.f32.mrf.mxu0
        %v4412 = vadd.f32 0.0, %v4411
        %v4413 = vpop.f32.mrf.mxu0
        %v4414 = vadd.f32 0.0, %v4413
        %v4415 = vpop.f32.mrf.mxu0
        %v4416 = vadd.f32 0.0, %v4415
        %4417 = vmatprep.mubr.bf16.mxu0 0
        %4418 = vmatmul.mubr.bf16.gmra.mxu0 %v4373
        %v4419 = vpop.f32.mrf.mxu0
        %v4420 = vadd.f32 0.0, %v4419
        %v4421 = vpop.f32.mrf.mxu0
        %v4422 = vadd.f32 0.0, %v4421
        %v4423 = vpop.f32.mrf.mxu0
        %v4424 = vadd.f32 0.0, %v4423
        %v4425 = vpop.f32.mrf.mxu0
        %v4426 = vadd.f32 0.0, %v4425
        %4427 = vdwg.mxu0
        %v4428 = vadd.f32 %v4310, %v4410
        %v4429 = vadd.f32 %v4311, %v4412
        %v4430 = vadd.f32 %v4312, %v4414
        %v4431 = vadd.f32 %v4313, %v4416
        %v4432 = vadd.f32 %v4314, %v4420
        %v4433 = vadd.f32 %v4315, %v4422
        %v4434 = vadd.f32 %v4316, %v4424
        %v4435 = vadd.f32 %v4317, %v4426
        %4444 = vrot.lane.b32.xlu0 %v3554, 64
        %v4445 = vpop.permute.xlu0 %4444
        %4446 = vrot.lane.b32.xlu0 %v3555, 64
        %v4447 = vpop.permute.xlu0 %4446
        %4448 = vrot.lane.b32.xlu0 %v3556, 64
        %v4449 = vpop.permute.xlu0 %4448
        %4450 = vrot.lane.b32.xlu0 %v3557, 64
        %v4451 = vpop.permute.xlu0 %4450
        %4452 = vrot.lane.b32.xlu0 %v3558, 64
        %v4453 = vpop.permute.xlu0 %4452
        %4454 = vrot.lane.b32.xlu0 %v3559, 64
        %v4455 = vpop.permute.xlu0 %4454
        %4456 = vrot.lane.b32.xlu0 %v3560, 64
        %v4457 = vpop.permute.xlu0 %4456
        %4458 = vrot.lane.b32.xlu0 %v3561, 64
        %v4459 = vpop.permute.xlu0 %4458
        %4468 = vrot.lane.b32.xlu0 %v3562, 64
        %v4469 = vpop.permute.xlu0 %4468
        %4470 = vrot.lane.b32.xlu0 %v3563, 64
        %v4471 = vpop.permute.xlu0 %4470
        %4472 = vrot.lane.b32.xlu0 %v3564, 64
        %v4473 = vpop.permute.xlu0 %4472
        %4474 = vrot.lane.b32.xlu0 %v3565, 64
        %v4475 = vpop.permute.xlu0 %4474
        %4476 = vrot.lane.b32.xlu0 %v3566, 64
        %v4477 = vpop.permute.xlu0 %4476
        %4478 = vrot.lane.b32.xlu0 %v3567, 64
        %v4479 = vpop.permute.xlu0 %4478
        %4480 = vrot.lane.b32.xlu0 %v3568, 64
        %v4481 = vpop.permute.xlu0 %4480
        %4482 = vrot.lane.b32.xlu0 %v3569, 64
        %v4483 = vpop.permute.xlu0 %4482
        %v4485 = vsel %vm1581, %v4445, 0
        %v4488 = vsel %vm1581, %v4447, 0
        %v4491 = vsel %vm1581, %v4449, 0
        %v4494 = vsel %vm1581, %v4451, 0
        %v4497 = vsel %vm1581, %v4453, 0
        %v4500 = vsel %vm1581, %v4455, 0
        %v4503 = vsel %vm1581, %v4457, 0
        %v4506 = vsel %vm1581, %v4459, 0
        %v4509 = vsel %vm1581, %v4469, 0
        %v4512 = vsel %vm1581, %v4471, 0
        %v4515 = vsel %vm1581, %v4473, 0
        %v4518 = vsel %vm1581, %v4475, 0
        %v4521 = vsel %vm1581, %v4477, 0
        %v4524 = vsel %vm1581, %v4479, 0
        %v4527 = vsel %vm1581, %v4481, 0
        %v4530 = vsel %vm1581, %v4483, 0
        %4532 = vmatprep.subr.bf16.mxu0 0
        %4533 = vmatpush1.bf16.xpose.msra.mxu0 %v4530
        %4534 = vmatprep.subr.bf16.mxu0 0
        %4535 = vmatpush1.bf16.xpose.msra.mxu0 %v4527
        %4536 = vmatprep.subr.bf16.mxu0 0
        %4537 = vmatpush1.bf16.xpose.msra.mxu0 %v4524
        %4538 = vmatprep.subr.bf16.mxu0 0
        %4539 = vmatpush1.bf16.xpose.msra.mxu0 %v4521
        %4540 = vmatprep.subr.bf16.mxu0 0
        %4541 = vmatpush1.bf16.xpose.msra.mxu0 %v4518
        %4542 = vmatprep.subr.bf16.mxu0 0
        %4543 = vmatpush1.bf16.xpose.msra.mxu0 %v4515
        %4544 = vmatprep.subr.bf16.mxu0 0
        %4545 = vmatpush1.bf16.xpose.msra.mxu0 %v4512
        %4546 = vmatprep.subr.bf16.mxu0 0
        %4547 = vmatpush1.bf16.xpose.msra.mxu0 %v4509
        %4548 = vmatprep.subr.bf16.mxu0 0
        %4549 = vmatpush2.bf16.xpose.msra.mxu0 0
        %4550 = vmatprep.subr.bf16.mxu0 0
        %4551 = vmatpush2.bf16.xpose.msra.mxu0 0
        %4552 = vmatprep.subr.bf16.mxu0 0
        %4553 = vmatpush2.bf16.xpose.msra.mxu0 0
        %4554 = vmatprep.subr.bf16.mxu0 0
        %4555 = vmatpush2.bf16.xpose.msra.mxu0 0
        %4556 = vmatprep.subr.bf16.mxu0 0
        %4557 = vmatpush2.bf16.xpose.msra.mxu0 0
        %4558 = vmatprep.subr.bf16.mxu0 0
        %4559 = vmatpush2.bf16.xpose.msra.mxu0 0
        %4560 = vmatprep.subr.bf16.mxu0 0
        %4561 = vmatpush2.bf16.xpose.msra.mxu0 0
        %4562 = vmatprep.subr.bf16.mxu0 0
        %4563 = vmatpush2.bf16.xpose.msra.mxu0 0
        %4564 = vmatprep.mubr.bf16.mxu0 0
        %4565 = vmatmul.mubr.bf16.gmra.mxu0 %v4485
        %v4566 = vpop.f32.mrf.mxu0
        %v4567 = vadd.f32 0.0, %v4566
        %v4568 = vpop.f32.mrf.mxu0
        %v4569 = vpop.f32.mrf.mxu0
        %v4570 = vadd.f32 0.0, %v4569
        %v4571 = vpop.f32.mrf.mxu0
        %4572 = vmatprep.mubr.bf16.mxu0 0
        %4573 = vmatmul.mubr.bf16.gmra.mxu0 %v4488
        %v4574 = vpop.f32.mrf.mxu0
        %v4575 = vadd.f32 0.0, %v4574
        %v4576 = vpop.f32.mrf.mxu0
        %v4577 = vpop.f32.mrf.mxu0
        %v4578 = vadd.f32 0.0, %v4577
        %v4579 = vpop.f32.mrf.mxu0
        %4580 = vmatprep.mubr.bf16.mxu0 0
        %4581 = vmatmul.mubr.bf16.gmra.mxu0 %v4491
        %v4582 = vpop.f32.mrf.mxu0
        %v4583 = vadd.f32 0.0, %v4582
        %v4584 = vpop.f32.mrf.mxu0
        %v4585 = vpop.f32.mrf.mxu0
        %v4586 = vadd.f32 0.0, %v4585
        %v4587 = vpop.f32.mrf.mxu0
        %4588 = vmatprep.mubr.bf16.mxu0 0
        %4589 = vmatmul.mubr.bf16.gmra.mxu0 %v4494
        %v4590 = vpop.f32.mrf.mxu0
        %v4591 = vadd.f32 0.0, %v4590
        %v4592 = vpop.f32.mrf.mxu0
        %v4593 = vpop.f32.mrf.mxu0
        %v4594 = vadd.f32 0.0, %v4593
        %v4595 = vpop.f32.mrf.mxu0
        %4596 = vmatprep.mubr.bf16.mxu0 0
        %4597 = vmatmul.mubr.bf16.gmra.mxu0 %v4497
        %v4598 = vpop.f32.mrf.mxu0
        %v4599 = vadd.f32 0.0, %v4598
        %v4600 = vpop.f32.mrf.mxu0
        %v4601 = vpop.f32.mrf.mxu0
        %v4602 = vadd.f32 0.0, %v4601
        %v4603 = vpop.f32.mrf.mxu0
        %4604 = vmatprep.mubr.bf16.mxu0 0
        %4605 = vmatmul.mubr.bf16.gmra.mxu0 %v4500
        %v4606 = vpop.f32.mrf.mxu0
        %v4607 = vadd.f32 0.0, %v4606
        %v4608 = vpop.f32.mrf.mxu0
        %v4609 = vpop.f32.mrf.mxu0
        %v4610 = vadd.f32 0.0, %v4609
        %v4611 = vpop.f32.mrf.mxu0
        %4612 = vmatprep.mubr.bf16.mxu0 0
        %4613 = vmatmul.mubr.bf16.gmra.mxu0 %v4503
        %v4614 = vpop.f32.mrf.mxu0
        %v4615 = vadd.f32 0.0, %v4614
        %v4616 = vpop.f32.mrf.mxu0
        %v4617 = vpop.f32.mrf.mxu0
        %v4618 = vadd.f32 0.0, %v4617
        %v4619 = vpop.f32.mrf.mxu0
        %4620 = vmatprep.mubr.bf16.mxu0 0
        %4621 = vmatmul.mubr.bf16.gmra.mxu0 %v4506
        %v4622 = vpop.f32.mrf.mxu0
        %v4623 = vadd.f32 0.0, %v4622
        %v4624 = vpop.f32.mrf.mxu0
        %v4625 = vpop.f32.mrf.mxu0
        %v4626 = vadd.f32 0.0, %v4625
        %v4627 = vpop.f32.mrf.mxu0
        %4628 = vdwg.mxu0
        %4629 = vmax.xlane.f32.xlu0 %v4567
        %v4630 = vpop.xlane.xlu0 %4629
        %4631 = vmax.xlane.f32.xlu0 %v4570
        %v4632 = vpop.xlane.xlu0 %4631
        %4633 = vmax.xlane.f32.xlu0 %v4575
        %v4634 = vpop.xlane.xlu0 %4633
        %4635 = vmax.xlane.f32.xlu0 %v4578
        %v4636 = vpop.xlane.xlu0 %4635
        %4637 = vmax.xlane.f32.xlu0 %v4583
        %v4638 = vpop.xlane.xlu0 %4637
        %4639 = vmax.xlane.f32.xlu0 %v4586
        %v4640 = vpop.xlane.xlu0 %4639
        %4641 = vmax.xlane.f32.xlu0 %v4591
        %v4642 = vpop.xlane.xlu0 %4641
        %4643 = vmax.xlane.f32.xlu0 %v4594
        %v4644 = vpop.xlane.xlu0 %4643
        %4645 = vmax.xlane.f32.xlu0 %v4599
        %v4646 = vpop.xlane.xlu0 %4645
        %4647 = vmax.xlane.f32.xlu0 %v4602
        %v4648 = vpop.xlane.xlu0 %4647
        %4649 = vmax.xlane.f32.xlu0 %v4607
        %v4650 = vpop.xlane.xlu0 %4649
        %4651 = vmax.xlane.f32.xlu0 %v4610
        %v4652 = vpop.xlane.xlu0 %4651
        %4653 = vmax.xlane.f32.xlu0 %v4615
        %v4654 = vpop.xlane.xlu0 %4653
        %4655 = vmax.xlane.f32.xlu0 %v4618
        %v4656 = vpop.xlane.xlu0 %4655
        %4657 = vmax.xlane.f32.xlu0 %v4623
        %v4658 = vpop.xlane.xlu0 %4657
        %4659 = vmax.xlane.f32.xlu0 %v4626
        %v4660 = vpop.xlane.xlu0 %4659
        %v4661 = vsub.f32 %v4567, %v4630
        %v4662 = vsub.f32 %v4570, %v4632
        %v4663 = vsub.f32 %v4575, %v4634
        %v4664 = vsub.f32 %v4578, %v4636
        %v4665 = vsub.f32 %v4583, %v4638
        %v4666 = vsub.f32 %v4586, %v4640
        %v4667 = vsub.f32 %v4591, %v4642
        %v4668 = vsub.f32 %v4594, %v4644
        %v4669 = vsub.f32 %v4599, %v4646
        %v4670 = vsub.f32 %v4602, %v4648
        %v4671 = vsub.f32 %v4607, %v4650
        %v4672 = vsub.f32 %v4610, %v4652
        %v4673 = vsub.f32 %v4615, %v4654
        %v4674 = vsub.f32 %v4618, %v4656
        %v4675 = vsub.f32 %v4623, %v4658
        %v4676 = vsub.f32 %v4626, %v4660
        %v4677 = vmul.f32 %v4661, 1.442695
        %v4678 = vpow.pop %v4677
        %v4679 = vmul.f32 %v4662, 1.442695
        %v4680 = vpow.pop %v4679
        %v4681 = vmul.f32 %v4663, 1.442695
        %v4682 = vpow.pop %v4681
        %v4683 = vmul.f32 %v4664, 1.442695
        %v4684 = vpow.pop %v4683
        %v4685 = vmul.f32 %v4665, 1.442695
        %v4686 = vpow.pop %v4685
        %v4687 = vmul.f32 %v4666, 1.442695
        %v4688 = vpow.pop %v4687
        %v4689 = vmul.f32 %v4667, 1.442695
        %v4690 = vpow.pop %v4689
        %v4691 = vmul.f32 %v4668, 1.442695
        %v4692 = vpow.pop %v4691
        %v4693 = vmul.f32 %v4669, 1.442695
        %v4694 = vpow.pop %v4693
        %v4695 = vmul.f32 %v4670, 1.442695
        %v4696 = vpow.pop %v4695
        %v4697 = vmul.f32 %v4671, 1.442695
        %v4698 = vpow.pop %v4697
        %v4699 = vmul.f32 %v4672, 1.442695
        %v4700 = vpow.pop %v4699
        %v4701 = vmul.f32 %v4673, 1.442695
        %v4702 = vpow.pop %v4701
        %v4703 = vmul.f32 %v4674, 1.442695
        %v4704 = vpow.pop %v4703
        %v4705 = vmul.f32 %v4675, 1.442695
        %v4706 = vpow.pop %v4705
        %v4707 = vmul.f32 %v4676, 1.442695
        %v4708 = vpow.pop %v4707
        %4709 = vadd.xlane.f32.xlu0 %v4678
        %v4710 = vpop.xlane.xlu0 %4709
        %4711 = vadd.xlane.f32.xlu0 %v4680
        %v4712 = vpop.xlane.xlu0 %4711
        %4713 = vadd.xlane.f32.xlu0 %v4682
        %v4714 = vpop.xlane.xlu0 %4713
        %4715 = vadd.xlane.f32.xlu0 %v4684
        %v4716 = vpop.xlane.xlu0 %4715
        %4717 = vadd.xlane.f32.xlu0 %v4686
        %v4718 = vpop.xlane.xlu0 %4717
        %4719 = vadd.xlane.f32.xlu0 %v4688
        %v4720 = vpop.xlane.xlu0 %4719
        %4721 = vadd.xlane.f32.xlu0 %v4690
        %v4722 = vpop.xlane.xlu0 %4721
        %4723 = vadd.xlane.f32.xlu0 %v4692
        %v4724 = vpop.xlane.xlu0 %4723
        %4725 = vadd.xlane.f32.xlu0 %v4694
        %v4726 = vpop.xlane.xlu0 %4725
        %4727 = vadd.xlane.f32.xlu0 %v4696
        %v4728 = vpop.xlane.xlu0 %4727
        %4729 = vadd.xlane.f32.xlu0 %v4698
        %v4730 = vpop.xlane.xlu0 %4729
        %4731 = vadd.xlane.f32.xlu0 %v4700
        %v4732 = vpop.xlane.xlu0 %4731
        %4733 = vadd.xlane.f32.xlu0 %v4702
        %v4734 = vpop.xlane.xlu0 %4733
        %4735 = vadd.xlane.f32.xlu0 %v4704
        %v4736 = vpop.xlane.xlu0 %4735
        %4737 = vadd.xlane.f32.xlu0 %v4706
        %v4738 = vpop.xlane.xlu0 %4737
        %4739 = vadd.xlane.f32.xlu0 %v4708
        %v4740 = vpop.xlane.xlu0 %4739
        %v4741 = vrcp.pop %v4710
        %v4742 = vrcp.pop %v4712
        %v4743 = vrcp.pop %v4714
        %v4744 = vrcp.pop %v4716
        %v4745 = vrcp.pop %v4718
        %v4746 = vrcp.pop %v4720
        %v4747 = vrcp.pop %v4722
        %v4748 = vrcp.pop %v4724
        %v4749 = vrcp.pop %v4726
        %v4750 = vrcp.pop %v4728
        %v4751 = vrcp.pop %v4730
        %v4752 = vrcp.pop %v4732
        %v4753 = vrcp.pop %v4734
        %v4754 = vrcp.pop %v4736
        %v4755 = vrcp.pop %v4738
        %v4756 = vrcp.pop %v4740
        %v4757 = vmul.f32 %v4678, %v4741
        %v4758 = vmul.f32 %v4680, %v4742
        %v4759 = vmul.f32 %v4682, %v4743
        %v4760 = vmul.f32 %v4684, %v4744
        %v4761 = vmul.f32 %v4686, %v4745
        %v4762 = vmul.f32 %v4688, %v4746
        %v4763 = vmul.f32 %v4690, %v4747
        %v4764 = vmul.f32 %v4692, %v4748
        %v4765 = vmul.f32 %v4694, %v4749
        %v4766 = vmul.f32 %v4696, %v4750
        %v4767 = vmul.f32 %v4698, %v4751
        %v4768 = vmul.f32 %v4700, %v4752
        %v4769 = vmul.f32 %v4702, %v4753
        %v4770 = vmul.f32 %v4704, %v4754
        %v4771 = vmul.f32 %v4706, %v4755
        %v4772 = vmul.f32 %v4708, %v4756
        %v4773 = vpack.c.bf16 %v4758, %v4757
        %v4774 = vpack.c.bf16 %v4760, %v4759
        %v4775 = vpack.c.bf16 %v4762, %v4761
        %v4776 = vpack.c.bf16 %v4764, %v4763
        %v4777 = vpack.c.bf16 %v4766, %v4765
        %v4778 = vpack.c.bf16 %v4768, %v4767
        %v4779 = vpack.c.bf16 %v4770, %v4769
        %v4780 = vpack.c.bf16 %v4772, %v4771
        %4789 = vrot.lane.b32.xlu0 %v3570, 64
        %v4790 = vpop.permute.xlu0 %4789
        %4791 = vrot.lane.b32.xlu0 %v3571, 64
        %v4792 = vpop.permute.xlu0 %4791
        %4793 = vrot.lane.b32.xlu0 %v3572, 64
        %v4794 = vpop.permute.xlu0 %4793
        %4795 = vrot.lane.b32.xlu0 %v3573, 64
        %v4796 = vpop.permute.xlu0 %4795
        %4797 = vrot.lane.b32.xlu0 %v3574, 64
        %v4798 = vpop.permute.xlu0 %4797
        %4799 = vrot.lane.b32.xlu0 %v3575, 64
        %v4800 = vpop.permute.xlu0 %4799
        %4801 = vrot.lane.b32.xlu0 %v3576, 64
        %v4802 = vpop.permute.xlu0 %4801
        %4803 = vrot.lane.b32.xlu0 %v3577, 64
        %v4804 = vpop.permute.xlu0 %4803
        %4813 = vmatprep.subr.bf16.mxu0 0
        %4814 = vmatpush1.bf16.msra.mxu0 %v4804
        %4815 = vmatprep.subr.bf16.mxu0 0
        %4816 = vmatpush1.bf16.msra.mxu0 %v4802
        %4817 = vmatprep.subr.bf16.mxu0 0
        %4818 = vmatpush1.bf16.msra.mxu0 %v4800
        %4819 = vmatprep.subr.bf16.mxu0 0
        %4820 = vmatpush1.bf16.msra.mxu0 %v4798
        %4821 = vmatprep.subr.bf16.mxu0 0
        %4822 = vmatpush1.bf16.msra.mxu0 %v4796
        %4823 = vmatprep.subr.bf16.mxu0 0
        %4824 = vmatpush1.bf16.msra.mxu0 %v4794
        %4825 = vmatprep.subr.bf16.mxu0 0
        %4826 = vmatpush1.bf16.msra.mxu0 %v4792
        %4827 = vmatprep.subr.bf16.mxu0 0
        %4828 = vmatpush1.bf16.msra.mxu0 %v4790
        %4829 = vmatprep.subr.bf16.mxu0 0
        %4830 = vmatpush2.bf16.msra.mxu0 0
        %4831 = vmatprep.subr.bf16.mxu0 0
        %4832 = vmatpush2.bf16.msra.mxu0 0
        %4833 = vmatprep.subr.bf16.mxu0 0
        %4834 = vmatpush2.bf16.msra.mxu0 0
        %4835 = vmatprep.subr.bf16.mxu0 0
        %4836 = vmatpush2.bf16.msra.mxu0 0
        %4837 = vmatprep.subr.bf16.mxu0 0
        %4838 = vmatpush2.bf16.msra.mxu0 0
        %4839 = vmatprep.subr.bf16.mxu0 0
        %4840 = vmatpush2.bf16.msra.mxu0 0
        %4841 = vmatprep.subr.bf16.mxu0 0
        %4842 = vmatpush2.bf16.msra.mxu0 0
        %4843 = vmatprep.subr.bf16.mxu0 0
        %4844 = vmatpush2.bf16.msra.mxu0 0
        %4845 = vmatprep.mubr.bf16.mxu0 0
        %4846 = vmatmul.mubr.bf16.gmra.mxu0 %v4773
        %v4847 = vpop.f32.mrf.mxu0
        %v4848 = vadd.f32 0.0, %v4847
        %v4849 = vpop.f32.mrf.mxu0
        %v4850 = vpop.f32.mrf.mxu0
        %v4851 = vadd.f32 0.0, %v4850
        %v4852 = vpop.f32.mrf.mxu0
        %4853 = vmatprep.mubr.bf16.mxu0 0
        %4854 = vmatmul.mubr.bf16.gmra.mxu0 %v4774
        %v4855 = vpop.f32.mrf.mxu0
        %v4856 = vadd.f32 0.0, %v4855
        %v4857 = vpop.f32.mrf.mxu0
        %v4858 = vpop.f32.mrf.mxu0
        %v4859 = vadd.f32 0.0, %v4858
        %v4860 = vpop.f32.mrf.mxu0
        %4861 = vmatprep.mubr.bf16.mxu0 0
        %4862 = vmatmul.mubr.bf16.gmra.mxu0 %v4775
        %v4863 = vpop.f32.mrf.mxu0
        %v4864 = vadd.f32 0.0, %v4863
        %v4865 = vpop.f32.mrf.mxu0
        %v4866 = vpop.f32.mrf.mxu0
        %v4867 = vadd.f32 0.0, %v4866
        %v4868 = vpop.f32.mrf.mxu0
        %4869 = vmatprep.mubr.bf16.mxu0 0
        %4870 = vmatmul.mubr.bf16.gmra.mxu0 %v4776
        %v4871 = vpop.f32.mrf.mxu0
        %v4872 = vadd.f32 0.0, %v4871
        %v4873 = vpop.f32.mrf.mxu0
        %v4874 = vpop.f32.mrf.mxu0
        %v4875 = vadd.f32 0.0, %v4874
        %v4876 = vpop.f32.mrf.mxu0
        %4877 = vmatprep.mubr.bf16.mxu0 0
        %4878 = vmatmul.mubr.bf16.gmra.mxu0 %v4777
        %v4879 = vpop.f32.mrf.mxu0
        %v4880 = vadd.f32 0.0, %v4879
        %v4881 = vpop.f32.mrf.mxu0
        %v4882 = vpop.f32.mrf.mxu0
        %v4883 = vadd.f32 0.0, %v4882
        %v4884 = vpop.f32.mrf.mxu0
        %4885 = vmatprep.mubr.bf16.mxu0 0
        %4886 = vmatmul.mubr.bf16.gmra.mxu0 %v4778
        %v4887 = vpop.f32.mrf.mxu0
        %v4888 = vadd.f32 0.0, %v4887
        %v4889 = vpop.f32.mrf.mxu0
        %v4890 = vpop.f32.mrf.mxu0
        %v4891 = vadd.f32 0.0, %v4890
        %v4892 = vpop.f32.mrf.mxu0
        %4893 = vmatprep.mubr.bf16.mxu0 0
        %4894 = vmatmul.mubr.bf16.gmra.mxu0 %v4779
        %v4895 = vpop.f32.mrf.mxu0
        %v4896 = vadd.f32 0.0, %v4895
        %v4897 = vpop.f32.mrf.mxu0
        %v4898 = vpop.f32.mrf.mxu0
        %v4899 = vadd.f32 0.0, %v4898
        %v4900 = vpop.f32.mrf.mxu0
        %4901 = vmatprep.mubr.bf16.mxu0 0
        %4902 = vmatmul.mubr.bf16.gmra.mxu0 %v4780
        %v4903 = vpop.f32.mrf.mxu0
        %v4904 = vadd.f32 0.0, %v4903
        %v4905 = vpop.f32.mrf.mxu0
        %v4906 = vpop.f32.mrf.mxu0
        %v4907 = vadd.f32 0.0, %v4906
        %v4908 = vpop.f32.mrf.mxu0
        %4909 = vdwg.mxu0
        %v4910 = vpack.c.bf16 %v4851, %v4848
        %v4911 = vpack.c.bf16 %v4859, %v4856
        %v4912 = vpack.c.bf16 %v4867, %v4864
        %v4913 = vpack.c.bf16 %v4875, %v4872
        %v4914 = vpack.c.bf16 %v4883, %v4880
        %v4915 = vpack.c.bf16 %v4891, %v4888
        %v4916 = vpack.c.bf16 %v4899, %v4896
        %v4917 = vpack.c.bf16 %v4907, %v4904
        %4918 = vmatprep.subr.bf16.mxu0 0
        %4919 = vmatpush1.bf16.msra.mxu0 %v4917
        %4920 = vmatprep.subr.bf16.mxu0 0
        %4921 = vmatpush1.bf16.msra.mxu0 %v4916
        %4922 = vmatprep.subr.bf16.mxu0 0
        %4923 = vmatpush1.bf16.msra.mxu0 %v4915
        %4924 = vmatprep.subr.bf16.mxu0 0
        %4925 = vmatpush1.bf16.msra.mxu0 %v4914
        %4926 = vmatprep.subr.bf16.mxu0 0
        %4927 = vmatpush1.bf16.msra.mxu0 %v4913
        %4928 = vmatprep.subr.bf16.mxu0 0
        %4929 = vmatpush1.bf16.msra.mxu0 %v4912
        %4930 = vmatprep.subr.bf16.mxu0 0
        %4931 = vmatpush1.bf16.msra.mxu0 %v4911
        %4932 = vmatprep.subr.bf16.mxu0 0
        %4933 = vmatpush1.bf16.msra.mxu0 %v4910
        %4934 = vmatprep.subr.bf16.mxu0 0
        %4935 = vmatpush2.bf16.msra.mxu0 0
        %4936 = vmatprep.subr.bf16.mxu0 0
        %4937 = vmatpush2.bf16.msra.mxu0 0
        %4938 = vmatprep.subr.bf16.mxu0 0
        %4939 = vmatpush2.bf16.msra.mxu0 0
        %4940 = vmatprep.subr.bf16.mxu0 0
        %4941 = vmatpush2.bf16.msra.mxu0 0
        %4942 = vmatprep.subr.bf16.mxu0 0
        %4943 = vmatpush2.bf16.msra.mxu0 0
        %4944 = vmatprep.subr.bf16.mxu0 0
        %4945 = vmatpush2.bf16.msra.mxu0 0
        %4946 = vmatprep.subr.bf16.mxu0 0
        %4947 = vmatpush2.bf16.msra.mxu0 0
        %4948 = vmatprep.subr.bf16.mxu0 0
        %4949 = vmatpush2.bf16.msra.mxu0 0
        %4950 = vmatprep.mubr.bf16.mxu0 0
        %4951 = vmatmul.mubr.bf16.gmra.mxu0 %v1453
        %v4952 = vpop.f32.mrf.mxu0
        %v4953 = vadd.f32 0.0, %v4952
        %v4954 = vpop.f32.mrf.mxu0
        %v4955 = vpop.f32.mrf.mxu0
        %v4956 = vadd.f32 0.0, %v4955
        %v4957 = vpop.f32.mrf.mxu0
        %4958 = vmatprep.mubr.bf16.mxu0 0
        %4959 = vmatmul.mubr.bf16.gmra.mxu0 %v1454
        %v4960 = vpop.f32.mrf.mxu0
        %v4961 = vadd.f32 0.0, %v4960
        %v4962 = vpop.f32.mrf.mxu0
        %v4963 = vpop.f32.mrf.mxu0
        %v4964 = vadd.f32 0.0, %v4963
        %v4965 = vpop.f32.mrf.mxu0
        %4966 = vdwg.mxu0
        %v4967 = vpack.c.bf16 %v4956, %v4953
        %v4968 = vpack.c.bf16 %v4964, %v4961
        %4969 = vmatprep.subr.bf16.mxu0 0
        %4970 = vmatpush1.bf16.msra.mxu0 %v4917
        %4971 = vmatprep.subr.bf16.mxu0 0
        %4972 = vmatpush1.bf16.msra.mxu0 %v4916
        %4973 = vmatprep.subr.bf16.mxu0 0
        %4974 = vmatpush1.bf16.msra.mxu0 %v4915
        %4975 = vmatprep.subr.bf16.mxu0 0
        %4976 = vmatpush1.bf16.msra.mxu0 %v4914
        %4977 = vmatprep.subr.bf16.mxu0 0
        %4978 = vmatpush1.bf16.msra.mxu0 %v4913
        %4979 = vmatprep.subr.bf16.mxu0 0
        %4980 = vmatpush1.bf16.msra.mxu0 %v4912
        %4981 = vmatprep.subr.bf16.mxu0 0
        %4982 = vmatpush1.bf16.msra.mxu0 %v4911
        %4983 = vmatprep.subr.bf16.mxu0 0
        %4984 = vmatpush1.bf16.msra.mxu0 %v4910
        %4985 = vmatprep.subr.bf16.mxu0 0
        %4986 = vmatpush2.bf16.msra.mxu0 0
        %4987 = vmatprep.subr.bf16.mxu0 0
        %4988 = vmatpush2.bf16.msra.mxu0 0
        %4989 = vmatprep.subr.bf16.mxu0 0
        %4990 = vmatpush2.bf16.msra.mxu0 0
        %4991 = vmatprep.subr.bf16.mxu0 0
        %4992 = vmatpush2.bf16.msra.mxu0 0
        %4993 = vmatprep.subr.bf16.mxu0 0
        %4994 = vmatpush2.bf16.msra.mxu0 0
        %4995 = vmatprep.subr.bf16.mxu0 0
        %4996 = vmatpush2.bf16.msra.mxu0 0
        %4997 = vmatprep.subr.bf16.mxu0 0
        %4998 = vmatpush2.bf16.msra.mxu0 0
        %4999 = vmatprep.subr.bf16.mxu0 0
        %5000 = vmatpush2.bf16.msra.mxu0 0
        %5001 = vmatprep.mubr.bf16.mxu0 0
        %5002 = vmatmul.mubr.bf16.gmra.mxu0 %v1471
        %v5003 = vpop.f32.mrf.mxu0
        %v5004 = vadd.f32 0.0, %v5003
        %v5005 = vpop.f32.mrf.mxu0
        %v5006 = vpop.f32.mrf.mxu0
        %v5007 = vadd.f32 0.0, %v5006
        %v5008 = vpop.f32.mrf.mxu0
        %5009 = vmatprep.mubr.bf16.mxu0 0
        %5010 = vmatmul.mubr.bf16.gmra.mxu0 %v1472
        %v5011 = vpop.f32.mrf.mxu0
        %v5012 = vadd.f32 0.0, %v5011
        %v5013 = vpop.f32.mrf.mxu0
        %v5014 = vpop.f32.mrf.mxu0
        %v5015 = vadd.f32 0.0, %v5014
        %v5016 = vpop.f32.mrf.mxu0
        %5017 = vdwg.mxu0
        %v5018 = vpack.c.bf16 %v5007, %v5004
        %v5019 = vpack.c.bf16 %v5015, %v5012
        %v5021 = vsel %vm1581, %v5018, 0
        %v5024 = vsel %vm1581, %v5019, 0
        %5026 = vmatprep.subr.bf16.mxu0 0
        %5027 = vmatpush1.bf16.msra.mxu0 0
        %5028 = vmatprep.subr.bf16.mxu0 0
        %5029 = vmatpush1.bf16.msra.mxu0 0
        %5030 = vmatprep.subr.bf16.mxu0 0
        %5031 = vmatpush1.bf16.msra.mxu0 0
        %5032 = vmatprep.subr.bf16.mxu0 0
        %5033 = vmatpush1.bf16.msra.mxu0 0
        %5034 = vmatprep.subr.bf16.mxu0 %v2117
        %5035 = vmatpush1.bf16.msra.mxu0 %v2116
        %5036 = vmatprep.subr.bf16.mxu0 %v2115
        %5037 = vmatpush1.bf16.msra.mxu0 %v2114
        %5038 = vmatprep.subr.bf16.mxu0 %v2113
        %5039 = vmatpush1.bf16.msra.mxu0 %v2112
        %5040 = vmatprep.subr.bf16.mxu0 %v2111
        %5041 = vmatpush1.bf16.msra.mxu0 %v2110
        %5042 = vmatprep.subr.bf16.mxu0 0
        %5043 = vmatpush2.bf16.msra.mxu0 0
        %5044 = vmatprep.subr.bf16.mxu0 0
        %5045 = vmatpush2.bf16.msra.mxu0 0
        %5046 = vmatprep.subr.bf16.mxu0 0
        %5047 = vmatpush2.bf16.msra.mxu0 0
        %5048 = vmatprep.subr.bf16.mxu0 0
        %5049 = vmatpush2.bf16.msra.mxu0 0
        %5050 = vmatprep.subr.bf16.mxu0 0
        %5051 = vmatpush2.bf16.msra.mxu0 0
        %5052 = vmatprep.subr.bf16.mxu0 0
        %5053 = vmatpush2.bf16.msra.mxu0 0
        %5054 = vmatprep.subr.bf16.mxu0 0
        %5055 = vmatpush2.bf16.msra.mxu0 0
        %5056 = vmatprep.subr.bf16.mxu0 0
        %5057 = vmatpush2.bf16.msra.mxu0 0
        %5058 = vmatprep.mubr.bf16.mxu0 0
        %5059 = vmatmul.mubr.bf16.gmra.mxu0 %v5021
        %v5060 = vpop.f32.mrf.mxu0
        %v5061 = vadd.f32 0.0, %v5060
        %v5062 = vpop.f32.mrf.mxu0
        %v5063 = vadd.f32 0.0, %v5062
        %v5064 = vpop.f32.mrf.mxu0
        %v5065 = vadd.f32 0.0, %v5064
        %v5066 = vpop.f32.mrf.mxu0
        %v5067 = vadd.f32 0.0, %v5066
        %5068 = vmatprep.mubr.bf16.mxu0 0
        %5069 = vmatmul.mubr.bf16.gmra.mxu0 %v5024
        %v5070 = vpop.f32.mrf.mxu0
        %v5071 = vadd.f32 0.0, %v5070
        %v5072 = vpop.f32.mrf.mxu0
        %v5073 = vadd.f32 0.0, %v5072
        %v5074 = vpop.f32.mrf.mxu0
        %v5075 = vadd.f32 0.0, %v5074
        %v5076 = vpop.f32.mrf.mxu0
        %v5077 = vadd.f32 0.0, %v5076
        %5078 = vdwg.mxu0
        %v5080 = vsel %vm1581, %v4967, 0
        %v5083 = vsel %vm1581, %v4968, 0
        %5085 = vmatprep.subr.bf16.mxu0 0
        %5086 = vmatpush1.bf16.msra.mxu0 0
        %5087 = vmatprep.subr.bf16.mxu0 0
        %5088 = vmatpush1.bf16.msra.mxu0 0
        %5089 = vmatprep.subr.bf16.mxu0 0
        %5090 = vmatpush1.bf16.msra.mxu0 0
        %5091 = vmatprep.subr.bf16.mxu0 0
        %5092 = vmatpush1.bf16.msra.mxu0 0
        %5093 = vmatprep.subr.bf16.mxu0 %v2216
        %5094 = vmatpush1.bf16.msra.mxu0 %v2215
        %5095 = vmatprep.subr.bf16.mxu0 %v2214
        %5096 = vmatpush1.bf16.msra.mxu0 %v2213
        %5097 = vmatprep.subr.bf16.mxu0 %v2212
        %5098 = vmatpush1.bf16.msra.mxu0 %v2211
        %5099 = vmatprep.subr.bf16.mxu0 %v2210
        %5100 = vmatpush1.bf16.msra.mxu0 %v2209
        %5101 = vmatprep.subr.bf16.mxu0 0
        %5102 = vmatpush2.bf16.msra.mxu0 0
        %5103 = vmatprep.subr.bf16.mxu0 0
        %5104 = vmatpush2.bf16.msra.mxu0 0
        %5105 = vmatprep.subr.bf16.mxu0 0
        %5106 = vmatpush2.bf16.msra.mxu0 0
        %5107 = vmatprep.subr.bf16.mxu0 0
        %5108 = vmatpush2.bf16.msra.mxu0 0
        %5109 = vmatprep.subr.bf16.mxu0 0
        %5110 = vmatpush2.bf16.msra.mxu0 0
        %5111 = vmatprep.subr.bf16.mxu0 0
        %5112 = vmatpush2.bf16.msra.mxu0 0
        %5113 = vmatprep.subr.bf16.mxu0 0
        %5114 = vmatpush2.bf16.msra.mxu0 0
        %5115 = vmatprep.subr.bf16.mxu0 0
        %5116 = vmatpush2.bf16.msra.mxu0 0
        %5117 = vmatprep.mubr.bf16.mxu0 0
        %5118 = vmatmul.mubr.bf16.gmra.mxu0 %v5080
        %v5119 = vpop.f32.mrf.mxu0
        %v5120 = vadd.f32 %v5061, %v5119
        %v5121 = vpop.f32.mrf.mxu0
        %v5122 = vadd.f32 %v5063, %v5121
        %v5123 = vpop.f32.mrf.mxu0
        %v5124 = vadd.f32 %v5065, %v5123
        %v5125 = vpop.f32.mrf.mxu0
        %v5126 = vadd.f32 %v5067, %v5125
        %5127 = vmatprep.mubr.bf16.mxu0 0
        %5128 = vmatmul.mubr.bf16.gmra.mxu0 %v5083
        %v5129 = vpop.f32.mrf.mxu0
        %v5130 = vadd.f32 %v5071, %v5129
        %v5131 = vpop.f32.mrf.mxu0
        %v5132 = vadd.f32 %v5073, %v5131
        %v5133 = vpop.f32.mrf.mxu0
        %v5134 = vadd.f32 %v5075, %v5133
        %v5135 = vpop.f32.mrf.mxu0
        %v5136 = vadd.f32 %v5077, %v5135
        %5137 = vdwg.mxu0
        %5138 = vmatprep.subr.bf16.mxu0 0
        %5139 = vmatpush1.bf16.msra.mxu0 %v4917
        %5140 = vmatprep.subr.bf16.mxu0 0
        %5141 = vmatpush1.bf16.msra.mxu0 %v4916
        %5142 = vmatprep.subr.bf16.mxu0 0
        %5143 = vmatpush1.bf16.msra.mxu0 %v4915
        %5144 = vmatprep.subr.bf16.mxu0 0
        %5145 = vmatpush1.bf16.msra.mxu0 %v4914
        %5146 = vmatprep.subr.bf16.mxu0 0
        %5147 = vmatpush1.bf16.msra.mxu0 %v4913
        %5148 = vmatprep.subr.bf16.mxu0 0
        %5149 = vmatpush1.bf16.msra.mxu0 %v4912
        %5150 = vmatprep.subr.bf16.mxu0 0
        %5151 = vmatpush1.bf16.msra.mxu0 %v4911
        %5152 = vmatprep.subr.bf16.mxu0 0
        %5153 = vmatpush1.bf16.msra.mxu0 %v4910
        %5154 = vmatprep.subr.bf16.mxu0 0
        %5155 = vmatpush2.bf16.msra.mxu0 0
        %5156 = vmatprep.subr.bf16.mxu0 0
        %5157 = vmatpush2.bf16.msra.mxu0 0
        %5158 = vmatprep.subr.bf16.mxu0 0
        %5159 = vmatpush2.bf16.msra.mxu0 0
        %5160 = vmatprep.subr.bf16.mxu0 0
        %5161 = vmatpush2.bf16.msra.mxu0 0
        %5162 = vmatprep.subr.bf16.mxu0 0
        %5163 = vmatpush2.bf16.msra.mxu0 0
        %5164 = vmatprep.subr.bf16.mxu0 0
        %5165 = vmatpush2.bf16.msra.mxu0 0
        %5166 = vmatprep.subr.bf16.mxu0 0
        %5167 = vmatpush2.bf16.msra.mxu0 0
        %5168 = vmatprep.subr.bf16.mxu0 0
        %5169 = vmatpush2.bf16.msra.mxu0 0
        %5170 = vmatprep.mubr.bf16.mxu0 0
        %5171 = vmatmul.mubr.bf16.gmra.mxu0 %v1489
        %v5172 = vpop.f32.mrf.mxu0
        %v5173 = vadd.f32 0.0, %v5172
        %v5174 = vpop.f32.mrf.mxu0
        %v5175 = vpop.f32.mrf.mxu0
        %v5176 = vadd.f32 0.0, %v5175
        %v5177 = vpop.f32.mrf.mxu0
        %5178 = vmatprep.mubr.bf16.mxu0 0
        %5179 = vmatmul.mubr.bf16.gmra.mxu0 %v1490
        %v5180 = vpop.f32.mrf.mxu0
        %v5181 = vadd.f32 0.0, %v5180
        %v5182 = vpop.f32.mrf.mxu0
        %v5183 = vpop.f32.mrf.mxu0
        %v5184 = vadd.f32 0.0, %v5183
        %v5185 = vpop.f32.mrf.mxu0
        %5186 = vdwg.mxu0
        %v5187 = vpack.c.bf16 %v5176, %v5173
        %v5188 = vpack.c.bf16 %v5184, %v5181
        %v5190 = vsel %vm1581, %v5187, 0
        %v5193 = vsel %vm1581, %v5188, 0
        %5195 = vmatprep.subr.bf16.mxu0 0
        %5196 = vmatpush1.bf16.msra.mxu0 0
        %5197 = vmatprep.subr.bf16.mxu0 0
        %5198 = vmatpush1.bf16.msra.mxu0 0
        %5199 = vmatprep.subr.bf16.mxu0 0
        %5200 = vmatpush1.bf16.msra.mxu0 0
        %5201 = vmatprep.subr.bf16.mxu0 0
        %5202 = vmatpush1.bf16.msra.mxu0 0
        %5203 = vmatprep.subr.bf16.mxu0 %v2366
        %5204 = vmatpush1.bf16.msra.mxu0 %v2365
        %5205 = vmatprep.subr.bf16.mxu0 %v2364
        %5206 = vmatpush1.bf16.msra.mxu0 %v2363
        %5207 = vmatprep.subr.bf16.mxu0 %v2362
        %5208 = vmatpush1.bf16.msra.mxu0 %v2361
        %5209 = vmatprep.subr.bf16.mxu0 %v2360
        %5210 = vmatpush1.bf16.msra.mxu0 %v2359
        %5211 = vmatprep.subr.bf16.mxu0 0
        %5212 = vmatpush2.bf16.msra.mxu0 0
        %5213 = vmatprep.subr.bf16.mxu0 0
        %5214 = vmatpush2.bf16.msra.mxu0 0
        %5215 = vmatprep.subr.bf16.mxu0 0
        %5216 = vmatpush2.bf16.msra.mxu0 0
        %5217 = vmatprep.subr.bf16.mxu0 0
        %5218 = vmatpush2.bf16.msra.mxu0 0
        %5219 = vmatprep.subr.bf16.mxu0 0
        %5220 = vmatpush2.bf16.msra.mxu0 0
        %5221 = vmatprep.subr.bf16.mxu0 0
        %5222 = vmatpush2.bf16.msra.mxu0 0
        %5223 = vmatprep.subr.bf16.mxu0 0
        %5224 = vmatpush2.bf16.msra.mxu0 0
        %5225 = vmatprep.subr.bf16.mxu0 0
        %5226 = vmatpush2.bf16.msra.mxu0 0
        %5227 = vmatprep.mubr.bf16.mxu0 0
        %5228 = vmatmul.mubr.bf16.gmra.mxu0 %v5190
        %v5229 = vpop.f32.mrf.mxu0
        %v5230 = vadd.f32 0.0, %v5229
        %v5231 = vpop.f32.mrf.mxu0
        %v5232 = vadd.f32 0.0, %v5231
        %v5233 = vpop.f32.mrf.mxu0
        %v5234 = vadd.f32 0.0, %v5233
        %v5235 = vpop.f32.mrf.mxu0
        %v5236 = vadd.f32 0.0, %v5235
        %5237 = vmatprep.mubr.bf16.mxu0 0
        %5238 = vmatmul.mubr.bf16.gmra.mxu0 %v5193
        %v5239 = vpop.f32.mrf.mxu0
        %v5240 = vadd.f32 0.0, %v5239
        %v5241 = vpop.f32.mrf.mxu0
        %v5242 = vadd.f32 0.0, %v5241
        %v5243 = vpop.f32.mrf.mxu0
        %v5244 = vadd.f32 0.0, %v5243
        %v5245 = vpop.f32.mrf.mxu0
        %v5246 = vadd.f32 0.0, %v5245
        %5247 = vdwg.mxu0
        %v5248 = vadd.f32 %v5120, %v5230
        %v5249 = vadd.f32 %v5122, %v5232
        %v5250 = vadd.f32 %v5124, %v5234
        %v5251 = vadd.f32 %v5126, %v5236
        %v5252 = vadd.f32 %v5130, %v5240
        %v5253 = vadd.f32 %v5132, %v5242
        %v5254 = vadd.f32 %v5134, %v5244
        %v5255 = vadd.f32 %v5136, %v5246
        %5256 = vmatprep.subr.bf16.mxu0 0
        %5257 = vmatpush1.bf16.msra.mxu0 %v4917
        %5258 = vmatprep.subr.bf16.mxu0 0
        %5259 = vmatpush1.bf16.msra.mxu0 %v4916
        %5260 = vmatprep.subr.bf16.mxu0 0
        %5261 = vmatpush1.bf16.msra.mxu0 %v4915
        %5262 = vmatprep.subr.bf16.mxu0 0
        %5263 = vmatpush1.bf16.msra.mxu0 %v4914
        %5264 = vmatprep.subr.bf16.mxu0 0
        %5265 = vmatpush1.bf16.msra.mxu0 %v4913
        %5266 = vmatprep.subr.bf16.mxu0 0
        %5267 = vmatpush1.bf16.msra.mxu0 %v4912
        %5268 = vmatprep.subr.bf16.mxu0 0
        %5269 = vmatpush1.bf16.msra.mxu0 %v4911
        %5270 = vmatprep.subr.bf16.mxu0 0
        %5271 = vmatpush1.bf16.msra.mxu0 %v4910
        %5272 = vmatprep.subr.bf16.mxu0 0
        %5273 = vmatpush2.bf16.msra.mxu0 0
        %5274 = vmatprep.subr.bf16.mxu0 0
        %5275 = vmatpush2.bf16.msra.mxu0 0
        %5276 = vmatprep.subr.bf16.mxu0 0
        %5277 = vmatpush2.bf16.msra.mxu0 0
        %5278 = vmatprep.subr.bf16.mxu0 0
        %5279 = vmatpush2.bf16.msra.mxu0 0
        %5280 = vmatprep.subr.bf16.mxu0 0
        %5281 = vmatpush2.bf16.msra.mxu0 0
        %5282 = vmatprep.subr.bf16.mxu0 0
        %5283 = vmatpush2.bf16.msra.mxu0 0
        %5284 = vmatprep.subr.bf16.mxu0 0
        %5285 = vmatpush2.bf16.msra.mxu0 0
        %5286 = vmatprep.subr.bf16.mxu0 0
        %5287 = vmatpush2.bf16.msra.mxu0 0
        %5288 = vmatprep.mubr.bf16.mxu0 0
        %5289 = vmatmul.mubr.bf16.gmra.mxu0 %v1507
        %v5290 = vpop.f32.mrf.mxu0
        %v5291 = vadd.f32 0.0, %v5290
        %v5292 = vpop.f32.mrf.mxu0
        %v5293 = vpop.f32.mrf.mxu0
        %v5294 = vadd.f32 0.0, %v5293
        %v5295 = vpop.f32.mrf.mxu0
        %5296 = vmatprep.mubr.bf16.mxu0 0
        %5297 = vmatmul.mubr.bf16.gmra.mxu0 %v1508
        %v5298 = vpop.f32.mrf.mxu0
        %v5299 = vadd.f32 0.0, %v5298
        %v5300 = vpop.f32.mrf.mxu0
        %v5301 = vpop.f32.mrf.mxu0
        %v5302 = vadd.f32 0.0, %v5301
        %v5303 = vpop.f32.mrf.mxu0
        %5304 = vdwg.mxu0
        %v5305 = vpack.c.bf16 %v5294, %v5291
        %v5306 = vpack.c.bf16 %v5302, %v5299
        %v5308 = vsel %vm1581, %v5305, 0
        %v5311 = vsel %vm1581, %v5306, 0
        %5313 = vmatprep.subr.bf16.mxu0 0
        %5314 = vmatpush1.bf16.msra.mxu0 0
        %5315 = vmatprep.subr.bf16.mxu0 0
        %5316 = vmatpush1.bf16.msra.mxu0 0
        %5317 = vmatprep.subr.bf16.mxu0 0
        %5318 = vmatpush1.bf16.msra.mxu0 0
        %5319 = vmatprep.subr.bf16.mxu0 0
        %5320 = vmatpush1.bf16.msra.mxu0 0
        %5321 = vmatprep.subr.bf16.mxu0 %v2524
        %5322 = vmatpush1.bf16.msra.mxu0 %v2523
        %5323 = vmatprep.subr.bf16.mxu0 %v2522
        %5324 = vmatpush1.bf16.msra.mxu0 %v2521
        %5325 = vmatprep.subr.bf16.mxu0 %v2520
        %5326 = vmatpush1.bf16.msra.mxu0 %v2519
        %5327 = vmatprep.subr.bf16.mxu0 %v2518
        %5328 = vmatpush1.bf16.msra.mxu0 %v2517
        %5329 = vmatprep.subr.bf16.mxu0 0
        %5330 = vmatpush2.bf16.msra.mxu0 0
        %5331 = vmatprep.subr.bf16.mxu0 0
        %5332 = vmatpush2.bf16.msra.mxu0 0
        %5333 = vmatprep.subr.bf16.mxu0 0
        %5334 = vmatpush2.bf16.msra.mxu0 0
        %5335 = vmatprep.subr.bf16.mxu0 0
        %5336 = vmatpush2.bf16.msra.mxu0 0
        %5337 = vmatprep.subr.bf16.mxu0 0
        %5338 = vmatpush2.bf16.msra.mxu0 0
        %5339 = vmatprep.subr.bf16.mxu0 0
        %5340 = vmatpush2.bf16.msra.mxu0 0
        %5341 = vmatprep.subr.bf16.mxu0 0
        %5342 = vmatpush2.bf16.msra.mxu0 0
        %5343 = vmatprep.subr.bf16.mxu0 0
        %5344 = vmatpush2.bf16.msra.mxu0 0
        %5345 = vmatprep.mubr.bf16.mxu0 0
        %5346 = vmatmul.mubr.bf16.gmra.mxu0 %v5308
        %v5347 = vpop.f32.mrf.mxu0
        %v5348 = vadd.f32 0.0, %v5347
        %v5349 = vpop.f32.mrf.mxu0
        %v5350 = vadd.f32 0.0, %v5349
        %v5351 = vpop.f32.mrf.mxu0
        %v5352 = vadd.f32 0.0, %v5351
        %v5353 = vpop.f32.mrf.mxu0
        %v5354 = vadd.f32 0.0, %v5353
        %5355 = vmatprep.mubr.bf16.mxu0 0
        %5356 = vmatmul.mubr.bf16.gmra.mxu0 %v5311
        %v5357 = vpop.f32.mrf.mxu0
        %v5358 = vadd.f32 0.0, %v5357
        %v5359 = vpop.f32.mrf.mxu0
        %v5360 = vadd.f32 0.0, %v5359
        %v5361 = vpop.f32.mrf.mxu0
        %v5362 = vadd.f32 0.0, %v5361
        %v5363 = vpop.f32.mrf.mxu0
        %v5364 = vadd.f32 0.0, %v5363
        %5365 = vdwg.mxu0
        %v5366 = vadd.f32 %v5248, %v5348
        %v5367 = vadd.f32 %v5249, %v5350
        %v5368 = vadd.f32 %v5250, %v5352
        %v5369 = vadd.f32 %v5251, %v5354
        %v5370 = vadd.f32 %v5252, %v5358
        %v5371 = vadd.f32 %v5253, %v5360
        %v5372 = vadd.f32 %v5254, %v5362
        %v5373 = vadd.f32 %v5255, %v5364
        %v5375 = vlaneseq
        %v5376 = vshrl.u32 %v5375, 7
        %v5377 = vsub.s32 0, %v5376
        %v5378 = vrot.slane %v461, %v5377
        %v5379 = vlaneseq
        %v5380 = vshrl.u32 %v5379, 7
        %v5381 = vsub.s32 1, %v5380
        %v5382 = vrot.slane %v461, %v5381
        %v5385 = vadd.f32 %v2592, %v5378
        %v5386 = vadd.f32 %v2593, %v5382
        %v5387 = vadd.f32 %v2594, %v5378
        %v5388 = vadd.f32 %v2595, %v5382
        %v5389 = vadd.f32 %v2596, %v5378
        %v5390 = vadd.f32 %v2597, %v5382
        %v5391 = vadd.f32 %v2598, %v5378
        %v5392 = vadd.f32 %v2599, %v5382
        %v5393 = vadd.f32 %v3530, %v5378
        %v5394 = vadd.f32 %v3531, %v5382
        %v5395 = vadd.f32 %v3532, %v5378
        %v5396 = vadd.f32 %v3533, %v5382
        %v5397 = vadd.f32 %v3534, %v5378
        %v5398 = vadd.f32 %v3535, %v5382
        %v5399 = vadd.f32 %v3536, %v5378
        %v5400 = vadd.f32 %v3537, %v5382
        %v5401 = vadd.f32 %v4428, %v5378
        %v5402 = vadd.f32 %v4429, %v5382
        %v5403 = vadd.f32 %v4430, %v5378
        %v5404 = vadd.f32 %v4431, %v5382
        %v5405 = vadd.f32 %v4432, %v5378
        %v5406 = vadd.f32 %v4433, %v5382
        %v5407 = vadd.f32 %v4434, %v5378
        %v5408 = vadd.f32 %v4435, %v5382
        %v5409 = vadd.f32 %v5366, %v5378
        %v5410 = vadd.f32 %v5367, %v5382
        %v5411 = vadd.f32 %v5368, %v5378
        %v5412 = vadd.f32 %v5369, %v5382
        %v5413 = vadd.f32 %v5370, %v5378
        %v5414 = vadd.f32 %v5371, %v5382
        %v5415 = vadd.f32 %v5372, %v5378
        %v5416 = vadd.f32 %v5373, %v5382
        %v5417 = vadd.f32 %v5385, %v5386
        %5418 = vadd.xlane.f32.xlu0 %v5417
        %v5419 = vpop.xlane.xlu0 %5418
        %v5420 = vadd.f32 %v5387, %v5388
        %5421 = vadd.xlane.f32.xlu0 %v5420
        %v5422 = vpop.xlane.xlu0 %5421
        %v5423 = vadd.f32 %v5389, %v5390
        %5424 = vadd.xlane.f32.xlu0 %v5423
        %v5425 = vpop.xlane.xlu0 %5424
        %v5426 = vadd.f32 %v5391, %v5392
        %5427 = vadd.xlane.f32.xlu0 %v5426
        %v5428 = vpop.xlane.xlu0 %5427
        %v5429 = vadd.f32 %v5393, %v5394
        %5430 = vadd.xlane.f32.xlu0 %v5429
        %v5431 = vpop.xlane.xlu0 %5430
        %v5432 = vadd.f32 %v5395, %v5396
        %5433 = vadd.xlane.f32.xlu0 %v5432
        %v5434 = vpop.xlane.xlu0 %5433
        %v5435 = vadd.f32 %v5397, %v5398
        %5436 = vadd.xlane.f32.xlu0 %v5435
        %v5437 = vpop.xlane.xlu0 %5436
        %v5438 = vadd.f32 %v5399, %v5400
        %5439 = vadd.xlane.f32.xlu0 %v5438
        %v5440 = vpop.xlane.xlu0 %5439
        %v5441 = vadd.f32 %v5401, %v5402
        %5442 = vadd.xlane.f32.xlu0 %v5441
        %v5443 = vpop.xlane.xlu0 %5442
        %v5444 = vadd.f32 %v5403, %v5404
        %5445 = vadd.xlane.f32.xlu0 %v5444
        %v5446 = vpop.xlane.xlu0 %5445
        %v5447 = vadd.f32 %v5405, %v5406
        %5448 = vadd.xlane.f32.xlu0 %v5447
        %v5449 = vpop.xlane.xlu0 %5448
        %v5450 = vadd.f32 %v5407, %v5408
        %5451 = vadd.xlane.f32.xlu0 %v5450
        %v5452 = vpop.xlane.xlu0 %5451
        %v5453 = vadd.f32 %v5409, %v5410
        %5454 = vadd.xlane.f32.xlu0 %v5453
        %v5455 = vpop.xlane.xlu0 %5454
        %v5456 = vadd.f32 %v5411, %v5412
        %5457 = vadd.xlane.f32.xlu0 %v5456
        %v5458 = vpop.xlane.xlu0 %5457
        %v5459 = vadd.f32 %v5413, %v5414
        %5460 = vadd.xlane.f32.xlu0 %v5459
        %v5461 = vpop.xlane.xlu0 %5460
        %v5462 = vadd.f32 %v5415, %v5416
        %5463 = vadd.xlane.f32.xlu0 %v5462
        %v5464 = vpop.xlane.xlu0 %5463
        %v5465 = vrcp.pop 256.0
        %v5466 = vmul.f32 %v5419, %v5465
        %v5467 = vmul.f32 %v5422, %v5465
        %v5468 = vmul.f32 %v5425, %v5465
        %v5469 = vmul.f32 %v5428, %v5465
        %v5470 = vmul.f32 %v5431, %v5465
        %v5471 = vmul.f32 %v5434, %v5465
        %v5472 = vmul.f32 %v5437, %v5465
        %v5473 = vmul.f32 %v5440, %v5465
        %v5474 = vmul.f32 %v5443, %v5465
        %v5475 = vmul.f32 %v5446, %v5465
        %v5476 = vmul.f32 %v5449, %v5465
        %v5477 = vmul.f32 %v5452, %v5465
        %v5478 = vmul.f32 %v5455, %v5465
        %v5479 = vmul.f32 %v5458, %v5465
        %v5480 = vmul.f32 %v5461, %v5465
        %v5481 = vmul.f32 %v5464, %v5465
        %v5482 = vsub.f32 %v5385, %v5466
        %v5483 = vsub.f32 %v5386, %v5466
        %v5484 = vsub.f32 %v5387, %v5467
        %v5485 = vsub.f32 %v5388, %v5467
        %v5486 = vsub.f32 %v5389, %v5468
        %v5487 = vsub.f32 %v5390, %v5468
        %v5488 = vsub.f32 %v5391, %v5469
        %v5489 = vsub.f32 %v5392, %v5469
        %v5490 = vsub.f32 %v5393, %v5470
        %v5491 = vsub.f32 %v5394, %v5470
        %v5492 = vsub.f32 %v5395, %v5471
        %v5493 = vsub.f32 %v5396, %v5471
        %v5494 = vsub.f32 %v5397, %v5472
        %v5495 = vsub.f32 %v5398, %v5472
        %v5496 = vsub.f32 %v5399, %v5473
        %v5497 = vsub.f32 %v5400, %v5473
        %v5498 = vsub.f32 %v5401, %v5474
        %v5499 = vsub.f32 %v5402, %v5474
        %v5500 = vsub.f32 %v5403, %v5475
        %v5501 = vsub.f32 %v5404, %v5475
        %v5502 = vsub.f32 %v5405, %v5476
        %v5503 = vsub.f32 %v5406, %v5476
        %v5504 = vsub.f32 %v5407, %v5477
        %v5505 = vsub.f32 %v5408, %v5477
        %v5506 = vsub.f32 %v5409, %v5478
        %v5507 = vsub.f32 %v5410, %v5478
        %v5508 = vsub.f32 %v5411, %v5479
        %v5509 = vsub.f32 %v5412, %v5479
        %v5510 = vsub.f32 %v5413, %v5480
        %v5511 = vsub.f32 %v5414, %v5480
        %v5512 = vsub.f32 %v5415, %v5481
        %v5513 = vsub.f32 %v5416, %v5481
        %v5514 = vmul.f32 %v5482, %v5482
        %v5515 = vmul.f32 %v5483, %v5483
        %v5516 = vmul.f32 %v5484, %v5484
        %v5517 = vmul.f32 %v5485, %v5485
        %v5518 = vmul.f32 %v5486, %v5486
        %v5519 = vmul.f32 %v5487, %v5487
        %v5520 = vmul.f32 %v5488, %v5488
        %v5521 = vmul.f32 %v5489, %v5489
        %v5522 = vmul.f32 %v5490, %v5490
        %v5523 = vmul.f32 %v5491, %v5491
        %v5524 = vmul.f32 %v5492, %v5492
        %v5525 = vmul.f32 %v5493, %v5493
        %v5526 = vmul.f32 %v5494, %v5494
        %v5527 = vmul.f32 %v5495, %v5495
        %v5528 = vmul.f32 %v5496, %v5496
        %v5529 = vmul.f32 %v5497, %v5497
        %v5530 = vmul.f32 %v5498, %v5498
        %v5531 = vmul.f32 %v5499, %v5499
        %v5532 = vmul.f32 %v5500, %v5500
        %v5533 = vmul.f32 %v5501, %v5501
        %v5534 = vmul.f32 %v5502, %v5502
        %v5535 = vmul.f32 %v5503, %v5503
        %v5536 = vmul.f32 %v5504, %v5504
        %v5537 = vmul.f32 %v5505, %v5505
        %v5538 = vmul.f32 %v5506, %v5506
        %v5539 = vmul.f32 %v5507, %v5507
        %v5540 = vmul.f32 %v5508, %v5508
        %v5541 = vmul.f32 %v5509, %v5509
        %v5542 = vmul.f32 %v5510, %v5510
        %v5543 = vmul.f32 %v5511, %v5511
        %v5544 = vmul.f32 %v5512, %v5512
        %v5545 = vmul.f32 %v5513, %v5513
        %v5546 = vadd.f32 %v5514, %v5515
        %5547 = vadd.xlane.f32.xlu0 %v5546
        %v5548 = vpop.xlane.xlu0 %5547
        %v5549 = vadd.f32 %v5516, %v5517
        %5550 = vadd.xlane.f32.xlu0 %v5549
        %v5551 = vpop.xlane.xlu0 %5550
        %v5552 = vadd.f32 %v5518, %v5519
        %5553 = vadd.xlane.f32.xlu0 %v5552
        %v5554 = vpop.xlane.xlu0 %5553
        %v5555 = vadd.f32 %v5520, %v5521
        %5556 = vadd.xlane.f32.xlu0 %v5555
        %v5557 = vpop.xlane.xlu0 %5556
        %v5558 = vadd.f32 %v5522, %v5523
        %5559 = vadd.xlane.f32.xlu0 %v5558
        %v5560 = vpop.xlane.xlu0 %5559
        %v5561 = vadd.f32 %v5524, %v5525
        %5562 = vadd.xlane.f32.xlu0 %v5561
        %v5563 = vpop.xlane.xlu0 %5562
        %v5564 = vadd.f32 %v5526, %v5527
        %5565 = vadd.xlane.f32.xlu0 %v5564
        %v5566 = vpop.xlane.xlu0 %5565
        %v5567 = vadd.f32 %v5528, %v5529
        %5568 = vadd.xlane.f32.xlu0 %v5567
        %v5569 = vpop.xlane.xlu0 %5568
        %v5570 = vadd.f32 %v5530, %v5531
        %5571 = vadd.xlane.f32.xlu0 %v5570
        %v5572 = vpop.xlane.xlu0 %5571
        %v5573 = vadd.f32 %v5532, %v5533
        %5574 = vadd.xlane.f32.xlu0 %v5573
        %v5575 = vpop.xlane.xlu0 %5574
        %v5576 = vadd.f32 %v5534, %v5535
        %5577 = vadd.xlane.f32.xlu0 %v5576
        %v5578 = vpop.xlane.xlu0 %5577
        %v5579 = vadd.f32 %v5536, %v5537
        %5580 = vadd.xlane.f32.xlu0 %v5579
        %v5581 = vpop.xlane.xlu0 %5580
        %v5582 = vadd.f32 %v5538, %v5539
        %5583 = vadd.xlane.f32.xlu0 %v5582
        %v5584 = vpop.xlane.xlu0 %5583
        %v5585 = vadd.f32 %v5540, %v5541
        %5586 = vadd.xlane.f32.xlu0 %v5585
        %v5587 = vpop.xlane.xlu0 %5586
        %v5588 = vadd.f32 %v5542, %v5543
        %5589 = vadd.xlane.f32.xlu0 %v5588
        %v5590 = vpop.xlane.xlu0 %5589
        %v5591 = vadd.f32 %v5544, %v5545
        %5592 = vadd.xlane.f32.xlu0 %v5591
        %v5593 = vpop.xlane.xlu0 %5592
        %v5594 = vmul.f32 %v5548, %v5465
        %v5595 = vmul.f32 %v5551, %v5465
        %v5596 = vmul.f32 %v5554, %v5465
        %v5597 = vmul.f32 %v5557, %v5465
        %v5598 = vmul.f32 %v5560, %v5465
        %v5599 = vmul.f32 %v5563, %v5465
        %v5600 = vmul.f32 %v5566, %v5465
        %v5601 = vmul.f32 %v5569, %v5465
        %v5602 = vmul.f32 %v5572, %v5465
        %v5603 = vmul.f32 %v5575, %v5465
        %v5604 = vmul.f32 %v5578, %v5465
        %v5605 = vmul.f32 %v5581, %v5465
        %v5606 = vmul.f32 %v5584, %v5465
        %v5607 = vmul.f32 %v5587, %v5465
        %v5608 = vmul.f32 %v5590, %v5465
        %v5609 = vmul.f32 %v5593, %v5465
        %v5610 = vadd.f32 %v5594, 1e-05
        %v5611 = vadd.f32 %v5595, 1e-05
        %v5612 = vadd.f32 %v5596, 1e-05
        %v5613 = vadd.f32 %v5597, 1e-05
        %v5614 = vadd.f32 %v5598, 1e-05
        %v5615 = vadd.f32 %v5599, 1e-05
        %v5616 = vadd.f32 %v5600, 1e-05
        %v5617 = vadd.f32 %v5601, 1e-05
        %v5618 = vadd.f32 %v5602, 1e-05
        %v5619 = vadd.f32 %v5603, 1e-05
        %v5620 = vadd.f32 %v5604, 1e-05
        %v5621 = vadd.f32 %v5605, 1e-05
        %v5622 = vadd.f32 %v5606, 1e-05
        %v5623 = vadd.f32 %v5607, 1e-05
        %v5624 = vadd.f32 %v5608, 1e-05
        %v5625 = vadd.f32 %v5609, 1e-05
        %v5626 = vrsqrt.pop %v5610
        %v5627 = vrsqrt.pop %v5611
        %v5628 = vrsqrt.pop %v5612
        %v5629 = vrsqrt.pop %v5613
        %v5630 = vrsqrt.pop %v5614
        %v5631 = vrsqrt.pop %v5615
        %v5632 = vrsqrt.pop %v5616
        %v5633 = vrsqrt.pop %v5617
        %v5634 = vrsqrt.pop %v5618
        %v5635 = vrsqrt.pop %v5619
        %v5636 = vrsqrt.pop %v5620
        %v5637 = vrsqrt.pop %v5621
        %v5638 = vrsqrt.pop %v5622
        %v5639 = vrsqrt.pop %v5623
        %v5640 = vrsqrt.pop %v5624
        %v5641 = vrsqrt.pop %v5625
        %v5642 = vmul.f32 %v5482, %v5626
        %v5643 = vmul.f32 %v5483, %v5626
        %v5644 = vmul.f32 %v5484, %v5627
        %v5645 = vmul.f32 %v5485, %v5627
        %v5646 = vmul.f32 %v5486, %v5628
        %v5647 = vmul.f32 %v5487, %v5628
        %v5648 = vmul.f32 %v5488, %v5629
        %v5649 = vmul.f32 %v5489, %v5629
        %v5650 = vmul.f32 %v5490, %v5630
        %v5651 = vmul.f32 %v5491, %v5630
        %v5652 = vmul.f32 %v5492, %v5631
        %v5653 = vmul.f32 %v5493, %v5631
        %v5654 = vmul.f32 %v5494, %v5632
        %v5655 = vmul.f32 %v5495, %v5632
        %v5656 = vmul.f32 %v5496, %v5633
        %v5657 = vmul.f32 %v5497, %v5633
        %v5658 = vmul.f32 %v5498, %v5634
        %v5659 = vmul.f32 %v5499, %v5634
        %v5660 = vmul.f32 %v5500, %v5635
        %v5661 = vmul.f32 %v5501, %v5635
        %v5662 = vmul.f32 %v5502, %v5636
        %v5663 = vmul.f32 %v5503, %v5636
        %v5664 = vmul.f32 %v5504, %v5637
        %v5665 = vmul.f32 %v5505, %v5637
        %v5666 = vmul.f32 %v5506, %v5638
        %v5667 = vmul.f32 %v5507, %v5638
        %v5668 = vmul.f32 %v5508, %v5639
        %v5669 = vmul.f32 %v5509, %v5639
        %v5670 = vmul.f32 %v5510, %v5640
        %v5671 = vmul.f32 %v5511, %v5640
        %v5672 = vmul.f32 %v5512, %v5641
        %v5673 = vmul.f32 %v5513, %v5641
        %v5675 = vlaneseq
        %v5676 = vshrl.u32 %v5675, 7
        %v5677 = vsub.s32 0, %v5676
        %v5678 = vrot.slane %v462, %v5677
        %v5679 = vlaneseq
        %v5680 = vshrl.u32 %v5679, 7
        %v5681 = vsub.s32 1, %v5680
        %v5682 = vrot.slane %v462, %v5681
        %v5685 = vmul.f32 %v5642, %v5678
        %v5686 = vmul.f32 %v5643, %v5682
        %v5687 = vmul.f32 %v5644, %v5678
        %v5688 = vmul.f32 %v5645, %v5682
        %v5689 = vmul.f32 %v5646, %v5678
        %v5690 = vmul.f32 %v5647, %v5682
        %v5691 = vmul.f32 %v5648, %v5678
        %v5692 = vmul.f32 %v5649, %v5682
        %v5693 = vmul.f32 %v5650, %v5678
        %v5694 = vmul.f32 %v5651, %v5682
        %v5695 = vmul.f32 %v5652, %v5678
        %v5696 = vmul.f32 %v5653, %v5682
        %v5697 = vmul.f32 %v5654, %v5678
        %v5698 = vmul.f32 %v5655, %v5682
        %v5699 = vmul.f32 %v5656, %v5678
        %v5700 = vmul.f32 %v5657, %v5682
        %v5701 = vmul.f32 %v5658, %v5678
        %v5702 = vmul.f32 %v5659, %v5682
        %v5703 = vmul.f32 %v5660, %v5678
        %v5704 = vmul.f32 %v5661, %v5682
        %v5705 = vmul.f32 %v5662, %v5678
        %v5706 = vmul.f32 %v5663, %v5682
        %v5707 = vmul.f32 %v5664, %v5678
        %v5708 = vmul.f32 %v5665, %v5682
        %v5709 = vmul.f32 %v5666, %v5678
        %v5710 = vmul.f32 %v5667, %v5682
        %v5711 = vmul.f32 %v5668, %v5678
        %v5712 = vmul.f32 %v5669, %v5682
        %v5713 = vmul.f32 %v5670, %v5678
        %v5714 = vmul.f32 %v5671, %v5682
        %v5715 = vmul.f32 %v5672, %v5678
        %v5716 = vmul.f32 %v5673, %v5682
        %v5717 = vadd.f32 %v428, %v5685
        %v5718 = vadd.f32 %v429, %v5686
        %v5719 = vadd.f32 %v430, %v5687
        %v5720 = vadd.f32 %v431, %v5688
        %v5721 = vadd.f32 %v432, %v5689
        %v5722 = vadd.f32 %v433, %v5690
        %v5723 = vadd.f32 %v434, %v5691
        %v5724 = vadd.f32 %v435, %v5692
        %v5725 = vadd.f32 %v436, %v5693
        %v5726 = vadd.f32 %v437, %v5694
        %v5727 = vadd.f32 %v438, %v5695
        %v5728 = vadd.f32 %v439, %v5696
        %v5729 = vadd.f32 %v440, %v5697
        %v5730 = vadd.f32 %v441, %v5698
        %v5731 = vadd.f32 %v442, %v5699
        %v5732 = vadd.f32 %v443, %v5700
        %v5733 = vadd.f32 %v444, %v5701
        %v5734 = vadd.f32 %v445, %v5702
        %v5735 = vadd.f32 %v446, %v5703
        %v5736 = vadd.f32 %v447, %v5704
        %v5737 = vadd.f32 %v448, %v5705
        %v5738 = vadd.f32 %v449, %v5706
        %v5739 = vadd.f32 %v450, %v5707
        %v5740 = vadd.f32 %v451, %v5708
        %v5741 = vadd.f32 %v452, %v5709
        %v5742 = vadd.f32 %v453, %v5710
        %v5743 = vadd.f32 %v454, %v5711
        %v5744 = vadd.f32 %v455, %v5712
        %v5745 = vadd.f32 %v456, %v5713
        %v5746 = vadd.f32 %v457, %v5714
        %v5747 = vadd.f32 %v458, %v5715
        %v5748 = vadd.f32 %v459, %v5716
        %v5750 = vlaneseq
        %v5751 = vshrl.u32 %v5750, 7
        %v5752 = vsub.s32 0, %v5751
        %v5753 = vrot.slane %v463, %v5752
        %v5754 = vlaneseq
        %v5755 = vshrl.u32 %v5754, 7
        %v5756 = vsub.s32 1, %v5755
        %v5757 = vrot.slane %v463, %v5756
        %v5760 = vadd.f32 %v5717, %v5753
        %v5761 = vadd.f32 %v5718, %v5757
        %v5762 = vadd.f32 %v5719, %v5753
        %v5763 = vadd.f32 %v5720, %v5757
        %v5764 = vadd.f32 %v5721, %v5753
        %v5765 = vadd.f32 %v5722, %v5757
        %v5766 = vadd.f32 %v5723, %v5753
        %v5767 = vadd.f32 %v5724, %v5757
        %v5768 = vadd.f32 %v5725, %v5753
        %v5769 = vadd.f32 %v5726, %v5757
        %v5770 = vadd.f32 %v5727, %v5753
        %v5771 = vadd.f32 %v5728, %v5757
        %v5772 = vadd.f32 %v5729, %v5753
        %v5773 = vadd.f32 %v5730, %v5757
        %v5774 = vadd.f32 %v5731, %v5753
        %v5775 = vadd.f32 %v5732, %v5757
        %v5776 = vadd.f32 %v5733, %v5753
        %v5777 = vadd.f32 %v5734, %v5757
        %v5778 = vadd.f32 %v5735, %v5753
        %v5779 = vadd.f32 %v5736, %v5757
        %v5780 = vadd.f32 %v5737, %v5753
        %v5781 = vadd.f32 %v5738, %v5757
        %v5782 = vadd.f32 %v5739, %v5753
        %v5783 = vadd.f32 %v5740, %v5757
        %v5784 = vadd.f32 %v5741, %v5753
        %v5785 = vadd.f32 %v5742, %v5757
        %v5786 = vadd.f32 %v5743, %v5753
        %v5787 = vadd.f32 %v5744, %v5757
        %v5788 = vadd.f32 %v5745, %v5753
        %v5789 = vadd.f32 %v5746, %v5757
        %v5790 = vadd.f32 %v5747, %v5753
        %v5791 = vadd.f32 %v5748, %v5757
        %v5792 = vpack.c.bf16 %v5762, %v5760
        %v5793 = vpack.c.bf16 %v5763, %v5761
        %v5794 = vpack.c.bf16 %v5766, %v5764
        %v5795 = vpack.c.bf16 %v5767, %v5765
        %v5796 = vpack.c.bf16 %v5770, %v5768
        %v5797 = vpack.c.bf16 %v5771, %v5769
        %v5798 = vpack.c.bf16 %v5774, %v5772
        %v5799 = vpack.c.bf16 %v5775, %v5773
        %v5800 = vpack.c.bf16 %v5778, %v5776
        %v5801 = vpack.c.bf16 %v5779, %v5777
        %v5802 = vpack.c.bf16 %v5782, %v5780
        %v5803 = vpack.c.bf16 %v5783, %v5781
        %v5804 = vpack.c.bf16 %v5786, %v5784
        %v5805 = vpack.c.bf16 %v5787, %v5785
        %v5806 = vpack.c.bf16 %v5790, %v5788
        %v5807 = vpack.c.bf16 %v5791, %v5789
        %v5808 = vld [vmem:[%s349] sm:$0xff]
        %v5809 = vld [vmem:[%s349 + $0x8] sm:$0xff]
        %v5810 = vld [vmem:[%s349 + $0x10] sm:$0xff]
        %v5811 = vld [vmem:[%s349 + $0x18] sm:$0xff]
        %v5812 = vld [vmem:[%s349 + $0x20] sm:$0xff]
        %v5813 = vld [vmem:[%s349 + $0x28] sm:$0xff]
        %v5814 = vld [vmem:[%s349 + $0x30] sm:$0xff]
        %v5815 = vld [vmem:[%s349 + $0x38] sm:$0xff]
        %v5816 = vld [vmem:[%s349 + $0x40] sm:$0xff]
        %v5817 = vld [vmem:[%s349 + $0x48] sm:$0xff]
        %v5818 = vld [vmem:[%s349 + $0x50] sm:$0xff]
        %v5819 = vld [vmem:[%s349 + $0x58] sm:$0xff]
        %v5820 = vld [vmem:[%s349 + $0x60] sm:$0xff]
        %v5821 = vld [vmem:[%s349 + $0x68] sm:$0xff]
        %v5822 = vld [vmem:[%s349 + $0x70] sm:$0xff]
        %v5823 = vld [vmem:[%s349 + $0x78] sm:$0xff]
        %v5824 = vld [vmem:[%s349 + $0x80] sm:$0xff]
        %v5825 = vld [vmem:[%s349 + $0x88] sm:$0xff]
        %v5826 = vld [vmem:[%s349 + $0x90] sm:$0xff]
        %v5827 = vld [vmem:[%s349 + $0x98] sm:$0xff]
        %v5828 = vld [vmem:[%s349 + $0xa0] sm:$0xff]
        %v5829 = vld [vmem:[%s349 + $0xa8] sm:$0xff]
        %v5830 = vld [vmem:[%s349 + $0xb0] sm:$0xff]
        %v5831 = vld [vmem:[%s349 + $0xb8] sm:$0xff]
        %v5832 = vld [vmem:[%s349 + $0xc0] sm:$0xff]
        %v5833 = vld [vmem:[%s349 + $0xc8] sm:$0xff]
        %v5834 = vld [vmem:[%s349 + $0xd0] sm:$0xff]
        %v5835 = vld [vmem:[%s349 + $0xd8] sm:$0xff]
        %v5836 = vld [vmem:[%s349 + $0xe0] sm:$0xff]
        %v5837 = vld [vmem:[%s349 + $0xe8] sm:$0xff]
        %v5838 = vld [vmem:[%s349 + $0xf0] sm:$0xff]
        %v5839 = vld [vmem:[%s349 + $0xf8] sm:$0xff]
        %v5840 = vld [vmem:[%s349 + $0x100] sm:$0xff]
        %v5841 = vld [vmem:[%s349 + $0x108] sm:$0xff]
        %v5842 = vld [vmem:[%s349 + $0x110] sm:$0xff]
        %v5843 = vld [vmem:[%s349 + $0x118] sm:$0xff]
        %v5844 = vld [vmem:[%s349 + $0x120] sm:$0xff]
        %v5845 = vld [vmem:[%s349 + $0x128] sm:$0xff]
        %v5846 = vld [vmem:[%s349 + $0x130] sm:$0xff]
        %v5847 = vld [vmem:[%s349 + $0x138] sm:$0xff]
        %v5848 = vld [vmem:[%s349 + $0x140] sm:$0xff]
        %v5849 = vld [vmem:[%s349 + $0x148] sm:$0xff]
        %v5850 = vld [vmem:[%s349 + $0x150] sm:$0xff]
        %v5851 = vld [vmem:[%s349 + $0x158] sm:$0xff]
        %v5852 = vld [vmem:[%s349 + $0x160] sm:$0xff]
        %v5853 = vld [vmem:[%s349 + $0x168] sm:$0xff]
        %v5854 = vld [vmem:[%s349 + $0x170] sm:$0xff]
        %v5855 = vld [vmem:[%s349 + $0x178] sm:$0xff]
        %v5856 = vld [vmem:[%s349 + $0x180] sm:$0xff]
        %v5857 = vld [vmem:[%s349 + $0x188] sm:$0xff]
        %v5858 = vld [vmem:[%s349 + $0x190] sm:$0xff]
        %v5859 = vld [vmem:[%s349 + $0x198] sm:$0xff]
        %v5860 = vld [vmem:[%s349 + $0x1a0] sm:$0xff]
        %v5861 = vld [vmem:[%s349 + $0x1a8] sm:$0xff]
        %v5862 = vld [vmem:[%s349 + $0x1b0] sm:$0xff]
        %v5863 = vld [vmem:[%s349 + $0x1b8] sm:$0xff]
        %v5864 = vld [vmem:[%s349 + $0x1c0] sm:$0xff]
        %v5865 = vld [vmem:[%s349 + $0x1c8] sm:$0xff]
        %v5866 = vld [vmem:[%s349 + $0x1d0] sm:$0xff]
        %v5867 = vld [vmem:[%s349 + $0x1d8] sm:$0xff]
        %v5868 = vld [vmem:[%s349 + $0x1e0] sm:$0xff]
        %v5869 = vld [vmem:[%s349 + $0x1e8] sm:$0xff]
        %v5870 = vld [vmem:[%s349 + $0x1f0] sm:$0xff]
        %v5871 = vld [vmem:[%s349 + $0x1f8] sm:$0xff]
        %v5873 = vlaneseq
        %v5874 = vshrl.u32 %v5873, 7
        %v5875 = vsub.s32 0, %v5874
        %v5876 = vrot.slane %v464, %v5875
        %v5877 = vlaneseq
        %v5878 = vshrl.u32 %v5877, 7
        %v5879 = vsub.s32 1, %v5878
        %v5880 = vrot.slane %v464, %v5879
        %v5881 = vlaneseq
        %v5882 = vshrl.u32 %v5881, 7
        %v5883 = vsub.s32 2, %v5882
        %v5884 = vrot.slane %v464, %v5883
        %v5885 = vlaneseq
        %v5886 = vshrl.u32 %v5885, 7
        %v5887 = vsub.s32 3, %v5886
        %v5888 = vrot.slane %v464, %v5887
        %v5957 = vunpack.c.l.b16 %v5808
        %v5958 = vunpack.c.h.b16 %v5808
        %v5959 = vunpack.c.l.b16 %v5809
        %v5960 = vunpack.c.h.b16 %v5809
        %v5961 = vunpack.c.l.b16 %v5810
        %v5962 = vunpack.c.h.b16 %v5810
        %v5963 = vunpack.c.l.b16 %v5811
        %v5964 = vunpack.c.h.b16 %v5811
        %v5965 = vunpack.c.l.b16 %v5812
        %v5966 = vunpack.c.h.b16 %v5812
        %v5967 = vunpack.c.l.b16 %v5813
        %v5968 = vunpack.c.h.b16 %v5813
        %v5969 = vunpack.c.l.b16 %v5814
        %v5970 = vunpack.c.h.b16 %v5814
        %v5971 = vunpack.c.l.b16 %v5815
        %v5972 = vunpack.c.h.b16 %v5815
        %v5973 = vunpack.c.l.b16 %v5816
        %v5974 = vunpack.c.h.b16 %v5816
        %v5975 = vunpack.c.l.b16 %v5817
        %v5976 = vunpack.c.h.b16 %v5817
        %v5977 = vunpack.c.l.b16 %v5818
        %v5978 = vunpack.c.h.b16 %v5818
        %v5979 = vunpack.c.l.b16 %v5819
        %v5980 = vunpack.c.h.b16 %v5819
        %v5981 = vunpack.c.l.b16 %v5820
        %v5982 = vunpack.c.h.b16 %v5820
        %v5983 = vunpack.c.l.b16 %v5821
        %v5984 = vunpack.c.h.b16 %v5821
        %v5985 = vunpack.c.l.b16 %v5822
        %v5986 = vunpack.c.h.b16 %v5822
        %v5987 = vunpack.c.l.b16 %v5823
        %v5988 = vunpack.c.h.b16 %v5823
        %v5989 = vunpack.c.l.b16 %v5824
        %v5990 = vunpack.c.h.b16 %v5824
        %v5991 = vunpack.c.l.b16 %v5825
        %v5992 = vunpack.c.h.b16 %v5825
        %v5993 = vunpack.c.l.b16 %v5826
        %v5994 = vunpack.c.h.b16 %v5826
        %v5995 = vunpack.c.l.b16 %v5827
        %v5996 = vunpack.c.h.b16 %v5827
        %v5997 = vunpack.c.l.b16 %v5828
        %v5998 = vunpack.c.h.b16 %v5828
        %v5999 = vunpack.c.l.b16 %v5829
        %v6000 = vunpack.c.h.b16 %v5829
        %v6001 = vunpack.c.l.b16 %v5830
        %v6002 = vunpack.c.h.b16 %v5830
        %v6003 = vunpack.c.l.b16 %v5831
        %v6004 = vunpack.c.h.b16 %v5831
        %v6005 = vunpack.c.l.b16 %v5832
        %v6006 = vunpack.c.h.b16 %v5832
        %v6007 = vunpack.c.l.b16 %v5833
        %v6008 = vunpack.c.h.b16 %v5833
        %v6009 = vunpack.c.l.b16 %v5834
        %v6010 = vunpack.c.h.b16 %v5834
        %v6011 = vunpack.c.l.b16 %v5835
        %v6012 = vunpack.c.h.b16 %v5835
        %v6013 = vunpack.c.l.b16 %v5836
        %v6014 = vunpack.c.h.b16 %v5836
        %v6015 = vunpack.c.l.b16 %v5837
        %v6016 = vunpack.c.h.b16 %v5837
        %v6017 = vunpack.c.l.b16 %v5838
        %v6018 = vunpack.c.h.b16 %v5838
        %v6019 = vunpack.c.l.b16 %v5839
        %v6020 = vunpack.c.h.b16 %v5839
        %v6021 = vunpack.c.l.b16 %v5840
        %v6022 = vunpack.c.h.b16 %v5840
        %v6023 = vunpack.c.l.b16 %v5841
        %v6024 = vunpack.c.h.b16 %v5841
        %v6025 = vunpack.c.l.b16 %v5842
        %v6026 = vunpack.c.h.b16 %v5842
        %v6027 = vunpack.c.l.b16 %v5843
        %v6028 = vunpack.c.h.b16 %v5843
        %v6029 = vunpack.c.l.b16 %v5844
        %v6030 = vunpack.c.h.b16 %v5844
        %v6031 = vunpack.c.l.b16 %v5845
        %v6032 = vunpack.c.h.b16 %v5845
        %v6033 = vunpack.c.l.b16 %v5846
        %v6034 = vunpack.c.h.b16 %v5846
        %v6035 = vunpack.c.l.b16 %v5847
        %v6036 = vunpack.c.h.b16 %v5847
        %v6037 = vunpack.c.l.b16 %v5848
        %v6038 = vunpack.c.h.b16 %v5848
        %v6039 = vunpack.c.l.b16 %v5849
        %v6040 = vunpack.c.h.b16 %v5849
        %v6041 = vunpack.c.l.b16 %v5850
        %v6042 = vunpack.c.h.b16 %v5850
        %v6043 = vunpack.c.l.b16 %v5851
        %v6044 = vunpack.c.h.b16 %v5851
        %v6045 = vunpack.c.l.b16 %v5852
        %v6046 = vunpack.c.h.b16 %v5852
        %v6047 = vunpack.c.l.b16 %v5853
        %v6048 = vunpack.c.h.b16 %v5853
        %v6049 = vunpack.c.l.b16 %v5854
        %v6050 = vunpack.c.h.b16 %v5854
        %v6051 = vunpack.c.l.b16 %v5855
        %v6052 = vunpack.c.h.b16 %v5855
        %v6053 = vunpack.c.l.b16 %v5856
        %v6054 = vunpack.c.h.b16 %v5856
        %v6055 = vunpack.c.l.b16 %v5857
        %v6056 = vunpack.c.h.b16 %v5857
        %v6057 = vunpack.c.l.b16 %v5858
        %v6058 = vunpack.c.h.b16 %v5858
        %v6059 = vunpack.c.l.b16 %v5859
        %v6060 = vunpack.c.h.b16 %v5859
        %v6061 = vunpack.c.l.b16 %v5860
        %v6062 = vunpack.c.h.b16 %v5860
        %v6063 = vunpack.c.l.b16 %v5861
        %v6064 = vunpack.c.h.b16 %v5861
        %v6065 = vunpack.c.l.b16 %v5862
        %v6066 = vunpack.c.h.b16 %v5862
        %v6067 = vunpack.c.l.b16 %v5863
        %v6068 = vunpack.c.h.b16 %v5863
        %v6069 = vunpack.c.l.b16 %v5864
        %v6070 = vunpack.c.h.b16 %v5864
        %v6071 = vunpack.c.l.b16 %v5865
        %v6072 = vunpack.c.h.b16 %v5865
        %v6073 = vunpack.c.l.b16 %v5866
        %v6074 = vunpack.c.h.b16 %v5866
        %v6075 = vunpack.c.l.b16 %v5867
        %v6076 = vunpack.c.h.b16 %v5867
        %v6077 = vunpack.c.l.b16 %v5868
        %v6078 = vunpack.c.h.b16 %v5868
        %v6079 = vunpack.c.l.b16 %v5869
        %v6080 = vunpack.c.h.b16 %v5869
        %v6081 = vunpack.c.l.b16 %v5870
        %v6082 = vunpack.c.h.b16 %v5870
        %v6083 = vunpack.c.l.b16 %v5871
        %v6084 = vunpack.c.h.b16 %v5871
        %v6085 = vpack.c.b16 %v5961, %v5957
        %v6086 = vpack.c.b16 %v5962, %v5958
        %v6087 = vpack.c.b16 %v5963, %v5959
        %v6088 = vpack.c.b16 %v5964, %v5960
        %v6089 = vpack.c.b16 %v5969, %v5965
        %v6090 = vpack.c.b16 %v5970, %v5966
        %v6091 = vpack.c.b16 %v5971, %v5967
        %v6092 = vpack.c.b16 %v5972, %v5968
        %v6093 = vpack.c.b16 %v5977, %v5973
        %v6094 = vpack.c.b16 %v5978, %v5974
        %v6095 = vpack.c.b16 %v5979, %v5975
        %v6096 = vpack.c.b16 %v5980, %v5976
        %v6097 = vpack.c.b16 %v5985, %v5981
        %v6098 = vpack.c.b16 %v5986, %v5982
        %v6099 = vpack.c.b16 %v5987, %v5983
        %v6100 = vpack.c.b16 %v5988, %v5984
        %v6101 = vpack.c.b16 %v5993, %v5989
        %v6102 = vpack.c.b16 %v5994, %v5990
        %v6103 = vpack.c.b16 %v5995, %v5991
        %v6104 = vpack.c.b16 %v5996, %v5992
        %v6105 = vpack.c.b16 %v6001, %v5997
        %v6106 = vpack.c.b16 %v6002, %v5998
        %v6107 = vpack.c.b16 %v6003, %v5999
        %v6108 = vpack.c.b16 %v6004, %v6000
        %v6109 = vpack.c.b16 %v6009, %v6005
        %v6110 = vpack.c.b16 %v6010, %v6006
        %v6111 = vpack.c.b16 %v6011, %v6007
        %v6112 = vpack.c.b16 %v6012, %v6008
        %v6113 = vpack.c.b16 %v6017, %v6013
        %v6114 = vpack.c.b16 %v6018, %v6014
        %v6115 = vpack.c.b16 %v6019, %v6015
        %v6116 = vpack.c.b16 %v6020, %v6016
        %v6117 = vpack.c.b16 %v6025, %v6021
        %v6118 = vpack.c.b16 %v6026, %v6022
        %v6119 = vpack.c.b16 %v6027, %v6023
        %v6120 = vpack.c.b16 %v6028, %v6024
        %v6121 = vpack.c.b16 %v6033, %v6029
        %v6122 = vpack.c.b16 %v6034, %v6030
        %v6123 = vpack.c.b16 %v6035, %v6031
        %v6124 = vpack.c.b16 %v6036, %v6032
        %v6125 = vpack.c.b16 %v6041, %v6037
        %v6126 = vpack.c.b16 %v6042, %v6038
        %v6127 = vpack.c.b16 %v6043, %v6039
        %v6128 = vpack.c.b16 %v6044, %v6040
        %v6129 = vpack.c.b16 %v6049, %v6045
        %v6130 = vpack.c.b16 %v6050, %v6046
        %v6131 = vpack.c.b16 %v6051, %v6047
        %v6132 = vpack.c.b16 %v6052, %v6048
        %v6133 = vpack.c.b16 %v6057, %v6053
        %v6134 = vpack.c.b16 %v6058, %v6054
        %v6135 = vpack.c.b16 %v6059, %v6055
        %v6136 = vpack.c.b16 %v6060, %v6056
        %v6137 = vpack.c.b16 %v6065, %v6061
        %v6138 = vpack.c.b16 %v6066, %v6062
        %v6139 = vpack.c.b16 %v6067, %v6063
        %v6140 = vpack.c.b16 %v6068, %v6064
        %v6141 = vpack.c.b16 %v6073, %v6069
        %v6142 = vpack.c.b16 %v6074, %v6070
        %v6143 = vpack.c.b16 %v6075, %v6071
        %v6144 = vpack.c.b16 %v6076, %v6072
        %v6145 = vpack.c.b16 %v6081, %v6077
        %v6146 = vpack.c.b16 %v6082, %v6078
        %v6147 = vpack.c.b16 %v6083, %v6079
        %v6148 = vpack.c.b16 %v6084, %v6080
        %6213 = vmatprep.subr.bf16.mxu0 %v6114
        %6214 = vmatpush1.bf16.msra.mxu0 %v6113
        %6215 = vmatprep.subr.bf16.mxu0 %v6110
        %6216 = vmatpush1.bf16.msra.mxu0 %v6109
        %6217 = vmatprep.subr.bf16.mxu0 %v6106
        %6218 = vmatpush1.bf16.msra.mxu0 %v6105
        %6219 = vmatprep.subr.bf16.mxu0 %v6102
        %6220 = vmatpush1.bf16.msra.mxu0 %v6101
        %6221 = vmatprep.subr.bf16.mxu0 %v6098
        %6222 = vmatpush1.bf16.msra.mxu0 %v6097
        %6223 = vmatprep.subr.bf16.mxu0 %v6094
        %6224 = vmatpush1.bf16.msra.mxu0 %v6093
        %6225 = vmatprep.subr.bf16.mxu0 %v6090
        %6226 = vmatpush1.bf16.msra.mxu0 %v6089
        %6227 = vmatprep.subr.bf16.mxu0 %v6086
        %6228 = vmatpush1.bf16.msra.mxu0 %v6085
        %6229 = vmatprep.subr.bf16.mxu0 %v6146
        %6230 = vmatpush2.bf16.msra.mxu0 %v6145
        %6231 = vmatprep.subr.bf16.mxu0 %v6142
        %6232 = vmatpush2.bf16.msra.mxu0 %v6141
        %6233 = vmatprep.subr.bf16.mxu0 %v6138
        %6234 = vmatpush2.bf16.msra.mxu0 %v6137
        %6235 = vmatprep.subr.bf16.mxu0 %v6134
        %6236 = vmatpush2.bf16.msra.mxu0 %v6133
        %6237 = vmatprep.subr.bf16.mxu0 %v6130
        %6238 = vmatpush2.bf16.msra.mxu0 %v6129
        %6239 = vmatprep.subr.bf16.mxu0 %v6126
        %6240 = vmatpush2.bf16.msra.mxu0 %v6125
        %6241 = vmatprep.subr.bf16.mxu0 %v6122
        %6242 = vmatpush2.bf16.msra.mxu0 %v6121
        %6243 = vmatprep.subr.bf16.mxu0 %v6118
        %6244 = vmatpush2.bf16.msra.mxu0 %v6117
        %6245 = vmatprep.mubr.bf16.mxu0 %v5793
        %6246 = vmatmul.mubr.bf16.gmra.mxu0 %v5792
        %v6247 = vpop.f32.mrf.mxu0
        %v6248 = vadd.f32 %v5876, %v6247
        %v6249 = vpop.f32.mrf.mxu0
        %v6250 = vadd.f32 %v5880, %v6249
        %v6251 = vpop.f32.mrf.mxu0
        %v6252 = vadd.f32 %v5876, %v6251
        %v6253 = vpop.f32.mrf.mxu0
        %v6254 = vadd.f32 %v5880, %v6253
        %6255 = vmatprep.mubr.bf16.mxu0 %v5795
        %6256 = vmatmul.mubr.bf16.gmra.mxu0 %v5794
        %v6257 = vpop.f32.mrf.mxu0
        %v6258 = vadd.f32 %v5876, %v6257
        %v6259 = vpop.f32.mrf.mxu0
        %v6260 = vadd.f32 %v5880, %v6259
        %v6261 = vpop.f32.mrf.mxu0
        %v6262 = vadd.f32 %v5876, %v6261
        %v6263 = vpop.f32.mrf.mxu0
        %v6264 = vadd.f32 %v5880, %v6263
        %6265 = vmatprep.mubr.bf16.mxu0 %v5797
        %6266 = vmatmul.mubr.bf16.gmra.mxu0 %v5796
        %v6267 = vpop.f32.mrf.mxu0
        %v6268 = vadd.f32 %v5876, %v6267
        %v6269 = vpop.f32.mrf.mxu0
        %v6270 = vadd.f32 %v5880, %v6269
        %v6271 = vpop.f32.mrf.mxu0
        %v6272 = vadd.f32 %v5876, %v6271
        %v6273 = vpop.f32.mrf.mxu0
        %v6274 = vadd.f32 %v5880, %v6273
        %6275 = vmatprep.mubr.bf16.mxu0 %v5799
        %6276 = vmatmul.mubr.bf16.gmra.mxu0 %v5798
        %v6277 = vpop.f32.mrf.mxu0
        %v6278 = vadd.f32 %v5876, %v6277
        %v6279 = vpop.f32.mrf.mxu0
        %v6280 = vadd.f32 %v5880, %v6279
        %v6281 = vpop.f32.mrf.mxu0
        %v6282 = vadd.f32 %v5876, %v6281
        %v6283 = vpop.f32.mrf.mxu0
        %v6284 = vadd.f32 %v5880, %v6283
        %6285 = vmatprep.mubr.bf16.mxu0 %v5801
        %6286 = vmatmul.mubr.bf16.gmra.mxu0 %v5800
        %v6287 = vpop.f32.mrf.mxu0
        %v6288 = vadd.f32 %v5876, %v6287
        %v6289 = vpop.f32.mrf.mxu0
        %v6290 = vadd.f32 %v5880, %v6289
        %v6291 = vpop.f32.mrf.mxu0
        %v6292 = vadd.f32 %v5876, %v6291
        %v6293 = vpop.f32.mrf.mxu0
        %v6294 = vadd.f32 %v5880, %v6293
        %6295 = vmatprep.mubr.bf16.mxu0 %v5803
        %6296 = vmatmul.mubr.bf16.gmra.mxu0 %v5802
        %v6297 = vpop.f32.mrf.mxu0
        %v6298 = vadd.f32 %v5876, %v6297
        %v6299 = vpop.f32.mrf.mxu0
        %v6300 = vadd.f32 %v5880, %v6299
        %v6301 = vpop.f32.mrf.mxu0
        %v6302 = vadd.f32 %v5876, %v6301
        %v6303 = vpop.f32.mrf.mxu0
        %v6304 = vadd.f32 %v5880, %v6303
        %6305 = vmatprep.mubr.bf16.mxu0 %v5805
        %6306 = vmatmul.mubr.bf16.gmra.mxu0 %v5804
        %v6307 = vpop.f32.mrf.mxu0
        %v6308 = vadd.f32 %v5876, %v6307
        %v6309 = vpop.f32.mrf.mxu0
        %v6310 = vadd.f32 %v5880, %v6309
        %v6311 = vpop.f32.mrf.mxu0
        %v6312 = vadd.f32 %v5876, %v6311
        %v6313 = vpop.f32.mrf.mxu0
        %v6314 = vadd.f32 %v5880, %v6313
        %6315 = vmatprep.mubr.bf16.mxu0 %v5807
        %6316 = vmatmul.mubr.bf16.gmra.mxu0 %v5806
        %v6317 = vpop.f32.mrf.mxu0
        %v6318 = vadd.f32 %v5876, %v6317
        %v6319 = vpop.f32.mrf.mxu0
        %v6320 = vadd.f32 %v5880, %v6319
        %v6321 = vpop.f32.mrf.mxu0
        %v6322 = vadd.f32 %v5876, %v6321
        %v6323 = vpop.f32.mrf.mxu0
        %v6324 = vadd.f32 %v5880, %v6323
        %6325 = vdwg.mxu0
        %6326 = vmatprep.subr.bf16.mxu0 %v6116
        %6327 = vmatpush1.bf16.msra.mxu0 %v6115
        %6328 = vmatprep.subr.bf16.mxu0 %v6112
        %6329 = vmatpush1.bf16.msra.mxu0 %v6111
        %6330 = vmatprep.subr.bf16.mxu0 %v6108
        %6331 = vmatpush1.bf16.msra.mxu0 %v6107
        %6332 = vmatprep.subr.bf16.mxu0 %v6104
        %6333 = vmatpush1.bf16.msra.mxu0 %v6103
        %6334 = vmatprep.subr.bf16.mxu0 %v6100
        %6335 = vmatpush1.bf16.msra.mxu0 %v6099
        %6336 = vmatprep.subr.bf16.mxu0 %v6096
        %6337 = vmatpush1.bf16.msra.mxu0 %v6095
        %6338 = vmatprep.subr.bf16.mxu0 %v6092
        %6339 = vmatpush1.bf16.msra.mxu0 %v6091
        %6340 = vmatprep.subr.bf16.mxu0 %v6088
        %6341 = vmatpush1.bf16.msra.mxu0 %v6087
        %6342 = vmatprep.subr.bf16.mxu0 %v6148
        %6343 = vmatpush2.bf16.msra.mxu0 %v6147
        %6344 = vmatprep.subr.bf16.mxu0 %v6144
        %6345 = vmatpush2.bf16.msra.mxu0 %v6143
        %6346 = vmatprep.subr.bf16.mxu0 %v6140
        %6347 = vmatpush2.bf16.msra.mxu0 %v6139
        %6348 = vmatprep.subr.bf16.mxu0 %v6136
        %6349 = vmatpush2.bf16.msra.mxu0 %v6135
        %6350 = vmatprep.subr.bf16.mxu0 %v6132
        %6351 = vmatpush2.bf16.msra.mxu0 %v6131
        %6352 = vmatprep.subr.bf16.mxu0 %v6128
        %6353 = vmatpush2.bf16.msra.mxu0 %v6127
        %6354 = vmatprep.subr.bf16.mxu0 %v6124
        %6355 = vmatpush2.bf16.msra.mxu0 %v6123
        %6356 = vmatprep.subr.bf16.mxu0 %v6120
        %6357 = vmatpush2.bf16.msra.mxu0 %v6119
        %6358 = vmatprep.mubr.bf16.mxu0 %v5793
        %6359 = vmatmul.mubr.bf16.gmra.mxu0 %v5792
        %v6360 = vpop.f32.mrf.mxu0
        %v6361 = vadd.f32 %v5884, %v6360
        %v6362 = vpop.f32.mrf.mxu0
        %v6363 = vadd.f32 %v5888, %v6362
        %v6364 = vpop.f32.mrf.mxu0
        %v6365 = vadd.f32 %v5884, %v6364
        %v6366 = vpop.f32.mrf.mxu0
        %v6367 = vadd.f32 %v5888, %v6366
        %6368 = vmatprep.mubr.bf16.mxu0 %v5795
        %6369 = vmatmul.mubr.bf16.gmra.mxu0 %v5794
        %v6370 = vpop.f32.mrf.mxu0
        %v6371 = vadd.f32 %v5884, %v6370
        %v6372 = vpop.f32.mrf.mxu0
        %v6373 = vadd.f32 %v5888, %v6372
        %v6374 = vpop.f32.mrf.mxu0
        %v6375 = vadd.f32 %v5884, %v6374
        %v6376 = vpop.f32.mrf.mxu0
        %v6377 = vadd.f32 %v5888, %v6376
        %6378 = vmatprep.mubr.bf16.mxu0 %v5797
        %6379 = vmatmul.mubr.bf16.gmra.mxu0 %v5796
        %v6380 = vpop.f32.mrf.mxu0
        %v6381 = vadd.f32 %v5884, %v6380
        %v6382 = vpop.f32.mrf.mxu0
        %v6383 = vadd.f32 %v5888, %v6382
        %v6384 = vpop.f32.mrf.mxu0
        %v6385 = vadd.f32 %v5884, %v6384
        %v6386 = vpop.f32.mrf.mxu0
        %v6387 = vadd.f32 %v5888, %v6386
        %6388 = vmatprep.mubr.bf16.mxu0 %v5799
        %6389 = vmatmul.mubr.bf16.gmra.mxu0 %v5798
        %v6390 = vpop.f32.mrf.mxu0
        %v6391 = vadd.f32 %v5884, %v6390
        %v6392 = vpop.f32.mrf.mxu0
        %v6393 = vadd.f32 %v5888, %v6392
        %v6394 = vpop.f32.mrf.mxu0
        %v6395 = vadd.f32 %v5884, %v6394
        %v6396 = vpop.f32.mrf.mxu0
        %v6397 = vadd.f32 %v5888, %v6396
        %6398 = vmatprep.mubr.bf16.mxu0 %v5801
        %6399 = vmatmul.mubr.bf16.gmra.mxu0 %v5800
        %v6400 = vpop.f32.mrf.mxu0
        %v6401 = vadd.f32 %v5884, %v6400
        %v6402 = vpop.f32.mrf.mxu0
        %v6403 = vadd.f32 %v5888, %v6402
        %v6404 = vpop.f32.mrf.mxu0
        %v6405 = vadd.f32 %v5884, %v6404
        %v6406 = vpop.f32.mrf.mxu0
        %v6407 = vadd.f32 %v5888, %v6406
        %6408 = vmatprep.mubr.bf16.mxu0 %v5803
        %6409 = vmatmul.mubr.bf16.gmra.mxu0 %v5802
        %v6410 = vpop.f32.mrf.mxu0
        %v6411 = vadd.f32 %v5884, %v6410
        %v6412 = vpop.f32.mrf.mxu0
        %v6413 = vadd.f32 %v5888, %v6412
        %v6414 = vpop.f32.mrf.mxu0
        %v6415 = vadd.f32 %v5884, %v6414
        %v6416 = vpop.f32.mrf.mxu0
        %v6417 = vadd.f32 %v5888, %v6416
        %6418 = vmatprep.mubr.bf16.mxu0 %v5805
        %6419 = vmatmul.mubr.bf16.gmra.mxu0 %v5804
        %v6420 = vpop.f32.mrf.mxu0
        %v6421 = vadd.f32 %v5884, %v6420
        %v6422 = vpop.f32.mrf.mxu0
        %v6423 = vadd.f32 %v5888, %v6422
        %v6424 = vpop.f32.mrf.mxu0
        %v6425 = vadd.f32 %v5884, %v6424
        %v6426 = vpop.f32.mrf.mxu0
        %v6427 = vadd.f32 %v5888, %v6426
        %6428 = vmatprep.mubr.bf16.mxu0 %v5807
        %6429 = vmatmul.mubr.bf16.gmra.mxu0 %v5806
        %v6430 = vpop.f32.mrf.mxu0
        %v6431 = vadd.f32 %v5884, %v6430
        %v6432 = vpop.f32.mrf.mxu0
        %v6433 = vadd.f32 %v5888, %v6432
        %v6434 = vpop.f32.mrf.mxu0
        %v6435 = vadd.f32 %v5884, %v6434
        %v6436 = vpop.f32.mrf.mxu0
        %v6437 = vadd.f32 %v5888, %v6436
        %6438 = vdwg.mxu0
        %v6439 = vmax.f32 %v6248, 0.0
        %v6440 = vmax.f32 %v6250, 0.0
        %v6441 = vmax.f32 %v6361, 0.0
        %v6442 = vmax.f32 %v6363, 0.0
        %v6443 = vmax.f32 %v6252, 0.0
        %v6444 = vmax.f32 %v6254, 0.0
        %v6445 = vmax.f32 %v6365, 0.0
        %v6446 = vmax.f32 %v6367, 0.0
        %v6447 = vmax.f32 %v6258, 0.0
        %v6448 = vmax.f32 %v6260, 0.0
        %v6449 = vmax.f32 %v6371, 0.0
        %v6450 = vmax.f32 %v6373, 0.0
        %v6451 = vmax.f32 %v6262, 0.0
        %v6452 = vmax.f32 %v6264, 0.0
        %v6453 = vmax.f32 %v6375, 0.0
        %v6454 = vmax.f32 %v6377, 0.0
        %v6455 = vmax.f32 %v6268, 0.0
        %v6456 = vmax.f32 %v6270, 0.0
        %v6457 = vmax.f32 %v6381, 0.0
        %v6458 = vmax.f32 %v6383, 0.0
        %v6459 = vmax.f32 %v6272, 0.0
        %v6460 = vmax.f32 %v6274, 0.0
        %v6461 = vmax.f32 %v6385, 0.0
        %v6462 = vmax.f32 %v6387, 0.0
        %v6463 = vmax.f32 %v6278, 0.0
        %v6464 = vmax.f32 %v6280, 0.0
        %v6465 = vmax.f32 %v6391, 0.0
        %v6466 = vmax.f32 %v6393, 0.0
        %v6467 = vmax.f32 %v6282, 0.0
        %v6468 = vmax.f32 %v6284, 0.0
        %v6469 = vmax.f32 %v6395, 0.0
        %v6470 = vmax.f32 %v6397, 0.0
        %v6471 = vmax.f32 %v6288, 0.0
        %v6472 = vmax.f32 %v6290, 0.0
        %v6473 = vmax.f32 %v6401, 0.0
        %v6474 = vmax.f32 %v6403, 0.0
        %v6475 = vmax.f32 %v6292, 0.0
        %v6476 = vmax.f32 %v6294, 0.0
        %v6477 = vmax.f32 %v6405, 0.0
        %v6478 = vmax.f32 %v6407, 0.0
        %v6479 = vmax.f32 %v6298, 0.0
        %v6480 = vmax.f32 %v6300, 0.0
        %v6481 = vmax.f32 %v6411, 0.0
        %v6482 = vmax.f32 %v6413, 0.0
        %v6483 = vmax.f32 %v6302, 0.0
        %v6484 = vmax.f32 %v6304, 0.0
        %v6485 = vmax.f32 %v6415, 0.0
        %v6486 = vmax.f32 %v6417, 0.0
        %v6487 = vmax.f32 %v6308, 0.0
        %v6488 = vmax.f32 %v6310, 0.0
        %v6489 = vmax.f32 %v6421, 0.0
        %v6490 = vmax.f32 %v6423, 0.0
        %v6491 = vmax.f32 %v6312, 0.0
        %v6492 = vmax.f32 %v6314, 0.0
        %v6493 = vmax.f32 %v6425, 0.0
        %v6494 = vmax.f32 %v6427, 0.0
        %v6495 = vmax.f32 %v6318, 0.0
        %v6496 = vmax.f32 %v6320, 0.0
        %v6497 = vmax.f32 %v6431, 0.0
        %v6498 = vmax.f32 %v6433, 0.0
        %v6499 = vmax.f32 %v6322, 0.0
        %v6500 = vmax.f32 %v6324, 0.0
        %v6501 = vmax.f32 %v6435, 0.0
        %v6502 = vmax.f32 %v6437, 0.0
        %v6503 = vpack.c.bf16 %v6443, %v6439
        %v6504 = vpack.c.bf16 %v6444, %v6440
        %v6505 = vpack.c.bf16 %v6445, %v6441
        %v6506 = vpack.c.bf16 %v6446, %v6442
        %v6507 = vpack.c.bf16 %v6451, %v6447
        %v6508 = vpack.c.bf16 %v6452, %v6448
        %v6509 = vpack.c.bf16 %v6453, %v6449
        %v6510 = vpack.c.bf16 %v6454, %v6450
        %v6511 = vpack.c.bf16 %v6459, %v6455
        %v6512 = vpack.c.bf16 %v6460, %v6456
        %v6513 = vpack.c.bf16 %v6461, %v6457
        %v6514 = vpack.c.bf16 %v6462, %v6458
        %v6515 = vpack.c.bf16 %v6467, %v6463
        %v6516 = vpack.c.bf16 %v6468, %v6464
        %v6517 = vpack.c.bf16 %v6469, %v6465
        %v6518 = vpack.c.bf16 %v6470, %v6466
        %v6519 = vpack.c.bf16 %v6475, %v6471
        %v6520 = vpack.c.bf16 %v6476, %v6472
        %v6521 = vpack.c.bf16 %v6477, %v6473
        %v6522 = vpack.c.bf16 %v6478, %v6474
        %v6523 = vpack.c.bf16 %v6483, %v6479
        %v6524 = vpack.c.bf16 %v6484, %v6480
        %v6525 = vpack.c.bf16 %v6485, %v6481
        %v6526 = vpack.c.bf16 %v6486, %v6482
        %v6527 = vpack.c.bf16 %v6491, %v6487
        %v6528 = vpack.c.bf16 %v6492, %v6488
        %v6529 = vpack.c.bf16 %v6493, %v6489
        %v6530 = vpack.c.bf16 %v6494, %v6490
        %v6531 = vpack.c.bf16 %v6499, %v6495
        %v6532 = vpack.c.bf16 %v6500, %v6496
        %v6533 = vpack.c.bf16 %v6501, %v6497
        %v6534 = vpack.c.bf16 %v6502, %v6498
        %v6535 = vld [vmem:[%s354] sm:$0xff]
        %v6536 = vld [vmem:[%s354 + $0x8] sm:$0xff]
        %v6537 = vld [vmem:[%s354 + $0x10] sm:$0xff]
        %v6538 = vld [vmem:[%s354 + $0x18] sm:$0xff]
        %v6539 = vld [vmem:[%s354 + $0x20] sm:$0xff]
        %v6540 = vld [vmem:[%s354 + $0x28] sm:$0xff]
        %v6541 = vld [vmem:[%s354 + $0x30] sm:$0xff]
        %v6542 = vld [vmem:[%s354 + $0x38] sm:$0xff]
        %v6543 = vld [vmem:[%s354 + $0x40] sm:$0xff]
        %v6544 = vld [vmem:[%s354 + $0x48] sm:$0xff]
        %v6545 = vld [vmem:[%s354 + $0x50] sm:$0xff]
        %v6546 = vld [vmem:[%s354 + $0x58] sm:$0xff]
        %v6547 = vld [vmem:[%s354 + $0x60] sm:$0xff]
        %v6548 = vld [vmem:[%s354 + $0x68] sm:$0xff]
        %v6549 = vld [vmem:[%s354 + $0x70] sm:$0xff]
        %v6550 = vld [vmem:[%s354 + $0x78] sm:$0xff]
        %v6551 = vld [vmem:[%s354 + $0x80] sm:$0xff]
        %v6552 = vld [vmem:[%s354 + $0x88] sm:$0xff]
        %v6553 = vld [vmem:[%s354 + $0x90] sm:$0xff]
        %v6554 = vld [vmem:[%s354 + $0x98] sm:$0xff]
        %v6555 = vld [vmem:[%s354 + $0xa0] sm:$0xff]
        %v6556 = vld [vmem:[%s354 + $0xa8] sm:$0xff]
        %v6557 = vld [vmem:[%s354 + $0xb0] sm:$0xff]
        %v6558 = vld [vmem:[%s354 + $0xb8] sm:$0xff]
        %v6559 = vld [vmem:[%s354 + $0xc0] sm:$0xff]
        %v6560 = vld [vmem:[%s354 + $0xc8] sm:$0xff]
        %v6561 = vld [vmem:[%s354 + $0xd0] sm:$0xff]
        %v6562 = vld [vmem:[%s354 + $0xd8] sm:$0xff]
        %v6563 = vld [vmem:[%s354 + $0xe0] sm:$0xff]
        %v6564 = vld [vmem:[%s354 + $0xe8] sm:$0xff]
        %v6565 = vld [vmem:[%s354 + $0xf0] sm:$0xff]
        %v6566 = vld [vmem:[%s354 + $0xf8] sm:$0xff]
        %v6567 = vld [vmem:[%s354 + $0x100] sm:$0xff]
        %v6568 = vld [vmem:[%s354 + $0x108] sm:$0xff]
        %v6569 = vld [vmem:[%s354 + $0x110] sm:$0xff]
        %v6570 = vld [vmem:[%s354 + $0x118] sm:$0xff]
        %v6571 = vld [vmem:[%s354 + $0x120] sm:$0xff]
        %v6572 = vld [vmem:[%s354 + $0x128] sm:$0xff]
        %v6573 = vld [vmem:[%s354 + $0x130] sm:$0xff]
        %v6574 = vld [vmem:[%s354 + $0x138] sm:$0xff]
        %v6575 = vld [vmem:[%s354 + $0x140] sm:$0xff]
        %v6576 = vld [vmem:[%s354 + $0x148] sm:$0xff]
        %v6577 = vld [vmem:[%s354 + $0x150] sm:$0xff]
        %v6578 = vld [vmem:[%s354 + $0x158] sm:$0xff]
        %v6579 = vld [vmem:[%s354 + $0x160] sm:$0xff]
        %v6580 = vld [vmem:[%s354 + $0x168] sm:$0xff]
        %v6581 = vld [vmem:[%s354 + $0x170] sm:$0xff]
        %v6582 = vld [vmem:[%s354 + $0x178] sm:$0xff]
        %v6583 = vld [vmem:[%s354 + $0x180] sm:$0xff]
        %v6584 = vld [vmem:[%s354 + $0x188] sm:$0xff]
        %v6585 = vld [vmem:[%s354 + $0x190] sm:$0xff]
        %v6586 = vld [vmem:[%s354 + $0x198] sm:$0xff]
        %v6587 = vld [vmem:[%s354 + $0x1a0] sm:$0xff]
        %v6588 = vld [vmem:[%s354 + $0x1a8] sm:$0xff]
        %v6589 = vld [vmem:[%s354 + $0x1b0] sm:$0xff]
        %v6590 = vld [vmem:[%s354 + $0x1b8] sm:$0xff]
        %v6591 = vld [vmem:[%s354 + $0x1c0] sm:$0xff]
        %v6592 = vld [vmem:[%s354 + $0x1c8] sm:$0xff]
        %v6593 = vld [vmem:[%s354 + $0x1d0] sm:$0xff]
        %v6594 = vld [vmem:[%s354 + $0x1d8] sm:$0xff]
        %v6595 = vld [vmem:[%s354 + $0x1e0] sm:$0xff]
        %v6596 = vld [vmem:[%s354 + $0x1e8] sm:$0xff]
        %v6597 = vld [vmem:[%s354 + $0x1f0] sm:$0xff]
        %v6598 = vld [vmem:[%s354 + $0x1f8] sm:$0xff]
        %v6600 = vlaneseq
        %v6601 = vshrl.u32 %v6600, 7
        %v6602 = vsub.s32 0, %v6601
        %v6603 = vrot.slane %v465, %v6602
        %v6604 = vlaneseq
        %v6605 = vshrl.u32 %v6604, 7
        %v6606 = vsub.s32 1, %v6605
        %v6607 = vrot.slane %v465, %v6606
        %v6674 = vunpack.c.l.b16 %v6535
        %v6675 = vunpack.c.h.b16 %v6535
        %v6676 = vunpack.c.l.b16 %v6536
        %v6677 = vunpack.c.h.b16 %v6536
        %v6678 = vunpack.c.l.b16 %v6537
        %v6679 = vunpack.c.h.b16 %v6537
        %v6680 = vunpack.c.l.b16 %v6538
        %v6681 = vunpack.c.h.b16 %v6538
        %v6682 = vunpack.c.l.b16 %v6539
        %v6683 = vunpack.c.h.b16 %v6539
        %v6684 = vunpack.c.l.b16 %v6540
        %v6685 = vunpack.c.h.b16 %v6540
        %v6686 = vunpack.c.l.b16 %v6541
        %v6687 = vunpack.c.h.b16 %v6541
        %v6688 = vunpack.c.l.b16 %v6542
        %v6689 = vunpack.c.h.b16 %v6542
        %v6690 = vunpack.c.l.b16 %v6543
        %v6691 = vunpack.c.h.b16 %v6543
        %v6692 = vunpack.c.l.b16 %v6544
        %v6693 = vunpack.c.h.b16 %v6544
        %v6694 = vunpack.c.l.b16 %v6545
        %v6695 = vunpack.c.h.b16 %v6545
        %v6696 = vunpack.c.l.b16 %v6546
        %v6697 = vunpack.c.h.b16 %v6546
        %v6698 = vunpack.c.l.b16 %v6547
        %v6699 = vunpack.c.h.b16 %v6547
        %v6700 = vunpack.c.l.b16 %v6548
        %v6701 = vunpack.c.h.b16 %v6548
        %v6702 = vunpack.c.l.b16 %v6549
        %v6703 = vunpack.c.h.b16 %v6549
        %v6704 = vunpack.c.l.b16 %v6550
        %v6705 = vunpack.c.h.b16 %v6550
        %v6706 = vunpack.c.l.b16 %v6551
        %v6707 = vunpack.c.h.b16 %v6551
        %v6708 = vunpack.c.l.b16 %v6552
        %v6709 = vunpack.c.h.b16 %v6552
        %v6710 = vunpack.c.l.b16 %v6553
        %v6711 = vunpack.c.h.b16 %v6553
        %v6712 = vunpack.c.l.b16 %v6554
        %v6713 = vunpack.c.h.b16 %v6554
        %v6714 = vunpack.c.l.b16 %v6555
        %v6715 = vunpack.c.h.b16 %v6555
        %v6716 = vunpack.c.l.b16 %v6556
        %v6717 = vunpack.c.h.b16 %v6556
        %v6718 = vunpack.c.l.b16 %v6557
        %v6719 = vunpack.c.h.b16 %v6557
        %v6720 = vunpack.c.l.b16 %v6558
        %v6721 = vunpack.c.h.b16 %v6558
        %v6722 = vunpack.c.l.b16 %v6559
        %v6723 = vunpack.c.h.b16 %v6559
        %v6724 = vunpack.c.l.b16 %v6560
        %v6725 = vunpack.c.h.b16 %v6560
        %v6726 = vunpack.c.l.b16 %v6561
        %v6727 = vunpack.c.h.b16 %v6561
        %v6728 = vunpack.c.l.b16 %v6562
        %v6729 = vunpack.c.h.b16 %v6562
        %v6730 = vunpack.c.l.b16 %v6563
        %v6731 = vunpack.c.h.b16 %v6563
        %v6732 = vunpack.c.l.b16 %v6564
        %v6733 = vunpack.c.h.b16 %v6564
        %v6734 = vunpack.c.l.b16 %v6565
        %v6735 = vunpack.c.h.b16 %v6565
        %v6736 = vunpack.c.l.b16 %v6566
        %v6737 = vunpack.c.h.b16 %v6566
        %v6738 = vunpack.c.l.b16 %v6567
        %v6739 = vunpack.c.h.b16 %v6567
        %v6740 = vunpack.c.l.b16 %v6568
        %v6741 = vunpack.c.h.b16 %v6568
        %v6742 = vunpack.c.l.b16 %v6569
        %v6743 = vunpack.c.h.b16 %v6569
        %v6744 = vunpack.c.l.b16 %v6570
        %v6745 = vunpack.c.h.b16 %v6570
        %v6746 = vunpack.c.l.b16 %v6571
        %v6747 = vunpack.c.h.b16 %v6571
        %v6748 = vunpack.c.l.b16 %v6572
        %v6749 = vunpack.c.h.b16 %v6572
        %v6750 = vunpack.c.l.b16 %v6573
        %v6751 = vunpack.c.h.b16 %v6573
        %v6752 = vunpack.c.l.b16 %v6574
        %v6753 = vunpack.c.h.b16 %v6574
        %v6754 = vunpack.c.l.b16 %v6575
        %v6755 = vunpack.c.h.b16 %v6575
        %v6756 = vunpack.c.l.b16 %v6576
        %v6757 = vunpack.c.h.b16 %v6576
        %v6758 = vunpack.c.l.b16 %v6577
        %v6759 = vunpack.c.h.b16 %v6577
        %v6760 = vunpack.c.l.b16 %v6578
        %v6761 = vunpack.c.h.b16 %v6578
        %v6762 = vunpack.c.l.b16 %v6579
        %v6763 = vunpack.c.h.b16 %v6579
        %v6764 = vunpack.c.l.b16 %v6580
        %v6765 = vunpack.c.h.b16 %v6580
        %v6766 = vunpack.c.l.b16 %v6581
        %v6767 = vunpack.c.h.b16 %v6581
        %v6768 = vunpack.c.l.b16 %v6582
        %v6769 = vunpack.c.h.b16 %v6582
        %v6770 = vunpack.c.l.b16 %v6583
        %v6771 = vunpack.c.h.b16 %v6583
        %v6772 = vunpack.c.l.b16 %v6584
        %v6773 = vunpack.c.h.b16 %v6584
        %v6774 = vunpack.c.l.b16 %v6585
        %v6775 = vunpack.c.h.b16 %v6585
        %v6776 = vunpack.c.l.b16 %v6586
        %v6777 = vunpack.c.h.b16 %v6586
        %v6778 = vunpack.c.l.b16 %v6587
        %v6779 = vunpack.c.h.b16 %v6587
        %v6780 = vunpack.c.l.b16 %v6588
        %v6781 = vunpack.c.h.b16 %v6588
        %v6782 = vunpack.c.l.b16 %v6589
        %v6783 = vunpack.c.h.b16 %v6589
        %v6784 = vunpack.c.l.b16 %v6590
        %v6785 = vunpack.c.h.b16 %v6590
        %v6786 = vunpack.c.l.b16 %v6591
        %v6787 = vunpack.c.h.b16 %v6591
        %v6788 = vunpack.c.l.b16 %v6592
        %v6789 = vunpack.c.h.b16 %v6592
        %v6790 = vunpack.c.l.b16 %v6593
        %v6791 = vunpack.c.h.b16 %v6593
        %v6792 = vunpack.c.l.b16 %v6594
        %v6793 = vunpack.c.h.b16 %v6594
        %v6794 = vunpack.c.l.b16 %v6595
        %v6795 = vunpack.c.h.b16 %v6595
        %v6796 = vunpack.c.l.b16 %v6596
        %v6797 = vunpack.c.h.b16 %v6596
        %v6798 = vunpack.c.l.b16 %v6597
        %v6799 = vunpack.c.h.b16 %v6597
        %v6800 = vunpack.c.l.b16 %v6598
        %v6801 = vunpack.c.h.b16 %v6598
        %v6802 = vpack.c.b16 %v6676, %v6674
        %v6803 = vpack.c.b16 %v6677, %v6675
        %v6804 = vpack.c.b16 %v6680, %v6678
        %v6805 = vpack.c.b16 %v6681, %v6679
        %v6806 = vpack.c.b16 %v6684, %v6682
        %v6807 = vpack.c.b16 %v6685, %v6683
        %v6808 = vpack.c.b16 %v6688, %v6686
        %v6809 = vpack.c.b16 %v6689, %v6687
        %v6810 = vpack.c.b16 %v6692, %v6690
        %v6811 = vpack.c.b16 %v6693, %v6691
        %v6812 = vpack.c.b16 %v6696, %v6694
        %v6813 = vpack.c.b16 %v6697, %v6695
        %v6814 = vpack.c.b16 %v6700, %v6698
        %v6815 = vpack.c.b16 %v6701, %v6699
        %v6816 = vpack.c.b16 %v6704, %v6702
        %v6817 = vpack.c.b16 %v6705, %v6703
        %v6818 = vpack.c.b16 %v6708, %v6706
        %v6819 = vpack.c.b16 %v6709, %v6707
        %v6820 = vpack.c.b16 %v6712, %v6710
        %v6821 = vpack.c.b16 %v6713, %v6711
        %v6822 = vpack.c.b16 %v6716, %v6714
        %v6823 = vpack.c.b16 %v6717, %v6715
        %v6824 = vpack.c.b16 %v6720, %v6718
        %v6825 = vpack.c.b16 %v6721, %v6719
        %v6826 = vpack.c.b16 %v6724, %v6722
        %v6827 = vpack.c.b16 %v6725, %v6723
        %v6828 = vpack.c.b16 %v6728, %v6726
        %v6829 = vpack.c.b16 %v6729, %v6727
        %v6830 = vpack.c.b16 %v6732, %v6730
        %v6831 = vpack.c.b16 %v6733, %v6731
        %v6832 = vpack.c.b16 %v6736, %v6734
        %v6833 = vpack.c.b16 %v6737, %v6735
        %v6834 = vpack.c.b16 %v6740, %v6738
        %v6835 = vpack.c.b16 %v6741, %v6739
        %v6836 = vpack.c.b16 %v6744, %v6742
        %v6837 = vpack.c.b16 %v6745, %v6743
        %v6838 = vpack.c.b16 %v6748, %v6746
        %v6839 = vpack.c.b16 %v6749, %v6747
        %v6840 = vpack.c.b16 %v6752, %v6750
        %v6841 = vpack.c.b16 %v6753, %v6751
        %v6842 = vpack.c.b16 %v6756, %v6754
        %v6843 = vpack.c.b16 %v6757, %v6755
        %v6844 = vpack.c.b16 %v6760, %v6758
        %v6845 = vpack.c.b16 %v6761, %v6759
        %v6846 = vpack.c.b16 %v6764, %v6762
        %v6847 = vpack.c.b16 %v6765, %v6763
        %v6848 = vpack.c.b16 %v6768, %v6766
        %v6849 = vpack.c.b16 %v6769, %v6767
        %v6850 = vpack.c.b16 %v6772, %v6770
        %v6851 = vpack.c.b16 %v6773, %v6771
        %v6852 = vpack.c.b16 %v6776, %v6774
        %v6853 = vpack.c.b16 %v6777, %v6775
        %v6854 = vpack.c.b16 %v6780, %v6778
        %v6855 = vpack.c.b16 %v6781, %v6779
        %v6856 = vpack.c.b16 %v6784, %v6782
        %v6857 = vpack.c.b16 %v6785, %v6783
        %v6858 = vpack.c.b16 %v6788, %v6786
        %v6859 = vpack.c.b16 %v6789, %v6787
        %v6860 = vpack.c.b16 %v6792, %v6790
        %v6861 = vpack.c.b16 %v6793, %v6791
        %v6862 = vpack.c.b16 %v6796, %v6794
        %v6863 = vpack.c.b16 %v6797, %v6795
        %v6864 = vpack.c.b16 %v6800, %v6798
        %v6865 = vpack.c.b16 %v6801, %v6799
        %6930 = vmatprep.subr.bf16.mxu0 %v6817
        %6931 = vmatpush1.bf16.msra.mxu0 %v6816
        %6932 = vmatprep.subr.bf16.mxu0 %v6815
        %6933 = vmatpush1.bf16.msra.mxu0 %v6814
        %6934 = vmatprep.subr.bf16.mxu0 %v6813
        %6935 = vmatpush1.bf16.msra.mxu0 %v6812
        %6936 = vmatprep.subr.bf16.mxu0 %v6811
        %6937 = vmatpush1.bf16.msra.mxu0 %v6810
        %6938 = vmatprep.subr.bf16.mxu0 %v6809
        %6939 = vmatpush1.bf16.msra.mxu0 %v6808
        %6940 = vmatprep.subr.bf16.mxu0 %v6807
        %6941 = vmatpush1.bf16.msra.mxu0 %v6806
        %6942 = vmatprep.subr.bf16.mxu0 %v6805
        %6943 = vmatpush1.bf16.msra.mxu0 %v6804
        %6944 = vmatprep.subr.bf16.mxu0 %v6803
        %6945 = vmatpush1.bf16.msra.mxu0 %v6802
        %6946 = vmatprep.subr.bf16.mxu0 %v6833
        %6947 = vmatpush2.bf16.msra.mxu0 %v6832
        %6948 = vmatprep.subr.bf16.mxu0 %v6831
        %6949 = vmatpush2.bf16.msra.mxu0 %v6830
        %6950 = vmatprep.subr.bf16.mxu0 %v6829
        %6951 = vmatpush2.bf16.msra.mxu0 %v6828
        %6952 = vmatprep.subr.bf16.mxu0 %v6827
        %6953 = vmatpush2.bf16.msra.mxu0 %v6826
        %6954 = vmatprep.subr.bf16.mxu0 %v6825
        %6955 = vmatpush2.bf16.msra.mxu0 %v6824
        %6956 = vmatprep.subr.bf16.mxu0 %v6823
        %6957 = vmatpush2.bf16.msra.mxu0 %v6822
        %6958 = vmatprep.subr.bf16.mxu0 %v6821
        %6959 = vmatpush2.bf16.msra.mxu0 %v6820
        %6960 = vmatprep.subr.bf16.mxu0 %v6819
        %6961 = vmatpush2.bf16.msra.mxu0 %v6818
        %6962 = vmatprep.mubr.bf16.mxu0 %v6504
        %6963 = vmatmul.mubr.bf16.gmra.mxu0 %v6503
        %v6964 = vpop.f32.mrf.mxu0
        %v6965 = vadd.f32 %v6603, %v6964
        %v6966 = vpop.f32.mrf.mxu0
        %v6967 = vadd.f32 %v6607, %v6966
        %v6968 = vpop.f32.mrf.mxu0
        %v6969 = vadd.f32 %v6603, %v6968
        %v6970 = vpop.f32.mrf.mxu0
        %v6971 = vadd.f32 %v6607, %v6970
        %6972 = vmatprep.mubr.bf16.mxu0 %v6508
        %6973 = vmatmul.mubr.bf16.gmra.mxu0 %v6507
        %v6974 = vpop.f32.mrf.mxu0
        %v6975 = vadd.f32 %v6603, %v6974
        %v6976 = vpop.f32.mrf.mxu0
        %v6977 = vadd.f32 %v6607, %v6976
        %v6978 = vpop.f32.mrf.mxu0
        %v6979 = vadd.f32 %v6603, %v6978
        %v6980 = vpop.f32.mrf.mxu0
        %v6981 = vadd.f32 %v6607, %v6980
        %6982 = vmatprep.mubr.bf16.mxu0 %v6512
        %6983 = vmatmul.mubr.bf16.gmra.mxu0 %v6511
        %v6984 = vpop.f32.mrf.mxu0
        %v6985 = vadd.f32 %v6603, %v6984
        %v6986 = vpop.f32.mrf.mxu0
        %v6987 = vadd.f32 %v6607, %v6986
        %v6988 = vpop.f32.mrf.mxu0
        %v6989 = vadd.f32 %v6603, %v6988
        %v6990 = vpop.f32.mrf.mxu0
        %v6991 = vadd.f32 %v6607, %v6990
        %6992 = vmatprep.mubr.bf16.mxu0 %v6516
        %6993 = vmatmul.mubr.bf16.gmra.mxu0 %v6515
        %v6994 = vpop.f32.mrf.mxu0
        %v6995 = vadd.f32 %v6603, %v6994
        %v6996 = vpop.f32.mrf.mxu0
        %v6997 = vadd.f32 %v6607, %v6996
        %v6998 = vpop.f32.mrf.mxu0
        %v6999 = vadd.f32 %v6603, %v6998
        %v7000 = vpop.f32.mrf.mxu0
        %v7001 = vadd.f32 %v6607, %v7000
        %7002 = vmatprep.mubr.bf16.mxu0 %v6520
        %7003 = vmatmul.mubr.bf16.gmra.mxu0 %v6519
        %v7004 = vpop.f32.mrf.mxu0
        %v7005 = vadd.f32 %v6603, %v7004
        %v7006 = vpop.f32.mrf.mxu0
        %v7007 = vadd.f32 %v6607, %v7006
        %v7008 = vpop.f32.mrf.mxu0
        %v7009 = vadd.f32 %v6603, %v7008
        %v7010 = vpop.f32.mrf.mxu0
        %v7011 = vadd.f32 %v6607, %v7010
        %7012 = vmatprep.mubr.bf16.mxu0 %v6524
        %7013 = vmatmul.mubr.bf16.gmra.mxu0 %v6523
        %v7014 = vpop.f32.mrf.mxu0
        %v7015 = vadd.f32 %v6603, %v7014
        %v7016 = vpop.f32.mrf.mxu0
        %v7017 = vadd.f32 %v6607, %v7016
        %v7018 = vpop.f32.mrf.mxu0
        %v7019 = vadd.f32 %v6603, %v7018
        %v7020 = vpop.f32.mrf.mxu0
        %v7021 = vadd.f32 %v6607, %v7020
        %7022 = vmatprep.mubr.bf16.mxu0 %v6528
        %7023 = vmatmul.mubr.bf16.gmra.mxu0 %v6527
        %v7024 = vpop.f32.mrf.mxu0
        %v7025 = vadd.f32 %v6603, %v7024
        %v7026 = vpop.f32.mrf.mxu0
        %v7027 = vadd.f32 %v6607, %v7026
        %v7028 = vpop.f32.mrf.mxu0
        %v7029 = vadd.f32 %v6603, %v7028
        %v7030 = vpop.f32.mrf.mxu0
        %v7031 = vadd.f32 %v6607, %v7030
        %7032 = vmatprep.mubr.bf16.mxu0 %v6532
        %7033 = vmatmul.mubr.bf16.gmra.mxu0 %v6531
        %v7034 = vpop.f32.mrf.mxu0
        %v7035 = vadd.f32 %v6603, %v7034
        %v7036 = vpop.f32.mrf.mxu0
        %v7037 = vadd.f32 %v6607, %v7036
        %v7038 = vpop.f32.mrf.mxu0
        %v7039 = vadd.f32 %v6603, %v7038
        %v7040 = vpop.f32.mrf.mxu0
        %v7041 = vadd.f32 %v6607, %v7040
        %7042 = vdwg.mxu0
        %7043 = vmatprep.subr.bf16.mxu0 %v6849
        %7044 = vmatpush1.bf16.msra.mxu0 %v6848
        %7045 = vmatprep.subr.bf16.mxu0 %v6847
        %7046 = vmatpush1.bf16.msra.mxu0 %v6846
        %7047 = vmatprep.subr.bf16.mxu0 %v6845
        %7048 = vmatpush1.bf16.msra.mxu0 %v6844
        %7049 = vmatprep.subr.bf16.mxu0 %v6843
        %7050 = vmatpush1.bf16.msra.mxu0 %v6842
        %7051 = vmatprep.subr.bf16.mxu0 %v6841
        %7052 = vmatpush1.bf16.msra.mxu0 %v6840
        %7053 = vmatprep.subr.bf16.mxu0 %v6839
        %7054 = vmatpush1.bf16.msra.mxu0 %v6838
        %7055 = vmatprep.subr.bf16.mxu0 %v6837
        %7056 = vmatpush1.bf16.msra.mxu0 %v6836
        %7057 = vmatprep.subr.bf16.mxu0 %v6835
        %7058 = vmatpush1.bf16.msra.mxu0 %v6834
        %7059 = vmatprep.subr.bf16.mxu0 %v6865
        %7060 = vmatpush2.bf16.msra.mxu0 %v6864
        %7061 = vmatprep.subr.bf16.mxu0 %v6863
        %7062 = vmatpush2.bf16.msra.mxu0 %v6862
        %7063 = vmatprep.subr.bf16.mxu0 %v6861
        %7064 = vmatpush2.bf16.msra.mxu0 %v6860
        %7065 = vmatprep.subr.bf16.mxu0 %v6859
        %7066 = vmatpush2.bf16.msra.mxu0 %v6858
        %7067 = vmatprep.subr.bf16.mxu0 %v6857
        %7068 = vmatpush2.bf16.msra.mxu0 %v6856
        %7069 = vmatprep.subr.bf16.mxu0 %v6855
        %7070 = vmatpush2.bf16.msra.mxu0 %v6854
        %7071 = vmatprep.subr.bf16.mxu0 %v6853
        %7072 = vmatpush2.bf16.msra.mxu0 %v6852
        %7073 = vmatprep.subr.bf16.mxu0 %v6851
        %7074 = vmatpush2.bf16.msra.mxu0 %v6850
        %7075 = vmatprep.mubr.bf16.mxu0 %v6506
        %7076 = vmatmul.mubr.bf16.gmra.mxu0 %v6505
        %v7077 = vpop.f32.mrf.mxu0
        %v7078 = vadd.f32 %v6965, %v7077
        %v7079 = vpop.f32.mrf.mxu0
        %v7080 = vadd.f32 %v6967, %v7079
        %v7081 = vpop.f32.mrf.mxu0
        %v7082 = vadd.f32 %v6969, %v7081
        %v7083 = vpop.f32.mrf.mxu0
        %v7084 = vadd.f32 %v6971, %v7083
        %7085 = vmatprep.mubr.bf16.mxu0 %v6510
        %7086 = vmatmul.mubr.bf16.gmra.mxu0 %v6509
        %v7087 = vpop.f32.mrf.mxu0
        %v7088 = vadd.f32 %v6975, %v7087
        %v7089 = vpop.f32.mrf.mxu0
        %v7090 = vadd.f32 %v6977, %v7089
        %v7091 = vpop.f32.mrf.mxu0
        %v7092 = vadd.f32 %v6979, %v7091
        %v7093 = vpop.f32.mrf.mxu0
        %v7094 = vadd.f32 %v6981, %v7093
        %7095 = vmatprep.mubr.bf16.mxu0 %v6514
        %7096 = vmatmul.mubr.bf16.gmra.mxu0 %v6513
        %v7097 = vpop.f32.mrf.mxu0
        %v7098 = vadd.f32 %v6985, %v7097
        %v7099 = vpop.f32.mrf.mxu0
        %v7100 = vadd.f32 %v6987, %v7099
        %v7101 = vpop.f32.mrf.mxu0
        %v7102 = vadd.f32 %v6989, %v7101
        %v7103 = vpop.f32.mrf.mxu0
        %v7104 = vadd.f32 %v6991, %v7103
        %7105 = vmatprep.mubr.bf16.mxu0 %v6518
        %7106 = vmatmul.mubr.bf16.gmra.mxu0 %v6517
        %v7107 = vpop.f32.mrf.mxu0
        %v7108 = vadd.f32 %v6995, %v7107
        %v7109 = vpop.f32.mrf.mxu0
        %v7110 = vadd.f32 %v6997, %v7109
        %v7111 = vpop.f32.mrf.mxu0
        %v7112 = vadd.f32 %v6999, %v7111
        %v7113 = vpop.f32.mrf.mxu0
        %v7114 = vadd.f32 %v7001, %v7113
        %7115 = vmatprep.mubr.bf16.mxu0 %v6522
        %7116 = vmatmul.mubr.bf16.gmra.mxu0 %v6521
        %v7117 = vpop.f32.mrf.mxu0
        %v7118 = vadd.f32 %v7005, %v7117
        %v7119 = vpop.f32.mrf.mxu0
        %v7120 = vadd.f32 %v7007, %v7119
        %v7121 = vpop.f32.mrf.mxu0
        %v7122 = vadd.f32 %v7009, %v7121
        %v7123 = vpop.f32.mrf.mxu0
        %v7124 = vadd.f32 %v7011, %v7123
        %7125 = vmatprep.mubr.bf16.mxu0 %v6526
        %7126 = vmatmul.mubr.bf16.gmra.mxu0 %v6525
        %v7127 = vpop.f32.mrf.mxu0
        %v7128 = vadd.f32 %v7015, %v7127
        %v7129 = vpop.f32.mrf.mxu0
        %v7130 = vadd.f32 %v7017, %v7129
        %v7131 = vpop.f32.mrf.mxu0
        %v7132 = vadd.f32 %v7019, %v7131
        %v7133 = vpop.f32.mrf.mxu0
        %v7134 = vadd.f32 %v7021, %v7133
        %7135 = vmatprep.mubr.bf16.mxu0 %v6530
        %7136 = vmatmul.mubr.bf16.gmra.mxu0 %v6529
        %v7137 = vpop.f32.mrf.mxu0
        %v7138 = vadd.f32 %v7025, %v7137
        %v7139 = vpop.f32.mrf.mxu0
        %v7140 = vadd.f32 %v7027, %v7139
        %v7141 = vpop.f32.mrf.mxu0
        %v7142 = vadd.f32 %v7029, %v7141
        %v7143 = vpop.f32.mrf.mxu0
        %v7144 = vadd.f32 %v7031, %v7143
        %7145 = vmatprep.mubr.bf16.mxu0 %v6534
        %7146 = vmatmul.mubr.bf16.gmra.mxu0 %v6533
        %v7147 = vpop.f32.mrf.mxu0
        %v7148 = vadd.f32 %v7035, %v7147
        %v7149 = vpop.f32.mrf.mxu0
        %v7150 = vadd.f32 %v7037, %v7149
        %v7151 = vpop.f32.mrf.mxu0
        %v7152 = vadd.f32 %v7039, %v7151
        %v7153 = vpop.f32.mrf.mxu0
        %v7154 = vadd.f32 %v7041, %v7153
        %7155 = vdwg.mxu0
        %v7156 = vadd.f32 %v7078, %v7080
        %7157 = vadd.xlane.f32.xlu0 %v7156
        %v7158 = vpop.xlane.xlu0 %7157
        %v7159 = vadd.f32 %v7082, %v7084
        %7160 = vadd.xlane.f32.xlu0 %v7159
        %v7161 = vpop.xlane.xlu0 %7160
        %v7162 = vadd.f32 %v7088, %v7090
        %7163 = vadd.xlane.f32.xlu0 %v7162
        %v7164 = vpop.xlane.xlu0 %7163
        %v7165 = vadd.f32 %v7092, %v7094
        %7166 = vadd.xlane.f32.xlu0 %v7165
        %v7167 = vpop.xlane.xlu0 %7166
        %v7168 = vadd.f32 %v7098, %v7100
        %7169 = vadd.xlane.f32.xlu0 %v7168
        %v7170 = vpop.xlane.xlu0 %7169
        %v7171 = vadd.f32 %v7102, %v7104
        %7172 = vadd.xlane.f32.xlu0 %v7171
        %v7173 = vpop.xlane.xlu0 %7172
        %v7174 = vadd.f32 %v7108, %v7110
        %7175 = vadd.xlane.f32.xlu0 %v7174
        %v7176 = vpop.xlane.xlu0 %7175
        %v7177 = vadd.f32 %v7112, %v7114
        %7178 = vadd.xlane.f32.xlu0 %v7177
        %v7179 = vpop.xlane.xlu0 %7178
        %v7180 = vadd.f32 %v7118, %v7120
        %7181 = vadd.xlane.f32.xlu0 %v7180
        %v7182 = vpop.xlane.xlu0 %7181
        %v7183 = vadd.f32 %v7122, %v7124
        %7184 = vadd.xlane.f32.xlu0 %v7183
        %v7185 = vpop.xlane.xlu0 %7184
        %v7186 = vadd.f32 %v7128, %v7130
        %7187 = vadd.xlane.f32.xlu0 %v7186
        %v7188 = vpop.xlane.xlu0 %7187
        %v7189 = vadd.f32 %v7132, %v7134
        %7190 = vadd.xlane.f32.xlu0 %v7189
        %v7191 = vpop.xlane.xlu0 %7190
        %v7192 = vadd.f32 %v7138, %v7140
        %7193 = vadd.xlane.f32.xlu0 %v7192
        %v7194 = vpop.xlane.xlu0 %7193
        %v7195 = vadd.f32 %v7142, %v7144
        %7196 = vadd.xlane.f32.xlu0 %v7195
        %v7197 = vpop.xlane.xlu0 %7196
        %v7198 = vadd.f32 %v7148, %v7150
        %7199 = vadd.xlane.f32.xlu0 %v7198
        %v7200 = vpop.xlane.xlu0 %7199
        %v7201 = vadd.f32 %v7152, %v7154
        %7202 = vadd.xlane.f32.xlu0 %v7201
        %v7203 = vpop.xlane.xlu0 %7202
        %v7204 = vmul.f32 %v7158, %v5465
        %v7205 = vmul.f32 %v7161, %v5465
        %v7206 = vmul.f32 %v7164, %v5465
        %v7207 = vmul.f32 %v7167, %v5465
        %v7208 = vmul.f32 %v7170, %v5465
        %v7209 = vmul.f32 %v7173, %v5465
        %v7210 = vmul.f32 %v7176, %v5465
        %v7211 = vmul.f32 %v7179, %v5465
        %v7212 = vmul.f32 %v7182, %v5465
        %v7213 = vmul.f32 %v7185, %v5465
        %v7214 = vmul.f32 %v7188, %v5465
        %v7215 = vmul.f32 %v7191, %v5465
        %v7216 = vmul.f32 %v7194, %v5465
        %v7217 = vmul.f32 %v7197, %v5465
        %v7218 = vmul.f32 %v7200, %v5465
        %v7219 = vmul.f32 %v7203, %v5465
        %v7220 = vsub.f32 %v7078, %v7204
        %v7221 = vsub.f32 %v7080, %v7204
        %v7222 = vsub.f32 %v7082, %v7205
        %v7223 = vsub.f32 %v7084, %v7205
        %v7224 = vsub.f32 %v7088, %v7206
        %v7225 = vsub.f32 %v7090, %v7206
        %v7226 = vsub.f32 %v7092, %v7207
        %v7227 = vsub.f32 %v7094, %v7207
        %v7228 = vsub.f32 %v7098, %v7208
        %v7229 = vsub.f32 %v7100, %v7208
        %v7230 = vsub.f32 %v7102, %v7209
        %v7231 = vsub.f32 %v7104, %v7209
        %v7232 = vsub.f32 %v7108, %v7210
        %v7233 = vsub.f32 %v7110, %v7210
        %v7234 = vsub.f32 %v7112, %v7211
        %v7235 = vsub.f32 %v7114, %v7211
        %v7236 = vsub.f32 %v7118, %v7212
        %v7237 = vsub.f32 %v7120, %v7212
        %v7238 = vsub.f32 %v7122, %v7213
        %v7239 = vsub.f32 %v7124, %v7213
        %v7240 = vsub.f32 %v7128, %v7214
        %v7241 = vsub.f32 %v7130, %v7214
        %v7242 = vsub.f32 %v7132, %v7215
        %v7243 = vsub.f32 %v7134, %v7215
        %v7244 = vsub.f32 %v7138, %v7216
        %v7245 = vsub.f32 %v7140, %v7216
        %v7246 = vsub.f32 %v7142, %v7217
        %v7247 = vsub.f32 %v7144, %v7217
        %v7248 = vsub.f32 %v7148, %v7218
        %v7249 = vsub.f32 %v7150, %v7218
        %v7250 = vsub.f32 %v7152, %v7219
        %v7251 = vsub.f32 %v7154, %v7219
        %v7252 = vmul.f32 %v7220, %v7220
        %v7253 = vmul.f32 %v7221, %v7221
        %v7254 = vmul.f32 %v7222, %v7222
        %v7255 = vmul.f32 %v7223, %v7223
        %v7256 = vmul.f32 %v7224, %v7224
        %v7257 = vmul.f32 %v7225, %v7225
        %v7258 = vmul.f32 %v7226, %v7226
        %v7259 = vmul.f32 %v7227, %v7227
        %v7260 = vmul.f32 %v7228, %v7228
        %v7261 = vmul.f32 %v7229, %v7229
        %v7262 = vmul.f32 %v7230, %v7230
        %v7263 = vmul.f32 %v7231, %v7231
        %v7264 = vmul.f32 %v7232, %v7232
        %v7265 = vmul.f32 %v7233, %v7233
        %v7266 = vmul.f32 %v7234, %v7234
        %v7267 = vmul.f32 %v7235, %v7235
        %v7268 = vmul.f32 %v7236, %v7236
        %v7269 = vmul.f32 %v7237, %v7237
        %v7270 = vmul.f32 %v7238, %v7238
        %v7271 = vmul.f32 %v7239, %v7239
        %v7272 = vmul.f32 %v7240, %v7240
        %v7273 = vmul.f32 %v7241, %v7241
        %v7274 = vmul.f32 %v7242, %v7242
        %v7275 = vmul.f32 %v7243, %v7243
        %v7276 = vmul.f32 %v7244, %v7244
        %v7277 = vmul.f32 %v7245, %v7245
        %v7278 = vmul.f32 %v7246, %v7246
        %v7279 = vmul.f32 %v7247, %v7247
        %v7280 = vmul.f32 %v7248, %v7248
        %v7281 = vmul.f32 %v7249, %v7249
        %v7282 = vmul.f32 %v7250, %v7250
        %v7283 = vmul.f32 %v7251, %v7251
        %v7284 = vadd.f32 %v7252, %v7253
        %7285 = vadd.xlane.f32.xlu0 %v7284
        %v7286 = vpop.xlane.xlu0 %7285
        %v7287 = vadd.f32 %v7254, %v7255
        %7288 = vadd.xlane.f32.xlu0 %v7287
        %v7289 = vpop.xlane.xlu0 %7288
        %v7290 = vadd.f32 %v7256, %v7257
        %7291 = vadd.xlane.f32.xlu0 %v7290
        %v7292 = vpop.xlane.xlu0 %7291
        %v7293 = vadd.f32 %v7258, %v7259
        %7294 = vadd.xlane.f32.xlu0 %v7293
        %v7295 = vpop.xlane.xlu0 %7294
        %v7296 = vadd.f32 %v7260, %v7261
        %7297 = vadd.xlane.f32.xlu0 %v7296
        %v7298 = vpop.xlane.xlu0 %7297
        %v7299 = vadd.f32 %v7262, %v7263
        %7300 = vadd.xlane.f32.xlu0 %v7299
        %v7301 = vpop.xlane.xlu0 %7300
        %v7302 = vadd.f32 %v7264, %v7265
        %7303 = vadd.xlane.f32.xlu0 %v7302
        %v7304 = vpop.xlane.xlu0 %7303
        %v7305 = vadd.f32 %v7266, %v7267
        %7306 = vadd.xlane.f32.xlu0 %v7305
        %v7307 = vpop.xlane.xlu0 %7306
        %v7308 = vadd.f32 %v7268, %v7269
        %7309 = vadd.xlane.f32.xlu0 %v7308
        %v7310 = vpop.xlane.xlu0 %7309
        %v7311 = vadd.f32 %v7270, %v7271
        %7312 = vadd.xlane.f32.xlu0 %v7311
        %v7313 = vpop.xlane.xlu0 %7312
        %v7314 = vadd.f32 %v7272, %v7273
        %7315 = vadd.xlane.f32.xlu0 %v7314
        %v7316 = vpop.xlane.xlu0 %7315
        %v7317 = vadd.f32 %v7274, %v7275
        %7318 = vadd.xlane.f32.xlu0 %v7317
        %v7319 = vpop.xlane.xlu0 %7318
        %v7320 = vadd.f32 %v7276, %v7277
        %7321 = vadd.xlane.f32.xlu0 %v7320
        %v7322 = vpop.xlane.xlu0 %7321
        %v7323 = vadd.f32 %v7278, %v7279
        %7324 = vadd.xlane.f32.xlu0 %v7323
        %v7325 = vpop.xlane.xlu0 %7324
        %v7326 = vadd.f32 %v7280, %v7281
        %7327 = vadd.xlane.f32.xlu0 %v7326
        %v7328 = vpop.xlane.xlu0 %7327
        %v7329 = vadd.f32 %v7282, %v7283
        %7330 = vadd.xlane.f32.xlu0 %v7329
        %v7331 = vpop.xlane.xlu0 %7330
        %v7332 = vmul.f32 %v7286, %v5465
        %v7333 = vmul.f32 %v7289, %v5465
        %v7334 = vmul.f32 %v7292, %v5465
        %v7335 = vmul.f32 %v7295, %v5465
        %v7336 = vmul.f32 %v7298, %v5465
        %v7337 = vmul.f32 %v7301, %v5465
        %v7338 = vmul.f32 %v7304, %v5465
        %v7339 = vmul.f32 %v7307, %v5465
        %v7340 = vmul.f32 %v7310, %v5465
        %v7341 = vmul.f32 %v7313, %v5465
        %v7342 = vmul.f32 %v7316, %v5465
        %v7343 = vmul.f32 %v7319, %v5465
        %v7344 = vmul.f32 %v7322, %v5465
        %v7345 = vmul.f32 %v7325, %v5465
        %v7346 = vmul.f32 %v7328, %v5465
        %v7347 = vmul.f32 %v7331, %v5465
        %v7348 = vadd.f32 %v7332, 1e-05
        %v7349 = vadd.f32 %v7333, 1e-05
        %v7350 = vadd.f32 %v7334, 1e-05
        %v7351 = vadd.f32 %v7335, 1e-05
        %v7352 = vadd.f32 %v7336, 1e-05
        %v7353 = vadd.f32 %v7337, 1e-05
        %v7354 = vadd.f32 %v7338, 1e-05
        %v7355 = vadd.f32 %v7339, 1e-05
        %v7356 = vadd.f32 %v7340, 1e-05
        %v7357 = vadd.f32 %v7341, 1e-05
        %v7358 = vadd.f32 %v7342, 1e-05
        %v7359 = vadd.f32 %v7343, 1e-05
        %v7360 = vadd.f32 %v7344, 1e-05
        %v7361 = vadd.f32 %v7345, 1e-05
        %v7362 = vadd.f32 %v7346, 1e-05
        %v7363 = vadd.f32 %v7347, 1e-05
        %v7364 = vrsqrt.pop %v7348
        %v7365 = vrsqrt.pop %v7349
        %v7366 = vrsqrt.pop %v7350
        %v7367 = vrsqrt.pop %v7351
        %v7368 = vrsqrt.pop %v7352
        %v7369 = vrsqrt.pop %v7353
        %v7370 = vrsqrt.pop %v7354
        %v7371 = vrsqrt.pop %v7355
        %v7372 = vrsqrt.pop %v7356
        %v7373 = vrsqrt.pop %v7357
        %v7374 = vrsqrt.pop %v7358
        %v7375 = vrsqrt.pop %v7359
        %v7376 = vrsqrt.pop %v7360
        %v7377 = vrsqrt.pop %v7361
        %v7378 = vrsqrt.pop %v7362
        %v7379 = vrsqrt.pop %v7363
        %v7380 = vmul.f32 %v7220, %v7364
        %v7381 = vmul.f32 %v7221, %v7364
        %v7382 = vmul.f32 %v7222, %v7365
        %v7383 = vmul.f32 %v7223, %v7365
        %v7384 = vmul.f32 %v7224, %v7366
        %v7385 = vmul.f32 %v7225, %v7366
        %v7386 = vmul.f32 %v7226, %v7367
        %v7387 = vmul.f32 %v7227, %v7367
        %v7388 = vmul.f32 %v7228, %v7368
        %v7389 = vmul.f32 %v7229, %v7368
        %v7390 = vmul.f32 %v7230, %v7369
        %v7391 = vmul.f32 %v7231, %v7369
        %v7392 = vmul.f32 %v7232, %v7370
        %v7393 = vmul.f32 %v7233, %v7370
        %v7394 = vmul.f32 %v7234, %v7371
        %v7395 = vmul.f32 %v7235, %v7371
        %v7396 = vmul.f32 %v7236, %v7372
        %v7397 = vmul.f32 %v7237, %v7372
        %v7398 = vmul.f32 %v7238, %v7373
        %v7399 = vmul.f32 %v7239, %v7373
        %v7400 = vmul.f32 %v7240, %v7374
        %v7401 = vmul.f32 %v7241, %v7374
        %v7402 = vmul.f32 %v7242, %v7375
        %v7403 = vmul.f32 %v7243, %v7375
        %v7404 = vmul.f32 %v7244, %v7376
        %v7405 = vmul.f32 %v7245, %v7376
        %v7406 = vmul.f32 %v7246, %v7377
        %v7407 = vmul.f32 %v7247, %v7377
        %v7408 = vmul.f32 %v7248, %v7378
        %v7409 = vmul.f32 %v7249, %v7378
        %v7410 = vmul.f32 %v7250, %v7379
        %v7411 = vmul.f32 %v7251, %v7379
        %v7413 = vlaneseq
        %v7414 = vshrl.u32 %v7413, 7
        %v7415 = vsub.s32 0, %v7414
        %v7416 = vrot.slane %v466, %v7415
        %v7417 = vlaneseq
        %v7418 = vshrl.u32 %v7417, 7
        %v7419 = vsub.s32 1, %v7418
        %v7420 = vrot.slane %v466, %v7419
        %v7423 = vmul.f32 %v7380, %v7416
        %v7424 = vmul.f32 %v7381, %v7420
        %v7425 = vmul.f32 %v7382, %v7416
        %v7426 = vmul.f32 %v7383, %v7420
        %v7427 = vmul.f32 %v7384, %v7416
        %v7428 = vmul.f32 %v7385, %v7420
        %v7429 = vmul.f32 %v7386, %v7416
        %v7430 = vmul.f32 %v7387, %v7420
        %v7431 = vmul.f32 %v7388, %v7416
        %v7432 = vmul.f32 %v7389, %v7420
        %v7433 = vmul.f32 %v7390, %v7416
        %v7434 = vmul.f32 %v7391, %v7420
        %v7435 = vmul.f32 %v7392, %v7416
        %v7436 = vmul.f32 %v7393, %v7420
        %v7437 = vmul.f32 %v7394, %v7416
        %v7438 = vmul.f32 %v7395, %v7420
        %v7439 = vmul.f32 %v7396, %v7416
        %v7440 = vmul.f32 %v7397, %v7420
        %v7441 = vmul.f32 %v7398, %v7416
        %v7442 = vmul.f32 %v7399, %v7420
        %v7443 = vmul.f32 %v7400, %v7416
        %v7444 = vmul.f32 %v7401, %v7420
        %v7445 = vmul.f32 %v7402, %v7416
        %v7446 = vmul.f32 %v7403, %v7420
        %v7447 = vmul.f32 %v7404, %v7416
        %v7448 = vmul.f32 %v7405, %v7420
        %v7449 = vmul.f32 %v7406, %v7416
        %v7450 = vmul.f32 %v7407, %v7420
        %v7451 = vmul.f32 %v7408, %v7416
        %v7452 = vmul.f32 %v7409, %v7420
        %v7453 = vmul.f32 %v7410, %v7416
        %v7454 = vmul.f32 %v7411, %v7420
        %v7455 = vadd.f32 %v5760, %v7423
        %v7456 = vadd.f32 %v5761, %v7424
        %v7457 = vadd.f32 %v5762, %v7425
        %v7458 = vadd.f32 %v5763, %v7426
        %v7459 = vadd.f32 %v5764, %v7427
        %v7460 = vadd.f32 %v5765, %v7428
        %v7461 = vadd.f32 %v5766, %v7429
        %v7462 = vadd.f32 %v5767, %v7430
        %v7463 = vadd.f32 %v5768, %v7431
        %v7464 = vadd.f32 %v5769, %v7432
        %v7465 = vadd.f32 %v5770, %v7433
        %v7466 = vadd.f32 %v5771, %v7434
        %v7467 = vadd.f32 %v5772, %v7435
        %v7468 = vadd.f32 %v5773, %v7436
        %v7469 = vadd.f32 %v5774, %v7437
        %v7470 = vadd.f32 %v5775, %v7438
        %v7471 = vadd.f32 %v5776, %v7439
        %v7472 = vadd.f32 %v5777, %v7440
        %v7473 = vadd.f32 %v5778, %v7441
        %v7474 = vadd.f32 %v5779, %v7442
        %v7475 = vadd.f32 %v5780, %v7443
        %v7476 = vadd.f32 %v5781, %v7444
        %v7477 = vadd.f32 %v5782, %v7445
        %v7478 = vadd.f32 %v5783, %v7446
        %v7479 = vadd.f32 %v5784, %v7447
        %v7480 = vadd.f32 %v5785, %v7448
        %v7481 = vadd.f32 %v5786, %v7449
        %v7482 = vadd.f32 %v5787, %v7450
        %v7483 = vadd.f32 %v5788, %v7451
        %v7484 = vadd.f32 %v5789, %v7452
        %v7485 = vadd.f32 %v5790, %v7453
        %v7486 = vadd.f32 %v5791, %v7454
        %v7488 = vlaneseq
        %v7489 = vshrl.u32 %v7488, 7
        %v7490 = vsub.s32 0, %v7489
        %v7491 = vrot.slane %v467, %v7490
        %v7492 = vlaneseq
        %v7493 = vshrl.u32 %v7492, 7
        %v7494 = vsub.s32 1, %v7493
        %v7495 = vrot.slane %v467, %v7494
        %v7498 = vadd.f32 %v7455, %v7491
        %v7499 = vadd.f32 %v7456, %v7495
        %v7500 = vadd.f32 %v7457, %v7491
        %v7501 = vadd.f32 %v7458, %v7495
        %v7502 = vadd.f32 %v7459, %v7491
        %v7503 = vadd.f32 %v7460, %v7495
        %v7504 = vadd.f32 %v7461, %v7491
        %v7505 = vadd.f32 %v7462, %v7495
        %v7506 = vadd.f32 %v7463, %v7491
        %v7507 = vadd.f32 %v7464, %v7495
        %v7508 = vadd.f32 %v7465, %v7491
        %v7509 = vadd.f32 %v7466, %v7495
        %v7510 = vadd.f32 %v7467, %v7491
        %v7511 = vadd.f32 %v7468, %v7495
        %v7512 = vadd.f32 %v7469, %v7491
        %v7513 = vadd.f32 %v7470, %v7495
        %v7514 = vadd.f32 %v7471, %v7491
        %v7515 = vadd.f32 %v7472, %v7495
        %v7516 = vadd.f32 %v7473, %v7491
        %v7517 = vadd.f32 %v7474, %v7495
        %v7518 = vadd.f32 %v7475, %v7491
        %v7519 = vadd.f32 %v7476, %v7495
        %v7520 = vadd.f32 %v7477, %v7491
        %v7521 = vadd.f32 %v7478, %v7495
        %v7522 = vadd.f32 %v7479, %v7491
        %v7523 = vadd.f32 %v7480, %v7495
        %v7524 = vadd.f32 %v7481, %v7491
        %v7525 = vadd.f32 %v7482, %v7495
        %v7526 = vadd.f32 %v7483, %v7491
        %v7527 = vadd.f32 %v7484, %v7495
        %v7528 = vadd.f32 %v7485, %v7491
        %v7529 = vadd.f32 %v7486, %v7495
        %7530 = vst [vmem:[#allocation2] sm:$0xff] %v7498
        %7531 = vst [vmem:[#allocation2 + $0x8] sm:$0xff] %v7499
        %7532 = vst [vmem:[#allocation2 + $0x10] sm:$0xff] %v7500
        %7533 = vst [vmem:[#allocation2 + $0x18] sm:$0xff] %v7501
        %7534 = vst [vmem:[#allocation2 + $0x20] sm:$0xff] %v7502
        %7535 = vst [vmem:[#allocation2 + $0x28] sm:$0xff] %v7503
        %7536 = vst [vmem:[#allocation2 + $0x30] sm:$0xff] %v7504
        %7537 = vst [vmem:[#allocation2 + $0x38] sm:$0xff] %v7505
        %7538 = vst [vmem:[#allocation2 + $0x40] sm:$0xff] %v7506
        %7539 = vst [vmem:[#allocation2 + $0x48] sm:$0xff] %v7507
        %7540 = vst [vmem:[#allocation2 + $0x50] sm:$0xff] %v7508
        %7541 = vst [vmem:[#allocation2 + $0x58] sm:$0xff] %v7509
        %7542 = vst [vmem:[#allocation2 + $0x60] sm:$0xff] %v7510
        %7543 = vst [vmem:[#allocation2 + $0x68] sm:$0xff] %v7511
        %7544 = vst [vmem:[#allocation2 + $0x70] sm:$0xff] %v7512
        %7545 = vst [vmem:[#allocation2 + $0x78] sm:$0xff] %v7513
        %7546 = vst [vmem:[#allocation2 + $0x80] sm:$0xff] %v7514
        %7547 = vst [vmem:[#allocation2 + $0x88] sm:$0xff] %v7515
        %7548 = vst [vmem:[#allocation2 + $0x90] sm:$0xff] %v7516
        %7549 = vst [vmem:[#allocation2 + $0x98] sm:$0xff] %v7517
        %7550 = vst [vmem:[#allocation2 + $0xa0] sm:$0xff] %v7518
        %7551 = vst [vmem:[#allocation2 + $0xa8] sm:$0xff] %v7519
        %7552 = vst [vmem:[#allocation2 + $0xb0] sm:$0xff] %v7520
        %7553 = vst [vmem:[#allocation2 + $0xb8] sm:$0xff] %v7521
        %7554 = vst [vmem:[#allocation2 + $0xc0] sm:$0xff] %v7522
        %7555 = vst [vmem:[#allocation2 + $0xc8] sm:$0xff] %v7523
        %7556 = vst [vmem:[#allocation2 + $0xd0] sm:$0xff] %v7524
        %7557 = vst [vmem:[#allocation2 + $0xd8] sm:$0xff] %v7525
        %7558 = vst [vmem:[#allocation2 + $0xe0] sm:$0xff] %v7526
        %7559 = vst [vmem:[#allocation2 + $0xe8] sm:$0xff] %v7527
        %7560 = vst [vmem:[#allocation2 + $0xf0] sm:$0xff] %v7528
        %7561 = vst [vmem:[#allocation2 + $0xf8] sm:$0xff] %v7529
        %p7562 = scmp.eq.s32.totalorder %s25, 1
        // Predicated region
        $region49: #{encoder_forward.1} parent=43 // pred_check
          %p7563 = pneg %p7562
        $region50: #{encoder_forward.1} parent=43 // pred_check_branch
          %7565 = sbr.rel (%p7563) target = $region52
        $region51: #{encoder_forward.1} parent=43 // pred_region
          %7566 = vst [vmem:[%s329] sm:$0xff] %v7498
          %7567 = vst [vmem:[%s329 + $0x8] sm:$0xff] %v7499
          %7568 = vst [vmem:[%s329 + $0x10] sm:$0xff] %v7500
          %7569 = vst [vmem:[%s329 + $0x18] sm:$0xff] %v7501
          %7570 = vst [vmem:[%s329 + $0x20] sm:$0xff] %v7502
          %7571 = vst [vmem:[%s329 + $0x28] sm:$0xff] %v7503
          %7572 = vst [vmem:[%s329 + $0x30] sm:$0xff] %v7504
          %7573 = vst [vmem:[%s329 + $0x38] sm:$0xff] %v7505
          %7574 = vst [vmem:[%s329 + $0x40] sm:$0xff] %v7506
          %7575 = vst [vmem:[%s329 + $0x48] sm:$0xff] %v7507
          %7576 = vst [vmem:[%s329 + $0x50] sm:$0xff] %v7508
          %7577 = vst [vmem:[%s329 + $0x58] sm:$0xff] %v7509
          %7578 = vst [vmem:[%s329 + $0x60] sm:$0xff] %v7510
          %7579 = vst [vmem:[%s329 + $0x68] sm:$0xff] %v7511
          %7580 = vst [vmem:[%s329 + $0x70] sm:$0xff] %v7512
          %7581 = vst [vmem:[%s329 + $0x78] sm:$0xff] %v7513
          %7582 = vst [vmem:[%s329 + $0x80] sm:$0xff] %v7514
          %7583 = vst [vmem:[%s329 + $0x88] sm:$0xff] %v7515
          %7584 = vst [vmem:[%s329 + $0x90] sm:$0xff] %v7516
          %7585 = vst [vmem:[%s329 + $0x98] sm:$0xff] %v7517
          %7586 = vst [vmem:[%s329 + $0xa0] sm:$0xff] %v7518
          %7587 = vst [vmem:[%s329 + $0xa8] sm:$0xff] %v7519
          %7588 = vst [vmem:[%s329 + $0xb0] sm:$0xff] %v7520
          %7589 = vst [vmem:[%s329 + $0xb8] sm:$0xff] %v7521
          %7590 = vst [vmem:[%s329 + $0xc0] sm:$0xff] %v7522
          %7591 = vst [vmem:[%s329 + $0xc8] sm:$0xff] %v7523
          %7592 = vst [vmem:[%s329 + $0xd0] sm:$0xff] %v7524
          %7593 = vst [vmem:[%s329 + $0xd8] sm:$0xff] %v7525
          %7594 = vst [vmem:[%s329 + $0xe0] sm:$0xff] %v7526
          %7595 = vst [vmem:[%s329 + $0xe8] sm:$0xff] %v7527
          %7596 = vst [vmem:[%s329 + $0xf0] sm:$0xff] %v7528
          %7597 = vst [vmem:[%s329 + $0xf8] sm:$0xff] %v7529
        $region52: #{encoder_forward.1} parent=43 // pred_fallthru
          _
        %s7598 = sand.u32 %s196, 1
        %s7599 = scalar_lea.sflag [#allocation4], %s7598
        %s7600 = sand.u32 %s196, 1
        %s7601 = smul.addr %s7600, 256
        %s7602 = scalar_lea.vmem [#allocation3], %s7601
        // Predicated region
        $region53: #{encoder_forward.1} parent=43 // pred_check
          %p7603 = pneg %p206
        $region54: #{encoder_forward.1} parent=43 // pred_check_branch
          %7605 = sbr.rel (%p7603) target = $region56
        $region55: #{encoder_forward.1} parent=43 // pred_region
          %s7607 = ssub.s32 4096, 4096
          %7608 = vsyncadd %s7599, %s7607
          %s7609 = smul.addr %s24, 32
          %s7610 = smul.addr %s7609, 128
          %s7611 = scalar_lea.hbm %s6, %s7610
          %s7612 = sshll.u32 %s7602, 4
          %s7613 = int_to_ptr.vmem [resolvable:$true] %s7612
          %7618 = dma.vmem_to_hbm [thread:$0]  %s7613, 4096, %s7611, %s7599, 256, 256, 16
        $region56: #{encoder_forward.1} parent=43 // pred_fallthru
          _
      $region44: #{encoder_forward.1} parent=5 // pred_fallthru
        _
      %p7619 = scmp.le.s32.totalorder 2, %s15
      // Predicated region
      $region57: #{encoder_forward.1} parent=5 // pred_check
        %p7620 = pneg %p7619
      $region58: #{encoder_forward.1} parent=5 // pred_check_branch
        %7622 = sbr.rel (%p7620) target = $region60
      $region59: #{encoder_forward.1} parent=5 // pred_region
        %s7623 = ssub.s32 %s15, 2
        // Predicated region
        $region61: #{encoder_forward.1} parent=59 // pred_check
          %p7624 = pneg %p212
        $region62: #{encoder_forward.1} parent=59 // pred_check_branch
          %7626 = sbr.rel (%p7624) target = $region64
        $region63: #{encoder_forward.1} parent=59 // pred_region
          %s7627 = sand.u32 %s197, 1
          %s7628 = scalar_lea.sflag [#allocation4], %s7627
          %s7629 = sand.u32 %s197, 1
          %s7630 = smul.addr %s7629, 256
          %s7631 = scalar_lea.vmem [#allocation3], %s7630
          %7632 = dma.done %s7628, 4096
        $region64: #{encoder_forward.1} parent=59 // pred_fallthru
          _
      $region60: #{encoder_forward.1} parent=5 // pred_fallthru
        _
    $region6: #{encoder_forward.1} parent=1 // loop_footer
      %s19 = sadd.s32 1, %s15
    $region7: #{encoder_forward.1} parent=1 // loop_footer_branch
      %14 = sbr.rel target = $region3
    $region8: #{encoder_forward.1} parent=1 // loop_exit
      _
    %7633 = vsyncpa [#allocation4], 1
    %s7634 = scalar_lea.sflag [#allocation4], 1
    %7635 = vsyncpa %s7634, 1

</llo_original>
